<compile_context>
chip_gen: v6e
topology: v6e:2x2x1
jax: 0.10.0
libtpu: 0.0.40
codegen_flags: <defaults>
</compile_context>

<pallas_src>
import numpy as np
import jax
import jax.numpy as jnp
from jax.experimental import pallas as pl
from jax.experimental.pallas import tpu as pltpu

NEG_SLOPE = 0.01     # LeakyReLU default negative_slope
IN_EPS = 1e-5        # torch InstanceNorm default eps

# bf16 is MXU-native on v5e/v6e/v7x; f32 matmuls lower to ~3 bf16 passes.
MXU_DTYPE = jnp.bfloat16

# --------------------------- model configuration ---------------------------
SPATIAL_DIMS = 2
NUM_INPUT_CHANNELS = 4
LAYER_CHANNELS = [8, 16, 32]
KERNEL_SIZES = [3, 3]
STRIDES = [2, 2]
NUM_LAYERS = len(LAYER_CHANNELS) - 1


def init_params(key):
    params = {"encode": [], "decode": []}
    keys = jax.random.split(key, 2 * NUM_LAYERS)
    ki = 0
    # encode_layers: BasicConvLayer(in->out, k, stride = 1 if i==0 else strides[i-1])
    for i in range(NUM_LAYERS):
        cin = NUM_INPUT_CHANNELS if i == 0 else LAYER_CHANNELS[i - 1]
        cout = LAYER_CHANNELS[i]
        k = KERNEL_SIZES[i]
        s = 1 if i == 0 else STRIDES[i - 1]
        kw_, kb_ = jax.random.split(keys[ki]); ki += 1
        w = jax.random.normal(kw_, (cout, cin, k, k), jnp.float32) / np.sqrt(cin * k * k)
        b = jax.random.normal(kb_, (cout,), jnp.float32) * 0.01
        params["encode"].append((w, b, s))
    # decode_layers: UNetUpLayer(spatial, layer_channels[i+1], layer_channels[i], k_i, s_i)
    for i in range(NUM_LAYERS):
        cin = LAYER_CHANNELS[i + 1]
        cout = LAYER_CHANNELS[i]
        k = KERNEL_SIZES[i]
        s = STRIDES[i]
        k1, k2, k3, k4 = jax.random.split(keys[ki], 4); ki += 1
        wt = jax.random.normal(k1, (cin, cout, s, s), jnp.float32) / np.sqrt(cin * s * s)
        bt = jax.random.normal(k2, (cout,), jnp.float32) * 0.01
        wc = jax.random.normal(k3, (cout, 2 * cout, k, k), jnp.float32) / np.sqrt(2 * cout * k * k)
        bc = jax.random.normal(k4, (cout,), jnp.float32) * 0.01
        params["decode"].append((wt, bt, wc, bc, s))
    return params


# ------------------------ host-side layout utilities ------------------------

def _pad_flat(a):
    """(B, C, h, w) NCHW -> (B, C, (h+2)*(w+2)) padded-flat (zero ring, lane-dense)."""
    b, c, h, w = a.shape
    return jnp.pad(a, ((0, 0), (0, 0), (1, 1), (1, 1))).reshape(b, c, (h + 2) * (w + 2))


def _pad_flat_margin(a):
    """padded-flat plus zero lane margins of width m=w+3 on each side so all nine
    3x3 tap slices can be read in place without any in-kernel restaging."""
    b, c, h, w = a.shape
    m = w + 3
    return jnp.pad(_pad_flat(a), ((0, 0), (0, 0), (m, m)))


def _conv_wtaps(w):
    """(Cout, Cin, 3, 3) -> (9, Cout, Cin); tap index t = (dh+1)*3 + (dw+1)."""
    co, ci, kh, kw = w.shape
    return jnp.transpose(w, (2, 3, 0, 1)).reshape(kh * kw, co, ci).astype(MXU_DTYPE)


def _tconv_wmat(w):
    """(Cin, Cout, s, s) -> (s*s, Cout, Cin); leading index = di*s + dj."""
    ci, co, s, _ = w.shape
    return jnp.transpose(w, (2, 3, 1, 0)).reshape(s * s, co, ci).astype(MXU_DTYPE)


def _interior_mask(h, w):
    m = np.zeros((h + 2, w + 2), np.float32)
    m[1:h + 1, 1:w + 1] = 1.0
    return jnp.asarray(m.reshape(1, -1))


def _down_matrix(h, w, s):
    """0/1 selection: full-res padded-flat conv output -> strided-conv padded-flat output."""
    ho, wo = (h - 1) // s + 1, (w - 1) // s + 1
    d = np.zeros(((h + 2) * (w + 2), (ho + 2) * (wo + 2)), np.float32)
    for i in range(ho):
        for j in range(wo):
            d[(s * i + 1) * (w + 2) + (s * j + 1), (i + 1) * (wo + 2) + (j + 1)] = 1.0
    return jnp.asarray(d).astype(MXU_DTYPE)      # 0/1 entries are exact in bf16


def _up_matrices(h, w, s):
    """Per-phase 0/1 scatter: padded-flat (h,w) -> padded-flat (h*s, w*s)."""
    hu, wu = h * s, w * s
    u = np.zeros((s * s, (h + 2) * (w + 2), (hu + 2) * (wu + 2)), np.float32)
    for di in range(s):
        for dj in range(s):
            g = di * s + dj
            for i in range(h):
                for j in range(w):
                    u[g, (i + 1) * (w + 2) + (j + 1),
                         (s * i + di + 1) * (wu + 2) + (s * j + dj + 1)] = 1.0
    return jnp.asarray(u).astype(MXU_DTYPE)


# ------------------------------ fused forward -------------------------------

def full_res_adapter_forward(params, backbone_feature_maps, x_in):
    """Mirrors FullResAdapter.forward; all interface tensors are NCHW (PyTorch)."""
    # TODO(synk): `inner` is an arbitrary injected nn.Module; modeled as identity.
    assert SPATIAL_DIMS == 2
    assert all(int(k) == 3 for k in KERNEL_SIZES), "padded-flat layout assumes k=3, pad=1"

    ret = list(backbone_feature_maps)
    B, _, H, W = x_in.shape
    f0 = ret[-1]
    _, c_deep, h_deep, w_deep = f0.shape

    # ------------------------------ static plan ------------------------------
    enc_plan, h, w, cin = [], H, W, x_in.shape[1]
    for i in range(NUM_LAYERS):
        s = 1 if i == 0 else STRIDES[i - 1]
        ho, wo = (h - 1) // s + 1, (w - 1) // s + 1
        enc_plan.append(dict(cin=cin, cout=LAYER_CHANNELS[i], s=s,
                             hin=h, win=w, hout=ho, wout=wo))
        h, w, cin = ho, wo, LAYER_CHANNELS[i]

    dec_plan, h, w, cin = [], h_deep, w_deep, c_deep
    for t in range(NUM_LAYERS):
        i = NUM_LAYERS - 1 - t
        s, cout = STRIDES[i], LAYER_CHANNELS[i]
        hu, wu = h * s, w * s
        assert cin == LAYER_CHANNELS[i + 1]
        assert (hu, wu) == (enc_plan[i]['hout'], enc_plan[i]['wout'])
        dec_plan.append(dict(cin=cin, cout=cout, s=s, hin=h, win=w, hout=hu, wout=wu))
        h, w, cin = hu, wu, cout

    # ---------------------------- kernel operands ----------------------------
    operands, in_specs = [], []

    def _shared_map(nd):
        return lambda b: (0,) * nd

    def _batched_map(nd):
        return lambda b: (b,) + (0,) * (nd - 1)

    def _add(arr, batched=False):
        idx = len(operands)
        operands.append(arr)
        if batched:
            in_specs.append(pl.BlockSpec((1,) + tuple(arr.shape[1:]),
                                         _batched_map(arr.ndim)))
        else:
            in_specs.append(pl.BlockSpec(tuple(arr.shape), _shared_map(arr.ndim)))
        return idx

    x_idx = _add(_pad_flat_margin(x_in).astype(MXU_DTYPE), batched=True)
    f0_idx = _add(_pad_flat(f0).astype(MXU_DTYPE), batched=True)

    mask_idx = {}

    def _mask(hh, ww):
        if (hh, ww) not in mask_idx:
            mask_idx[(hh, ww)] = _add(_interior_mask(hh, ww))

    for lp, (wgt, _bias, _s) in zip(enc_plan, params["encode"]):
        lp['w_idx'] = _add(_conv_wtaps(wgt))       # conv bias dropped: non-affine IN cancels it
        if lp['s'] > 1:
            # TODO(synk): at real full-res, replace this dense O(P_in*P_out) selection
            # with strided tap staging (pl.ds(..., stride=s)); at 16x16 it is tiny.
            lp['d_idx'] = _add(_down_matrix(lp['hin'], lp['win'], lp['s']))
        _mask(lp['hout'], lp['wout'])

    for dp, (wt, bt, wc, _bc, _s) in zip(dec_plan, params["decode"][::-1]):
        dp['wt_idx'] = _add(_tconv_wmat(wt))
        dp['bt_idx'] = _add(bt.reshape(-1, 1).astype(jnp.float32))
        dp['u_idx'] = _add(_up_matrices(dp['hin'], dp['win'], dp['s']))
        dp['wc_idx'] = _add(_conv_wtaps(wc))       # conv bias dropped: IN cancels it
        _mask(dp['hout'], dp['wout'])

    n_in = len(operands)
    n_out = len(dec_plan)

    # One margin-padded "concat" VMEM scratch per decode layer:
    #   rows [0:cout)      = upsampled (tconv) half, written by the decoder
    #   rows [cout:2cout)  = skip half, written by the matching encoder layer
    cat_meta = []
    for dp in dec_plan:
        P = (dp['hout'] + 2) * (dp['wout'] + 2)
        m = dp['wout'] + 3
        cat_meta.append(dict(rows=2 * dp['cout'], m=m, P=P, width=2 * m + P))

    LANE = 128
    out_pads = [((dp['hout'] + 2) * (dp['wout'] + 2) + LANE - 1) // LANE * LANE
                for dp in dec_plan]

    # --------------------------------- kernel ---------------------------------
    def kernel(*refs):
        in_refs = refs[:n_in]
        out_refs = refs[n_in:n_in + n_out]
        cat_refs = refs[n_in + n_out:]

        masks = {g: in_refs[i][...] for g, i in mask_idx.items()}

        # zero the concat buffers (margins + interiors) for this batch element
        for cm, cref in zip(cat_meta, cat_refs):
            cref[...] = jnp.zeros((cm['rows'], cm['width']), MXU_DTYPE)

        def conv3x3(read_slice, w_ref, hh, ww):
            """'same' 3x3 conv as 9 tap-wise (Cout,Cin)@(Cin,P) MXU matmuls accumulated
            in f32 (MRB in-place accumulate on v7x).  The taps are 9 statically shifted
            lane slices of a margin-padded VMEM map -> zero staging stores."""
            pw = ww + 2
            P = (hh + 2) * pw
            m = ww + 3
            acc, t = None, 0
            for dh in (-1, 0, 1):
                for dw in (-1, 0, 1):
                    d = dh * pw + dw
                    z = jnp.dot(w_ref[t], read_slice(m + d, m + d + P),
                                preferred_element_type=jnp.float32)
                    acc = z if acc is None else acc + z
                    t += 1
            return acc

        def inst_norm_lrelu(y, mask, n_valid):
            """Masked InstanceNorm in one fused pass (E[y], E[y^2]) + LeakyReLU."""
            ym = y * mask
            inv_n = 1.0 / n_valid
            mean = jnp.sum(ym, axis=1, keepdims=True) * inv_n
            var = jnp.sum(ym * ym, axis=1, keepdims=True) * inv_n - mean * mean
            yn = (ym - mean) * jax.lax.rsqrt(var + IN_EPS)
            yn = jnp.where(yn >= 0, yn, NEG_SLOPE * yn)
            return yn * mask                       # re-zero the padding ring

        # -------------------------------- encoder ------------------------------
        for i, lp in enumerate(enc_plan):
            if i == 0:
                read = lambda c0, c1, r=in_refs[x_idx]: r[0, :, c0:c1]
            else:
                read = (lambda c0, c1, r=cat_refs[NUM_LAYERS - i], cp=lp['cin']:
                        r[cp:2 * cp, c0:c1])
            y = conv3x3(read, in_refs[lp['w_idx']], lp['hin'], lp['win'])
            if lp['s'] > 1:
                # strided conv == full-res conv followed by a 0/1 selection matmul
                y = jnp.dot(y.astype(MXU_DTYPE), in_refs[lp['d_idx']][...],
                            preferred_element_type=jnp.float32)
            cur = inst_norm_lrelu(y, masks[(lp['hout'], lp['wout'])],
                                  float(lp['hout'] * lp['wout']))
            # write the skip straight into its consumer decode layer's concat buffer
            t_dst = NUM_LAYERS - 1 - i
            cm = cat_meta[t_dst]
            cat_refs[t_dst][lp['cout']:2 * lp['cout'],
                            cm['m']:cm['m'] + cm['P']] = cur.astype(MXU_DTYPE)

        # -------------------------------- decoder ------------------------------
        cur = in_refs[f0_idx][0]                   # (Cin, P) already MXU_DTYPE
        for t, dp in enumerate(dec_plan):
            wt_ref, u_ref = in_refs[dp['wt_idx']], in_refs[dp['u_idx']]
            up = None
            for g in range(dp['s'] * dp['s']):
                z = jnp.dot(wt_ref[g], cur, preferred_element_type=jnp.float32)
                z = jnp.dot(z.astype(MXU_DTYPE), u_ref[g],
                            preferred_element_type=jnp.float32)
                up = z if up is None else up + z
            mask = masks[(dp['hout'], dp['wout'])]
            up = (up + in_refs[dp['bt_idx']][...]) * mask     # tconv bias kept
            cm = cat_meta[t]
            cat_refs[t][0:dp['cout'], cm['m']:cm['m'] + cm['P']] = up.astype(MXU_DTYPE)
            read = lambda c0, c1, r=cat_refs[t]: r[:, c0:c1]
            y = conv3x3(read, in_refs[dp['wc_idx']], dp['hout'], dp['wout'])
            curf = inst_norm_lrelu(y, mask, float(dp['hout'] * dp['wout']))
            out_refs[t][0, :, 0:cm['P']] = curf    # lane-dense padded block, crop in wrapper
            cur = curf.astype(MXU_DTYPE)

    # ------------------------------- pallas_call -------------------------------
    out_shapes = tuple(jax.ShapeDtypeStruct((B, dp['cout'], pp), jnp.float32)
                       for dp, pp in zip(dec_plan, out_pads))
    out_specs = tuple(pl.BlockSpec((1, dp['cout'], pp), _batched_map(3))
                      for dp, pp in zip(dec_plan, out_pads))
    scratch = [pltpu.VMEM((cm['rows'], cm['width']), MXU_DTYPE) for cm in cat_meta]

    outs = pl.pallas_call(
        kernel,
        out_shape=out_shapes,
        grid_spec=pltpu.PrefetchScalarGridSpec(
            num_scalar_prefetch=0,
            grid=(B,),
            in_specs=in_specs,
            out_specs=out_specs,
            scratch_shapes=scratch),
        compiler_params=pltpu.CompilerParams(
            dimension_semantics=("parallel",),       # shards batch across v7x's 2 TCs
            vmem_limit_bytes=32 * 1024 * 1024),
    )(*operands)

    for dp, pp, o in zip(dec_plan, out_pads, outs):
        ph, pw = dp['hout'] + 2, dp['wout'] + 2
        ret.append(o[:, :, :ph * pw].reshape(B, dp['cout'], ph, pw)[:, :, 1:ph - 1, 1:pw - 1])
    return ret


# ------------------------- pure-JAX reference (NCHW) -------------------------

def _ref_conv_in_lrelu(x, w, b, s):
    p = w.shape[-1] // 2
    y = jax.lax.conv_general_dilated(
        x, w, (s, s), [(p, p), (p, p)],
        dimension_numbers=("NCHW", "OIHW", "NCHW"),
        precision=jax.lax.Precision.HIGHEST)
    y = y + b[None, :, None, None]
    mean = y.mean(axis=(2, 3), keepdims=True)
    var = ((y - mean) ** 2).mean(axis=(2, 3), keepdims=True)
    y = (y - mean) * jax.lax.rsqrt(var + IN_EPS)
    return jnp.where(y >= 0, y, NEG_SLOPE * y)


def _ref_conv_transpose(x, w, b, s):
    B, cin, H, W = x.shape
    cout = w.shape[1]
    y = jnp.einsum("bchw,cokl->bohkwl", x, w, precision=jax.lax.Precision.HIGHEST)
    y = y.reshape(B, cout, H * s, W * s)
    return y + b[None, :, None, None]


def ref_forward(params, backbone_feature_maps, x_in):
    ret = list(backbone_feature_maps)
    x = x_in
    encodes = []
    for (w, b, s) in params["encode"]:
        x = _ref_conv_in_lrelu(x, w, b, s)
        encodes.append(x)
    for (wt, bt, wc, bc, s), skip in zip(params["decode"][::-1], encodes[::-1]):
        up = _ref_conv_transpose(ret[-1], wt, bt, s)
        cat = jnp.concatenate([up, skip], axis=1)
        ret.append(_ref_conv_in_lrelu(cat, wc, bc, 1))
    return ret


# ------------------------------------ main ------------------------------------

if __name__ == "__main__":
    key = jax.random.PRNGKey(0)
    kp, kx, kf = jax.random.split(key, 3)
    params = init_params(kp)

    B, H, W = 2, 16, 16
    x_in = jax.random.normal(kx, (B, NUM_INPUT_CHANNELS, H, W), jnp.float32)
    # Coarsest backbone feature map that `inner` passes through
    # (channels = LAYER_CHANNELS[-1], spatial H/4).
    f0 = jax.random.normal(kf, (B, LAYER_CHANNELS[-1], H // 4, W // 4), jnp.float32)
    backbone_feature_maps = [f0]

    ret = full_res_adapter_forward(params, backbone_feature_maps, x_in)
    ret = jax.block_until_ready(ret)

    expected_shapes = [(B, 32, 4, 4), (B, 16, 8, 8), (B, 8, 16, 16)]
    assert [tuple(r.shape) for r in ret] == expected_shapes, [r.shape for r in ret]

    ref = ref_forward(params, backbone_feature_maps, x_in)
    # bf16 MXU operands + bf16 activation buffers across ~5 cascaded matmul stages
    # (outputs are instance-normalized, i.e. O(1)); a real indexing/layout bug would
    # produce O(1) errors and still be caught.
    tol = 1e-1 if MXU_DTYPE == jnp.bfloat16 else 3e-2
    for r, rr in zip(ret, ref):
        np.testing.assert_allclose(np.asarray(r), np.asarray(rr), rtol=tol, atol=tol)

    print("KERNEL_OK")
</pallas_src>

<mosaic_0001>
module attributes {stable_mosaic.version = 11 : i64} {
  func.func @kernel(%arg0: i32, %arg1: memref<1x4x362xbf16, #tpu.memory_space<vmem>>, %arg2: memref<1x32x36xbf16, #tpu.memory_space<vmem>>, %arg3: memref<9x8x4xbf16, #tpu.memory_space<vmem>>, %arg4: memref<1x324xf32, #tpu.memory_space<vmem>>, %arg5: memref<9x16x8xbf16, #tpu.memory_space<vmem>>, %arg6: memref<324x100xbf16, #tpu.memory_space<vmem>>, %arg7: memref<1x100xf32, #tpu.memory_space<vmem>>, %arg8: memref<4x16x32xbf16, #tpu.memory_space<vmem>>, %arg9: memref<16x1xf32, #tpu.memory_space<vmem>>, %arg10: memref<4x36x100xbf16, #tpu.memory_space<vmem>>, %arg11: memref<9x16x32xbf16, #tpu.memory_space<vmem>>, %arg12: memref<4x8x16xbf16, #tpu.memory_space<vmem>>, %arg13: memref<8x1xf32, #tpu.memory_space<vmem>>, %arg14: memref<4x100x324xbf16, #tpu.memory_space<vmem>>, %arg15: memref<9x8x16xbf16, #tpu.memory_space<vmem>>, %arg16: memref<1x16x128xf32, #tpu.memory_space<vmem>>, %arg17: memref<1x8x384xf32, #tpu.memory_space<vmem>>, %arg18: memref<32x122xbf16, #tpu.memory_space<vmem>>, %arg19: memref<16x362xbf16, #tpu.memory_space<vmem>>) attributes {dimension_semantics = [#tpu.dimension_semantics<parallel>], iteration_bounds = array<i64: 2>, scalar_prefetch = 0 : i64, scratch_operands = 2 : i64, tpu.core_type = #tpu.core_type<tc>, window_params = [{transform_indices = @transform_0, window_bounds = array<i64: 1, 4, 362>}, {transform_indices = @transform_1, window_bounds = array<i64: 1, 32, 36>}, {pipeline_mode = #tpu.pipeline_mode<synchronous>, transform_indices = @transform_2, window_bounds = array<i64: 9, 8, 4>}, {pipeline_mode = #tpu.pipeline_mode<synchronous>, transform_indices = @transform_3, window_bounds = array<i64: 1, 324>}, {pipeline_mode = #tpu.pipeline_mode<synchronous>, transform_indices = @transform_4, window_bounds = array<i64: 9, 16, 8>}, {pipeline_mode = #tpu.pipeline_mode<synchronous>, transform_indices = @transform_5, window_bounds = array<i64: 324, 100>}, {pipeline_mode = #tpu.pipeline_mode<synchronous>, transform_indices = @transform_6, window_bounds = array<i64: 1, 100>}, {pipeline_mode = #tpu.pipeline_mode<synchronous>, transform_indices = @transform_7, window_bounds = array<i64: 4, 16, 32>}, {pipeline_mode = #tpu.pipeline_mode<synchronous>, transform_indices = @transform_8, window_bounds = array<i64: 16, 1>}, {pipeline_mode = #tpu.pipeline_mode<synchronous>, transform_indices = @transform_9, window_bounds = array<i64: 4, 36, 100>}, {pipeline_mode = #tpu.pipeline_mode<synchronous>, transform_indices = @transform_10, window_bounds = array<i64: 9, 16, 32>}, {pipeline_mode = #tpu.pipeline_mode<synchronous>, transform_indices = @transform_11, window_bounds = array<i64: 4, 8, 16>}, {pipeline_mode = #tpu.pipeline_mode<synchronous>, transform_indices = @transform_12, window_bounds = array<i64: 8, 1>}, {pipeline_mode = #tpu.pipeline_mode<synchronous>, transform_indices = @transform_13, window_bounds = array<i64: 4, 100, 324>}, {pipeline_mode = #tpu.pipeline_mode<synchronous>, transform_indices = @transform_14, window_bounds = array<i64: 9, 8, 16>}, {transform_indices = @transform_15, window_bounds = array<i64: 1, 16, 128>}, {transform_indices = @transform_16, window_bounds = array<i64: 1, 8, 384>}]} {
    %c0 = arith.constant 0 : index
    %c0_0 = arith.constant 0 : index
    %0 = vector.load %arg4[%c0, %c0_0] : memref<1x324xf32, #tpu.memory_space<vmem>>, vector<1x324xf32>
    %c0_1 = arith.constant 0 : index
    %c0_2 = arith.constant 0 : index
    %1 = vector.load %arg7[%c0_1, %c0_2] : memref<1x100xf32, #tpu.memory_space<vmem>>, vector<1x100xf32>
    %cst = arith.constant 0.000000e+00 : bf16
    %2 = vector.broadcast %cst : bf16 to vector<32x122xbf16>
    %c0_3 = arith.constant 0 : index
    %c0_4 = arith.constant 0 : index
    %3 = vector.load %arg18[%c0_3, %c0_4] : memref<32x122xbf16, #tpu.memory_space<vmem>>, vector<32x122xbf16>
    tpu.vector_store %arg18[%c0_3, %c0_4], %2 {strides = array<i32>} : memref<32x122xbf16, #tpu.memory_space<vmem>>, vector<32x122xbf16>,
    %cst_5 = arith.constant 0.000000e+00 : bf16
    %4 = vector.broadcast %cst_5 : bf16 to vector<16x362xbf16>
    %c0_6 = arith.constant 0 : index
    %c0_7 = arith.constant 0 : index
    %5 = vector.load %arg19[%c0_6, %c0_7] : memref<16x362xbf16, #tpu.memory_space<vmem>>, vector<16x362xbf16>
    tpu.vector_store %arg19[%c0_6, %c0_7], %4 {strides = array<i32>} : memref<16x362xbf16, #tpu.memory_space<vmem>>, vector<16x362xbf16>,
    %c0_8 = arith.constant 0 : index
    %c0_9 = arith.constant 0 : index
    %c0_10 = arith.constant 0 : index
    %6 = vector.load %arg3[%c0_8, %c0_9, %c0_10] : memref<9x8x4xbf16, #tpu.memory_space<vmem>>, vector<1x8x4xbf16>
    %7 = vector.shape_cast %6 : vector<1x8x4xbf16> to vector<8x4xbf16>
    %c0_11 = arith.constant 0 : index
    %c0_12 = arith.constant 0 : index
    %c0_13 = arith.constant 0 : index
    %8 = vector.load %arg1[%c0_11, %c0_12, %c0_13] : memref<1x4x362xbf16, #tpu.memory_space<vmem>>, vector<1x4x324xbf16>
    %9 = vector.shape_cast %8 : vector<1x4x324xbf16> to vector<4x324xbf16>
    %cst_14 = arith.constant dense<0.000000e+00> : vector<8x324xf32>
    %10 = tpu.matmul %7, %9, %cst_14 {dimension_numbers = #tpu.dot_dimension_numbers<[1], [0], [0], [1], [0, 0, 1, 1], [], []>} : vector<8x4xbf16>, vector<4x324xbf16>, vector<8x324xf32> -> vector<8x324xf32>
    %c1 = arith.constant 1 : index
    %c0_15 = arith.constant 0 : index
    %c0_16 = arith.constant 0 : index
    %11 = vector.load %arg3[%c1, %c0_15, %c0_16] : memref<9x8x4xbf16, #tpu.memory_space<vmem>>, vector<1x8x4xbf16>
    %12 = vector.shape_cast %11 : vector<1x8x4xbf16> to vector<8x4xbf16>
    %c0_17 = arith.constant 0 : index
    %c0_18 = arith.constant 0 : index
    %c1_19 = arith.constant 1 : index
    %13 = vector.load %arg1[%c0_17, %c0_18, %c1_19] : memref<1x4x362xbf16, #tpu.memory_space<vmem>>, vector<1x4x324xbf16>
    %14 = vector.shape_cast %13 : vector<1x4x324xbf16> to vector<4x324xbf16>
    %cst_20 = arith.constant dense<0.000000e+00> : vector<8x324xf32>
    %15 = tpu.matmul %12, %14, %cst_20 {dimension_numbers = #tpu.dot_dimension_numbers<[1], [0], [0], [1], [0, 0, 1, 1], [], []>} : vector<8x4xbf16>, vector<4x324xbf16>, vector<8x324xf32> -> vector<8x324xf32>
    %16 = arith.addf %10, %15 : vector<8x324xf32>
    %c2 = arith.constant 2 : index
    %c0_21 = arith.constant 0 : index
    %c0_22 = arith.constant 0 : index
    %17 = vector.load %arg3[%c2, %c0_21, %c0_22] : memref<9x8x4xbf16, #tpu.memory_space<vmem>>, vector<1x8x4xbf16>
    %18 = vector.shape_cast %17 : vector<1x8x4xbf16> to vector<8x4xbf16>
    %c0_23 = arith.constant 0 : index
    %c0_24 = arith.constant 0 : index
    %c2_25 = arith.constant 2 : index
    %19 = vector.load %arg1[%c0_23, %c0_24, %c2_25] : memref<1x4x362xbf16, #tpu.memory_space<vmem>>, vector<1x4x324xbf16>
    %20 = vector.shape_cast %19 : vector<1x4x324xbf16> to vector<4x324xbf16>
    %cst_26 = arith.constant dense<0.000000e+00> : vector<8x324xf32>
    %21 = tpu.matmul %18, %20, %cst_26 {dimension_numbers = #tpu.dot_dimension_numbers<[1], [0], [0], [1], [0, 0, 1, 1], [], []>} : vector<8x4xbf16>, vector<4x324xbf16>, vector<8x324xf32> -> vector<8x324xf32>
    %22 = arith.addf %16, %21 : vector<8x324xf32>
    %c3 = arith.constant 3 : index
    %c0_27 = arith.constant 0 : index
    %c0_28 = arith.constant 0 : index
    %23 = vector.load %arg3[%c3, %c0_27, %c0_28] : memref<9x8x4xbf16, #tpu.memory_space<vmem>>, vector<1x8x4xbf16>
    %24 = vector.shape_cast %23 : vector<1x8x4xbf16> to vector<8x4xbf16>
    %c0_29 = arith.constant 0 : index
    %c0_30 = arith.constant 0 : index
    %c18 = arith.constant 18 : index
    %25 = vector.load %arg1[%c0_29, %c0_30, %c18] : memref<1x4x362xbf16, #tpu.memory_space<vmem>>, vector<1x4x324xbf16>
    %26 = vector.shape_cast %25 : vector<1x4x324xbf16> to vector<4x324xbf16>
    %cst_31 = arith.constant dense<0.000000e+00> : vector<8x324xf32>
    %27 = tpu.matmul %24, %26, %cst_31 {dimension_numbers = #tpu.dot_dimension_numbers<[1], [0], [0], [1], [0, 0, 1, 1], [], []>} : vector<8x4xbf16>, vector<4x324xbf16>, vector<8x324xf32> -> vector<8x324xf32>
    %28 = arith.addf %22, %27 : vector<8x324xf32>
    %c4 = arith.constant 4 : index
    %c0_32 = arith.constant 0 : index
    %c0_33 = arith.constant 0 : index
    %29 = vector.load %arg3[%c4, %c0_32, %c0_33] : memref<9x8x4xbf16, #tpu.memory_space<vmem>>, vector<1x8x4xbf16>
    %30 = vector.shape_cast %29 : vector<1x8x4xbf16> to vector<8x4xbf16>
    %c0_34 = arith.constant 0 : index
    %c0_35 = arith.constant 0 : index
    %c19 = arith.constant 19 : index
    %31 = vector.load %arg1[%c0_34, %c0_35, %c19] : memref<1x4x362xbf16, #tpu.memory_space<vmem>>, vector<1x4x324xbf16>
    %32 = vector.shape_cast %31 : vector<1x4x324xbf16> to vector<4x324xbf16>
    %cst_36 = arith.constant dense<0.000000e+00> : vector<8x324xf32>
    %33 = tpu.matmul %30, %32, %cst_36 {dimension_numbers = #tpu.dot_dimension_numbers<[1], [0], [0], [1], [0, 0, 1, 1], [], []>} : vector<8x4xbf16>, vector<4x324xbf16>, vector<8x324xf32> -> vector<8x324xf32>
    %34 = arith.addf %28, %33 : vector<8x324xf32>
    %c5 = arith.constant 5 : index
    %c0_37 = arith.constant 0 : index
    %c0_38 = arith.constant 0 : index
    %35 = vector.load %arg3[%c5, %c0_37, %c0_38] : memref<9x8x4xbf16, #tpu.memory_space<vmem>>, vector<1x8x4xbf16>
    %36 = vector.shape_cast %35 : vector<1x8x4xbf16> to vector<8x4xbf16>
    %c0_39 = arith.constant 0 : index
    %c0_40 = arith.constant 0 : index
    %c20 = arith.constant 20 : index
    %37 = vector.load %arg1[%c0_39, %c0_40, %c20] : memref<1x4x362xbf16, #tpu.memory_space<vmem>>, vector<1x4x324xbf16>
    %38 = vector.shape_cast %37 : vector<1x4x324xbf16> to vector<4x324xbf16>
    %cst_41 = arith.constant dense<0.000000e+00> : vector<8x324xf32>
    %39 = tpu.matmul %36, %38, %cst_41 {dimension_numbers = #tpu.dot_dimension_numbers<[1], [0], [0], [1], [0, 0, 1, 1], [], []>} : vector<8x4xbf16>, vector<4x324xbf16>, vector<8x324xf32> -> vector<8x324xf32>
    %40 = arith.addf %34, %39 : vector<8x324xf32>
    %c6 = arith.constant 6 : index
    %c0_42 = arith.constant 0 : index
    %c0_43 = arith.constant 0 : index
    %41 = vector.load %arg3[%c6, %c0_42, %c0_43] : memref<9x8x4xbf16, #tpu.memory_space<vmem>>, vector<1x8x4xbf16>
    %42 = vector.shape_cast %41 : vector<1x8x4xbf16> to vector<8x4xbf16>
    %c0_44 = arith.constant 0 : index
    %c0_45 = arith.constant 0 : index
    %c36 = arith.constant 36 : index
    %43 = vector.load %arg1[%c0_44, %c0_45, %c36] : memref<1x4x362xbf16, #tpu.memory_space<vmem>>, vector<1x4x324xbf16>
    %44 = vector.shape_cast %43 : vector<1x4x324xbf16> to vector<4x324xbf16>
    %cst_46 = arith.constant dense<0.000000e+00> : vector<8x324xf32>
    %45 = tpu.matmul %42, %44, %cst_46 {dimension_numbers = #tpu.dot_dimension_numbers<[1], [0], [0], [1], [0, 0, 1, 1], [], []>} : vector<8x4xbf16>, vector<4x324xbf16>, vector<8x324xf32> -> vector<8x324xf32>
    %46 = arith.addf %40, %45 : vector<8x324xf32>
    %c7 = arith.constant 7 : index
    %c0_47 = arith.constant 0 : index
    %c0_48 = arith.constant 0 : index
    %47 = vector.load %arg3[%c7, %c0_47, %c0_48] : memref<9x8x4xbf16, #tpu.memory_space<vmem>>, vector<1x8x4xbf16>
    %48 = vector.shape_cast %47 : vector<1x8x4xbf16> to vector<8x4xbf16>
    %c0_49 = arith.constant 0 : index
    %c0_50 = arith.constant 0 : index
    %c37 = arith.constant 37 : index
    %49 = vector.load %arg1[%c0_49, %c0_50, %c37] : memref<1x4x362xbf16, #tpu.memory_space<vmem>>, vector<1x4x324xbf16>
    %50 = vector.shape_cast %49 : vector<1x4x324xbf16> to vector<4x324xbf16>
    %cst_51 = arith.constant dense<0.000000e+00> : vector<8x324xf32>
    %51 = tpu.matmul %48, %50, %cst_51 {dimension_numbers = #tpu.dot_dimension_numbers<[1], [0], [0], [1], [0, 0, 1, 1], [], []>} : vector<8x4xbf16>, vector<4x324xbf16>, vector<8x324xf32> -> vector<8x324xf32>
    %52 = arith.addf %46, %51 : vector<8x324xf32>
    %c8 = arith.constant 8 : index
    %c0_52 = arith.constant 0 : index
    %c0_53 = arith.constant 0 : index
    %53 = vector.load %arg3[%c8, %c0_52, %c0_53] : memref<9x8x4xbf16, #tpu.memory_space<vmem>>, vector<1x8x4xbf16>
    %54 = vector.shape_cast %53 : vector<1x8x4xbf16> to vector<8x4xbf16>
    %c0_54 = arith.constant 0 : index
    %c0_55 = arith.constant 0 : index
    %c38 = arith.constant 38 : index
    %55 = vector.load %arg1[%c0_54, %c0_55, %c38] : memref<1x4x362xbf16, #tpu.memory_space<vmem>>, vector<1x4x324xbf16>
    %56 = vector.shape_cast %55 : vector<1x4x324xbf16> to vector<4x324xbf16>
    %cst_56 = arith.constant dense<0.000000e+00> : vector<8x324xf32>
    %57 = tpu.matmul %54, %56, %cst_56 {dimension_numbers = #tpu.dot_dimension_numbers<[1], [0], [0], [1], [0, 0, 1, 1], [], []>} : vector<8x4xbf16>, vector<4x324xbf16>, vector<8x324xf32> -> vector<8x324xf32>
    %58 = arith.addf %52, %57 : vector<8x324xf32>
    %59 = vector.broadcast %0 : vector<1x324xf32> to vector<8x324xf32>
    %60 = arith.mulf %58, %59 : vector<8x324xf32>
    %cst_57 = arith.constant dense<0.000000e+00> : vector<8xf32>
    %61 = vector.multi_reduction <add>, %60, %cst_57 [1] : vector<8x324xf32> to vector<8xf32>
    %62 = vector.shape_cast %61 : vector<8xf32> to vector<8x1xf32>
    %cst_58 = arith.constant 3.906250e-03 : f32
    %63 = vector.broadcast %cst_58 : f32 to vector<8x1xf32>
    %64 = arith.mulf %62, %63 : vector<8x1xf32>
    %65 = arith.mulf %60, %60 : vector<8x324xf32>
    %cst_59 = arith.constant dense<0.000000e+00> : vector<8xf32>
    %66 = vector.multi_reduction <add>, %65, %cst_59 [1] : vector<8x324xf32> to vector<8xf32>
    %67 = vector.shape_cast %66 : vector<8xf32> to vector<8x1xf32>
    %cst_60 = arith.constant 3.906250e-03 : f32
    %68 = vector.broadcast %cst_60 : f32 to vector<8x1xf32>
    %69 = arith.mulf %67, %68 : vector<8x1xf32>
    %70 = arith.mulf %64, %64 : vector<8x1xf32>
    %71 = arith.subf %69, %70 : vector<8x1xf32>
    %72 = vector.broadcast %64 : vector<8x1xf32> to vector<8x324xf32>
    %73 = arith.subf %60, %72 : vector<8x324xf32>
    %cst_61 = arith.constant 9.99999974E-6 : f32
    %74 = vector.broadcast %cst_61 : f32 to vector<8x1xf32>
    %75 = arith.addf %71, %74 : vector<8x1xf32>
    %76 = math.rsqrt %75 : vector<8x1xf32>
    %77 = vector.broadcast %76 : vector<8x1xf32> to vector<8x324xf32>
    %78 = arith.mulf %73, %77 : vector<8x324xf32>
    %cst_62 = arith.constant 0.000000e+00 : f32
    %79 = vector.broadcast %cst_62 : f32 to vector<8x324xf32>
    %80 = arith.cmpf oge, %78, %79 : vector<8x324xf32>
    %cst_63 = arith.constant 0.00999999977 : f32
    %81 = vector.broadcast %cst_63 : f32 to vector<8x324xf32>
    %82 = arith.mulf %81, %78 : vector<8x324xf32>
    %83 = arith.select %80, %78, %82 : vector<8x324xi1>, vector<8x324xf32>
    %84 = vector.broadcast %0 : vector<1x324xf32> to vector<8x324xf32>
    %85 = arith.mulf %83, %84 : vector<8x324xf32>
    %86 = arith.truncf %85 : vector<8x324xf32> to vector<8x324xbf16>
    %c8_64 = arith.constant 8 : index
    %c19_65 = arith.constant 19 : index
    %87 = vector.load %arg19[%c8_64, %c19_65] : memref<16x362xbf16, #tpu.memory_space<vmem>>, vector<8x324xbf16>
    tpu.vector_store %arg19[%c8_64, %c19_65], %86 {strides = array<i32>} : memref<16x362xbf16, #tpu.memory_space<vmem>>, vector<8x324xbf16>,
    %c0_66 = arith.constant 0 : index
    %c0_67 = arith.constant 0 : index
    %c0_68 = arith.constant 0 : index
    %88 = vector.load %arg5[%c0_66, %c0_67, %c0_68] : memref<9x16x8xbf16, #tpu.memory_space<vmem>>, vector<1x16x8xbf16>
    %89 = vector.shape_cast %88 : vector<1x16x8xbf16> to vector<16x8xbf16>
    %c8_69 = arith.constant 8 : index
    %c0_70 = arith.constant 0 : index
    %90 = vector.load %arg19[%c8_69, %c0_70] : memref<16x362xbf16, #tpu.memory_space<vmem>>, vector<8x324xbf16>
    %cst_71 = arith.constant dense<0.000000e+00> : vector<16x324xf32>
    %91 = tpu.matmul %89, %90, %cst_71 {dimension_numbers = #tpu.dot_dimension_numbers<[1], [0], [0], [1], [0, 0, 1, 1], [], []>} : vector<16x8xbf16>, vector<8x324xbf16>, vector<16x324xf32> -> vector<16x324xf32>
    %c1_72 = arith.constant 1 : index
    %c0_73 = arith.constant 0 : index
    %c0_74 = arith.constant 0 : index
    %92 = vector.load %arg5[%c1_72, %c0_73, %c0_74] : memref<9x16x8xbf16, #tpu.memory_space<vmem>>, vector<1x16x8xbf16>
    %93 = vector.shape_cast %92 : vector<1x16x8xbf16> to vector<16x8xbf16>
    %c8_75 = arith.constant 8 : index
    %c1_76 = arith.constant 1 : index
    %94 = vector.load %arg19[%c8_75, %c1_76] : memref<16x362xbf16, #tpu.memory_space<vmem>>, vector<8x324xbf16>
    %cst_77 = arith.constant dense<0.000000e+00> : vector<16x324xf32>
    %95 = tpu.matmul %93, %94, %cst_77 {dimension_numbers = #tpu.dot_dimension_numbers<[1], [0], [0], [1], [0, 0, 1, 1], [], []>} : vector<16x8xbf16>, vector<8x324xbf16>, vector<16x324xf32> -> vector<16x324xf32>
    %96 = arith.addf %91, %95 : vector<16x324xf32>
    %c2_78 = arith.constant 2 : index
    %c0_79 = arith.constant 0 : index
    %c0_80 = arith.constant 0 : index
    %97 = vector.load %arg5[%c2_78, %c0_79, %c0_80] : memref<9x16x8xbf16, #tpu.memory_space<vmem>>, vector<1x16x8xbf16>
    %98 = vector.shape_cast %97 : vector<1x16x8xbf16> to vector<16x8xbf16>
    %c8_81 = arith.constant 8 : index
    %c2_82 = arith.constant 2 : index
    %99 = vector.load %arg19[%c8_81, %c2_82] : memref<16x362xbf16, #tpu.memory_space<vmem>>, vector<8x324xbf16>
    %cst_83 = arith.constant dense<0.000000e+00> : vector<16x324xf32>
    %100 = tpu.matmul %98, %99, %cst_83 {dimension_numbers = #tpu.dot_dimension_numbers<[1], [0], [0], [1], [0, 0, 1, 1], [], []>} : vector<16x8xbf16>, vector<8x324xbf16>, vector<16x324xf32> -> vector<16x324xf32>
    %101 = arith.addf %96, %100 : vector<16x324xf32>
    %c3_84 = arith.constant 3 : index
    %c0_85 = arith.constant 0 : index
    %c0_86 = arith.constant 0 : index
    %102 = vector.load %arg5[%c3_84, %c0_85, %c0_86] : memref<9x16x8xbf16, #tpu.memory_space<vmem>>, vector<1x16x8xbf16>
    %103 = vector.shape_cast %102 : vector<1x16x8xbf16> to vector<16x8xbf16>
    %c8_87 = arith.constant 8 : index
    %c18_88 = arith.constant 18 : index
    %104 = vector.load %arg19[%c8_87, %c18_88] : memref<16x362xbf16, #tpu.memory_space<vmem>>, vector<8x324xbf16>
    %cst_89 = arith.constant dense<0.000000e+00> : vector<16x324xf32>
    %105 = tpu.matmul %103, %104, %cst_89 {dimension_numbers = #tpu.dot_dimension_numbers<[1], [0], [0], [1], [0, 0, 1, 1], [], []>} : vector<16x8xbf16>, vector<8x324xbf16>, vector<16x324xf32> -> vector<16x324xf32>
    %106 = arith.addf %101, %105 : vector<16x324xf32>
    %c4_90 = arith.constant 4 : index
    %c0_91 = arith.constant 0 : index
    %c0_92 = arith.constant 0 : index
    %107 = vector.load %arg5[%c4_90, %c0_91, %c0_92] : memref<9x16x8xbf16, #tpu.memory_space<vmem>>, vector<1x16x8xbf16>
    %108 = vector.shape_cast %107 : vector<1x16x8xbf16> to vector<16x8xbf16>
    %c8_93 = arith.constant 8 : index
    %c19_94 = arith.constant 19 : index
    %109 = vector.load %arg19[%c8_93, %c19_94] : memref<16x362xbf16, #tpu.memory_space<vmem>>, vector<8x324xbf16>
    %cst_95 = arith.constant dense<0.000000e+00> : vector<16x324xf32>
    %110 = tpu.matmul %108, %109, %cst_95 {dimension_numbers = #tpu.dot_dimension_numbers<[1], [0], [0], [1], [0, 0, 1, 1], [], []>} : vector<16x8xbf16>, vector<8x324xbf16>, vector<16x324xf32> -> vector<16x324xf32>
    %111 = arith.addf %106, %110 : vector<16x324xf32>
    %c5_96 = arith.constant 5 : index
    %c0_97 = arith.constant 0 : index
    %c0_98 = arith.constant 0 : index
    %112 = vector.load %arg5[%c5_96, %c0_97, %c0_98] : memref<9x16x8xbf16, #tpu.memory_space<vmem>>, vector<1x16x8xbf16>
    %113 = vector.shape_cast %112 : vector<1x16x8xbf16> to vector<16x8xbf16>
    %c8_99 = arith.constant 8 : index
    %c20_100 = arith.constant 20 : index
    %114 = vector.load %arg19[%c8_99, %c20_100] : memref<16x362xbf16, #tpu.memory_space<vmem>>, vector<8x324xbf16>
    %cst_101 = arith.constant dense<0.000000e+00> : vector<16x324xf32>
    %115 = tpu.matmul %113, %114, %cst_101 {dimension_numbers = #tpu.dot_dimension_numbers<[1], [0], [0], [1], [0, 0, 1, 1], [], []>} : vector<16x8xbf16>, vector<8x324xbf16>, vector<16x324xf32> -> vector<16x324xf32>
    %116 = arith.addf %111, %115 : vector<16x324xf32>
    %c6_102 = arith.constant 6 : index
    %c0_103 = arith.constant 0 : index
    %c0_104 = arith.constant 0 : index
    %117 = vector.load %arg5[%c6_102, %c0_103, %c0_104] : memref<9x16x8xbf16, #tpu.memory_space<vmem>>, vector<1x16x8xbf16>
    %118 = vector.shape_cast %117 : vector<1x16x8xbf16> to vector<16x8xbf16>
    %c8_105 = arith.constant 8 : index
    %c36_106 = arith.constant 36 : index
    %119 = vector.load %arg19[%c8_105, %c36_106] : memref<16x362xbf16, #tpu.memory_space<vmem>>, vector<8x324xbf16>
    %cst_107 = arith.constant dense<0.000000e+00> : vector<16x324xf32>
    %120 = tpu.matmul %118, %119, %cst_107 {dimension_numbers = #tpu.dot_dimension_numbers<[1], [0], [0], [1], [0, 0, 1, 1], [], []>} : vector<16x8xbf16>, vector<8x324xbf16>, vector<16x324xf32> -> vector<16x324xf32>
    %121 = arith.addf %116, %120 : vector<16x324xf32>
    %c7_108 = arith.constant 7 : index
    %c0_109 = arith.constant 0 : index
    %c0_110 = arith.constant 0 : index
    %122 = vector.load %arg5[%c7_108, %c0_109, %c0_110] : memref<9x16x8xbf16, #tpu.memory_space<vmem>>, vector<1x16x8xbf16>
    %123 = vector.shape_cast %122 : vector<1x16x8xbf16> to vector<16x8xbf16>
    %c8_111 = arith.constant 8 : index
    %c37_112 = arith.constant 37 : index
    %124 = vector.load %arg19[%c8_111, %c37_112] : memref<16x362xbf16, #tpu.memory_space<vmem>>, vector<8x324xbf16>
    %cst_113 = arith.constant dense<0.000000e+00> : vector<16x324xf32>
    %125 = tpu.matmul %123, %124, %cst_113 {dimension_numbers = #tpu.dot_dimension_numbers<[1], [0], [0], [1], [0, 0, 1, 1], [], []>} : vector<16x8xbf16>, vector<8x324xbf16>, vector<16x324xf32> -> vector<16x324xf32>
    %126 = arith.addf %121, %125 : vector<16x324xf32>
    %c8_114 = arith.constant 8 : index
    %c0_115 = arith.constant 0 : index
    %c0_116 = arith.constant 0 : index
    %127 = vector.load %arg5[%c8_114, %c0_115, %c0_116] : memref<9x16x8xbf16, #tpu.memory_space<vmem>>, vector<1x16x8xbf16>
    %128 = vector.shape_cast %127 : vector<1x16x8xbf16> to vector<16x8xbf16>
    %c8_117 = arith.constant 8 : index
    %c38_118 = arith.constant 38 : index
    %129 = vector.load %arg19[%c8_117, %c38_118] : memref<16x362xbf16, #tpu.memory_space<vmem>>, vector<8x324xbf16>
    %cst_119 = arith.constant dense<0.000000e+00> : vector<16x324xf32>
    %130 = tpu.matmul %128, %129, %cst_119 {dimension_numbers = #tpu.dot_dimension_numbers<[1], [0], [0], [1], [0, 0, 1, 1], [], []>} : vector<16x8xbf16>, vector<8x324xbf16>, vector<16x324xf32> -> vector<16x324xf32>
    %131 = arith.addf %126, %130 : vector<16x324xf32>
    %132 = arith.truncf %131 : vector<16x324xf32> to vector<16x324xbf16>
    %c0_120 = arith.constant 0 : index
    %c0_121 = arith.constant 0 : index
    %133 = vector.load %arg6[%c0_120, %c0_121] : memref<324x100xbf16, #tpu.memory_space<vmem>>, vector<324x100xbf16>
    %cst_122 = arith.constant dense<0.000000e+00> : vector<16x100xf32>
    %134 = tpu.matmul %132, %133, %cst_122 {dimension_numbers = #tpu.dot_dimension_numbers<[1], [0], [0], [1], [0, 0, 1, 1], [], []>} : vector<16x324xbf16>, vector<324x100xbf16>, vector<16x100xf32> -> vector<16x100xf32>
    %135 = vector.broadcast %1 : vector<1x100xf32> to vector<16x100xf32>
    %136 = arith.mulf %134, %135 : vector<16x100xf32>
    %cst_123 = arith.constant dense<0.000000e+00> : vector<16xf32>
    %137 = vector.multi_reduction <add>, %136, %cst_123 [1] : vector<16x100xf32> to vector<16xf32>
    %138 = vector.shape_cast %137 : vector<16xf32> to vector<16x1xf32>
    %cst_124 = arith.constant 1.562500e-02 : f32
    %139 = vector.broadcast %cst_124 : f32 to vector<16x1xf32>
    %140 = arith.mulf %138, %139 : vector<16x1xf32>
    %141 = arith.mulf %136, %136 : vector<16x100xf32>
    %cst_125 = arith.constant dense<0.000000e+00> : vector<16xf32>
    %142 = vector.multi_reduction <add>, %141, %cst_125 [1] : vector<16x100xf32> to vector<16xf32>
    %143 = vector.shape_cast %142 : vector<16xf32> to vector<16x1xf32>
    %cst_126 = arith.constant 1.562500e-02 : f32
    %144 = vector.broadcast %cst_126 : f32 to vector<16x1xf32>
    %145 = arith.mulf %143, %144 : vector<16x1xf32>
    %146 = arith.mulf %140, %140 : vector<16x1xf32>
    %147 = arith.subf %145, %146 : vector<16x1xf32>
    %148 = vector.broadcast %140 : vector<16x1xf32> to vector<16x100xf32>
    %149 = arith.subf %136, %148 : vector<16x100xf32>
    %cst_127 = arith.constant 9.99999974E-6 : f32
    %150 = vector.broadcast %cst_127 : f32 to vector<16x1xf32>
    %151 = arith.addf %147, %150 : vector<16x1xf32>
    %152 = math.rsqrt %151 : vector<16x1xf32>
    %153 = vector.broadcast %152 : vector<16x1xf32> to vector<16x100xf32>
    %154 = arith.mulf %149, %153 : vector<16x100xf32>
    %cst_128 = arith.constant 0.000000e+00 : f32
    %155 = vector.broadcast %cst_128 : f32 to vector<16x100xf32>
    %156 = arith.cmpf oge, %154, %155 : vector<16x100xf32>
    %cst_129 = arith.constant 0.00999999977 : f32
    %157 = vector.broadcast %cst_129 : f32 to vector<16x100xf32>
    %158 = arith.mulf %157, %154 : vector<16x100xf32>
    %159 = arith.select %156, %154, %158 : vector<16x100xi1>, vector<16x100xf32>
    %160 = vector.broadcast %1 : vector<1x100xf32> to vector<16x100xf32>
    %161 = arith.mulf %159, %160 : vector<16x100xf32>
    %162 = arith.truncf %161 : vector<16x100xf32> to vector<16x100xbf16>
    %c16 = arith.constant 16 : index
    %c11 = arith.constant 11 : index
    %163 = vector.load %arg18[%c16, %c11] : memref<32x122xbf16, #tpu.memory_space<vmem>>, vector<16x100xbf16>
    tpu.vector_store %arg18[%c16, %c11], %162 {strides = array<i32>} : memref<32x122xbf16, #tpu.memory_space<vmem>>, vector<16x100xbf16>,
    %c0_130 = arith.constant 0 : index
    %c0_131 = arith.constant 0 : index
    %c0_132 = arith.constant 0 : index
    %164 = vector.load %arg2[%c0_130, %c0_131, %c0_132] : memref<1x32x36xbf16, #tpu.memory_space<vmem>>, vector<1x32x36xbf16>
    %165 = vector.shape_cast %164 : vector<1x32x36xbf16> to vector<32x36xbf16>
    %c0_133 = arith.constant 0 : index
    %c0_134 = arith.constant 0 : index
    %c0_135 = arith.constant 0 : index
    %166 = vector.load %arg8[%c0_133, %c0_134, %c0_135] : memref<4x16x32xbf16, #tpu.memory_space<vmem>>, vector<1x16x32xbf16>
    %167 = vector.shape_cast %166 : vector<1x16x32xbf16> to vector<16x32xbf16>
    %cst_136 = arith.constant dense<0.000000e+00> : vector<16x36xf32>
    %168 = tpu.matmul %167, %165, %cst_136 {dimension_numbers = #tpu.dot_dimension_numbers<[1], [0], [0], [1], [0, 0, 1, 1], [], []>} : vector<16x32xbf16>, vector<32x36xbf16>, vector<16x36xf32> -> vector<16x36xf32>
    %169 = arith.truncf %168 : vector<16x36xf32> to vector<16x36xbf16>
    %c0_137 = arith.constant 0 : index
    %c0_138 = arith.constant 0 : index
    %c0_139 = arith.constant 0 : index
    %170 = vector.load %arg10[%c0_137, %c0_138, %c0_139] : memref<4x36x100xbf16, #tpu.memory_space<vmem>>, vector<1x36x100xbf16>
    %171 = vector.shape_cast %170 : vector<1x36x100xbf16> to vector<36x100xbf16>
    %cst_140 = arith.constant dense<0.000000e+00> : vector<16x100xf32>
    %172 = tpu.matmul %169, %171, %cst_140 {dimension_numbers = #tpu.dot_dimension_numbers<[1], [0], [0], [1], [0, 0, 1, 1], [], []>} : vector<16x36xbf16>, vector<36x100xbf16>, vector<16x100xf32> -> vector<16x100xf32>
    %c1_141 = arith.constant 1 : index
    %c0_142 = arith.constant 0 : index
    %c0_143 = arith.constant 0 : index
    %173 = vector.load %arg8[%c1_141, %c0_142, %c0_143] : memref<4x16x32xbf16, #tpu.memory_space<vmem>>, vector<1x16x32xbf16>
    %174 = vector.shape_cast %173 : vector<1x16x32xbf16> to vector<16x32xbf16>
    %cst_144 = arith.constant dense<0.000000e+00> : vector<16x36xf32>
    %175 = tpu.matmul %174, %165, %cst_144 {dimension_numbers = #tpu.dot_dimension_numbers<[1], [0], [0], [1], [0, 0, 1, 1], [], []>} : vector<16x32xbf16>, vector<32x36xbf16>, vector<16x36xf32> -> vector<16x36xf32>
    %176 = arith.truncf %175 : vector<16x36xf32> to vector<16x36xbf16>
    %c1_145 = arith.constant 1 : index
    %c0_146 = arith.constant 0 : index
    %c0_147 = arith.constant 0 : index
    %177 = vector.load %arg10[%c1_145, %c0_146, %c0_147] : memref<4x36x100xbf16, #tpu.memory_space<vmem>>, vector<1x36x100xbf16>
    %178 = vector.shape_cast %177 : vector<1x36x100xbf16> to vector<36x100xbf16>
    %cst_148 = arith.constant dense<0.000000e+00> : vector<16x100xf32>
    %179 = tpu.matmul %176, %178, %cst_148 {dimension_numbers = #tpu.dot_dimension_numbers<[1], [0], [0], [1], [0, 0, 1, 1], [], []>} : vector<16x36xbf16>, vector<36x100xbf16>, vector<16x100xf32> -> vector<16x100xf32>
    %180 = arith.addf %172, %179 : vector<16x100xf32>
    %c2_149 = arith.constant 2 : index
    %c0_150 = arith.constant 0 : index
    %c0_151 = arith.constant 0 : index
    %181 = vector.load %arg8[%c2_149, %c0_150, %c0_151] : memref<4x16x32xbf16, #tpu.memory_space<vmem>>, vector<1x16x32xbf16>
    %182 = vector.shape_cast %181 : vector<1x16x32xbf16> to vector<16x32xbf16>
    %cst_152 = arith.constant dense<0.000000e+00> : vector<16x36xf32>
    %183 = tpu.matmul %182, %165, %cst_152 {dimension_numbers = #tpu.dot_dimension_numbers<[1], [0], [0], [1], [0, 0, 1, 1], [], []>} : vector<16x32xbf16>, vector<32x36xbf16>, vector<16x36xf32> -> vector<16x36xf32>
    %184 = arith.truncf %183 : vector<16x36xf32> to vector<16x36xbf16>
    %c2_153 = arith.constant 2 : index
    %c0_154 = arith.constant 0 : index
    %c0_155 = arith.constant 0 : index
    %185 = vector.load %arg10[%c2_153, %c0_154, %c0_155] : memref<4x36x100xbf16, #tpu.memory_space<vmem>>, vector<1x36x100xbf16>
    %186 = vector.shape_cast %185 : vector<1x36x100xbf16> to vector<36x100xbf16>
    %cst_156 = arith.constant dense<0.000000e+00> : vector<16x100xf32>
    %187 = tpu.matmul %184, %186, %cst_156 {dimension_numbers = #tpu.dot_dimension_numbers<[1], [0], [0], [1], [0, 0, 1, 1], [], []>} : vector<16x36xbf16>, vector<36x100xbf16>, vector<16x100xf32> -> vector<16x100xf32>
    %188 = arith.addf %180, %187 : vector<16x100xf32>
    %c3_157 = arith.constant 3 : index
    %c0_158 = arith.constant 0 : index
    %c0_159 = arith.constant 0 : index
    %189 = vector.load %arg8[%c3_157, %c0_158, %c0_159] : memref<4x16x32xbf16, #tpu.memory_space<vmem>>, vector<1x16x32xbf16>
    %190 = vector.shape_cast %189 : vector<1x16x32xbf16> to vector<16x32xbf16>
    %cst_160 = arith.constant dense<0.000000e+00> : vector<16x36xf32>
    %191 = tpu.matmul %190, %165, %cst_160 {dimension_numbers = #tpu.dot_dimension_numbers<[1], [0], [0], [1], [0, 0, 1, 1], [], []>} : vector<16x32xbf16>, vector<32x36xbf16>, vector<16x36xf32> -> vector<16x36xf32>
    %192 = arith.truncf %191 : vector<16x36xf32> to vector<16x36xbf16>
    %c3_161 = arith.constant 3 : index
    %c0_162 = arith.constant 0 : index
    %c0_163 = arith.constant 0 : index
    %193 = vector.load %arg10[%c3_161, %c0_162, %c0_163] : memref<4x36x100xbf16, #tpu.memory_space<vmem>>, vector<1x36x100xbf16>
    %194 = vector.shape_cast %193 : vector<1x36x100xbf16> to vector<36x100xbf16>
    %cst_164 = arith.constant dense<0.000000e+00> : vector<16x100xf32>
    %195 = tpu.matmul %192, %194, %cst_164 {dimension_numbers = #tpu.dot_dimension_numbers<[1], [0], [0], [1], [0, 0, 1, 1], [], []>} : vector<16x36xbf16>, vector<36x100xbf16>, vector<16x100xf32> -> vector<16x100xf32>
    %196 = arith.addf %188, %195 : vector<16x100xf32>
    %c0_165 = arith.constant 0 : index
    %c0_166 = arith.constant 0 : index
    %197 = vector.load %arg9[%c0_165, %c0_166] : memref<16x1xf32, #tpu.memory_space<vmem>>, vector<16x1xf32>
    %198 = vector.broadcast %197 : vector<16x1xf32> to vector<16x100xf32>
    %199 = arith.addf %196, %198 : vector<16x100xf32>
    %200 = vector.broadcast %1 : vector<1x100xf32> to vector<16x100xf32>
    %201 = arith.mulf %199, %200 : vector<16x100xf32>
    %202 = arith.truncf %201 : vector<16x100xf32> to vector<16x100xbf16>
    %c0_167 = arith.constant 0 : index
    %c11_168 = arith.constant 11 : index
    %203 = vector.load %arg18[%c0_167, %c11_168] : memref<32x122xbf16, #tpu.memory_space<vmem>>, vector<16x100xbf16>
    tpu.vector_store %arg18[%c0_167, %c11_168], %202 {strides = array<i32>} : memref<32x122xbf16, #tpu.memory_space<vmem>>, vector<16x100xbf16>,
    %c0_169 = arith.constant 0 : index
    %c0_170 = arith.constant 0 : index
    %c0_171 = arith.constant 0 : index
    %204 = vector.load %arg11[%c0_169, %c0_170, %c0_171] : memref<9x16x32xbf16, #tpu.memory_space<vmem>>, vector<1x16x32xbf16>
    %205 = vector.shape_cast %204 : vector<1x16x32xbf16> to vector<16x32xbf16>
    %c0_172 = arith.constant 0 : index
    %c0_173 = arith.constant 0 : index
    %206 = vector.load %arg18[%c0_172, %c0_173] : memref<32x122xbf16, #tpu.memory_space<vmem>>, vector<32x100xbf16>
    %cst_174 = arith.constant dense<0.000000e+00> : vector<16x100xf32>
    %207 = tpu.matmul %205, %206, %cst_174 {dimension_numbers = #tpu.dot_dimension_numbers<[1], [0], [0], [1], [0, 0, 1, 1], [], []>} : vector<16x32xbf16>, vector<32x100xbf16>, vector<16x100xf32> -> vector<16x100xf32>
    %c1_175 = arith.constant 1 : index
    %c0_176 = arith.constant 0 : index
    %c0_177 = arith.constant 0 : index
    %208 = vector.load %arg11[%c1_175, %c0_176, %c0_177] : memref<9x16x32xbf16, #tpu.memory_space<vmem>>, vector<1x16x32xbf16>
    %209 = vector.shape_cast %208 : vector<1x16x32xbf16> to vector<16x32xbf16>
    %c0_178 = arith.constant 0 : index
    %c1_179 = arith.constant 1 : index
    %210 = vector.load %arg18[%c0_178, %c1_179] : memref<32x122xbf16, #tpu.memory_space<vmem>>, vector<32x100xbf16>
    %cst_180 = arith.constant dense<0.000000e+00> : vector<16x100xf32>
    %211 = tpu.matmul %209, %210, %cst_180 {dimension_numbers = #tpu.dot_dimension_numbers<[1], [0], [0], [1], [0, 0, 1, 1], [], []>} : vector<16x32xbf16>, vector<32x100xbf16>, vector<16x100xf32> -> vector<16x100xf32>
    %212 = arith.addf %207, %211 : vector<16x100xf32>
    %c2_181 = arith.constant 2 : index
    %c0_182 = arith.constant 0 : index
    %c0_183 = arith.constant 0 : index
    %213 = vector.load %arg11[%c2_181, %c0_182, %c0_183] : memref<9x16x32xbf16, #tpu.memory_space<vmem>>, vector<1x16x32xbf16>
    %214 = vector.shape_cast %213 : vector<1x16x32xbf16> to vector<16x32xbf16>
    %c0_184 = arith.constant 0 : index
    %c2_185 = arith.constant 2 : index
    %215 = vector.load %arg18[%c0_184, %c2_185] : memref<32x122xbf16, #tpu.memory_space<vmem>>, vector<32x100xbf16>
    %cst_186 = arith.constant dense<0.000000e+00> : vector<16x100xf32>
    %216 = tpu.matmul %214, %215, %cst_186 {dimension_numbers = #tpu.dot_dimension_numbers<[1], [0], [0], [1], [0, 0, 1, 1], [], []>} : vector<16x32xbf16>, vector<32x100xbf16>, vector<16x100xf32> -> vector<16x100xf32>
    %217 = arith.addf %212, %216 : vector<16x100xf32>
    %c3_187 = arith.constant 3 : index
    %c0_188 = arith.constant 0 : index
    %c0_189 = arith.constant 0 : index
    %218 = vector.load %arg11[%c3_187, %c0_188, %c0_189] : memref<9x16x32xbf16, #tpu.memory_space<vmem>>, vector<1x16x32xbf16>
    %219 = vector.shape_cast %218 : vector<1x16x32xbf16> to vector<16x32xbf16>
    %c0_190 = arith.constant 0 : index
    %c10 = arith.constant 10 : index
    %220 = vector.load %arg18[%c0_190, %c10] : memref<32x122xbf16, #tpu.memory_space<vmem>>, vector<32x100xbf16>
    %cst_191 = arith.constant dense<0.000000e+00> : vector<16x100xf32>
    %221 = tpu.matmul %219, %220, %cst_191 {dimension_numbers = #tpu.dot_dimension_numbers<[1], [0], [0], [1], [0, 0, 1, 1], [], []>} : vector<16x32xbf16>, vector<32x100xbf16>, vector<16x100xf32> -> vector<16x100xf32>
    %222 = arith.addf %217, %221 : vector<16x100xf32>
    %c4_192 = arith.constant 4 : index
    %c0_193 = arith.constant 0 : index
    %c0_194 = arith.constant 0 : index
    %223 = vector.load %arg11[%c4_192, %c0_193, %c0_194] : memref<9x16x32xbf16, #tpu.memory_space<vmem>>, vector<1x16x32xbf16>
    %224 = vector.shape_cast %223 : vector<1x16x32xbf16> to vector<16x32xbf16>
    %c0_195 = arith.constant 0 : index
    %c11_196 = arith.constant 11 : index
    %225 = vector.load %arg18[%c0_195, %c11_196] : memref<32x122xbf16, #tpu.memory_space<vmem>>, vector<32x100xbf16>
    %cst_197 = arith.constant dense<0.000000e+00> : vector<16x100xf32>
    %226 = tpu.matmul %224, %225, %cst_197 {dimension_numbers = #tpu.dot_dimension_numbers<[1], [0], [0], [1], [0, 0, 1, 1], [], []>} : vector<16x32xbf16>, vector<32x100xbf16>, vector<16x100xf32> -> vector<16x100xf32>
    %227 = arith.addf %222, %226 : vector<16x100xf32>
    %c5_198 = arith.constant 5 : index
    %c0_199 = arith.constant 0 : index
    %c0_200 = arith.constant 0 : index
    %228 = vector.load %arg11[%c5_198, %c0_199, %c0_200] : memref<9x16x32xbf16, #tpu.memory_space<vmem>>, vector<1x16x32xbf16>
    %229 = vector.shape_cast %228 : vector<1x16x32xbf16> to vector<16x32xbf16>
    %c0_201 = arith.constant 0 : index
    %c12 = arith.constant 12 : index
    %230 = vector.load %arg18[%c0_201, %c12] : memref<32x122xbf16, #tpu.memory_space<vmem>>, vector<32x100xbf16>
    %cst_202 = arith.constant dense<0.000000e+00> : vector<16x100xf32>
    %231 = tpu.matmul %229, %230, %cst_202 {dimension_numbers = #tpu.dot_dimension_numbers<[1], [0], [0], [1], [0, 0, 1, 1], [], []>} : vector<16x32xbf16>, vector<32x100xbf16>, vector<16x100xf32> -> vector<16x100xf32>
    %232 = arith.addf %227, %231 : vector<16x100xf32>
    %c6_203 = arith.constant 6 : index
    %c0_204 = arith.constant 0 : index
    %c0_205 = arith.constant 0 : index
    %233 = vector.load %arg11[%c6_203, %c0_204, %c0_205] : memref<9x16x32xbf16, #tpu.memory_space<vmem>>, vector<1x16x32xbf16>
    %234 = vector.shape_cast %233 : vector<1x16x32xbf16> to vector<16x32xbf16>
    %c0_206 = arith.constant 0 : index
    %c20_207 = arith.constant 20 : index
    %235 = vector.load %arg18[%c0_206, %c20_207] : memref<32x122xbf16, #tpu.memory_space<vmem>>, vector<32x100xbf16>
    %cst_208 = arith.constant dense<0.000000e+00> : vector<16x100xf32>
    %236 = tpu.matmul %234, %235, %cst_208 {dimension_numbers = #tpu.dot_dimension_numbers<[1], [0], [0], [1], [0, 0, 1, 1], [], []>} : vector<16x32xbf16>, vector<32x100xbf16>, vector<16x100xf32> -> vector<16x100xf32>
    %237 = arith.addf %232, %236 : vector<16x100xf32>
    %c7_209 = arith.constant 7 : index
    %c0_210 = arith.constant 0 : index
    %c0_211 = arith.constant 0 : index
    %238 = vector.load %arg11[%c7_209, %c0_210, %c0_211] : memref<9x16x32xbf16, #tpu.memory_space<vmem>>, vector<1x16x32xbf16>
    %239 = vector.shape_cast %238 : vector<1x16x32xbf16> to vector<16x32xbf16>
    %c0_212 = arith.constant 0 : index
    %c21 = arith.constant 21 : index
    %240 = vector.load %arg18[%c0_212, %c21] : memref<32x122xbf16, #tpu.memory_space<vmem>>, vector<32x100xbf16>
    %cst_213 = arith.constant dense<0.000000e+00> : vector<16x100xf32>
    %241 = tpu.matmul %239, %240, %cst_213 {dimension_numbers = #tpu.dot_dimension_numbers<[1], [0], [0], [1], [0, 0, 1, 1], [], []>} : vector<16x32xbf16>, vector<32x100xbf16>, vector<16x100xf32> -> vector<16x100xf32>
    %242 = arith.addf %237, %241 : vector<16x100xf32>
    %c8_214 = arith.constant 8 : index
    %c0_215 = arith.constant 0 : index
    %c0_216 = arith.constant 0 : index
    %243 = vector.load %arg11[%c8_214, %c0_215, %c0_216] : memref<9x16x32xbf16, #tpu.memory_space<vmem>>, vector<1x16x32xbf16>
    %244 = vector.shape_cast %243 : vector<1x16x32xbf16> to vector<16x32xbf16>
    %c0_217 = arith.constant 0 : index
    %c22 = arith.constant 22 : index
    %245 = vector.load %arg18[%c0_217, %c22] : memref<32x122xbf16, #tpu.memory_space<vmem>>, vector<32x100xbf16>
    %cst_218 = arith.constant dense<0.000000e+00> : vector<16x100xf32>
    %246 = tpu.matmul %244, %245, %cst_218 {dimension_numbers = #tpu.dot_dimension_numbers<[1], [0], [0], [1], [0, 0, 1, 1], [], []>} : vector<16x32xbf16>, vector<32x100xbf16>, vector<16x100xf32> -> vector<16x100xf32>
    %247 = arith.addf %242, %246 : vector<16x100xf32>
    %248 = vector.broadcast %1 : vector<1x100xf32> to vector<16x100xf32>
    %249 = arith.mulf %247, %248 : vector<16x100xf32>
    %cst_219 = arith.constant dense<0.000000e+00> : vector<16xf32>
    %250 = vector.multi_reduction <add>, %249, %cst_219 [1] : vector<16x100xf32> to vector<16xf32>
    %251 = vector.shape_cast %250 : vector<16xf32> to vector<16x1xf32>
    %cst_220 = arith.constant 1.562500e-02 : f32
    %252 = vector.broadcast %cst_220 : f32 to vector<16x1xf32>
    %253 = arith.mulf %251, %252 : vector<16x1xf32>
    %254 = arith.mulf %249, %249 : vector<16x100xf32>
    %cst_221 = arith.constant dense<0.000000e+00> : vector<16xf32>
    %255 = vector.multi_reduction <add>, %254, %cst_221 [1] : vector<16x100xf32> to vector<16xf32>
    %256 = vector.shape_cast %255 : vector<16xf32> to vector<16x1xf32>
    %cst_222 = arith.constant 1.562500e-02 : f32
    %257 = vector.broadcast %cst_222 : f32 to vector<16x1xf32>
    %258 = arith.mulf %256, %257 : vector<16x1xf32>
    %259 = arith.mulf %253, %253 : vector<16x1xf32>
    %260 = arith.subf %258, %259 : vector<16x1xf32>
    %261 = vector.broadcast %253 : vector<16x1xf32> to vector<16x100xf32>
    %262 = arith.subf %249, %261 : vector<16x100xf32>
    %cst_223 = arith.constant 9.99999974E-6 : f32
    %263 = vector.broadcast %cst_223 : f32 to vector<16x1xf32>
    %264 = arith.addf %260, %263 : vector<16x1xf32>
    %265 = math.rsqrt %264 : vector<16x1xf32>
    %266 = vector.broadcast %265 : vector<16x1xf32> to vector<16x100xf32>
    %267 = arith.mulf %262, %266 : vector<16x100xf32>
    %cst_224 = arith.constant 0.000000e+00 : f32
    %268 = vector.broadcast %cst_224 : f32 to vector<16x100xf32>
    %269 = arith.cmpf oge, %267, %268 : vector<16x100xf32>
    %cst_225 = arith.constant 0.00999999977 : f32
    %270 = vector.broadcast %cst_225 : f32 to vector<16x100xf32>
    %271 = arith.mulf %270, %267 : vector<16x100xf32>
    %272 = arith.select %269, %267, %271 : vector<16x100xi1>, vector<16x100xf32>
    %273 = vector.broadcast %1 : vector<1x100xf32> to vector<16x100xf32>
    %274 = arith.mulf %272, %273 : vector<16x100xf32>
    %c0_226 = arith.constant 0 : index
    %c0_227 = arith.constant 0 : index
    %c0_228 = arith.constant 0 : index
    %275 = vector.load %arg16[%c0_226, %c0_227, %c0_228] : memref<1x16x128xf32, #tpu.memory_space<vmem>>, vector<1x16x100xf32>
    %276 = vector.shape_cast %275 : vector<1x16x100xf32> to vector<16x100xf32>
    %277 = vector.shape_cast %274 : vector<16x100xf32> to vector<1x16x100xf32>
    tpu.vector_store %arg16[%c0_226, %c0_227, %c0_228], %277 {strides = array<i32>} : memref<1x16x128xf32, #tpu.memory_space<vmem>>, vector<1x16x100xf32>,
    %278 = arith.truncf %274 : vector<16x100xf32> to vector<16x100xbf16>
    %c0_229 = arith.constant 0 : index
    %c0_230 = arith.constant 0 : index
    %c0_231 = arith.constant 0 : index
    %279 = vector.load %arg12[%c0_229, %c0_230, %c0_231] : memref<4x8x16xbf16, #tpu.memory_space<vmem>>, vector<1x8x16xbf16>
    %280 = vector.shape_cast %279 : vector<1x8x16xbf16> to vector<8x16xbf16>
    %cst_232 = arith.constant dense<0.000000e+00> : vector<8x100xf32>
    %281 = tpu.matmul %280, %278, %cst_232 {dimension_numbers = #tpu.dot_dimension_numbers<[1], [0], [0], [1], [0, 0, 1, 1], [], []>} : vector<8x16xbf16>, vector<16x100xbf16>, vector<8x100xf32> -> vector<8x100xf32>
    %282 = arith.truncf %281 : vector<8x100xf32> to vector<8x100xbf16>
    %c0_233 = arith.constant 0 : index
    %c0_234 = arith.constant 0 : index
    %c0_235 = arith.constant 0 : index
    %283 = vector.load %arg14[%c0_233, %c0_234, %c0_235] : memref<4x100x324xbf16, #tpu.memory_space<vmem>>, vector<1x100x324xbf16>
    %284 = vector.shape_cast %283 : vector<1x100x324xbf16> to vector<100x324xbf16>
    %cst_236 = arith.constant dense<0.000000e+00> : vector<8x324xf32>
    %285 = tpu.matmul %282, %284, %cst_236 {dimension_numbers = #tpu.dot_dimension_numbers<[1], [0], [0], [1], [0, 0, 1, 1], [], []>} : vector<8x100xbf16>, vector<100x324xbf16>, vector<8x324xf32> -> vector<8x324xf32>
    %c1_237 = arith.constant 1 : index
    %c0_238 = arith.constant 0 : index
    %c0_239 = arith.constant 0 : index
    %286 = vector.load %arg12[%c1_237, %c0_238, %c0_239] : memref<4x8x16xbf16, #tpu.memory_space<vmem>>, vector<1x8x16xbf16>
    %287 = vector.shape_cast %286 : vector<1x8x16xbf16> to vector<8x16xbf16>
    %cst_240 = arith.constant dense<0.000000e+00> : vector<8x100xf32>
    %288 = tpu.matmul %287, %278, %cst_240 {dimension_numbers = #tpu.dot_dimension_numbers<[1], [0], [0], [1], [0, 0, 1, 1], [], []>} : vector<8x16xbf16>, vector<16x100xbf16>, vector<8x100xf32> -> vector<8x100xf32>
    %289 = arith.truncf %288 : vector<8x100xf32> to vector<8x100xbf16>
    %c1_241 = arith.constant 1 : index
    %c0_242 = arith.constant 0 : index
    %c0_243 = arith.constant 0 : index
    %290 = vector.load %arg14[%c1_241, %c0_242, %c0_243] : memref<4x100x324xbf16, #tpu.memory_space<vmem>>, vector<1x100x324xbf16>
    %291 = vector.shape_cast %290 : vector<1x100x324xbf16> to vector<100x324xbf16>
    %cst_244 = arith.constant dense<0.000000e+00> : vector<8x324xf32>
    %292 = tpu.matmul %289, %291, %cst_244 {dimension_numbers = #tpu.dot_dimension_numbers<[1], [0], [0], [1], [0, 0, 1, 1], [], []>} : vector<8x100xbf16>, vector<100x324xbf16>, vector<8x324xf32> -> vector<8x324xf32>
    %293 = arith.addf %285, %292 : vector<8x324xf32>
    %c2_245 = arith.constant 2 : index
    %c0_246 = arith.constant 0 : index
    %c0_247 = arith.constant 0 : index
    %294 = vector.load %arg12[%c2_245, %c0_246, %c0_247] : memref<4x8x16xbf16, #tpu.memory_space<vmem>>, vector<1x8x16xbf16>
    %295 = vector.shape_cast %294 : vector<1x8x16xbf16> to vector<8x16xbf16>
    %cst_248 = arith.constant dense<0.000000e+00> : vector<8x100xf32>
    %296 = tpu.matmul %295, %278, %cst_248 {dimension_numbers = #tpu.dot_dimension_numbers<[1], [0], [0], [1], [0, 0, 1, 1], [], []>} : vector<8x16xbf16>, vector<16x100xbf16>, vector<8x100xf32> -> vector<8x100xf32>
    %297 = arith.truncf %296 : vector<8x100xf32> to vector<8x100xbf16>
    %c2_249 = arith.constant 2 : index
    %c0_250 = arith.constant 0 : index
    %c0_251 = arith.constant 0 : index
    %298 = vector.load %arg14[%c2_249, %c0_250, %c0_251] : memref<4x100x324xbf16, #tpu.memory_space<vmem>>, vector<1x100x324xbf16>
    %299 = vector.shape_cast %298 : vector<1x100x324xbf16> to vector<100x324xbf16>
    %cst_252 = arith.constant dense<0.000000e+00> : vector<8x324xf32>
    %300 = tpu.matmul %297, %299, %cst_252 {dimension_numbers = #tpu.dot_dimension_numbers<[1], [0], [0], [1], [0, 0, 1, 1], [], []>} : vector<8x100xbf16>, vector<100x324xbf16>, vector<8x324xf32> -> vector<8x324xf32>
    %301 = arith.addf %293, %300 : vector<8x324xf32>
    %c3_253 = arith.constant 3 : index
    %c0_254 = arith.constant 0 : index
    %c0_255 = arith.constant 0 : index
    %302 = vector.load %arg12[%c3_253, %c0_254, %c0_255] : memref<4x8x16xbf16, #tpu.memory_space<vmem>>, vector<1x8x16xbf16>
    %303 = vector.shape_cast %302 : vector<1x8x16xbf16> to vector<8x16xbf16>
    %cst_256 = arith.constant dense<0.000000e+00> : vector<8x100xf32>
    %304 = tpu.matmul %303, %278, %cst_256 {dimension_numbers = #tpu.dot_dimension_numbers<[1], [0], [0], [1], [0, 0, 1, 1], [], []>} : vector<8x16xbf16>, vector<16x100xbf16>, vector<8x100xf32> -> vector<8x100xf32>
    %305 = arith.truncf %304 : vector<8x100xf32> to vector<8x100xbf16>
    %c3_257 = arith.constant 3 : index
    %c0_258 = arith.constant 0 : index
    %c0_259 = arith.constant 0 : index
    %306 = vector.load %arg14[%c3_257, %c0_258, %c0_259] : memref<4x100x324xbf16, #tpu.memory_space<vmem>>, vector<1x100x324xbf16>
    %307 = vector.shape_cast %306 : vector<1x100x324xbf16> to vector<100x324xbf16>
    %cst_260 = arith.constant dense<0.000000e+00> : vector<8x324xf32>
    %308 = tpu.matmul %305, %307, %cst_260 {dimension_numbers = #tpu.dot_dimension_numbers<[1], [0], [0], [1], [0, 0, 1, 1], [], []>} : vector<8x100xbf16>, vector<100x324xbf16>, vector<8x324xf32> -> vector<8x324xf32>
    %309 = arith.addf %301, %308 : vector<8x324xf32>
    %c0_261 = arith.constant 0 : index
    %c0_262 = arith.constant 0 : index
    %310 = vector.load %arg13[%c0_261, %c0_262] : memref<8x1xf32, #tpu.memory_space<vmem>>, vector<8x1xf32>
    %311 = vector.broadcast %310 : vector<8x1xf32> to vector<8x324xf32>
    %312 = arith.addf %309, %311 : vector<8x324xf32>
    %313 = vector.broadcast %0 : vector<1x324xf32> to vector<8x324xf32>
    %314 = arith.mulf %312, %313 : vector<8x324xf32>
    %315 = arith.truncf %314 : vector<8x324xf32> to vector<8x324xbf16>
    %c0_263 = arith.constant 0 : index
    %c19_264 = arith.constant 19 : index
    %316 = vector.load %arg19[%c0_263, %c19_264] : memref<16x362xbf16, #tpu.memory_space<vmem>>, vector<8x324xbf16>
    tpu.vector_store %arg19[%c0_263, %c19_264], %315 {strides = array<i32>} : memref<16x362xbf16, #tpu.memory_space<vmem>>, vector<8x324xbf16>,
    %c0_265 = arith.constant 0 : index
    %c0_266 = arith.constant 0 : index
    %c0_267 = arith.constant 0 : index
    %317 = vector.load %arg15[%c0_265, %c0_266, %c0_267] : memref<9x8x16xbf16, #tpu.memory_space<vmem>>, vector<1x8x16xbf16>
    %318 = vector.shape_cast %317 : vector<1x8x16xbf16> to vector<8x16xbf16>
    %c0_268 = arith.constant 0 : index
    %c0_269 = arith.constant 0 : index
    %319 = vector.load %arg19[%c0_268, %c0_269] : memref<16x362xbf16, #tpu.memory_space<vmem>>, vector<16x324xbf16>
    %cst_270 = arith.constant dense<0.000000e+00> : vector<8x324xf32>
    %320 = tpu.matmul %318, %319, %cst_270 {dimension_numbers = #tpu.dot_dimension_numbers<[1], [0], [0], [1], [0, 0, 1, 1], [], []>} : vector<8x16xbf16>, vector<16x324xbf16>, vector<8x324xf32> -> vector<8x324xf32>
    %c1_271 = arith.constant 1 : index
    %c0_272 = arith.constant 0 : index
    %c0_273 = arith.constant 0 : index
    %321 = vector.load %arg15[%c1_271, %c0_272, %c0_273] : memref<9x8x16xbf16, #tpu.memory_space<vmem>>, vector<1x8x16xbf16>
    %322 = vector.shape_cast %321 : vector<1x8x16xbf16> to vector<8x16xbf16>
    %c0_274 = arith.constant 0 : index
    %c1_275 = arith.constant 1 : index
    %323 = vector.load %arg19[%c0_274, %c1_275] : memref<16x362xbf16, #tpu.memory_space<vmem>>, vector<16x324xbf16>
    %cst_276 = arith.constant dense<0.000000e+00> : vector<8x324xf32>
    %324 = tpu.matmul %322, %323, %cst_276 {dimension_numbers = #tpu.dot_dimension_numbers<[1], [0], [0], [1], [0, 0, 1, 1], [], []>} : vector<8x16xbf16>, vector<16x324xbf16>, vector<8x324xf32> -> vector<8x324xf32>
    %325 = arith.addf %320, %324 : vector<8x324xf32>
    %c2_277 = arith.constant 2 : index
    %c0_278 = arith.constant 0 : index
    %c0_279 = arith.constant 0 : index
    %326 = vector.load %arg15[%c2_277, %c0_278, %c0_279] : memref<9x8x16xbf16, #tpu.memory_space<vmem>>, vector<1x8x16xbf16>
    %327 = vector.shape_cast %326 : vector<1x8x16xbf16> to vector<8x16xbf16>
    %c0_280 = arith.constant 0 : index
    %c2_281 = arith.constant 2 : index
    %328 = vector.load %arg19[%c0_280, %c2_281] : memref<16x362xbf16, #tpu.memory_space<vmem>>, vector<16x324xbf16>
    %cst_282 = arith.constant dense<0.000000e+00> : vector<8x324xf32>
    %329 = tpu.matmul %327, %328, %cst_282 {dimension_numbers = #tpu.dot_dimension_numbers<[1], [0], [0], [1], [0, 0, 1, 1], [], []>} : vector<8x16xbf16>, vector<16x324xbf16>, vector<8x324xf32> -> vector<8x324xf32>
    %330 = arith.addf %325, %329 : vector<8x324xf32>
    %c3_283 = arith.constant 3 : index
    %c0_284 = arith.constant 0 : index
    %c0_285 = arith.constant 0 : index
    %331 = vector.load %arg15[%c3_283, %c0_284, %c0_285] : memref<9x8x16xbf16, #tpu.memory_space<vmem>>, vector<1x8x16xbf16>
    %332 = vector.shape_cast %331 : vector<1x8x16xbf16> to vector<8x16xbf16>
    %c0_286 = arith.constant 0 : index
    %c18_287 = arith.constant 18 : index
    %333 = vector.load %arg19[%c0_286, %c18_287] : memref<16x362xbf16, #tpu.memory_space<vmem>>, vector<16x324xbf16>
    %cst_288 = arith.constant dense<0.000000e+00> : vector<8x324xf32>
    %334 = tpu.matmul %332, %333, %cst_288 {dimension_numbers = #tpu.dot_dimension_numbers<[1], [0], [0], [1], [0, 0, 1, 1], [], []>} : vector<8x16xbf16>, vector<16x324xbf16>, vector<8x324xf32> -> vector<8x324xf32>
    %335 = arith.addf %330, %334 : vector<8x324xf32>
    %c4_289 = arith.constant 4 : index
    %c0_290 = arith.constant 0 : index
    %c0_291 = arith.constant 0 : index
    %336 = vector.load %arg15[%c4_289, %c0_290, %c0_291] : memref<9x8x16xbf16, #tpu.memory_space<vmem>>, vector<1x8x16xbf16>
    %337 = vector.shape_cast %336 : vector<1x8x16xbf16> to vector<8x16xbf16>
    %c0_292 = arith.constant 0 : index
    %c19_293 = arith.constant 19 : index
    %338 = vector.load %arg19[%c0_292, %c19_293] : memref<16x362xbf16, #tpu.memory_space<vmem>>, vector<16x324xbf16>
    %cst_294 = arith.constant dense<0.000000e+00> : vector<8x324xf32>
    %339 = tpu.matmul %337, %338, %cst_294 {dimension_numbers = #tpu.dot_dimension_numbers<[1], [0], [0], [1], [0, 0, 1, 1], [], []>} : vector<8x16xbf16>, vector<16x324xbf16>, vector<8x324xf32> -> vector<8x324xf32>
    %340 = arith.addf %335, %339 : vector<8x324xf32>
    %c5_295 = arith.constant 5 : index
    %c0_296 = arith.constant 0 : index
    %c0_297 = arith.constant 0 : index
    %341 = vector.load %arg15[%c5_295, %c0_296, %c0_297] : memref<9x8x16xbf16, #tpu.memory_space<vmem>>, vector<1x8x16xbf16>
    %342 = vector.shape_cast %341 : vector<1x8x16xbf16> to vector<8x16xbf16>
    %c0_298 = arith.constant 0 : index
    %c20_299 = arith.constant 20 : index
    %343 = vector.load %arg19[%c0_298, %c20_299] : memref<16x362xbf16, #tpu.memory_space<vmem>>, vector<16x324xbf16>
    %cst_300 = arith.constant dense<0.000000e+00> : vector<8x324xf32>
    %344 = tpu.matmul %342, %343, %cst_300 {dimension_numbers = #tpu.dot_dimension_numbers<[1], [0], [0], [1], [0, 0, 1, 1], [], []>} : vector<8x16xbf16>, vector<16x324xbf16>, vector<8x324xf32> -> vector<8x324xf32>
    %345 = arith.addf %340, %344 : vector<8x324xf32>
    %c6_301 = arith.constant 6 : index
    %c0_302 = arith.constant 0 : index
    %c0_303 = arith.constant 0 : index
    %346 = vector.load %arg15[%c6_301, %c0_302, %c0_303] : memref<9x8x16xbf16, #tpu.memory_space<vmem>>, vector<1x8x16xbf16>
    %347 = vector.shape_cast %346 : vector<1x8x16xbf16> to vector<8x16xbf16>
    %c0_304 = arith.constant 0 : index
    %c36_305 = arith.constant 36 : index
    %348 = vector.load %arg19[%c0_304, %c36_305] : memref<16x362xbf16, #tpu.memory_space<vmem>>, vector<16x324xbf16>
    %cst_306 = arith.constant dense<0.000000e+00> : vector<8x324xf32>
    %349 = tpu.matmul %347, %348, %cst_306 {dimension_numbers = #tpu.dot_dimension_numbers<[1], [0], [0], [1], [0, 0, 1, 1], [], []>} : vector<8x16xbf16>, vector<16x324xbf16>, vector<8x324xf32> -> vector<8x324xf32>
    %350 = arith.addf %345, %349 : vector<8x324xf32>
    %c7_307 = arith.constant 7 : index
    %c0_308 = arith.constant 0 : index
    %c0_309 = arith.constant 0 : index
    %351 = vector.load %arg15[%c7_307, %c0_308, %c0_309] : memref<9x8x16xbf16, #tpu.memory_space<vmem>>, vector<1x8x16xbf16>
    %352 = vector.shape_cast %351 : vector<1x8x16xbf16> to vector<8x16xbf16>
    %c0_310 = arith.constant 0 : index
    %c37_311 = arith.constant 37 : index
    %353 = vector.load %arg19[%c0_310, %c37_311] : memref<16x362xbf16, #tpu.memory_space<vmem>>, vector<16x324xbf16>
    %cst_312 = arith.constant dense<0.000000e+00> : vector<8x324xf32>
    %354 = tpu.matmul %352, %353, %cst_312 {dimension_numbers = #tpu.dot_dimension_numbers<[1], [0], [0], [1], [0, 0, 1, 1], [], []>} : vector<8x16xbf16>, vector<16x324xbf16>, vector<8x324xf32> -> vector<8x324xf32>
    %355 = arith.addf %350, %354 : vector<8x324xf32>
    %c8_313 = arith.constant 8 : index
    %c0_314 = arith.constant 0 : index
    %c0_315 = arith.constant 0 : index
    %356 = vector.load %arg15[%c8_313, %c0_314, %c0_315] : memref<9x8x16xbf16, #tpu.memory_space<vmem>>, vector<1x8x16xbf16>
    %357 = vector.shape_cast %356 : vector<1x8x16xbf16> to vector<8x16xbf16>
    %c0_316 = arith.constant 0 : index
    %c38_317 = arith.constant 38 : index
    %358 = vector.load %arg19[%c0_316, %c38_317] : memref<16x362xbf16, #tpu.memory_space<vmem>>, vector<16x324xbf16>
    %cst_318 = arith.constant dense<0.000000e+00> : vector<8x324xf32>
    %359 = tpu.matmul %357, %358, %cst_318 {dimension_numbers = #tpu.dot_dimension_numbers<[1], [0], [0], [1], [0, 0, 1, 1], [], []>} : vector<8x16xbf16>, vector<16x324xbf16>, vector<8x324xf32> -> vector<8x324xf32>
    %360 = arith.addf %355, %359 : vector<8x324xf32>
    %361 = vector.broadcast %0 : vector<1x324xf32> to vector<8x324xf32>
    %362 = arith.mulf %360, %361 : vector<8x324xf32>
    %cst_319 = arith.constant dense<0.000000e+00> : vector<8xf32>
    %363 = vector.multi_reduction <add>, %362, %cst_319 [1] : vector<8x324xf32> to vector<8xf32>
    %364 = vector.shape_cast %363 : vector<8xf32> to vector<8x1xf32>
    %cst_320 = arith.constant 3.906250e-03 : f32
    %365 = vector.broadcast %cst_320 : f32 to vector<8x1xf32>
    %366 = arith.mulf %364, %365 : vector<8x1xf32>
    %367 = arith.mulf %362, %362 : vector<8x324xf32>
    %cst_321 = arith.constant dense<0.000000e+00> : vector<8xf32>
    %368 = vector.multi_reduction <add>, %367, %cst_321 [1] : vector<8x324xf32> to vector<8xf32>
    %369 = vector.shape_cast %368 : vector<8xf32> to vector<8x1xf32>
    %cst_322 = arith.constant 3.906250e-03 : f32
    %370 = vector.broadcast %cst_322 : f32 to vector<8x1xf32>
    %371 = arith.mulf %369, %370 : vector<8x1xf32>
    %372 = arith.mulf %366, %366 : vector<8x1xf32>
    %373 = arith.subf %371, %372 : vector<8x1xf32>
    %374 = vector.broadcast %366 : vector<8x1xf32> to vector<8x324xf32>
    %375 = arith.subf %362, %374 : vector<8x324xf32>
    %cst_323 = arith.constant 9.99999974E-6 : f32
    %376 = vector.broadcast %cst_323 : f32 to vector<8x1xf32>
    %377 = arith.addf %373, %376 : vector<8x1xf32>
    %378 = math.rsqrt %377 : vector<8x1xf32>
    %379 = vector.broadcast %378 : vector<8x1xf32> to vector<8x324xf32>
    %380 = arith.mulf %375, %379 : vector<8x324xf32>
    %cst_324 = arith.constant 0.000000e+00 : f32
    %381 = vector.broadcast %cst_324 : f32 to vector<8x324xf32>
    %382 = arith.cmpf oge, %380, %381 : vector<8x324xf32>
    %cst_325 = arith.constant 0.00999999977 : f32
    %383 = vector.broadcast %cst_325 : f32 to vector<8x324xf32>
    %384 = arith.mulf %383, %380 : vector<8x324xf32>
    %385 = arith.select %382, %380, %384 : vector<8x324xi1>, vector<8x324xf32>
    %386 = vector.broadcast %0 : vector<1x324xf32> to vector<8x324xf32>
    %387 = arith.mulf %385, %386 : vector<8x324xf32>
    %c0_326 = arith.constant 0 : index
    %c0_327 = arith.constant 0 : index
    %c0_328 = arith.constant 0 : index
    %388 = vector.load %arg17[%c0_326, %c0_327, %c0_328] : memref<1x8x384xf32, #tpu.memory_space<vmem>>, vector<1x8x324xf32>
    %389 = vector.shape_cast %388 : vector<1x8x324xf32> to vector<8x324xf32>
    %390 = vector.shape_cast %387 : vector<8x324xf32> to vector<1x8x324xf32>
    tpu.vector_store %arg17[%c0_326, %c0_327, %c0_328], %390 {strides = array<i32>} : memref<1x8x384xf32, #tpu.memory_space<vmem>>, vector<1x8x324xf32>,
    return
  }
  func.func @transform_0(%arg0: i32) -> (i32, i32, i32) {
    %c0_i32 = arith.constant 0 : i32
    %c0_i32_0 = arith.constant 0 : i32
    %c0_i32_1 = arith.constant 0 : i32
    return %arg0, %c0_i32, %c0_i32_0 : i32, i32, i32
  }
  func.func @transform_1(%arg0: i32) -> (i32, i32, i32) {
    %c0_i32 = arith.constant 0 : i32
    %c0_i32_0 = arith.constant 0 : i32
    %c0_i32_1 = arith.constant 0 : i32
    return %arg0, %c0_i32, %c0_i32_0 : i32, i32, i32
  }
  func.func @transform_2(%arg0: i32) -> (i32, i32, i32) {
    %c0_i32 = arith.constant 0 : i32
    %c0_i32_0 = arith.constant 0 : i32
    %c0_i32_1 = arith.constant 0 : i32
    %c0_i32_2 = arith.constant 0 : i32
    return %c0_i32, %c0_i32_0, %c0_i32_1 : i32, i32, i32
  }
  func.func @transform_3(%arg0: i32) -> (i32, i32) {
    %c0_i32 = arith.constant 0 : i32
    %c0_i32_0 = arith.constant 0 : i32
    %c0_i32_1 = arith.constant 0 : i32
    return %c0_i32, %c0_i32_0 : i32, i32
  }
  func.func @transform_4(%arg0: i32) -> (i32, i32, i32) {
    %c0_i32 = arith.constant 0 : i32
    %c0_i32_0 = arith.constant 0 : i32
    %c0_i32_1 = arith.constant 0 : i32
    %c0_i32_2 = arith.constant 0 : i32
    return %c0_i32, %c0_i32_0, %c0_i32_1 : i32, i32, i32
  }
  func.func @transform_5(%arg0: i32) -> (i32, i32) {
    %c0_i32 = arith.constant 0 : i32
    %c0_i32_0 = arith.constant 0 : i32
    %c0_i32_1 = arith.constant 0 : i32
    return %c0_i32, %c0_i32_0 : i32, i32
  }
  func.func @transform_6(%arg0: i32) -> (i32, i32) {
    %c0_i32 = arith.constant 0 : i32
    %c0_i32_0 = arith.constant 0 : i32
    %c0_i32_1 = arith.constant 0 : i32
    return %c0_i32, %c0_i32_0 : i32, i32
  }
  func.func @transform_7(%arg0: i32) -> (i32, i32, i32) {
    %c0_i32 = arith.constant 0 : i32
    %c0_i32_0 = arith.constant 0 : i32
    %c0_i32_1 = arith.constant 0 : i32
    %c0_i32_2 = arith.constant 0 : i32
    return %c0_i32, %c0_i32_0, %c0_i32_1 : i32, i32, i32
  }
  func.func @transform_8(%arg0: i32) -> (i32, i32) {
    %c0_i32 = arith.constant 0 : i32
    %c0_i32_0 = arith.constant 0 : i32
    %c0_i32_1 = arith.constant 0 : i32
    return %c0_i32, %c0_i32_0 : i32, i32
  }
  func.func @transform_9(%arg0: i32) -> (i32, i32, i32) {
    %c0_i32 = arith.constant 0 : i32
    %c0_i32_0 = arith.constant 0 : i32
    %c0_i32_1 = arith.constant 0 : i32
    %c0_i32_2 = arith.constant 0 : i32
    return %c0_i32, %c0_i32_0, %c0_i32_1 : i32, i32, i32
  }
  func.func @transform_10(%arg0: i32) -> (i32, i32, i32) {
    %c0_i32 = arith.constant 0 : i32
    %c0_i32_0 = arith.constant 0 : i32
    %c0_i32_1 = arith.constant 0 : i32
    %c0_i32_2 = arith.constant 0 : i32
    return %c0_i32, %c0_i32_0, %c0_i32_1 : i32, i32, i32
  }
  func.func @transform_11(%arg0: i32) -> (i32, i32, i32) {
    %c0_i32 = arith.constant 0 : i32
    %c0_i32_0 = arith.constant 0 : i32
    %c0_i32_1 = arith.constant 0 : i32
    %c0_i32_2 = arith.constant 0 : i32
    return %c0_i32, %c0_i32_0, %c0_i32_1 : i32, i32, i32
  }
  func.func @transform_12(%arg0: i32) -> (i32, i32) {
    %c0_i32 = arith.constant 0 : i32
    %c0_i32_0 = arith.constant 0 : i32
    %c0_i32_1 = arith.constant 0 : i32
    return %c0_i32, %c0_i32_0 : i32, i32
  }
  func.func @transform_13(%arg0: i32) -> (i32, i32, i32) {
    %c0_i32 = arith.constant 0 : i32
    %c0_i32_0 = arith.constant 0 : i32
    %c0_i32_1 = arith.constant 0 : i32
    %c0_i32_2 = arith.constant 0 : i32
    return %c0_i32, %c0_i32_0, %c0_i32_1 : i32, i32, i32
  }
  func.func @transform_14(%arg0: i32) -> (i32, i32, i32) {
    %c0_i32 = arith.constant 0 : i32
    %c0_i32_0 = arith.constant 0 : i32
    %c0_i32_1 = arith.constant 0 : i32
    %c0_i32_2 = arith.constant 0 : i32
    return %c0_i32, %c0_i32_0, %c0_i32_1 : i32, i32, i32
  }
  func.func @transform_15(%arg0: i32) -> (i32, i32, i32) {
    %c0_i32 = arith.constant 0 : i32
    %c0_i32_0 = arith.constant 0 : i32
    %c0_i32_1 = arith.constant 0 : i32
    return %arg0, %c0_i32, %c0_i32_0 : i32, i32, i32
  }
  func.func @transform_16(%arg0: i32) -> (i32, i32, i32) {
    %c0_i32 = arith.constant 0 : i32
    %c0_i32_0 = arith.constant 0 : i32
    %c0_i32_1 = arith.constant 0 : i32
    return %arg0, %c0_i32, %c0_i32_0 : i32, i32, i32
  }
}

</mosaic_0001>

<llo_original>
// kernel: tpu_custom_call.1
$region0: #{tpu_custom_call.1}
  #allocation0 [shape = 'u32[]', space=smem, size = 0x4, offset = 0x4, fixed_abs, tag = 'smem constant byte address 0x4 - core index']
  #allocation1 [shape = 'u32[144,128]{1,0:T(1,128)}', space=vmem, size = 0x12000, scoped, tag = 'internal scratch']
  #allocation2 [shape = 'bf16[32,122]{1,0:T(8,128)(2,1)}', space=vmem, size = 0x2000, scoped, tag = 'scratch operand']
  #allocation3 [shape = 'bf16[16,362]{1,0:T(8,128)(2,1)}', space=vmem, size = 0x3000, scoped, tag = 'scratch operand']
  %s0 = inlined_call_operand.vmem [shape: bf16[2,4,362], index: 0, kind: input, shape index: {}]
  %s1 = inlined_call_operand.vmem [shape: bf16[2,32,36], index: 1, kind: input, shape index: {}]
  %s2 = inlined_call_operand.vmem [shape: bf16[9,8,4], index: 2, kind: input, shape index: {}]
  %s3 = inlined_call_operand.vmem [shape: f32[1,324], index: 3, kind: input, shape index: {}]
  %s4 = inlined_call_operand.vmem [shape: bf16[9,16,8], index: 4, kind: input, shape index: {}]
  %s5 = inlined_call_operand.vmem [shape: bf16[324,100], index: 5, kind: input, shape index: {}]
  %s6 = inlined_call_operand.vmem [shape: f32[1,100], index: 6, kind: input, shape index: {}]
  %s7 = inlined_call_operand.vmem [shape: bf16[4,16,32], index: 7, kind: input, shape index: {}]
  %s8 = inlined_call_operand.vmem [shape: f32[16,1], index: 8, kind: input, shape index: {}]
  %s9 = inlined_call_operand.vmem [shape: bf16[4,36,100], index: 9, kind: input, shape index: {}]
  %s10 = inlined_call_operand.vmem [shape: bf16[9,16,32], index: 10, kind: input, shape index: {}]
  %s11 = inlined_call_operand.vmem [shape: bf16[4,8,16], index: 11, kind: input, shape index: {}]
  %s12 = inlined_call_operand.vmem [shape: f32[8,1], index: 12, kind: input, shape index: {}]
  %s13 = inlined_call_operand.vmem [shape: bf16[4,100,324], index: 13, kind: input, shape index: {}]
  %s14 = inlined_call_operand.vmem [shape: bf16[9,8,16], index: 14, kind: input, shape index: {}]
  %s15 = inlined_call_operand.hbm [shape: f32[2,16,128], index: 15, kind: output, shape index: {0}]
  %s16 = inlined_call_operand.hbm [shape: f32[2,8,384], index: 16, kind: output, shape index: {1}]
  %17 = xla_tuple %s15, %s16
  %s18 = sld [smem:[#allocation0]]
  $region101: #{tpu_custom_call.1} parent=0
    _
  %s20 = ssub.s32 1, %s18
  %s21 = scalar_select 0, %s20, %s18
  $region1: #{tpu_custom_call.1} parent=0
    #allocation4 [shape = 'u8[16384]{0}', space=vmem, size = 0x4000, scoped, tag = 'output window, operand 0']
    #allocation5 [shape = 's32[2]{0}', space=sflag, size = 0x8, scoped, tag = 'scoped memory for tpu_custom_call.1']
    #allocation6 [shape = 'u8[24576]{0}', space=vmem, size = 0x6000, scoped, tag = 'output window, operand 1']
    #allocation7 [shape = 's32[2]{0}', space=sflag, size = 0x8, scoped, tag = 'scoped memory for tpu_custom_call.1']
    %22 = vsyncpa [#allocation5], 0
    %s23 = scalar_lea.sflag [#allocation5], 1
    %24 = vsyncpa %s23, 0
    %25 = vsyncpa [#allocation7], 0
    %s26 = scalar_lea.sflag [#allocation7], 1
    %27 = vsyncpa %s26, 0
    loop: start=0, step=1, limit=4
    $region2: #{tpu_custom_call.1} parent=1 // loop_pre_header
      _
    $region3: #{tpu_custom_call.1} parent=1 // loop_header
      %s29 = sphi 0, %s33
      %p30 = scmp.ge.s32.totalorder %s29, 4
      %s39 = sphi 0, %s41
      %s42 = sphi 0, %s39
      %s43 = sphi 0, %s42
      %s59 = sphi 0, %s43
      %s65 = sphi 0, %s67
      %s68 = sphi 0, %s65
      %s69 = sphi 0, %s68
      %s85 = sphi 0, %s69
      %s89 = sphi 0, %s89
      %s91 = sphi 0, %s89
      %s92 = sphi 0, %s91
      %s106 = sphi 0, %s92
      %s110 = sphi 0, %s110
      %s112 = sphi 0, %s110
      %s113 = sphi 0, %s112
      %s127 = sphi 0, %s113
      %s131 = sphi 0, %s131
      %s133 = sphi 0, %s131
      %s134 = sphi 0, %s133
      %s148 = sphi 0, %s134
      %s152 = sphi 0, %s152
      %s154 = sphi 0, %s152
      %s155 = sphi 0, %s154
      %s169 = sphi 0, %s155
      %s173 = sphi 0, %s173
      %s175 = sphi 0, %s173
      %s176 = sphi 0, %s175
      %s190 = sphi 0, %s176
      %s194 = sphi 0, %s194
      %s196 = sphi 0, %s194
      %s197 = sphi 0, %s196
      %s211 = sphi 0, %s197
      %s215 = sphi 0, %s215
      %s217 = sphi 0, %s215
      %s218 = sphi 0, %s217
      %s232 = sphi 0, %s218
      %s236 = sphi 0, %s236
      %s238 = sphi 0, %s236
      %s239 = sphi 0, %s238
      %s253 = sphi 0, %s239
      %s257 = sphi 0, %s257
      %s259 = sphi 0, %s257
      %s260 = sphi 0, %s259
      %s274 = sphi 0, %s260
      %s278 = sphi 0, %s278
      %s280 = sphi 0, %s278
      %s281 = sphi 0, %s280
      %s295 = sphi 0, %s281
      %s299 = sphi 0, %s299
      %s301 = sphi 0, %s299
      %s302 = sphi 0, %s301
      %s316 = sphi 0, %s302
      %s320 = sphi 0, %s320
      %s322 = sphi 0, %s320
      %s323 = sphi 0, %s322
      %s337 = sphi 0, %s323
      %s341 = sphi 0, %s341
      %s343 = sphi 0, %s341
      %s344 = sphi 0, %s343
      %s358 = sphi 0, %s344
      %s364 = sphi 0, %s366
      %s367 = sphi 0, %s364
      %s368 = sphi 0, %s367
      %s384 = sphi 0, %s368
      %s390 = sphi 0, %s392
      %s393 = sphi 0, %s390
      %s394 = sphi 0, %s393
      %s410 = sphi 0, %s394
    $region4: #{tpu_custom_call.1} parent=1 // loop_header_branch
      %32 = sbr.rel (%p30) target = $region8
    $region5: #{tpu_custom_call.1} parent=1 // loop_body
      %s34 = ssub.s32 %s29, 1
      %s35 = ssub.s32 %s29, 2
      %s36 = sadd.s32 %s29, 1
      %s37 = ssub.s32 %s29, %s36
      %p38 = scmp.eq.s32.totalorder %s37, 0
      %s40 = sadd.s32 %s39, 1
      %s41 = scalar_select %p38, %s39, %s40
      %p44 = pneg %p38
      %p45 = scmp.eq.s32.totalorder %s29, 1
      %p46 = por %p44, %p45
      %p47 = scmp.ne.s32.totalorder %s39, %s42
      %p48 = scmp.eq.s32.totalorder %s29, 0
      %p49 = por %p47, %p48
      %p50 = scmp.ne.s32.totalorder %s39, %s42
      %p51 = scmp.eq.s32.totalorder %s34, 1
      %p52 = por %p50, %p51
      %p53 = scmp.ne.s32.totalorder %s42, %s43
      %p54 = scmp.eq.s32.totalorder %s34, 0
      %p55 = por %p53, %p54
      %p56 = scmp.ne.s32.totalorder %s42, %s43
      %p57 = scmp.eq.s32.totalorder %s35, 1
      %p58 = por %p56, %p57
      %p60 = scmp.ne.s32.totalorder %s43, %s59
      %p61 = scmp.eq.s32.totalorder %s35, 0
      %p62 = por %p60, %p61
      %s63 = ssub.s32 %s29, %s36
      %p64 = scmp.eq.s32.totalorder %s63, 0
      %s66 = sadd.s32 %s65, 1
      %s67 = scalar_select %p64, %s65, %s66
      %p70 = pneg %p64
      %p71 = scmp.eq.s32.totalorder %s29, 1
      %p72 = por %p70, %p71
      %p73 = scmp.ne.s32.totalorder %s65, %s68
      %p74 = scmp.eq.s32.totalorder %s29, 0
      %p75 = por %p73, %p74
      %p76 = scmp.ne.s32.totalorder %s65, %s68
      %p77 = scmp.eq.s32.totalorder %s34, 1
      %p78 = por %p76, %p77
      %p79 = scmp.ne.s32.totalorder %s68, %s69
      %p80 = scmp.eq.s32.totalorder %s34, 0
      %p81 = por %p79, %p80
      %p82 = scmp.ne.s32.totalorder %s68, %s69
      %p83 = scmp.eq.s32.totalorder %s35, 1
      %p84 = por %p82, %p83
      %p86 = scmp.ne.s32.totalorder %s69, %s85
      %p87 = scmp.eq.s32.totalorder %s35, 0
      %p88 = por %p86, %p87
      %s90 = sadd.s32 %s89, 1
      %p93 = scmp.eq.s32.totalorder %s29, 1
      %p94 = scmp.ne.s32.totalorder %s89, %s91
      %p95 = scmp.eq.s32.totalorder %s29, 0
      %p96 = por %p94, %p95
      %p97 = scmp.ne.s32.totalorder %s89, %s91
      %p98 = scmp.eq.s32.totalorder %s34, 1
      %p99 = por %p97, %p98
      %p100 = scmp.ne.s32.totalorder %s91, %s92
      %p101 = scmp.eq.s32.totalorder %s34, 0
      %p102 = por %p100, %p101
      %p103 = scmp.ne.s32.totalorder %s91, %s92
      %p104 = scmp.eq.s32.totalorder %s35, 1
      %p105 = por %p103, %p104
      %p107 = scmp.ne.s32.totalorder %s92, %s106
      %p108 = scmp.eq.s32.totalorder %s35, 0
      %p109 = por %p107, %p108
      %s111 = sadd.s32 %s110, 1
      %p114 = scmp.eq.s32.totalorder %s29, 1
      %p115 = scmp.ne.s32.totalorder %s110, %s112
      %p116 = scmp.eq.s32.totalorder %s29, 0
      %p117 = por %p115, %p116
      %p118 = scmp.ne.s32.totalorder %s110, %s112
      %p119 = scmp.eq.s32.totalorder %s34, 1
      %p120 = por %p118, %p119
      %p121 = scmp.ne.s32.totalorder %s112, %s113
      %p122 = scmp.eq.s32.totalorder %s34, 0
      %p123 = por %p121, %p122
      %p124 = scmp.ne.s32.totalorder %s112, %s113
      %p125 = scmp.eq.s32.totalorder %s35, 1
      %p126 = por %p124, %p125
      %p128 = scmp.ne.s32.totalorder %s113, %s127
      %p129 = scmp.eq.s32.totalorder %s35, 0
      %p130 = por %p128, %p129
      %s132 = sadd.s32 %s131, 1
      %p135 = scmp.eq.s32.totalorder %s29, 1
      %p136 = scmp.ne.s32.totalorder %s131, %s133
      %p137 = scmp.eq.s32.totalorder %s29, 0
      %p138 = por %p136, %p137
      %p139 = scmp.ne.s32.totalorder %s131, %s133
      %p140 = scmp.eq.s32.totalorder %s34, 1
      %p141 = por %p139, %p140
      %p142 = scmp.ne.s32.totalorder %s133, %s134
      %p143 = scmp.eq.s32.totalorder %s34, 0
      %p144 = por %p142, %p143
      %p145 = scmp.ne.s32.totalorder %s133, %s134
      %p146 = scmp.eq.s32.totalorder %s35, 1
      %p147 = por %p145, %p146
      %p149 = scmp.ne.s32.totalorder %s134, %s148
      %p150 = scmp.eq.s32.totalorder %s35, 0
      %p151 = por %p149, %p150
      %s153 = sadd.s32 %s152, 1
      %p156 = scmp.eq.s32.totalorder %s29, 1
      %p157 = scmp.ne.s32.totalorder %s152, %s154
      %p158 = scmp.eq.s32.totalorder %s29, 0
      %p159 = por %p157, %p158
      %p160 = scmp.ne.s32.totalorder %s152, %s154
      %p161 = scmp.eq.s32.totalorder %s34, 1
      %p162 = por %p160, %p161
      %p163 = scmp.ne.s32.totalorder %s154, %s155
      %p164 = scmp.eq.s32.totalorder %s34, 0
      %p165 = por %p163, %p164
      %p166 = scmp.ne.s32.totalorder %s154, %s155
      %p167 = scmp.eq.s32.totalorder %s35, 1
      %p168 = por %p166, %p167
      %p170 = scmp.ne.s32.totalorder %s155, %s169
      %p171 = scmp.eq.s32.totalorder %s35, 0
      %p172 = por %p170, %p171
      %s174 = sadd.s32 %s173, 1
      %p177 = scmp.eq.s32.totalorder %s29, 1
      %p178 = scmp.ne.s32.totalorder %s173, %s175
      %p179 = scmp.eq.s32.totalorder %s29, 0
      %p180 = por %p178, %p179
      %p181 = scmp.ne.s32.totalorder %s173, %s175
      %p182 = scmp.eq.s32.totalorder %s34, 1
      %p183 = por %p181, %p182
      %p184 = scmp.ne.s32.totalorder %s175, %s176
      %p185 = scmp.eq.s32.totalorder %s34, 0
      %p186 = por %p184, %p185
      %p187 = scmp.ne.s32.totalorder %s175, %s176
      %p188 = scmp.eq.s32.totalorder %s35, 1
      %p189 = por %p187, %p188
      %p191 = scmp.ne.s32.totalorder %s176, %s190
      %p192 = scmp.eq.s32.totalorder %s35, 0
      %p193 = por %p191, %p192
      %s195 = sadd.s32 %s194, 1
      %p198 = scmp.eq.s32.totalorder %s29, 1
      %p199 = scmp.ne.s32.totalorder %s194, %s196
      %p200 = scmp.eq.s32.totalorder %s29, 0
      %p201 = por %p199, %p200
      %p202 = scmp.ne.s32.totalorder %s194, %s196
      %p203 = scmp.eq.s32.totalorder %s34, 1
      %p204 = por %p202, %p203
      %p205 = scmp.ne.s32.totalorder %s196, %s197
      %p206 = scmp.eq.s32.totalorder %s34, 0
      %p207 = por %p205, %p206
      %p208 = scmp.ne.s32.totalorder %s196, %s197
      %p209 = scmp.eq.s32.totalorder %s35, 1
      %p210 = por %p208, %p209
      %p212 = scmp.ne.s32.totalorder %s197, %s211
      %p213 = scmp.eq.s32.totalorder %s35, 0
      %p214 = por %p212, %p213
      %s216 = sadd.s32 %s215, 1
      %p219 = scmp.eq.s32.totalorder %s29, 1
      %p220 = scmp.ne.s32.totalorder %s215, %s217
      %p221 = scmp.eq.s32.totalorder %s29, 0
      %p222 = por %p220, %p221
      %p223 = scmp.ne.s32.totalorder %s215, %s217
      %p224 = scmp.eq.s32.totalorder %s34, 1
      %p225 = por %p223, %p224
      %p226 = scmp.ne.s32.totalorder %s217, %s218
      %p227 = scmp.eq.s32.totalorder %s34, 0
      %p228 = por %p226, %p227
      %p229 = scmp.ne.s32.totalorder %s217, %s218
      %p230 = scmp.eq.s32.totalorder %s35, 1
      %p231 = por %p229, %p230
      %p233 = scmp.ne.s32.totalorder %s218, %s232
      %p234 = scmp.eq.s32.totalorder %s35, 0
      %p235 = por %p233, %p234
      %s237 = sadd.s32 %s236, 1
      %p240 = scmp.eq.s32.totalorder %s29, 1
      %p241 = scmp.ne.s32.totalorder %s236, %s238
      %p242 = scmp.eq.s32.totalorder %s29, 0
      %p243 = por %p241, %p242
      %p244 = scmp.ne.s32.totalorder %s236, %s238
      %p245 = scmp.eq.s32.totalorder %s34, 1
      %p246 = por %p244, %p245
      %p247 = scmp.ne.s32.totalorder %s238, %s239
      %p248 = scmp.eq.s32.totalorder %s34, 0
      %p249 = por %p247, %p248
      %p250 = scmp.ne.s32.totalorder %s238, %s239
      %p251 = scmp.eq.s32.totalorder %s35, 1
      %p252 = por %p250, %p251
      %p254 = scmp.ne.s32.totalorder %s239, %s253
      %p255 = scmp.eq.s32.totalorder %s35, 0
      %p256 = por %p254, %p255
      %s258 = sadd.s32 %s257, 1
      %p261 = scmp.eq.s32.totalorder %s29, 1
      %p262 = scmp.ne.s32.totalorder %s257, %s259
      %p263 = scmp.eq.s32.totalorder %s29, 0
      %p264 = por %p262, %p263
      %p265 = scmp.ne.s32.totalorder %s257, %s259
      %p266 = scmp.eq.s32.totalorder %s34, 1
      %p267 = por %p265, %p266
      %p268 = scmp.ne.s32.totalorder %s259, %s260
      %p269 = scmp.eq.s32.totalorder %s34, 0
      %p270 = por %p268, %p269
      %p271 = scmp.ne.s32.totalorder %s259, %s260
      %p272 = scmp.eq.s32.totalorder %s35, 1
      %p273 = por %p271, %p272
      %p275 = scmp.ne.s32.totalorder %s260, %s274
      %p276 = scmp.eq.s32.totalorder %s35, 0
      %p277 = por %p275, %p276
      %s279 = sadd.s32 %s278, 1
      %p282 = scmp.eq.s32.totalorder %s29, 1
      %p283 = scmp.ne.s32.totalorder %s278, %s280
      %p284 = scmp.eq.s32.totalorder %s29, 0
      %p285 = por %p283, %p284
      %p286 = scmp.ne.s32.totalorder %s278, %s280
      %p287 = scmp.eq.s32.totalorder %s34, 1
      %p288 = por %p286, %p287
      %p289 = scmp.ne.s32.totalorder %s280, %s281
      %p290 = scmp.eq.s32.totalorder %s34, 0
      %p291 = por %p289, %p290
      %p292 = scmp.ne.s32.totalorder %s280, %s281
      %p293 = scmp.eq.s32.totalorder %s35, 1
      %p294 = por %p292, %p293
      %p296 = scmp.ne.s32.totalorder %s281, %s295
      %p297 = scmp.eq.s32.totalorder %s35, 0
      %p298 = por %p296, %p297
      %s300 = sadd.s32 %s299, 1
      %p303 = scmp.eq.s32.totalorder %s29, 1
      %p304 = scmp.ne.s32.totalorder %s299, %s301
      %p305 = scmp.eq.s32.totalorder %s29, 0
      %p306 = por %p304, %p305
      %p307 = scmp.ne.s32.totalorder %s299, %s301
      %p308 = scmp.eq.s32.totalorder %s34, 1
      %p309 = por %p307, %p308
      %p310 = scmp.ne.s32.totalorder %s301, %s302
      %p311 = scmp.eq.s32.totalorder %s34, 0
      %p312 = por %p310, %p311
      %p313 = scmp.ne.s32.totalorder %s301, %s302
      %p314 = scmp.eq.s32.totalorder %s35, 1
      %p315 = por %p313, %p314
      %p317 = scmp.ne.s32.totalorder %s302, %s316
      %p318 = scmp.eq.s32.totalorder %s35, 0
      %p319 = por %p317, %p318
      %s321 = sadd.s32 %s320, 1
      %p324 = scmp.eq.s32.totalorder %s29, 1
      %p325 = scmp.ne.s32.totalorder %s320, %s322
      %p326 = scmp.eq.s32.totalorder %s29, 0
      %p327 = por %p325, %p326
      %p328 = scmp.ne.s32.totalorder %s320, %s322
      %p329 = scmp.eq.s32.totalorder %s34, 1
      %p330 = por %p328, %p329
      %p331 = scmp.ne.s32.totalorder %s322, %s323
      %p332 = scmp.eq.s32.totalorder %s34, 0
      %p333 = por %p331, %p332
      %p334 = scmp.ne.s32.totalorder %s322, %s323
      %p335 = scmp.eq.s32.totalorder %s35, 1
      %p336 = por %p334, %p335
      %p338 = scmp.ne.s32.totalorder %s323, %s337
      %p339 = scmp.eq.s32.totalorder %s35, 0
      %p340 = por %p338, %p339
      %s342 = sadd.s32 %s341, 1
      %p345 = scmp.eq.s32.totalorder %s29, 1
      %p346 = scmp.ne.s32.totalorder %s341, %s343
      %p347 = scmp.eq.s32.totalorder %s29, 0
      %p348 = por %p346, %p347
      %p349 = scmp.ne.s32.totalorder %s341, %s343
      %p350 = scmp.eq.s32.totalorder %s34, 1
      %p351 = por %p349, %p350
      %p352 = scmp.ne.s32.totalorder %s343, %s344
      %p353 = scmp.eq.s32.totalorder %s34, 0
      %p354 = por %p352, %p353
      %p355 = scmp.ne.s32.totalorder %s343, %s344
      %p356 = scmp.eq.s32.totalorder %s35, 1
      %p357 = por %p355, %p356
      %p359 = scmp.ne.s32.totalorder %s344, %s358
      %p360 = scmp.eq.s32.totalorder %s35, 0
      %p361 = por %p359, %p360
      %s362 = ssub.s32 %s29, %s36
      %p363 = scmp.eq.s32.totalorder %s362, 0
      %s365 = sadd.s32 %s364, 1
      %s366 = scalar_select %p363, %s364, %s365
      %p369 = pneg %p363
      %p370 = scmp.eq.s32.totalorder %s29, 1
      %p371 = por %p369, %p370
      %p372 = scmp.ne.s32.totalorder %s364, %s367
      %p373 = scmp.eq.s32.totalorder %s29, 0
      %p374 = por %p372, %p373
      %p375 = scmp.ne.s32.totalorder %s364, %s367
      %p376 = scmp.eq.s32.totalorder %s34, 1
      %p377 = por %p375, %p376
      %p378 = scmp.ne.s32.totalorder %s367, %s368
      %p379 = scmp.eq.s32.totalorder %s34, 0
      %p380 = por %p378, %p379
      %p381 = scmp.ne.s32.totalorder %s367, %s368
      %p382 = scmp.eq.s32.totalorder %s35, 1
      %p383 = por %p381, %p382
      %p385 = scmp.ne.s32.totalorder %s368, %s384
      %p386 = scmp.eq.s32.totalorder %s35, 0
      %p387 = por %p385, %p386
      %s388 = ssub.s32 %s29, %s36
      %p389 = scmp.eq.s32.totalorder %s388, 0
      %s391 = sadd.s32 %s390, 1
      %s392 = scalar_select %p389, %s390, %s391
      %p395 = pneg %p389
      %p396 = scmp.eq.s32.totalorder %s29, 1
      %p397 = por %p395, %p396
      %p398 = scmp.ne.s32.totalorder %s390, %s393
      %p399 = scmp.eq.s32.totalorder %s29, 0
      %p400 = por %p398, %p399
      %p401 = scmp.ne.s32.totalorder %s390, %s393
      %p402 = scmp.eq.s32.totalorder %s34, 1
      %p403 = por %p401, %p402
      %p404 = scmp.ne.s32.totalorder %s393, %s394
      %p405 = scmp.eq.s32.totalorder %s34, 0
      %p406 = por %p404, %p405
      %p407 = scmp.ne.s32.totalorder %s393, %s394
      %p408 = scmp.eq.s32.totalorder %s35, 1
      %p409 = por %p407, %p408
      %p411 = scmp.ne.s32.totalorder %s394, %s410
      %p412 = scmp.eq.s32.totalorder %s35, 0
      %p413 = por %p411, %p412
      %p414 = scmp.le.s32.totalorder 1, %s29
      %p415 = scmp.lt.s32.totalorder %s29, 3
      %p416 = pnand %p414, %p415
      %p417 = pneg %p416
      // Predicated region
      $region9: #{tpu_custom_call.1} parent=5 // pred_check
        _
      $region10: #{tpu_custom_call.1} parent=5 // pred_check_branch
        %419 = sbr.rel (%p416) target = $region12
      $region11: #{tpu_custom_call.1} parent=5 // pred_region
        %s420 = ssub.s32 %s29, 1
        // Predicated region
        $region13: #{tpu_custom_call.1} parent=11 // pred_check
          %p421 = pneg %p102
        $region14: #{tpu_custom_call.1} parent=11 // pred_check_branch
          %423 = sbr.rel (%p421) target = $region16
        $region15: #{tpu_custom_call.1} parent=11 // pred_region
          _
        $region16: #{tpu_custom_call.1} parent=11 // pred_fallthru
          _
        // Predicated region
        $region17: #{tpu_custom_call.1} parent=11 // pred_check
          %p424 = pneg %p123
        $region18: #{tpu_custom_call.1} parent=11 // pred_check_branch
          %426 = sbr.rel (%p424) target = $region20
        $region19: #{tpu_custom_call.1} parent=11 // pred_region
          _
        $region20: #{tpu_custom_call.1} parent=11 // pred_fallthru
          _
        // Predicated region
        $region21: #{tpu_custom_call.1} parent=11 // pred_check
          %p427 = pneg %p144
        $region22: #{tpu_custom_call.1} parent=11 // pred_check_branch
          %429 = sbr.rel (%p427) target = $region24
        $region23: #{tpu_custom_call.1} parent=11 // pred_region
          _
        $region24: #{tpu_custom_call.1} parent=11 // pred_fallthru
          _
        // Predicated region
        $region25: #{tpu_custom_call.1} parent=11 // pred_check
          %p430 = pneg %p165
        $region26: #{tpu_custom_call.1} parent=11 // pred_check_branch
          %432 = sbr.rel (%p430) target = $region28
        $region27: #{tpu_custom_call.1} parent=11 // pred_region
          _
        $region28: #{tpu_custom_call.1} parent=11 // pred_fallthru
          _
        // Predicated region
        $region29: #{tpu_custom_call.1} parent=11 // pred_check
          %p433 = pneg %p186
        $region30: #{tpu_custom_call.1} parent=11 // pred_check_branch
          %435 = sbr.rel (%p433) target = $region32
        $region31: #{tpu_custom_call.1} parent=11 // pred_region
          _
        $region32: #{tpu_custom_call.1} parent=11 // pred_fallthru
          _
        // Predicated region
        $region33: #{tpu_custom_call.1} parent=11 // pred_check
          %p436 = pneg %p207
        $region34: #{tpu_custom_call.1} parent=11 // pred_check_branch
          %438 = sbr.rel (%p436) target = $region36
        $region35: #{tpu_custom_call.1} parent=11 // pred_region
          _
        $region36: #{tpu_custom_call.1} parent=11 // pred_fallthru
          _
        // Predicated region
        $region37: #{tpu_custom_call.1} parent=11 // pred_check
          %p439 = pneg %p228
        $region38: #{tpu_custom_call.1} parent=11 // pred_check_branch
          %441 = sbr.rel (%p439) target = $region40
        $region39: #{tpu_custom_call.1} parent=11 // pred_region
          _
        $region40: #{tpu_custom_call.1} parent=11 // pred_fallthru
          _
        // Predicated region
        $region41: #{tpu_custom_call.1} parent=11 // pred_check
          %p442 = pneg %p249
        $region42: #{tpu_custom_call.1} parent=11 // pred_check_branch
          %444 = sbr.rel (%p442) target = $region44
        $region43: #{tpu_custom_call.1} parent=11 // pred_region
          _
        $region44: #{tpu_custom_call.1} parent=11 // pred_fallthru
          _
        // Predicated region
        $region45: #{tpu_custom_call.1} parent=11 // pred_check
          %p445 = pneg %p270
        $region46: #{tpu_custom_call.1} parent=11 // pred_check_branch
          %447 = sbr.rel (%p445) target = $region48
        $region47: #{tpu_custom_call.1} parent=11 // pred_region
          _
        $region48: #{tpu_custom_call.1} parent=11 // pred_fallthru
          _
        // Predicated region
        $region49: #{tpu_custom_call.1} parent=11 // pred_check
          %p448 = pneg %p291
        $region50: #{tpu_custom_call.1} parent=11 // pred_check_branch
          %450 = sbr.rel (%p448) target = $region52
        $region51: #{tpu_custom_call.1} parent=11 // pred_region
          _
        $region52: #{tpu_custom_call.1} parent=11 // pred_fallthru
          _
        // Predicated region
        $region53: #{tpu_custom_call.1} parent=11 // pred_check
          %p451 = pneg %p312
        $region54: #{tpu_custom_call.1} parent=11 // pred_check_branch
          %453 = sbr.rel (%p451) target = $region56
        $region55: #{tpu_custom_call.1} parent=11 // pred_region
          _
        $region56: #{tpu_custom_call.1} parent=11 // pred_fallthru
          _
        // Predicated region
        $region57: #{tpu_custom_call.1} parent=11 // pred_check
          %p454 = pneg %p333
        $region58: #{tpu_custom_call.1} parent=11 // pred_check_branch
          %456 = sbr.rel (%p454) target = $region60
        $region59: #{tpu_custom_call.1} parent=11 // pred_region
          _
        $region60: #{tpu_custom_call.1} parent=11 // pred_fallthru
          _
        // Predicated region
        $region61: #{tpu_custom_call.1} parent=11 // pred_check
          %p457 = pneg %p354
        $region62: #{tpu_custom_call.1} parent=11 // pred_check_branch
          %459 = sbr.rel (%p457) target = $region64
        $region63: #{tpu_custom_call.1} parent=11 // pred_region
          _
        $region64: #{tpu_custom_call.1} parent=11 // pred_fallthru
          _
      $region12: #{tpu_custom_call.1} parent=5 // pred_fallthru
        _
      %p460 = scmp.lt.s32.totalorder %s29, 2
      // Predicated region
      $region65: #{tpu_custom_call.1} parent=5 // pred_check
        %p461 = pneg %p460
      $region66: #{tpu_custom_call.1} parent=5 // pred_check_branch
        %463 = sbr.rel (%p461) target = $region68
      $region67: #{tpu_custom_call.1} parent=5 // pred_region
        // Predicated region
        $region69: #{tpu_custom_call.1} parent=67 // pred_check
          %p464 = pneg %p49
        $region70: #{tpu_custom_call.1} parent=67 // pred_check_branch
          %466 = sbr.rel (%p464) target = $region72
        $region71: #{tpu_custom_call.1} parent=67 // pred_region
          %p467 = scmp.lt.s32.totalorder %s29, 1
          %s468 = scalar_select %p467, %s29, 1
          %s469 = smul.addr %s468, 3
          %s470 = smul.addr %s469, 2
          %s471 = scalar_lea.vmem %s0, %s470
        $region72: #{tpu_custom_call.1} parent=67 // pred_fallthru
          _
        // Predicated region
        $region73: #{tpu_custom_call.1} parent=67 // pred_check
          %p472 = pneg %p75
        $region74: #{tpu_custom_call.1} parent=67 // pred_check_branch
          %474 = sbr.rel (%p472) target = $region76
        $region75: #{tpu_custom_call.1} parent=67 // pred_region
          %p475 = scmp.lt.s32.totalorder %s29, 1
          %s476 = scalar_select %p475, %s29, 1
          %s477 = smul.addr %s476, 4
          %s478 = smul.addr %s477, 4
          %s479 = scalar_lea.vmem %s1, %s478
        $region76: #{tpu_custom_call.1} parent=67 // pred_fallthru
          _
      $region68: #{tpu_custom_call.1} parent=5 // pred_fallthru
        _
      %p480 = scmp.le.s32.totalorder 1, %s29
      %p481 = scmp.lt.s32.totalorder %s29, 3
      %p482 = pnand %p480, %p481
      %p483 = pneg %p482
      // Predicated region
      $region77: #{tpu_custom_call.1} parent=5 // pred_check
        _
      $region78: #{tpu_custom_call.1} parent=5 // pred_check_branch
        %485 = sbr.rel (%p482) target = $region80
      $region79: #{tpu_custom_call.1} parent=5 // pred_region
        %s486 = ssub.s32 %s29, 1
        %p487 = scmp.lt.s32.totalorder %s34, 1
        %s488 = scalar_select %p487, %s34, 1
        %s489 = smul.addr %s488, 3
        %s490 = smul.addr %s489, 2
        %s491 = scalar_lea.vmem %s0, %s490
        %p492 = pneg %p55
        %p493 = pneg %p52
        %p494 = scmp.lt.s32.totalorder %s34, 1
        %s495 = scalar_select %p494, %s34, 1
        %s496 = smul.addr %s495, 4
        %s497 = smul.addr %s496, 4
        %s498 = scalar_lea.vmem %s1, %s497
        %p499 = pneg %p81
        %p500 = pneg %p78
        %p501 = pneg %p102
        %p502 = pneg %p99
        %p503 = pneg %p123
        %p504 = pneg %p120
        %p505 = pneg %p144
        %p506 = pneg %p141
        %p507 = pneg %p165
        %p508 = pneg %p162
        %p509 = pneg %p186
        %p510 = pneg %p183
        %p511 = pneg %p207
        %p512 = pneg %p204
        %p513 = pneg %p228
        %p514 = pneg %p225
        %p515 = pneg %p249
        %p516 = pneg %p246
        %p517 = pneg %p270
        %p518 = pneg %p267
        %p519 = pneg %p291
        %p520 = pneg %p288
        %p521 = pneg %p312
        %p522 = pneg %p309
        %p523 = pneg %p333
        %p524 = pneg %p330
        %p525 = pneg %p354
        %p526 = pneg %p351
        %p527 = pneg %p380
        %p528 = pneg %p377
        %s529 = sand.u32 %s367, 1
        %s530 = scalar_lea.sflag [#allocation5], %s529
        %s531 = sand.u32 %s367, 1
        %s532 = smul.addr %s531, 16
        %s533 = scalar_lea.vmem [#allocation4], %s532
        %p534 = pneg %p406
        %p535 = pneg %p403
        %s536 = sand.u32 %s393, 1
        %s537 = scalar_lea.sflag [#allocation7], %s536
        %s538 = sand.u32 %s393, 1
        %s539 = smul.addr %s538, 24
        %s540 = scalar_lea.vmem [#allocation6], %s539
        %p541 = scmp.lt.s32.totalorder %s34, 1
        %s542 = scalar_select %p541, %s34, 1
        %s543 = smul.addr %s542, 3
        %s544 = smul.addr %s543, 2
        %s545 = scalar_lea.vmem %s0, %s544
        %p546 = scmp.lt.s32.totalorder %s34, 1
        %s547 = scalar_select %p546, %s34, 1
        %s548 = smul.addr %s547, 4
        %s549 = smul.addr %s548, 4
        %s550 = scalar_lea.vmem %s1, %s549
        %v552 = vld [vmem:[%s3] sm:$0x7]
        %v553 = vld [vmem:[%s6] sm:$0x1]
        %vm554 = vcmask 994304
        %555 = vst.msk [vmem:[#allocation2] sm:$0xf] %vm554, 0
        %556 = vst.msk [vmem:[#allocation2 + $0x4] sm:$0xf] %vm554, 0
        %557 = vst.msk [vmem:[#allocation2 + $0x8] sm:$0xf] %vm554, 0
        %558 = vst.msk [vmem:[#allocation2 + $0xc] sm:$0xf] %vm554, 0
        %559 = vst [vmem:[#allocation3] sm:$0xff] 0
        %vm560 = vcmask 863232
        %561 = vst.msk [vmem:[#allocation3 + $0x8] sm:$0xf] %vm560, 0
        %562 = vst [vmem:[#allocation3 + $0xc] sm:$0xff] 0
        %563 = vst.msk [vmem:[#allocation3 + $0x14] sm:$0xf] %vm560, 0
        %v564 = vld [vmem:[%s2] sm:$0xf]
        %v565 = vld [vmem:[%s545] sm:$0x3f]
        %s566 = scalar_lea.vmem %s2, 4
        %v567 = vld [vmem:[%s566] sm:$0xf]
        %v569 = vcombine.high %v565, %v565
        %v571 = vunpack.c.l.s4 1983009808
        %v572 = vunpack.c.0.s8 %v571
        %v573 = vlaneseq
        %v574 = vshrl.u32 %v573, 7
        %v575 = vsub.s32 %v572, %v574
        %v576 = vrot.slane %v565, %v575
        %v578 = vunpack.c.l.s4 1983009808
        %v579 = vunpack.c.0.s8 %v578
        %v580 = vlaneseq
        %v581 = vshrl.u32 %v580, 7
        %v582 = vsub.s32 %v579, %v581
        %v583 = vrot.slane %v569, %v582
        %v584 = vcombine.high %v576, %v576
        %585 = vrot.lane.b32.xlu0 %v576, 127
        %v586 = vpop.permute.xlu0 %585
        %587 = vrot.lane.b32.xlu0 %v584, 127
        %v588 = vpop.permute.xlu0 %587
        %589 = vrot.lane.b32.xlu0 %v583, 127
        %v590 = vpop.permute.xlu0 %589
        %vm591 = vcmask 1039360
        %v592 = vsel %vm591, %v586, %v588
        %v593 = vsel %vm591, %v588, %v590
        %vm594 = vcmask 31744
        %v596 = vsel %vm594, %v567, 0
        %vm598 = vcmask 1041408
        %v600 = vsel %vm598, %v592, 0
        %v603 = vsel %vm598, %v593, 0
        %v606 = vsel %vm598, %v590, 0
        %608 = vmatprep.subr.bf16.mxu0 0
        %609 = vmatpush1.bf16.msra.mxu0 0
        %610 = vmatprep.subr.bf16.mxu0 0
        %611 = vmatpush1.bf16.msra.mxu0 0
        %612 = vmatprep.subr.bf16.mxu0 0
        %613 = vmatpush1.bf16.msra.mxu0 0
        %614 = vmatprep.subr.bf16.mxu0 0
        %615 = vmatpush1.bf16.msra.mxu0 0
        %616 = vmatprep.subr.bf16.mxu0 0
        %617 = vmatpush1.bf16.msra.mxu0 0
        %618 = vmatprep.subr.bf16.mxu0 0
        %619 = vmatpush1.bf16.msra.mxu0 0
        %620 = vmatprep.subr.bf16.mxu0 0
        %621 = vmatpush1.bf16.msra.mxu0 0
        %622 = vmatprep.subr.bf16.mxu0 %v603
        %623 = vmatpush1.bf16.msra.mxu0 %v600
        %624 = vmatprep.subr.bf16.mxu0 0
        %625 = vmatpush2.bf16.msra.mxu0 0
        %626 = vmatprep.subr.bf16.mxu0 0
        %627 = vmatpush2.bf16.msra.mxu0 0
        %628 = vmatprep.subr.bf16.mxu0 0
        %629 = vmatpush2.bf16.msra.mxu0 0
        %630 = vmatprep.subr.bf16.mxu0 0
        %631 = vmatpush2.bf16.msra.mxu0 0
        %632 = vmatprep.subr.bf16.mxu0 0
        %633 = vmatpush2.bf16.msra.mxu0 0
        %634 = vmatprep.subr.bf16.mxu0 0
        %635 = vmatpush2.bf16.msra.mxu0 0
        %636 = vmatprep.subr.bf16.mxu0 0
        %637 = vmatpush2.bf16.msra.mxu0 0
        %638 = vmatprep.subr.bf16.mxu0 0
        %639 = vmatpush2.bf16.msra.mxu0 0
        %640 = vmatprep.mubr.bf16.mxu0 0
        %641 = vmatmul.mubr.bf16.gmra.mxu0 %v596
        %v642 = vpop.f32.mrf.mxu0
        %v643 = vadd.f32 0.0, %v642
        %v644 = vpop.f32.mrf.mxu0
        %v645 = vadd.f32 0.0, %v644
        %v646 = vpop.f32.mrf.mxu0
        %v647 = vpop.f32.mrf.mxu0
        %648 = vdwg.mxu0
        %649 = vmatprep.subr.bf16.mxu0 0
        %650 = vmatpush1.bf16.msra.mxu0 0
        %651 = vmatprep.subr.bf16.mxu0 0
        %652 = vmatpush1.bf16.msra.mxu0 0
        %653 = vmatprep.subr.bf16.mxu0 0
        %654 = vmatpush1.bf16.msra.mxu0 0
        %655 = vmatprep.subr.bf16.mxu0 0
        %656 = vmatpush1.bf16.msra.mxu0 0
        %657 = vmatprep.subr.bf16.mxu0 0
        %658 = vmatpush1.bf16.msra.mxu0 0
        %659 = vmatprep.subr.bf16.mxu0 0
        %660 = vmatpush1.bf16.msra.mxu0 0
        %661 = vmatprep.subr.bf16.mxu0 0
        %662 = vmatpush1.bf16.msra.mxu0 0
        %663 = vmatprep.subr.bf16.mxu0 0
        %664 = vmatpush1.bf16.msra.mxu0 %v606
        %665 = vmatprep.subr.bf16.mxu0 0
        %666 = vmatpush2.bf16.msra.mxu0 0
        %667 = vmatprep.subr.bf16.mxu0 0
        %668 = vmatpush2.bf16.msra.mxu0 0
        %669 = vmatprep.subr.bf16.mxu0 0
        %670 = vmatpush2.bf16.msra.mxu0 0
        %671 = vmatprep.subr.bf16.mxu0 0
        %672 = vmatpush2.bf16.msra.mxu0 0
        %673 = vmatprep.subr.bf16.mxu0 0
        %674 = vmatpush2.bf16.msra.mxu0 0
        %675 = vmatprep.subr.bf16.mxu0 0
        %676 = vmatpush2.bf16.msra.mxu0 0
        %677 = vmatprep.subr.bf16.mxu0 0
        %678 = vmatpush2.bf16.msra.mxu0 0
        %679 = vmatprep.subr.bf16.mxu0 0
        %680 = vmatpush2.bf16.msra.mxu0 0
        %681 = vmatprep.mubr.bf16.mxu0 0
        %682 = vmatmul.mubr.bf16.gmra.mxu0 %v596
        %v683 = vpop.f32.mrf.mxu0
        %v684 = vadd.f32 0.0, %v683
        %v685 = vpop.f32.mrf.mxu0
        %v686 = vpop.f32.mrf.mxu0
        %v687 = vpop.f32.mrf.mxu0
        %688 = vdwg.mxu0
        %v690 = vsel %vm594, %v564, 0
        %v693 = vsel %vm598, %v576, 0
        %v696 = vsel %vm598, %v584, 0
        %v699 = vsel %vm598, %v583, 0
        %701 = vmatprep.subr.bf16.mxu0 0
        %702 = vmatpush1.bf16.msra.mxu0 0
        %703 = vmatprep.subr.bf16.mxu0 0
        %704 = vmatpush1.bf16.msra.mxu0 0
        %705 = vmatprep.subr.bf16.mxu0 0
        %706 = vmatpush1.bf16.msra.mxu0 0
        %707 = vmatprep.subr.bf16.mxu0 0
        %708 = vmatpush1.bf16.msra.mxu0 0
        %709 = vmatprep.subr.bf16.mxu0 0
        %710 = vmatpush1.bf16.msra.mxu0 0
        %711 = vmatprep.subr.bf16.mxu0 0
        %712 = vmatpush1.bf16.msra.mxu0 0
        %713 = vmatprep.subr.bf16.mxu0 0
        %714 = vmatpush1.bf16.msra.mxu0 0
        %715 = vmatprep.subr.bf16.mxu0 %v696
        %716 = vmatpush1.bf16.msra.mxu0 %v693
        %717 = vmatprep.subr.bf16.mxu0 0
        %718 = vmatpush2.bf16.msra.mxu0 0
        %719 = vmatprep.subr.bf16.mxu0 0
        %720 = vmatpush2.bf16.msra.mxu0 0
        %721 = vmatprep.subr.bf16.mxu0 0
        %722 = vmatpush2.bf16.msra.mxu0 0
        %723 = vmatprep.subr.bf16.mxu0 0
        %724 = vmatpush2.bf16.msra.mxu0 0
        %725 = vmatprep.subr.bf16.mxu0 0
        %726 = vmatpush2.bf16.msra.mxu0 0
        %727 = vmatprep.subr.bf16.mxu0 0
        %728 = vmatpush2.bf16.msra.mxu0 0
        %729 = vmatprep.subr.bf16.mxu0 0
        %730 = vmatpush2.bf16.msra.mxu0 0
        %731 = vmatprep.subr.bf16.mxu0 0
        %732 = vmatpush2.bf16.msra.mxu0 0
        %733 = vmatprep.mubr.bf16.mxu0 0
        %734 = vmatmul.mubr.bf16.gmra.mxu0 %v690
        %v735 = vpop.f32.mrf.mxu0
        %v736 = vadd.f32 %v643, %v735
        %v737 = vpop.f32.mrf.mxu0
        %v738 = vadd.f32 %v645, %v737
        %v739 = vpop.f32.mrf.mxu0
        %v740 = vpop.f32.mrf.mxu0
        %741 = vdwg.mxu0
        %742 = vmatprep.subr.bf16.mxu0 0
        %743 = vmatpush1.bf16.msra.mxu0 0
        %744 = vmatprep.subr.bf16.mxu0 0
        %745 = vmatpush1.bf16.msra.mxu0 0
        %746 = vmatprep.subr.bf16.mxu0 0
        %747 = vmatpush1.bf16.msra.mxu0 0
        %748 = vmatprep.subr.bf16.mxu0 0
        %749 = vmatpush1.bf16.msra.mxu0 0
        %750 = vmatprep.subr.bf16.mxu0 0
        %751 = vmatpush1.bf16.msra.mxu0 0
        %752 = vmatprep.subr.bf16.mxu0 0
        %753 = vmatpush1.bf16.msra.mxu0 0
        %754 = vmatprep.subr.bf16.mxu0 0
        %755 = vmatpush1.bf16.msra.mxu0 0
        %756 = vmatprep.subr.bf16.mxu0 0
        %757 = vmatpush1.bf16.msra.mxu0 %v699
        %758 = vmatprep.subr.bf16.mxu0 0
        %759 = vmatpush2.bf16.msra.mxu0 0
        %760 = vmatprep.subr.bf16.mxu0 0
        %761 = vmatpush2.bf16.msra.mxu0 0
        %762 = vmatprep.subr.bf16.mxu0 0
        %763 = vmatpush2.bf16.msra.mxu0 0
        %764 = vmatprep.subr.bf16.mxu0 0
        %765 = vmatpush2.bf16.msra.mxu0 0
        %766 = vmatprep.subr.bf16.mxu0 0
        %767 = vmatpush2.bf16.msra.mxu0 0
        %768 = vmatprep.subr.bf16.mxu0 0
        %769 = vmatpush2.bf16.msra.mxu0 0
        %770 = vmatprep.subr.bf16.mxu0 0
        %771 = vmatpush2.bf16.msra.mxu0 0
        %772 = vmatprep.subr.bf16.mxu0 0
        %773 = vmatpush2.bf16.msra.mxu0 0
        %774 = vmatprep.mubr.bf16.mxu0 0
        %775 = vmatmul.mubr.bf16.gmra.mxu0 %v690
        %v776 = vpop.f32.mrf.mxu0
        %v777 = vadd.f32 %v684, %v776
        %v778 = vpop.f32.mrf.mxu0
        %v779 = vpop.f32.mrf.mxu0
        %v780 = vpop.f32.mrf.mxu0
        %781 = vdwg.mxu0
        %s782 = scalar_lea.vmem %s2, 8
        %v783 = vld [vmem:[%s782] sm:$0xf]
        %v784 = vld [vmem:[%s545] sm:$0x3f]
        %v786 = vcombine.high %v784, %v784
        %v788 = vunpack.c.l.s4 1983009808
        %v789 = vunpack.c.0.s8 %v788
        %v790 = vlaneseq
        %v791 = vshrl.u32 %v790, 7
        %v792 = vsub.s32 %v789, %v791
        %v793 = vrot.slane %v784, %v792
        %v795 = vunpack.c.l.s4 1983009808
        %v796 = vunpack.c.0.s8 %v795
        %v797 = vlaneseq
        %v798 = vshrl.u32 %v797, 7
        %v799 = vsub.s32 %v796, %v798
        %v800 = vrot.slane %v786, %v799
        %v801 = vcombine.high %v793, %v793
        %802 = vrot.lane.b32.xlu0 %v793, 126
        %v803 = vpop.permute.xlu0 %802
        %804 = vrot.lane.b32.xlu0 %v801, 126
        %v805 = vpop.permute.xlu0 %804
        %806 = vrot.lane.b32.xlu0 %v800, 126
        %v807 = vpop.permute.xlu0 %806
        %vm808 = vcmask 1031168
        %v809 = vsel %vm808, %v803, %v805
        %v810 = vsel %vm808, %v805, %v807
        %v812 = vsel %vm594, %v783, 0
        %v815 = vsel %vm598, %v809, 0
        %v818 = vsel %vm598, %v810, 0
        %v821 = vsel %vm598, %v807, 0
        %823 = vmatprep.subr.bf16.mxu0 0
        %824 = vmatpush1.bf16.msra.mxu0 0
        %825 = vmatprep.subr.bf16.mxu0 0
        %826 = vmatpush1.bf16.msra.mxu0 0
        %827 = vmatprep.subr.bf16.mxu0 0
        %828 = vmatpush1.bf16.msra.mxu0 0
        %829 = vmatprep.subr.bf16.mxu0 0
        %830 = vmatpush1.bf16.msra.mxu0 0
        %831 = vmatprep.subr.bf16.mxu0 0
        %832 = vmatpush1.bf16.msra.mxu0 0
        %833 = vmatprep.subr.bf16.mxu0 0
        %834 = vmatpush1.bf16.msra.mxu0 0
        %835 = vmatprep.subr.bf16.mxu0 0
        %836 = vmatpush1.bf16.msra.mxu0 0
        %837 = vmatprep.subr.bf16.mxu0 %v818
        %838 = vmatpush1.bf16.msra.mxu0 %v815
        %839 = vmatprep.subr.bf16.mxu0 0
        %840 = vmatpush2.bf16.msra.mxu0 0
        %841 = vmatprep.subr.bf16.mxu0 0
        %842 = vmatpush2.bf16.msra.mxu0 0
        %843 = vmatprep.subr.bf16.mxu0 0
        %844 = vmatpush2.bf16.msra.mxu0 0
        %845 = vmatprep.subr.bf16.mxu0 0
        %846 = vmatpush2.bf16.msra.mxu0 0
        %847 = vmatprep.subr.bf16.mxu0 0
        %848 = vmatpush2.bf16.msra.mxu0 0
        %849 = vmatprep.subr.bf16.mxu0 0
        %850 = vmatpush2.bf16.msra.mxu0 0
        %851 = vmatprep.subr.bf16.mxu0 0
        %852 = vmatpush2.bf16.msra.mxu0 0
        %853 = vmatprep.subr.bf16.mxu0 0
        %854 = vmatpush2.bf16.msra.mxu0 0
        %855 = vmatprep.mubr.bf16.mxu0 0
        %856 = vmatmul.mubr.bf16.gmra.mxu0 %v812
        %v857 = vpop.f32.mrf.mxu0
        %v858 = vadd.f32 0.0, %v857
        %v859 = vpop.f32.mrf.mxu0
        %v860 = vadd.f32 0.0, %v859
        %v861 = vpop.f32.mrf.mxu0
        %v862 = vpop.f32.mrf.mxu0
        %863 = vdwg.mxu0
        %864 = vmatprep.subr.bf16.mxu0 0
        %865 = vmatpush1.bf16.msra.mxu0 0
        %866 = vmatprep.subr.bf16.mxu0 0
        %867 = vmatpush1.bf16.msra.mxu0 0
        %868 = vmatprep.subr.bf16.mxu0 0
        %869 = vmatpush1.bf16.msra.mxu0 0
        %870 = vmatprep.subr.bf16.mxu0 0
        %871 = vmatpush1.bf16.msra.mxu0 0
        %872 = vmatprep.subr.bf16.mxu0 0
        %873 = vmatpush1.bf16.msra.mxu0 0
        %874 = vmatprep.subr.bf16.mxu0 0
        %875 = vmatpush1.bf16.msra.mxu0 0
        %876 = vmatprep.subr.bf16.mxu0 0
        %877 = vmatpush1.bf16.msra.mxu0 0
        %878 = vmatprep.subr.bf16.mxu0 0
        %879 = vmatpush1.bf16.msra.mxu0 %v821
        %880 = vmatprep.subr.bf16.mxu0 0
        %881 = vmatpush2.bf16.msra.mxu0 0
        %882 = vmatprep.subr.bf16.mxu0 0
        %883 = vmatpush2.bf16.msra.mxu0 0
        %884 = vmatprep.subr.bf16.mxu0 0
        %885 = vmatpush2.bf16.msra.mxu0 0
        %886 = vmatprep.subr.bf16.mxu0 0
        %887 = vmatpush2.bf16.msra.mxu0 0
        %888 = vmatprep.subr.bf16.mxu0 0
        %889 = vmatpush2.bf16.msra.mxu0 0
        %890 = vmatprep.subr.bf16.mxu0 0
        %891 = vmatpush2.bf16.msra.mxu0 0
        %892 = vmatprep.subr.bf16.mxu0 0
        %893 = vmatpush2.bf16.msra.mxu0 0
        %894 = vmatprep.subr.bf16.mxu0 0
        %895 = vmatpush2.bf16.msra.mxu0 0
        %896 = vmatprep.mubr.bf16.mxu0 0
        %897 = vmatmul.mubr.bf16.gmra.mxu0 %v812
        %v898 = vpop.f32.mrf.mxu0
        %v899 = vadd.f32 0.0, %v898
        %v900 = vpop.f32.mrf.mxu0
        %v901 = vpop.f32.mrf.mxu0
        %v902 = vpop.f32.mrf.mxu0
        %903 = vdwg.mxu0
        %v904 = vadd.f32 %v736, %v858
        %v905 = vadd.f32 %v738, %v860
        %v906 = vadd.f32 %v777, %v899
        %s907 = scalar_lea.vmem %s2, 12
        %v908 = vld [vmem:[%s907] sm:$0xf]
        %v909 = vld [vmem:[%s545] sm:$0x3f]
        %v911 = vcombine.high %v909, %v909
        %v913 = vunpack.c.l.s4 1983009808
        %v914 = vunpack.c.0.s8 %v913
        %v915 = vlaneseq
        %v916 = vshrl.u32 %v915, 7
        %v917 = vsub.s32 %v914, %v916
        %v918 = vrot.slane %v909, %v917
        %v920 = vunpack.c.l.s4 1983009808
        %v921 = vunpack.c.0.s8 %v920
        %v922 = vlaneseq
        %v923 = vshrl.u32 %v922, 7
        %v924 = vsub.s32 %v921, %v923
        %v925 = vrot.slane %v911, %v924
        %v926 = vcombine.high %v918, %v918
        %927 = vrot.lane.b32.xlu0 %v918, 110
        %v928 = vpop.permute.xlu0 %927
        %929 = vrot.lane.b32.xlu0 %v926, 110
        %v930 = vpop.permute.xlu0 %929
        %931 = vrot.lane.b32.xlu0 %v925, 110
        %v932 = vpop.permute.xlu0 %931
        %vm933 = vcmask 900096
        %v934 = vsel %vm933, %v928, %v930
        %v935 = vsel %vm933, %v930, %v932
        %v937 = vsel %vm594, %v908, 0
        %v940 = vsel %vm598, %v934, 0
        %v943 = vsel %vm598, %v935, 0
        %v946 = vsel %vm598, %v932, 0
        %948 = vmatprep.subr.bf16.mxu0 0
        %949 = vmatpush1.bf16.msra.mxu0 0
        %950 = vmatprep.subr.bf16.mxu0 0
        %951 = vmatpush1.bf16.msra.mxu0 0
        %952 = vmatprep.subr.bf16.mxu0 0
        %953 = vmatpush1.bf16.msra.mxu0 0
        %954 = vmatprep.subr.bf16.mxu0 0
        %955 = vmatpush1.bf16.msra.mxu0 0
        %956 = vmatprep.subr.bf16.mxu0 0
        %957 = vmatpush1.bf16.msra.mxu0 0
        %958 = vmatprep.subr.bf16.mxu0 0
        %959 = vmatpush1.bf16.msra.mxu0 0
        %960 = vmatprep.subr.bf16.mxu0 0
        %961 = vmatpush1.bf16.msra.mxu0 0
        %962 = vmatprep.subr.bf16.mxu0 %v943
        %963 = vmatpush1.bf16.msra.mxu0 %v940
        %964 = vmatprep.subr.bf16.mxu0 0
        %965 = vmatpush2.bf16.msra.mxu0 0
        %966 = vmatprep.subr.bf16.mxu0 0
        %967 = vmatpush2.bf16.msra.mxu0 0
        %968 = vmatprep.subr.bf16.mxu0 0
        %969 = vmatpush2.bf16.msra.mxu0 0
        %970 = vmatprep.subr.bf16.mxu0 0
        %971 = vmatpush2.bf16.msra.mxu0 0
        %972 = vmatprep.subr.bf16.mxu0 0
        %973 = vmatpush2.bf16.msra.mxu0 0
        %974 = vmatprep.subr.bf16.mxu0 0
        %975 = vmatpush2.bf16.msra.mxu0 0
        %976 = vmatprep.subr.bf16.mxu0 0
        %977 = vmatpush2.bf16.msra.mxu0 0
        %978 = vmatprep.subr.bf16.mxu0 0
        %979 = vmatpush2.bf16.msra.mxu0 0
        %980 = vmatprep.mubr.bf16.mxu0 0
        %981 = vmatmul.mubr.bf16.gmra.mxu0 %v937
        %v982 = vpop.f32.mrf.mxu0
        %v983 = vadd.f32 0.0, %v982
        %v984 = vpop.f32.mrf.mxu0
        %v985 = vadd.f32 0.0, %v984
        %v986 = vpop.f32.mrf.mxu0
        %v987 = vpop.f32.mrf.mxu0
        %988 = vdwg.mxu0
        %989 = vmatprep.subr.bf16.mxu0 0
        %990 = vmatpush1.bf16.msra.mxu0 0
        %991 = vmatprep.subr.bf16.mxu0 0
        %992 = vmatpush1.bf16.msra.mxu0 0
        %993 = vmatprep.subr.bf16.mxu0 0
        %994 = vmatpush1.bf16.msra.mxu0 0
        %995 = vmatprep.subr.bf16.mxu0 0
        %996 = vmatpush1.bf16.msra.mxu0 0
        %997 = vmatprep.subr.bf16.mxu0 0
        %998 = vmatpush1.bf16.msra.mxu0 0
        %999 = vmatprep.subr.bf16.mxu0 0
        %1000 = vmatpush1.bf16.msra.mxu0 0
        %1001 = vmatprep.subr.bf16.mxu0 0
        %1002 = vmatpush1.bf16.msra.mxu0 0
        %1003 = vmatprep.subr.bf16.mxu0 0
        %1004 = vmatpush1.bf16.msra.mxu0 %v946
        %1005 = vmatprep.subr.bf16.mxu0 0
        %1006 = vmatpush2.bf16.msra.mxu0 0
        %1007 = vmatprep.subr.bf16.mxu0 0
        %1008 = vmatpush2.bf16.msra.mxu0 0
        %1009 = vmatprep.subr.bf16.mxu0 0
        %1010 = vmatpush2.bf16.msra.mxu0 0
        %1011 = vmatprep.subr.bf16.mxu0 0
        %1012 = vmatpush2.bf16.msra.mxu0 0
        %1013 = vmatprep.subr.bf16.mxu0 0
        %1014 = vmatpush2.bf16.msra.mxu0 0
        %1015 = vmatprep.subr.bf16.mxu0 0
        %1016 = vmatpush2.bf16.msra.mxu0 0
        %1017 = vmatprep.subr.bf16.mxu0 0
        %1018 = vmatpush2.bf16.msra.mxu0 0
        %1019 = vmatprep.subr.bf16.mxu0 0
        %1020 = vmatpush2.bf16.msra.mxu0 0
        %1021 = vmatprep.mubr.bf16.mxu0 0
        %1022 = vmatmul.mubr.bf16.gmra.mxu0 %v937
        %v1023 = vpop.f32.mrf.mxu0
        %v1024 = vadd.f32 0.0, %v1023
        %v1025 = vpop.f32.mrf.mxu0
        %v1026 = vpop.f32.mrf.mxu0
        %v1027 = vpop.f32.mrf.mxu0
        %1028 = vdwg.mxu0
        %v1029 = vadd.f32 %v904, %v983
        %v1030 = vadd.f32 %v905, %v985
        %v1031 = vadd.f32 %v906, %v1024
        %s1032 = scalar_lea.vmem %s2, 16
        %v1033 = vld [vmem:[%s1032] sm:$0xf]
        %v1034 = vld [vmem:[%s545] sm:$0x3f]
        %v1036 = vcombine.high %v1034, %v1034
        %v1038 = vunpack.c.l.s4 1983009808
        %v1039 = vunpack.c.0.s8 %v1038
        %v1040 = vlaneseq
        %v1041 = vshrl.u32 %v1040, 7
        %v1042 = vsub.s32 %v1039, %v1041
        %v1043 = vrot.slane %v1034, %v1042
        %v1045 = vunpack.c.l.s4 1983009808
        %v1046 = vunpack.c.0.s8 %v1045
        %v1047 = vlaneseq
        %v1048 = vshrl.u32 %v1047, 7
        %v1049 = vsub.s32 %v1046, %v1048
        %v1050 = vrot.slane %v1036, %v1049
        %v1051 = vcombine.high %v1043, %v1043
        %1052 = vrot.lane.b32.xlu0 %v1043, 109
        %v1053 = vpop.permute.xlu0 %1052
        %1054 = vrot.lane.b32.xlu0 %v1051, 109
        %v1055 = vpop.permute.xlu0 %1054
        %1056 = vrot.lane.b32.xlu0 %v1050, 109
        %v1057 = vpop.permute.xlu0 %1056
        %vm1058 = vcmask 891904
        %v1059 = vsel %vm1058, %v1053, %v1055
        %v1060 = vsel %vm1058, %v1055, %v1057
        %v1062 = vsel %vm594, %v1033, 0
        %v1065 = vsel %vm598, %v1059, 0
        %v1068 = vsel %vm598, %v1060, 0
        %v1071 = vsel %vm598, %v1057, 0
        %1073 = vmatprep.subr.bf16.mxu0 0
        %1074 = vmatpush1.bf16.msra.mxu0 0
        %1075 = vmatprep.subr.bf16.mxu0 0
        %1076 = vmatpush1.bf16.msra.mxu0 0
        %1077 = vmatprep.subr.bf16.mxu0 0
        %1078 = vmatpush1.bf16.msra.mxu0 0
        %1079 = vmatprep.subr.bf16.mxu0 0
        %1080 = vmatpush1.bf16.msra.mxu0 0
        %1081 = vmatprep.subr.bf16.mxu0 0
        %1082 = vmatpush1.bf16.msra.mxu0 0
        %1083 = vmatprep.subr.bf16.mxu0 0
        %1084 = vmatpush1.bf16.msra.mxu0 0
        %1085 = vmatprep.subr.bf16.mxu0 0
        %1086 = vmatpush1.bf16.msra.mxu0 0
        %1087 = vmatprep.subr.bf16.mxu0 %v1068
        %1088 = vmatpush1.bf16.msra.mxu0 %v1065
        %1089 = vmatprep.subr.bf16.mxu0 0
        %1090 = vmatpush2.bf16.msra.mxu0 0
        %1091 = vmatprep.subr.bf16.mxu0 0
        %1092 = vmatpush2.bf16.msra.mxu0 0
        %1093 = vmatprep.subr.bf16.mxu0 0
        %1094 = vmatpush2.bf16.msra.mxu0 0
        %1095 = vmatprep.subr.bf16.mxu0 0
        %1096 = vmatpush2.bf16.msra.mxu0 0
        %1097 = vmatprep.subr.bf16.mxu0 0
        %1098 = vmatpush2.bf16.msra.mxu0 0
        %1099 = vmatprep.subr.bf16.mxu0 0
        %1100 = vmatpush2.bf16.msra.mxu0 0
        %1101 = vmatprep.subr.bf16.mxu0 0
        %1102 = vmatpush2.bf16.msra.mxu0 0
        %1103 = vmatprep.subr.bf16.mxu0 0
        %1104 = vmatpush2.bf16.msra.mxu0 0
        %1105 = vmatprep.mubr.bf16.mxu0 0
        %1106 = vmatmul.mubr.bf16.gmra.mxu0 %v1062
        %v1107 = vpop.f32.mrf.mxu0
        %v1108 = vadd.f32 0.0, %v1107
        %v1109 = vpop.f32.mrf.mxu0
        %v1110 = vadd.f32 0.0, %v1109
        %v1111 = vpop.f32.mrf.mxu0
        %v1112 = vpop.f32.mrf.mxu0
        %1113 = vdwg.mxu0
        %1114 = vmatprep.subr.bf16.mxu0 0
        %1115 = vmatpush1.bf16.msra.mxu0 0
        %1116 = vmatprep.subr.bf16.mxu0 0
        %1117 = vmatpush1.bf16.msra.mxu0 0
        %1118 = vmatprep.subr.bf16.mxu0 0
        %1119 = vmatpush1.bf16.msra.mxu0 0
        %1120 = vmatprep.subr.bf16.mxu0 0
        %1121 = vmatpush1.bf16.msra.mxu0 0
        %1122 = vmatprep.subr.bf16.mxu0 0
        %1123 = vmatpush1.bf16.msra.mxu0 0
        %1124 = vmatprep.subr.bf16.mxu0 0
        %1125 = vmatpush1.bf16.msra.mxu0 0
        %1126 = vmatprep.subr.bf16.mxu0 0
        %1127 = vmatpush1.bf16.msra.mxu0 0
        %1128 = vmatprep.subr.bf16.mxu0 0
        %1129 = vmatpush1.bf16.msra.mxu0 %v1071
        %1130 = vmatprep.subr.bf16.mxu0 0
        %1131 = vmatpush2.bf16.msra.mxu0 0
        %1132 = vmatprep.subr.bf16.mxu0 0
        %1133 = vmatpush2.bf16.msra.mxu0 0
        %1134 = vmatprep.subr.bf16.mxu0 0
        %1135 = vmatpush2.bf16.msra.mxu0 0
        %1136 = vmatprep.subr.bf16.mxu0 0
        %1137 = vmatpush2.bf16.msra.mxu0 0
        %1138 = vmatprep.subr.bf16.mxu0 0
        %1139 = vmatpush2.bf16.msra.mxu0 0
        %1140 = vmatprep.subr.bf16.mxu0 0
        %1141 = vmatpush2.bf16.msra.mxu0 0
        %1142 = vmatprep.subr.bf16.mxu0 0
        %1143 = vmatpush2.bf16.msra.mxu0 0
        %1144 = vmatprep.subr.bf16.mxu0 0
        %1145 = vmatpush2.bf16.msra.mxu0 0
        %1146 = vmatprep.mubr.bf16.mxu0 0
        %1147 = vmatmul.mubr.bf16.gmra.mxu0 %v1062
        %v1148 = vpop.f32.mrf.mxu0
        %v1149 = vadd.f32 0.0, %v1148
        %v1150 = vpop.f32.mrf.mxu0
        %v1151 = vpop.f32.mrf.mxu0
        %v1152 = vpop.f32.mrf.mxu0
        %1153 = vdwg.mxu0
        %v1154 = vadd.f32 %v1029, %v1108
        %v1155 = vadd.f32 %v1030, %v1110
        %v1156 = vadd.f32 %v1031, %v1149
        %s1157 = scalar_lea.vmem %s2, 20
        %v1158 = vld [vmem:[%s1157] sm:$0xf]
        %v1159 = vld [vmem:[%s545] sm:$0x3f]
        %v1161 = vcombine.high %v1159, %v1159
        %v1163 = vunpack.c.l.s4 1983009808
        %v1164 = vunpack.c.0.s8 %v1163
        %v1165 = vlaneseq
        %v1166 = vshrl.u32 %v1165, 7
        %v1167 = vsub.s32 %v1164, %v1166
        %v1168 = vrot.slane %v1159, %v1167
        %v1170 = vunpack.c.l.s4 1983009808
        %v1171 = vunpack.c.0.s8 %v1170
        %v1172 = vlaneseq
        %v1173 = vshrl.u32 %v1172, 7
        %v1174 = vsub.s32 %v1171, %v1173
        %v1175 = vrot.slane %v1161, %v1174
        %v1176 = vcombine.high %v1168, %v1168
        %1177 = vrot.lane.b32.xlu0 %v1168, 108
        %v1178 = vpop.permute.xlu0 %1177
        %1179 = vrot.lane.b32.xlu0 %v1176, 108
        %v1180 = vpop.permute.xlu0 %1179
        %1181 = vrot.lane.b32.xlu0 %v1175, 108
        %v1182 = vpop.permute.xlu0 %1181
        %vm1183 = vcmask 883712
        %v1184 = vsel %vm1183, %v1178, %v1180
        %v1185 = vsel %vm1183, %v1180, %v1182
        %v1187 = vsel %vm594, %v1158, 0
        %v1190 = vsel %vm598, %v1184, 0
        %v1193 = vsel %vm598, %v1185, 0
        %v1196 = vsel %vm598, %v1182, 0
        %1198 = vmatprep.subr.bf16.mxu0 0
        %1199 = vmatpush1.bf16.msra.mxu0 0
        %1200 = vmatprep.subr.bf16.mxu0 0
        %1201 = vmatpush1.bf16.msra.mxu0 0
        %1202 = vmatprep.subr.bf16.mxu0 0
        %1203 = vmatpush1.bf16.msra.mxu0 0
        %1204 = vmatprep.subr.bf16.mxu0 0
        %1205 = vmatpush1.bf16.msra.mxu0 0
        %1206 = vmatprep.subr.bf16.mxu0 0
        %1207 = vmatpush1.bf16.msra.mxu0 0
        %1208 = vmatprep.subr.bf16.mxu0 0
        %1209 = vmatpush1.bf16.msra.mxu0 0
        %1210 = vmatprep.subr.bf16.mxu0 0
        %1211 = vmatpush1.bf16.msra.mxu0 0
        %1212 = vmatprep.subr.bf16.mxu0 %v1193
        %1213 = vmatpush1.bf16.msra.mxu0 %v1190
        %1214 = vmatprep.subr.bf16.mxu0 0
        %1215 = vmatpush2.bf16.msra.mxu0 0
        %1216 = vmatprep.subr.bf16.mxu0 0
        %1217 = vmatpush2.bf16.msra.mxu0 0
        %1218 = vmatprep.subr.bf16.mxu0 0
        %1219 = vmatpush2.bf16.msra.mxu0 0
        %1220 = vmatprep.subr.bf16.mxu0 0
        %1221 = vmatpush2.bf16.msra.mxu0 0
        %1222 = vmatprep.subr.bf16.mxu0 0
        %1223 = vmatpush2.bf16.msra.mxu0 0
        %1224 = vmatprep.subr.bf16.mxu0 0
        %1225 = vmatpush2.bf16.msra.mxu0 0
        %1226 = vmatprep.subr.bf16.mxu0 0
        %1227 = vmatpush2.bf16.msra.mxu0 0
        %1228 = vmatprep.subr.bf16.mxu0 0
        %1229 = vmatpush2.bf16.msra.mxu0 0
        %1230 = vmatprep.mubr.bf16.mxu0 0
        %1231 = vmatmul.mubr.bf16.gmra.mxu0 %v1187
        %v1232 = vpop.f32.mrf.mxu0
        %v1233 = vadd.f32 0.0, %v1232
        %v1234 = vpop.f32.mrf.mxu0
        %v1235 = vadd.f32 0.0, %v1234
        %v1236 = vpop.f32.mrf.mxu0
        %v1237 = vpop.f32.mrf.mxu0
        %1238 = vdwg.mxu0
        %1239 = vmatprep.subr.bf16.mxu0 0
        %1240 = vmatpush1.bf16.msra.mxu0 0
        %1241 = vmatprep.subr.bf16.mxu0 0
        %1242 = vmatpush1.bf16.msra.mxu0 0
        %1243 = vmatprep.subr.bf16.mxu0 0
        %1244 = vmatpush1.bf16.msra.mxu0 0
        %1245 = vmatprep.subr.bf16.mxu0 0
        %1246 = vmatpush1.bf16.msra.mxu0 0
        %1247 = vmatprep.subr.bf16.mxu0 0
        %1248 = vmatpush1.bf16.msra.mxu0 0
        %1249 = vmatprep.subr.bf16.mxu0 0
        %1250 = vmatpush1.bf16.msra.mxu0 0
        %1251 = vmatprep.subr.bf16.mxu0 0
        %1252 = vmatpush1.bf16.msra.mxu0 0
        %1253 = vmatprep.subr.bf16.mxu0 0
        %1254 = vmatpush1.bf16.msra.mxu0 %v1196
        %1255 = vmatprep.subr.bf16.mxu0 0
        %1256 = vmatpush2.bf16.msra.mxu0 0
        %1257 = vmatprep.subr.bf16.mxu0 0
        %1258 = vmatpush2.bf16.msra.mxu0 0
        %1259 = vmatprep.subr.bf16.mxu0 0
        %1260 = vmatpush2.bf16.msra.mxu0 0
        %1261 = vmatprep.subr.bf16.mxu0 0
        %1262 = vmatpush2.bf16.msra.mxu0 0
        %1263 = vmatprep.subr.bf16.mxu0 0
        %1264 = vmatpush2.bf16.msra.mxu0 0
        %1265 = vmatprep.subr.bf16.mxu0 0
        %1266 = vmatpush2.bf16.msra.mxu0 0
        %1267 = vmatprep.subr.bf16.mxu0 0
        %1268 = vmatpush2.bf16.msra.mxu0 0
        %1269 = vmatprep.subr.bf16.mxu0 0
        %1270 = vmatpush2.bf16.msra.mxu0 0
        %1271 = vmatprep.mubr.bf16.mxu0 0
        %1272 = vmatmul.mubr.bf16.gmra.mxu0 %v1187
        %v1273 = vpop.f32.mrf.mxu0
        %v1274 = vadd.f32 0.0, %v1273
        %v1275 = vpop.f32.mrf.mxu0
        %v1276 = vpop.f32.mrf.mxu0
        %v1277 = vpop.f32.mrf.mxu0
        %1278 = vdwg.mxu0
        %v1279 = vadd.f32 %v1154, %v1233
        %v1280 = vadd.f32 %v1155, %v1235
        %v1281 = vadd.f32 %v1156, %v1274
        %s1282 = scalar_lea.vmem %s2, 24
        %v1283 = vld [vmem:[%s1282] sm:$0xf]
        %v1284 = vld [vmem:[%s545] sm:$0x3f]
        %v1286 = vcombine.high %v1284, %v1284
        %v1288 = vunpack.c.l.s4 1983009808
        %v1289 = vunpack.c.0.s8 %v1288
        %v1290 = vlaneseq
        %v1291 = vshrl.u32 %v1290, 7
        %v1292 = vsub.s32 %v1289, %v1291
        %v1293 = vrot.slane %v1284, %v1292
        %v1295 = vunpack.c.l.s4 1983009808
        %v1296 = vunpack.c.0.s8 %v1295
        %v1297 = vlaneseq
        %v1298 = vshrl.u32 %v1297, 7
        %v1299 = vsub.s32 %v1296, %v1298
        %v1300 = vrot.slane %v1286, %v1299
        %v1301 = vcombine.high %v1293, %v1293
        %1302 = vrot.lane.b32.xlu0 %v1293, 92
        %v1303 = vpop.permute.xlu0 %1302
        %1304 = vrot.lane.b32.xlu0 %v1301, 92
        %v1305 = vpop.permute.xlu0 %1304
        %1306 = vrot.lane.b32.xlu0 %v1300, 92
        %v1307 = vpop.permute.xlu0 %1306
        %vm1308 = vcmask 752640
        %v1309 = vsel %vm1308, %v1303, %v1305
        %v1310 = vsel %vm1308, %v1305, %v1307
        %v1312 = vsel %vm594, %v1283, 0
        %v1315 = vsel %vm598, %v1309, 0
        %v1318 = vsel %vm598, %v1310, 0
        %v1321 = vsel %vm598, %v1307, 0
        %1323 = vmatprep.subr.bf16.mxu0 0
        %1324 = vmatpush1.bf16.msra.mxu0 0
        %1325 = vmatprep.subr.bf16.mxu0 0
        %1326 = vmatpush1.bf16.msra.mxu0 0
        %1327 = vmatprep.subr.bf16.mxu0 0
        %1328 = vmatpush1.bf16.msra.mxu0 0
        %1329 = vmatprep.subr.bf16.mxu0 0
        %1330 = vmatpush1.bf16.msra.mxu0 0
        %1331 = vmatprep.subr.bf16.mxu0 0
        %1332 = vmatpush1.bf16.msra.mxu0 0
        %1333 = vmatprep.subr.bf16.mxu0 0
        %1334 = vmatpush1.bf16.msra.mxu0 0
        %1335 = vmatprep.subr.bf16.mxu0 0
        %1336 = vmatpush1.bf16.msra.mxu0 0
        %1337 = vmatprep.subr.bf16.mxu0 %v1318
        %1338 = vmatpush1.bf16.msra.mxu0 %v1315
        %1339 = vmatprep.subr.bf16.mxu0 0
        %1340 = vmatpush2.bf16.msra.mxu0 0
        %1341 = vmatprep.subr.bf16.mxu0 0
        %1342 = vmatpush2.bf16.msra.mxu0 0
        %1343 = vmatprep.subr.bf16.mxu0 0
        %1344 = vmatpush2.bf16.msra.mxu0 0
        %1345 = vmatprep.subr.bf16.mxu0 0
        %1346 = vmatpush2.bf16.msra.mxu0 0
        %1347 = vmatprep.subr.bf16.mxu0 0
        %1348 = vmatpush2.bf16.msra.mxu0 0
        %1349 = vmatprep.subr.bf16.mxu0 0
        %1350 = vmatpush2.bf16.msra.mxu0 0
        %1351 = vmatprep.subr.bf16.mxu0 0
        %1352 = vmatpush2.bf16.msra.mxu0 0
        %1353 = vmatprep.subr.bf16.mxu0 0
        %1354 = vmatpush2.bf16.msra.mxu0 0
        %1355 = vmatprep.mubr.bf16.mxu0 0
        %1356 = vmatmul.mubr.bf16.gmra.mxu0 %v1312
        %v1357 = vpop.f32.mrf.mxu0
        %v1358 = vadd.f32 0.0, %v1357
        %v1359 = vpop.f32.mrf.mxu0
        %v1360 = vadd.f32 0.0, %v1359
        %v1361 = vpop.f32.mrf.mxu0
        %v1362 = vpop.f32.mrf.mxu0
        %1363 = vdwg.mxu0
        %1364 = vmatprep.subr.bf16.mxu0 0
        %1365 = vmatpush1.bf16.msra.mxu0 0
        %1366 = vmatprep.subr.bf16.mxu0 0
        %1367 = vmatpush1.bf16.msra.mxu0 0
        %1368 = vmatprep.subr.bf16.mxu0 0
        %1369 = vmatpush1.bf16.msra.mxu0 0
        %1370 = vmatprep.subr.bf16.mxu0 0
        %1371 = vmatpush1.bf16.msra.mxu0 0
        %1372 = vmatprep.subr.bf16.mxu0 0
        %1373 = vmatpush1.bf16.msra.mxu0 0
        %1374 = vmatprep.subr.bf16.mxu0 0
        %1375 = vmatpush1.bf16.msra.mxu0 0
        %1376 = vmatprep.subr.bf16.mxu0 0
        %1377 = vmatpush1.bf16.msra.mxu0 0
        %1378 = vmatprep.subr.bf16.mxu0 0
        %1379 = vmatpush1.bf16.msra.mxu0 %v1321
        %1380 = vmatprep.subr.bf16.mxu0 0
        %1381 = vmatpush2.bf16.msra.mxu0 0
        %1382 = vmatprep.subr.bf16.mxu0 0
        %1383 = vmatpush2.bf16.msra.mxu0 0
        %1384 = vmatprep.subr.bf16.mxu0 0
        %1385 = vmatpush2.bf16.msra.mxu0 0
        %1386 = vmatprep.subr.bf16.mxu0 0
        %1387 = vmatpush2.bf16.msra.mxu0 0
        %1388 = vmatprep.subr.bf16.mxu0 0
        %1389 = vmatpush2.bf16.msra.mxu0 0
        %1390 = vmatprep.subr.bf16.mxu0 0
        %1391 = vmatpush2.bf16.msra.mxu0 0
        %1392 = vmatprep.subr.bf16.mxu0 0
        %1393 = vmatpush2.bf16.msra.mxu0 0
        %1394 = vmatprep.subr.bf16.mxu0 0
        %1395 = vmatpush2.bf16.msra.mxu0 0
        %1396 = vmatprep.mubr.bf16.mxu0 0
        %1397 = vmatmul.mubr.bf16.gmra.mxu0 %v1312
        %v1398 = vpop.f32.mrf.mxu0
        %v1399 = vadd.f32 0.0, %v1398
        %v1400 = vpop.f32.mrf.mxu0
        %v1401 = vpop.f32.mrf.mxu0
        %v1402 = vpop.f32.mrf.mxu0
        %1403 = vdwg.mxu0
        %v1404 = vadd.f32 %v1279, %v1358
        %v1405 = vadd.f32 %v1280, %v1360
        %v1406 = vadd.f32 %v1281, %v1399
        %s1407 = scalar_lea.vmem %s2, 28
        %v1408 = vld [vmem:[%s1407] sm:$0xf]
        %v1409 = vld [vmem:[%s545] sm:$0x3f]
        %v1411 = vcombine.high %v1409, %v1409
        %v1413 = vunpack.c.l.s4 1983009808
        %v1414 = vunpack.c.0.s8 %v1413
        %v1415 = vlaneseq
        %v1416 = vshrl.u32 %v1415, 7
        %v1417 = vsub.s32 %v1414, %v1416
        %v1418 = vrot.slane %v1409, %v1417
        %v1420 = vunpack.c.l.s4 1983009808
        %v1421 = vunpack.c.0.s8 %v1420
        %v1422 = vlaneseq
        %v1423 = vshrl.u32 %v1422, 7
        %v1424 = vsub.s32 %v1421, %v1423
        %v1425 = vrot.slane %v1411, %v1424
        %v1426 = vcombine.high %v1418, %v1418
        %1427 = vrot.lane.b32.xlu0 %v1418, 91
        %v1428 = vpop.permute.xlu0 %1427
        %1429 = vrot.lane.b32.xlu0 %v1426, 91
        %v1430 = vpop.permute.xlu0 %1429
        %1431 = vrot.lane.b32.xlu0 %v1425, 91
        %v1432 = vpop.permute.xlu0 %1431
        %vm1433 = vcmask 744448
        %v1434 = vsel %vm1433, %v1428, %v1430
        %v1435 = vsel %vm1433, %v1430, %v1432
        %v1437 = vsel %vm594, %v1408, 0
        %v1440 = vsel %vm598, %v1434, 0
        %v1443 = vsel %vm598, %v1435, 0
        %v1446 = vsel %vm598, %v1432, 0
        %1448 = vmatprep.subr.bf16.mxu0 0
        %1449 = vmatpush1.bf16.msra.mxu0 0
        %1450 = vmatprep.subr.bf16.mxu0 0
        %1451 = vmatpush1.bf16.msra.mxu0 0
        %1452 = vmatprep.subr.bf16.mxu0 0
        %1453 = vmatpush1.bf16.msra.mxu0 0
        %1454 = vmatprep.subr.bf16.mxu0 0
        %1455 = vmatpush1.bf16.msra.mxu0 0
        %1456 = vmatprep.subr.bf16.mxu0 0
        %1457 = vmatpush1.bf16.msra.mxu0 0
        %1458 = vmatprep.subr.bf16.mxu0 0
        %1459 = vmatpush1.bf16.msra.mxu0 0
        %1460 = vmatprep.subr.bf16.mxu0 0
        %1461 = vmatpush1.bf16.msra.mxu0 0
        %1462 = vmatprep.subr.bf16.mxu0 %v1443
        %1463 = vmatpush1.bf16.msra.mxu0 %v1440
        %1464 = vmatprep.subr.bf16.mxu0 0
        %1465 = vmatpush2.bf16.msra.mxu0 0
        %1466 = vmatprep.subr.bf16.mxu0 0
        %1467 = vmatpush2.bf16.msra.mxu0 0
        %1468 = vmatprep.subr.bf16.mxu0 0
        %1469 = vmatpush2.bf16.msra.mxu0 0
        %1470 = vmatprep.subr.bf16.mxu0 0
        %1471 = vmatpush2.bf16.msra.mxu0 0
        %1472 = vmatprep.subr.bf16.mxu0 0
        %1473 = vmatpush2.bf16.msra.mxu0 0
        %1474 = vmatprep.subr.bf16.mxu0 0
        %1475 = vmatpush2.bf16.msra.mxu0 0
        %1476 = vmatprep.subr.bf16.mxu0 0
        %1477 = vmatpush2.bf16.msra.mxu0 0
        %1478 = vmatprep.subr.bf16.mxu0 0
        %1479 = vmatpush2.bf16.msra.mxu0 0
        %1480 = vmatprep.mubr.bf16.mxu0 0
        %1481 = vmatmul.mubr.bf16.gmra.mxu0 %v1437
        %v1482 = vpop.f32.mrf.mxu0
        %v1483 = vadd.f32 0.0, %v1482
        %v1484 = vpop.f32.mrf.mxu0
        %v1485 = vadd.f32 0.0, %v1484
        %v1486 = vpop.f32.mrf.mxu0
        %v1487 = vpop.f32.mrf.mxu0
        %1488 = vdwg.mxu0
        %1489 = vmatprep.subr.bf16.mxu0 0
        %1490 = vmatpush1.bf16.msra.mxu0 0
        %1491 = vmatprep.subr.bf16.mxu0 0
        %1492 = vmatpush1.bf16.msra.mxu0 0
        %1493 = vmatprep.subr.bf16.mxu0 0
        %1494 = vmatpush1.bf16.msra.mxu0 0
        %1495 = vmatprep.subr.bf16.mxu0 0
        %1496 = vmatpush1.bf16.msra.mxu0 0
        %1497 = vmatprep.subr.bf16.mxu0 0
        %1498 = vmatpush1.bf16.msra.mxu0 0
        %1499 = vmatprep.subr.bf16.mxu0 0
        %1500 = vmatpush1.bf16.msra.mxu0 0
        %1501 = vmatprep.subr.bf16.mxu0 0
        %1502 = vmatpush1.bf16.msra.mxu0 0
        %1503 = vmatprep.subr.bf16.mxu0 0
        %1504 = vmatpush1.bf16.msra.mxu0 %v1446
        %1505 = vmatprep.subr.bf16.mxu0 0
        %1506 = vmatpush2.bf16.msra.mxu0 0
        %1507 = vmatprep.subr.bf16.mxu0 0
        %1508 = vmatpush2.bf16.msra.mxu0 0
        %1509 = vmatprep.subr.bf16.mxu0 0
        %1510 = vmatpush2.bf16.msra.mxu0 0
        %1511 = vmatprep.subr.bf16.mxu0 0
        %1512 = vmatpush2.bf16.msra.mxu0 0
        %1513 = vmatprep.subr.bf16.mxu0 0
        %1514 = vmatpush2.bf16.msra.mxu0 0
        %1515 = vmatprep.subr.bf16.mxu0 0
        %1516 = vmatpush2.bf16.msra.mxu0 0
        %1517 = vmatprep.subr.bf16.mxu0 0
        %1518 = vmatpush2.bf16.msra.mxu0 0
        %1519 = vmatprep.subr.bf16.mxu0 0
        %1520 = vmatpush2.bf16.msra.mxu0 0
        %1521 = vmatprep.mubr.bf16.mxu0 0
        %1522 = vmatmul.mubr.bf16.gmra.mxu0 %v1437
        %v1523 = vpop.f32.mrf.mxu0
        %v1524 = vadd.f32 0.0, %v1523
        %v1525 = vpop.f32.mrf.mxu0
        %v1526 = vpop.f32.mrf.mxu0
        %v1527 = vpop.f32.mrf.mxu0
        %1528 = vdwg.mxu0
        %v1529 = vadd.f32 %v1404, %v1483
        %v1530 = vadd.f32 %v1405, %v1485
        %v1531 = vadd.f32 %v1406, %v1524
        %s1532 = scalar_lea.vmem %s2, 32
        %v1533 = vld [vmem:[%s1532] sm:$0xf]
        %v1534 = vld [vmem:[%s545] sm:$0x3f]
        %v1536 = vcombine.high %v1534, %v1534
        %v1538 = vunpack.c.l.s4 1983009808
        %v1539 = vunpack.c.0.s8 %v1538
        %v1540 = vlaneseq
        %v1541 = vshrl.u32 %v1540, 7
        %v1542 = vsub.s32 %v1539, %v1541
        %v1543 = vrot.slane %v1534, %v1542
        %v1545 = vunpack.c.l.s4 1983009808
        %v1546 = vunpack.c.0.s8 %v1545
        %v1547 = vlaneseq
        %v1548 = vshrl.u32 %v1547, 7
        %v1549 = vsub.s32 %v1546, %v1548
        %v1550 = vrot.slane %v1536, %v1549
        %v1551 = vcombine.high %v1543, %v1543
        %1552 = vrot.lane.b32.xlu0 %v1543, 90
        %v1553 = vpop.permute.xlu0 %1552
        %1554 = vrot.lane.b32.xlu0 %v1551, 90
        %v1555 = vpop.permute.xlu0 %1554
        %1556 = vrot.lane.b32.xlu0 %v1550, 90
        %v1557 = vpop.permute.xlu0 %1556
        %vm1558 = vcmask 736256
        %v1559 = vsel %vm1558, %v1553, %v1555
        %v1560 = vsel %vm1558, %v1555, %v1557
        %v1562 = vsel %vm594, %v1533, 0
        %v1565 = vsel %vm598, %v1559, 0
        %v1568 = vsel %vm598, %v1560, 0
        %v1571 = vsel %vm598, %v1557, 0
        %1573 = vmatprep.subr.bf16.mxu0 0
        %1574 = vmatpush1.bf16.msra.mxu0 0
        %1575 = vmatprep.subr.bf16.mxu0 0
        %1576 = vmatpush1.bf16.msra.mxu0 0
        %1577 = vmatprep.subr.bf16.mxu0 0
        %1578 = vmatpush1.bf16.msra.mxu0 0
        %1579 = vmatprep.subr.bf16.mxu0 0
        %1580 = vmatpush1.bf16.msra.mxu0 0
        %1581 = vmatprep.subr.bf16.mxu0 0
        %1582 = vmatpush1.bf16.msra.mxu0 0
        %1583 = vmatprep.subr.bf16.mxu0 0
        %1584 = vmatpush1.bf16.msra.mxu0 0
        %1585 = vmatprep.subr.bf16.mxu0 0
        %1586 = vmatpush1.bf16.msra.mxu0 0
        %1587 = vmatprep.subr.bf16.mxu0 %v1568
        %1588 = vmatpush1.bf16.msra.mxu0 %v1565
        %1589 = vmatprep.subr.bf16.mxu0 0
        %1590 = vmatpush2.bf16.msra.mxu0 0
        %1591 = vmatprep.subr.bf16.mxu0 0
        %1592 = vmatpush2.bf16.msra.mxu0 0
        %1593 = vmatprep.subr.bf16.mxu0 0
        %1594 = vmatpush2.bf16.msra.mxu0 0
        %1595 = vmatprep.subr.bf16.mxu0 0
        %1596 = vmatpush2.bf16.msra.mxu0 0
        %1597 = vmatprep.subr.bf16.mxu0 0
        %1598 = vmatpush2.bf16.msra.mxu0 0
        %1599 = vmatprep.subr.bf16.mxu0 0
        %1600 = vmatpush2.bf16.msra.mxu0 0
        %1601 = vmatprep.subr.bf16.mxu0 0
        %1602 = vmatpush2.bf16.msra.mxu0 0
        %1603 = vmatprep.subr.bf16.mxu0 0
        %1604 = vmatpush2.bf16.msra.mxu0 0
        %1605 = vmatprep.mubr.bf16.mxu0 0
        %1606 = vmatmul.mubr.bf16.gmra.mxu0 %v1562
        %v1607 = vpop.f32.mrf.mxu0
        %v1608 = vadd.f32 0.0, %v1607
        %v1609 = vpop.f32.mrf.mxu0
        %v1610 = vadd.f32 0.0, %v1609
        %v1611 = vpop.f32.mrf.mxu0
        %v1612 = vpop.f32.mrf.mxu0
        %1613 = vdwg.mxu0
        %1614 = vmatprep.subr.bf16.mxu0 0
        %1615 = vmatpush1.bf16.msra.mxu0 0
        %1616 = vmatprep.subr.bf16.mxu0 0
        %1617 = vmatpush1.bf16.msra.mxu0 0
        %1618 = vmatprep.subr.bf16.mxu0 0
        %1619 = vmatpush1.bf16.msra.mxu0 0
        %1620 = vmatprep.subr.bf16.mxu0 0
        %1621 = vmatpush1.bf16.msra.mxu0 0
        %1622 = vmatprep.subr.bf16.mxu0 0
        %1623 = vmatpush1.bf16.msra.mxu0 0
        %1624 = vmatprep.subr.bf16.mxu0 0
        %1625 = vmatpush1.bf16.msra.mxu0 0
        %1626 = vmatprep.subr.bf16.mxu0 0
        %1627 = vmatpush1.bf16.msra.mxu0 0
        %1628 = vmatprep.subr.bf16.mxu0 0
        %1629 = vmatpush1.bf16.msra.mxu0 %v1571
        %1630 = vmatprep.subr.bf16.mxu0 0
        %1631 = vmatpush2.bf16.msra.mxu0 0
        %1632 = vmatprep.subr.bf16.mxu0 0
        %1633 = vmatpush2.bf16.msra.mxu0 0
        %1634 = vmatprep.subr.bf16.mxu0 0
        %1635 = vmatpush2.bf16.msra.mxu0 0
        %1636 = vmatprep.subr.bf16.mxu0 0
        %1637 = vmatpush2.bf16.msra.mxu0 0
        %1638 = vmatprep.subr.bf16.mxu0 0
        %1639 = vmatpush2.bf16.msra.mxu0 0
        %1640 = vmatprep.subr.bf16.mxu0 0
        %1641 = vmatpush2.bf16.msra.mxu0 0
        %1642 = vmatprep.subr.bf16.mxu0 0
        %1643 = vmatpush2.bf16.msra.mxu0 0
        %1644 = vmatprep.subr.bf16.mxu0 0
        %1645 = vmatpush2.bf16.msra.mxu0 0
        %1646 = vmatprep.mubr.bf16.mxu0 0
        %1647 = vmatmul.mubr.bf16.gmra.mxu0 %v1562
        %v1648 = vpop.f32.mrf.mxu0
        %v1649 = vadd.f32 0.0, %v1648
        %v1650 = vpop.f32.mrf.mxu0
        %v1651 = vpop.f32.mrf.mxu0
        %v1652 = vpop.f32.mrf.mxu0
        %1653 = vdwg.mxu0
        %v1654 = vadd.f32 %v1529, %v1608
        %v1655 = vadd.f32 %v1530, %v1610
        %v1656 = vadd.f32 %v1531, %v1649
        %v1658 = vlaneseq
        %v1659 = vshrl.u32 %v1658, 7
        %v1660 = vsub.s32 0, %v1659
        %v1661 = vrot.slane %v552, %v1660
        %v1662 = vlaneseq
        %v1663 = vshrl.u32 %v1662, 7
        %v1664 = vsub.s32 1, %v1663
        %v1665 = vrot.slane %v552, %v1664
        %v1666 = vlaneseq
        %v1667 = vshrl.u32 %v1666, 7
        %v1668 = vsub.s32 2, %v1667
        %v1669 = vrot.slane %v552, %v1668
        %v1673 = vmul.f32 %v1654, %v1661
        %v1674 = vmul.f32 %v1655, %v1665
        %v1675 = vmul.f32 %v1656, %v1669
        %v1676 = vadd.f32 %v1673, %v1674
        %vm1677 = vcmask 556032
        %v1678 = vsel %vm1677, %v1675, 0.0
        %v1679 = vadd.f32 %v1676, %v1678
        %1680 = vadd.xlane.f32.xlu0 %v1679
        %v1681 = vpop.xlane.xlu0 %1680
        %v1682 = vmul.f32 %v1681, 0.00390625
        %v1683 = vmul.f32 %v1673, %v1673
        %v1684 = vmul.f32 %v1674, %v1674
        %v1685 = vmul.f32 %v1675, %v1675
        %v1686 = vadd.f32 %v1683, %v1684
        %v1687 = vsel %vm1677, %v1685, 0.0
        %v1688 = vadd.f32 %v1686, %v1687
        %1689 = vadd.xlane.f32.xlu0 %v1688
        %v1690 = vpop.xlane.xlu0 %1689
        %v1691 = vmul.f32 %v1690, 0.00390625
        %v1692 = vmul.f32 %v1682, %v1682
        %v1693 = vsub.f32 %v1691, %v1692
        %v1694 = vsub.f32 %v1673, %v1682
        %v1695 = vsub.f32 %v1674, %v1682
        %v1696 = vsub.f32 %v1675, %v1682
        %v1697 = vadd.f32 %v1693, 1e-05
        %v1698 = vrsqrt.pop %v1697
        %v1699 = vmul.f32 %v1694, %v1698
        %v1700 = vmul.f32 %v1695, %v1698
        %v1701 = vmul.f32 %v1696, %v1698
        %vm1702 = vcmp.ge.f32.partialorder %v1699, 0.0
        %vm1703 = vcmp.ge.f32.partialorder %v1700, 0.0
        %vm1704 = vcmp.ge.f32.partialorder %v1701, 0.0
        %v1705 = vmul.f32 %v1699, 0.01
        %v1706 = vmul.f32 %v1700, 0.01
        %v1707 = vmul.f32 %v1701, 0.01
        %v1708 = vsel %vm1702, %v1699, %v1705
        %v1709 = vsel %vm1703, %v1700, %v1706
        %v1710 = vsel %vm1704, %v1701, %v1707
        %v1711 = vmul.f32 %v1708, %v1661
        %v1712 = vmul.f32 %v1709, %v1665
        %v1713 = vmul.f32 %v1710, %v1669
        %v1714 = vpack.c.bf16 %v1711, %v1711
        %v1715 = vpack.c.bf16 %v1712, %v1712
        %v1716 = vpack.c.bf16 %v1713, %v1713
        %v1720 = vunpack.c.l.b16 %v1714
        %v1721 = vunpack.c.l.b16 %v1715
        %v1722 = vunpack.c.l.b16 %v1716
        %v1723 = vpack.c.b16 %v1721, %v1720
        %v1724 = vpack.c.b16 %v1722, %v1722
        %1725 = vrot.lane.b32.xlu0 %v1723, 19
        %v1726 = vpop.permute.xlu0 %1725
        %1727 = vrot.lane.b32.xlu0 %v1724, 19
        %v1728 = vpop.permute.xlu0 %1727
        %v1729 = vrot.slane %v1726, 4
        %vm1730 = vcmask 154624
        %v1731 = vsel %vm1730, %v1729, %v1726
        %v1732 = vsel %vm1730, %v1729, %v1728
        %vm1735 = vcmask 1043608
        %vm1736 = vcmask 1047556
        %vm1737 = vmor %vm1736, %vm1735
        %1738 = vst.msk [vmem:[#allocation3 + $0xc] sm:$0xff] %vm1737, %v1731
        %vm1739 = vcmask 707584
        %1740 = vst.msk [vmem:[#allocation3 + $0x14] sm:$0xf] %vm1739, %v1732
        %v1741 = vld [vmem:[%s4] sm:$0xf]
        %v1742 = vld [vmem:[%s4 + $0x4] sm:$0xf]
        %v1743 = vld [vmem:[#allocation3 + $0xc] sm:$0xff]
        %v1744 = vld [vmem:[#allocation3 + $0x14] sm:$0xf]
        %s1745 = scalar_lea.vmem %s4, 8
        %v1746 = vld [vmem:[%s1745] sm:$0xf]
        %v1747 = vld [vmem:[%s1745 + $0x4] sm:$0xf]
        %v1750 = vunpack.c.l.b16 %v1746
        %v1751 = vunpack.c.l.b16 %v1747
        %v1752 = vpack.c.b16 %v1751, %v1750
        %v1755 = vunpack.c.l.b16 %v1743
        %v1756 = vunpack.c.h.b16 %v1743
        %v1757 = vunpack.c.l.b16 %v1744
        %v1758 = vpack.c.b16 %v1755, %v1755
        %v1759 = vpack.c.b16 %v1756, %v1756
        %v1760 = vpack.c.b16 %v1757, %v1757
        %1761 = vrot.lane.b32.xlu0 %v1758, 127
        %v1762 = vpop.permute.xlu0 %1761
        %1763 = vrot.lane.b32.xlu0 %v1759, 127
        %v1764 = vpop.permute.xlu0 %1763
        %1765 = vrot.lane.b32.xlu0 %v1760, 127
        %v1766 = vpop.permute.xlu0 %1765
        %v1767 = vsel %vm591, %v1762, %v1764
        %v1768 = vsel %vm591, %v1764, %v1766
        %vm1769 = vcmask 64512
        %v1771 = vsel %vm1769, %v1752, 0
        %vm1773 = vcmask 1043456
        %v1775 = vsel %vm1773, %v1767, 0
        %v1778 = vsel %vm1773, %v1768, 0
        %v1781 = vsel %vm1773, %v1766, 0
        %1783 = vmatprep.subr.bf16.mxu0 0
        %1784 = vmatpush1.bf16.msra.mxu0 0
        %1785 = vmatprep.subr.bf16.mxu0 0
        %1786 = vmatpush1.bf16.msra.mxu0 0
        %1787 = vmatprep.subr.bf16.mxu0 0
        %1788 = vmatpush1.bf16.msra.mxu0 0
        %1789 = vmatprep.subr.bf16.mxu0 0
        %1790 = vmatpush1.bf16.msra.mxu0 0
        %1791 = vmatprep.subr.bf16.mxu0 0
        %1792 = vmatpush1.bf16.msra.mxu0 0
        %1793 = vmatprep.subr.bf16.mxu0 0
        %1794 = vmatpush1.bf16.msra.mxu0 0
        %1795 = vmatprep.subr.bf16.mxu0 0
        %1796 = vmatpush1.bf16.msra.mxu0 0
        %1797 = vmatprep.subr.bf16.mxu0 %v1778
        %1798 = vmatpush1.bf16.msra.mxu0 %v1775
        %1799 = vmatprep.subr.bf16.mxu0 0
        %1800 = vmatpush2.bf16.msra.mxu0 0
        %1801 = vmatprep.subr.bf16.mxu0 0
        %1802 = vmatpush2.bf16.msra.mxu0 0
        %1803 = vmatprep.subr.bf16.mxu0 0
        %1804 = vmatpush2.bf16.msra.mxu0 0
        %1805 = vmatprep.subr.bf16.mxu0 0
        %1806 = vmatpush2.bf16.msra.mxu0 0
        %1807 = vmatprep.subr.bf16.mxu0 0
        %1808 = vmatpush2.bf16.msra.mxu0 0
        %1809 = vmatprep.subr.bf16.mxu0 0
        %1810 = vmatpush2.bf16.msra.mxu0 0
        %1811 = vmatprep.subr.bf16.mxu0 0
        %1812 = vmatpush2.bf16.msra.mxu0 0
        %1813 = vmatprep.subr.bf16.mxu0 0
        %1814 = vmatpush2.bf16.msra.mxu0 0
        %1815 = vmatprep.mubr.bf16.mxu0 0
        %1816 = vmatmul.mubr.bf16.gmra.mxu0 %v1771
        %v1817 = vpop.f32.mrf.mxu0
        %v1818 = vadd.f32 0.0, %v1817
        %v1819 = vpop.f32.mrf.mxu0
        %v1820 = vadd.f32 0.0, %v1819
        %v1821 = vpop.f32.mrf.mxu0
        %v1822 = vadd.f32 0.0, %v1821
        %v1823 = vpop.f32.mrf.mxu0
        %v1824 = vadd.f32 0.0, %v1823
        %1825 = vdwg.mxu0
        %1826 = vmatprep.subr.bf16.mxu0 0
        %1827 = vmatpush1.bf16.msra.mxu0 0
        %1828 = vmatprep.subr.bf16.mxu0 0
        %1829 = vmatpush1.bf16.msra.mxu0 0
        %1830 = vmatprep.subr.bf16.mxu0 0
        %1831 = vmatpush1.bf16.msra.mxu0 0
        %1832 = vmatprep.subr.bf16.mxu0 0
        %1833 = vmatpush1.bf16.msra.mxu0 0
        %1834 = vmatprep.subr.bf16.mxu0 0
        %1835 = vmatpush1.bf16.msra.mxu0 0
        %1836 = vmatprep.subr.bf16.mxu0 0
        %1837 = vmatpush1.bf16.msra.mxu0 0
        %1838 = vmatprep.subr.bf16.mxu0 0
        %1839 = vmatpush1.bf16.msra.mxu0 0
        %1840 = vmatprep.subr.bf16.mxu0 0
        %1841 = vmatpush1.bf16.msra.mxu0 %v1781
        %1842 = vmatprep.subr.bf16.mxu0 0
        %1843 = vmatpush2.bf16.msra.mxu0 0
        %1844 = vmatprep.subr.bf16.mxu0 0
        %1845 = vmatpush2.bf16.msra.mxu0 0
        %1846 = vmatprep.subr.bf16.mxu0 0
        %1847 = vmatpush2.bf16.msra.mxu0 0
        %1848 = vmatprep.subr.bf16.mxu0 0
        %1849 = vmatpush2.bf16.msra.mxu0 0
        %1850 = vmatprep.subr.bf16.mxu0 0
        %1851 = vmatpush2.bf16.msra.mxu0 0
        %1852 = vmatprep.subr.bf16.mxu0 0
        %1853 = vmatpush2.bf16.msra.mxu0 0
        %1854 = vmatprep.subr.bf16.mxu0 0
        %1855 = vmatpush2.bf16.msra.mxu0 0
        %1856 = vmatprep.subr.bf16.mxu0 0
        %1857 = vmatpush2.bf16.msra.mxu0 0
        %1858 = vmatprep.mubr.bf16.mxu0 0
        %1859 = vmatmul.mubr.bf16.gmra.mxu0 %v1771
        %v1860 = vpop.f32.mrf.mxu0
        %v1861 = vadd.f32 0.0, %v1860
        %v1862 = vpop.f32.mrf.mxu0
        %v1863 = vpop.f32.mrf.mxu0
        %v1864 = vadd.f32 0.0, %v1863
        %v1865 = vpop.f32.mrf.mxu0
        %1866 = vdwg.mxu0
        %v1869 = vunpack.c.l.b16 %v1741
        %v1870 = vunpack.c.l.b16 %v1742
        %v1871 = vpack.c.b16 %v1870, %v1869
        %v1873 = vsel %vm1769, %v1871, 0
        %v1876 = vsel %vm1773, %v1758, 0
        %v1879 = vsel %vm1773, %v1759, 0
        %v1882 = vsel %vm1773, %v1760, 0
        %1884 = vmatprep.subr.bf16.mxu0 0
        %1885 = vmatpush1.bf16.msra.mxu0 0
        %1886 = vmatprep.subr.bf16.mxu0 0
        %1887 = vmatpush1.bf16.msra.mxu0 0
        %1888 = vmatprep.subr.bf16.mxu0 0
        %1889 = vmatpush1.bf16.msra.mxu0 0
        %1890 = vmatprep.subr.bf16.mxu0 0
        %1891 = vmatpush1.bf16.msra.mxu0 0
        %1892 = vmatprep.subr.bf16.mxu0 0
        %1893 = vmatpush1.bf16.msra.mxu0 0
        %1894 = vmatprep.subr.bf16.mxu0 0
        %1895 = vmatpush1.bf16.msra.mxu0 0
        %1896 = vmatprep.subr.bf16.mxu0 0
        %1897 = vmatpush1.bf16.msra.mxu0 0
        %1898 = vmatprep.subr.bf16.mxu0 %v1879
        %1899 = vmatpush1.bf16.msra.mxu0 %v1876
        %1900 = vmatprep.subr.bf16.mxu0 0
        %1901 = vmatpush2.bf16.msra.mxu0 0
        %1902 = vmatprep.subr.bf16.mxu0 0
        %1903 = vmatpush2.bf16.msra.mxu0 0
        %1904 = vmatprep.subr.bf16.mxu0 0
        %1905 = vmatpush2.bf16.msra.mxu0 0
        %1906 = vmatprep.subr.bf16.mxu0 0
        %1907 = vmatpush2.bf16.msra.mxu0 0
        %1908 = vmatprep.subr.bf16.mxu0 0
        %1909 = vmatpush2.bf16.msra.mxu0 0
        %1910 = vmatprep.subr.bf16.mxu0 0
        %1911 = vmatpush2.bf16.msra.mxu0 0
        %1912 = vmatprep.subr.bf16.mxu0 0
        %1913 = vmatpush2.bf16.msra.mxu0 0
        %1914 = vmatprep.subr.bf16.mxu0 0
        %1915 = vmatpush2.bf16.msra.mxu0 0
        %1916 = vmatprep.mubr.bf16.mxu0 0
        %1917 = vmatmul.mubr.bf16.gmra.mxu0 %v1873
        %v1918 = vpop.f32.mrf.mxu0
        %v1919 = vadd.f32 %v1818, %v1918
        %v1920 = vpop.f32.mrf.mxu0
        %v1921 = vadd.f32 %v1820, %v1920
        %v1922 = vpop.f32.mrf.mxu0
        %v1923 = vadd.f32 %v1822, %v1922
        %v1924 = vpop.f32.mrf.mxu0
        %v1925 = vadd.f32 %v1824, %v1924
        %1926 = vdwg.mxu0
        %1927 = vmatprep.subr.bf16.mxu0 0
        %1928 = vmatpush1.bf16.msra.mxu0 0
        %1929 = vmatprep.subr.bf16.mxu0 0
        %1930 = vmatpush1.bf16.msra.mxu0 0
        %1931 = vmatprep.subr.bf16.mxu0 0
        %1932 = vmatpush1.bf16.msra.mxu0 0
        %1933 = vmatprep.subr.bf16.mxu0 0
        %1934 = vmatpush1.bf16.msra.mxu0 0
        %1935 = vmatprep.subr.bf16.mxu0 0
        %1936 = vmatpush1.bf16.msra.mxu0 0
        %1937 = vmatprep.subr.bf16.mxu0 0
        %1938 = vmatpush1.bf16.msra.mxu0 0
        %1939 = vmatprep.subr.bf16.mxu0 0
        %1940 = vmatpush1.bf16.msra.mxu0 0
        %1941 = vmatprep.subr.bf16.mxu0 0
        %1942 = vmatpush1.bf16.msra.mxu0 %v1882
        %1943 = vmatprep.subr.bf16.mxu0 0
        %1944 = vmatpush2.bf16.msra.mxu0 0
        %1945 = vmatprep.subr.bf16.mxu0 0
        %1946 = vmatpush2.bf16.msra.mxu0 0
        %1947 = vmatprep.subr.bf16.mxu0 0
        %1948 = vmatpush2.bf16.msra.mxu0 0
        %1949 = vmatprep.subr.bf16.mxu0 0
        %1950 = vmatpush2.bf16.msra.mxu0 0
        %1951 = vmatprep.subr.bf16.mxu0 0
        %1952 = vmatpush2.bf16.msra.mxu0 0
        %1953 = vmatprep.subr.bf16.mxu0 0
        %1954 = vmatpush2.bf16.msra.mxu0 0
        %1955 = vmatprep.subr.bf16.mxu0 0
        %1956 = vmatpush2.bf16.msra.mxu0 0
        %1957 = vmatprep.subr.bf16.mxu0 0
        %1958 = vmatpush2.bf16.msra.mxu0 0
        %1959 = vmatprep.mubr.bf16.mxu0 0
        %1960 = vmatmul.mubr.bf16.gmra.mxu0 %v1873
        %v1961 = vpop.f32.mrf.mxu0
        %v1962 = vadd.f32 %v1861, %v1961
        %v1963 = vpop.f32.mrf.mxu0
        %v1964 = vpop.f32.mrf.mxu0
        %v1965 = vadd.f32 %v1864, %v1964
        %v1966 = vpop.f32.mrf.mxu0
        %1967 = vdwg.mxu0
        %s1968 = scalar_lea.vmem %s4, 16
        %v1969 = vld [vmem:[%s1968] sm:$0xf]
        %v1970 = vld [vmem:[%s1968 + $0x4] sm:$0xf]
        %v1973 = vunpack.c.l.b16 %v1969
        %v1974 = vunpack.c.l.b16 %v1970
        %v1975 = vpack.c.b16 %v1974, %v1973
        %1976 = vrot.lane.b32.xlu0 %v1758, 126
        %v1977 = vpop.permute.xlu0 %1976
        %1978 = vrot.lane.b32.xlu0 %v1759, 126
        %v1979 = vpop.permute.xlu0 %1978
        %1980 = vrot.lane.b32.xlu0 %v1760, 126
        %v1981 = vpop.permute.xlu0 %1980
        %v1982 = vsel %vm808, %v1977, %v1979
        %v1983 = vsel %vm808, %v1979, %v1981
        %v1985 = vsel %vm1769, %v1975, 0
        %v1988 = vsel %vm1773, %v1982, 0
        %v1991 = vsel %vm1773, %v1983, 0
        %v1994 = vsel %vm1773, %v1981, 0
        %1996 = vmatprep.subr.bf16.mxu0 0
        %1997 = vmatpush1.bf16.msra.mxu0 0
        %1998 = vmatprep.subr.bf16.mxu0 0
        %1999 = vmatpush1.bf16.msra.mxu0 0
        %2000 = vmatprep.subr.bf16.mxu0 0
        %2001 = vmatpush1.bf16.msra.mxu0 0
        %2002 = vmatprep.subr.bf16.mxu0 0
        %2003 = vmatpush1.bf16.msra.mxu0 0
        %2004 = vmatprep.subr.bf16.mxu0 0
        %2005 = vmatpush1.bf16.msra.mxu0 0
        %2006 = vmatprep.subr.bf16.mxu0 0
        %2007 = vmatpush1.bf16.msra.mxu0 0
        %2008 = vmatprep.subr.bf16.mxu0 0
        %2009 = vmatpush1.bf16.msra.mxu0 0
        %2010 = vmatprep.subr.bf16.mxu0 %v1991
        %2011 = vmatpush1.bf16.msra.mxu0 %v1988
        %2012 = vmatprep.subr.bf16.mxu0 0
        %2013 = vmatpush2.bf16.msra.mxu0 0
        %2014 = vmatprep.subr.bf16.mxu0 0
        %2015 = vmatpush2.bf16.msra.mxu0 0
        %2016 = vmatprep.subr.bf16.mxu0 0
        %2017 = vmatpush2.bf16.msra.mxu0 0
        %2018 = vmatprep.subr.bf16.mxu0 0
        %2019 = vmatpush2.bf16.msra.mxu0 0
        %2020 = vmatprep.subr.bf16.mxu0 0
        %2021 = vmatpush2.bf16.msra.mxu0 0
        %2022 = vmatprep.subr.bf16.mxu0 0
        %2023 = vmatpush2.bf16.msra.mxu0 0
        %2024 = vmatprep.subr.bf16.mxu0 0
        %2025 = vmatpush2.bf16.msra.mxu0 0
        %2026 = vmatprep.subr.bf16.mxu0 0
        %2027 = vmatpush2.bf16.msra.mxu0 0
        %2028 = vmatprep.mubr.bf16.mxu0 0
        %2029 = vmatmul.mubr.bf16.gmra.mxu0 %v1985
        %v2030 = vpop.f32.mrf.mxu0
        %v2031 = vadd.f32 0.0, %v2030
        %v2032 = vpop.f32.mrf.mxu0
        %v2033 = vadd.f32 0.0, %v2032
        %v2034 = vpop.f32.mrf.mxu0
        %v2035 = vadd.f32 0.0, %v2034
        %v2036 = vpop.f32.mrf.mxu0
        %v2037 = vadd.f32 0.0, %v2036
        %2038 = vdwg.mxu0
        %2039 = vmatprep.subr.bf16.mxu0 0
        %2040 = vmatpush1.bf16.msra.mxu0 0
        %2041 = vmatprep.subr.bf16.mxu0 0
        %2042 = vmatpush1.bf16.msra.mxu0 0
        %2043 = vmatprep.subr.bf16.mxu0 0
        %2044 = vmatpush1.bf16.msra.mxu0 0
        %2045 = vmatprep.subr.bf16.mxu0 0
        %2046 = vmatpush1.bf16.msra.mxu0 0
        %2047 = vmatprep.subr.bf16.mxu0 0
        %2048 = vmatpush1.bf16.msra.mxu0 0
        %2049 = vmatprep.subr.bf16.mxu0 0
        %2050 = vmatpush1.bf16.msra.mxu0 0
        %2051 = vmatprep.subr.bf16.mxu0 0
        %2052 = vmatpush1.bf16.msra.mxu0 0
        %2053 = vmatprep.subr.bf16.mxu0 0
        %2054 = vmatpush1.bf16.msra.mxu0 %v1994
        %2055 = vmatprep.subr.bf16.mxu0 0
        %2056 = vmatpush2.bf16.msra.mxu0 0
        %2057 = vmatprep.subr.bf16.mxu0 0
        %2058 = vmatpush2.bf16.msra.mxu0 0
        %2059 = vmatprep.subr.bf16.mxu0 0
        %2060 = vmatpush2.bf16.msra.mxu0 0
        %2061 = vmatprep.subr.bf16.mxu0 0
        %2062 = vmatpush2.bf16.msra.mxu0 0
        %2063 = vmatprep.subr.bf16.mxu0 0
        %2064 = vmatpush2.bf16.msra.mxu0 0
        %2065 = vmatprep.subr.bf16.mxu0 0
        %2066 = vmatpush2.bf16.msra.mxu0 0
        %2067 = vmatprep.subr.bf16.mxu0 0
        %2068 = vmatpush2.bf16.msra.mxu0 0
        %2069 = vmatprep.subr.bf16.mxu0 0
        %2070 = vmatpush2.bf16.msra.mxu0 0
        %2071 = vmatprep.mubr.bf16.mxu0 0
        %2072 = vmatmul.mubr.bf16.gmra.mxu0 %v1985
        %v2073 = vpop.f32.mrf.mxu0
        %v2074 = vadd.f32 0.0, %v2073
        %v2075 = vpop.f32.mrf.mxu0
        %v2076 = vpop.f32.mrf.mxu0
        %v2077 = vadd.f32 0.0, %v2076
        %v2078 = vpop.f32.mrf.mxu0
        %2079 = vdwg.mxu0
        %v2080 = vadd.f32 %v1919, %v2031
        %v2081 = vadd.f32 %v1921, %v2033
        %v2082 = vadd.f32 %v1962, %v2074
        %v2083 = vadd.f32 %v1923, %v2035
        %v2084 = vadd.f32 %v1925, %v2037
        %v2085 = vadd.f32 %v1965, %v2077
        %s2086 = scalar_lea.vmem %s4, 24
        %v2087 = vld [vmem:[%s2086] sm:$0xf]
        %v2088 = vld [vmem:[%s2086 + $0x4] sm:$0xf]
        %v2091 = vunpack.c.l.b16 %v2087
        %v2092 = vunpack.c.l.b16 %v2088
        %v2093 = vpack.c.b16 %v2092, %v2091
        %2094 = vrot.lane.b32.xlu0 %v1758, 110
        %v2095 = vpop.permute.xlu0 %2094
        %2096 = vrot.lane.b32.xlu0 %v1759, 110
        %v2097 = vpop.permute.xlu0 %2096
        %2098 = vrot.lane.b32.xlu0 %v1760, 110
        %v2099 = vpop.permute.xlu0 %2098
        %v2100 = vsel %vm933, %v2095, %v2097
        %v2101 = vsel %vm933, %v2097, %v2099
        %v2103 = vsel %vm1769, %v2093, 0
        %v2106 = vsel %vm1773, %v2100, 0
        %v2109 = vsel %vm1773, %v2101, 0
        %v2112 = vsel %vm1773, %v2099, 0
        %2114 = vmatprep.subr.bf16.mxu0 0
        %2115 = vmatpush1.bf16.msra.mxu0 0
        %2116 = vmatprep.subr.bf16.mxu0 0
        %2117 = vmatpush1.bf16.msra.mxu0 0
        %2118 = vmatprep.subr.bf16.mxu0 0
        %2119 = vmatpush1.bf16.msra.mxu0 0
        %2120 = vmatprep.subr.bf16.mxu0 0
        %2121 = vmatpush1.bf16.msra.mxu0 0
        %2122 = vmatprep.subr.bf16.mxu0 0
        %2123 = vmatpush1.bf16.msra.mxu0 0
        %2124 = vmatprep.subr.bf16.mxu0 0
        %2125 = vmatpush1.bf16.msra.mxu0 0
        %2126 = vmatprep.subr.bf16.mxu0 0
        %2127 = vmatpush1.bf16.msra.mxu0 0
        %2128 = vmatprep.subr.bf16.mxu0 %v2109
        %2129 = vmatpush1.bf16.msra.mxu0 %v2106
        %2130 = vmatprep.subr.bf16.mxu0 0
        %2131 = vmatpush2.bf16.msra.mxu0 0
        %2132 = vmatprep.subr.bf16.mxu0 0
        %2133 = vmatpush2.bf16.msra.mxu0 0
        %2134 = vmatprep.subr.bf16.mxu0 0
        %2135 = vmatpush2.bf16.msra.mxu0 0
        %2136 = vmatprep.subr.bf16.mxu0 0
        %2137 = vmatpush2.bf16.msra.mxu0 0
        %2138 = vmatprep.subr.bf16.mxu0 0
        %2139 = vmatpush2.bf16.msra.mxu0 0
        %2140 = vmatprep.subr.bf16.mxu0 0
        %2141 = vmatpush2.bf16.msra.mxu0 0
        %2142 = vmatprep.subr.bf16.mxu0 0
        %2143 = vmatpush2.bf16.msra.mxu0 0
        %2144 = vmatprep.subr.bf16.mxu0 0
        %2145 = vmatpush2.bf16.msra.mxu0 0
        %2146 = vmatprep.mubr.bf16.mxu0 0
        %2147 = vmatmul.mubr.bf16.gmra.mxu0 %v2103
        %v2148 = vpop.f32.mrf.mxu0
        %v2149 = vadd.f32 0.0, %v2148
        %v2150 = vpop.f32.mrf.mxu0
        %v2151 = vadd.f32 0.0, %v2150
        %v2152 = vpop.f32.mrf.mxu0
        %v2153 = vadd.f32 0.0, %v2152
        %v2154 = vpop.f32.mrf.mxu0
        %v2155 = vadd.f32 0.0, %v2154
        %2156 = vdwg.mxu0
        %2157 = vmatprep.subr.bf16.mxu0 0
        %2158 = vmatpush1.bf16.msra.mxu0 0
        %2159 = vmatprep.subr.bf16.mxu0 0
        %2160 = vmatpush1.bf16.msra.mxu0 0
        %2161 = vmatprep.subr.bf16.mxu0 0
        %2162 = vmatpush1.bf16.msra.mxu0 0
        %2163 = vmatprep.subr.bf16.mxu0 0
        %2164 = vmatpush1.bf16.msra.mxu0 0
        %2165 = vmatprep.subr.bf16.mxu0 0
        %2166 = vmatpush1.bf16.msra.mxu0 0
        %2167 = vmatprep.subr.bf16.mxu0 0
        %2168 = vmatpush1.bf16.msra.mxu0 0
        %2169 = vmatprep.subr.bf16.mxu0 0
        %2170 = vmatpush1.bf16.msra.mxu0 0
        %2171 = vmatprep.subr.bf16.mxu0 0
        %2172 = vmatpush1.bf16.msra.mxu0 %v2112
        %2173 = vmatprep.subr.bf16.mxu0 0
        %2174 = vmatpush2.bf16.msra.mxu0 0
        %2175 = vmatprep.subr.bf16.mxu0 0
        %2176 = vmatpush2.bf16.msra.mxu0 0
        %2177 = vmatprep.subr.bf16.mxu0 0
        %2178 = vmatpush2.bf16.msra.mxu0 0
        %2179 = vmatprep.subr.bf16.mxu0 0
        %2180 = vmatpush2.bf16.msra.mxu0 0
        %2181 = vmatprep.subr.bf16.mxu0 0
        %2182 = vmatpush2.bf16.msra.mxu0 0
        %2183 = vmatprep.subr.bf16.mxu0 0
        %2184 = vmatpush2.bf16.msra.mxu0 0
        %2185 = vmatprep.subr.bf16.mxu0 0
        %2186 = vmatpush2.bf16.msra.mxu0 0
        %2187 = vmatprep.subr.bf16.mxu0 0
        %2188 = vmatpush2.bf16.msra.mxu0 0
        %2189 = vmatprep.mubr.bf16.mxu0 0
        %2190 = vmatmul.mubr.bf16.gmra.mxu0 %v2103
        %v2191 = vpop.f32.mrf.mxu0
        %v2192 = vadd.f32 0.0, %v2191
        %v2193 = vpop.f32.mrf.mxu0
        %v2194 = vpop.f32.mrf.mxu0
        %v2195 = vadd.f32 0.0, %v2194
        %v2196 = vpop.f32.mrf.mxu0
        %2197 = vdwg.mxu0
        %v2198 = vadd.f32 %v2080, %v2149
        %v2199 = vadd.f32 %v2081, %v2151
        %v2200 = vadd.f32 %v2082, %v2192
        %v2201 = vadd.f32 %v2083, %v2153
        %v2202 = vadd.f32 %v2084, %v2155
        %v2203 = vadd.f32 %v2085, %v2195
        %s2204 = scalar_lea.vmem %s4, 32
        %v2205 = vld [vmem:[%s2204] sm:$0xf]
        %v2206 = vld [vmem:[%s2204 + $0x4] sm:$0xf]
        %v2209 = vunpack.c.l.b16 %v2205
        %v2210 = vunpack.c.l.b16 %v2206
        %v2211 = vpack.c.b16 %v2210, %v2209
        %2212 = vrot.lane.b32.xlu0 %v1758, 109
        %v2213 = vpop.permute.xlu0 %2212
        %2214 = vrot.lane.b32.xlu0 %v1759, 109
        %v2215 = vpop.permute.xlu0 %2214
        %2216 = vrot.lane.b32.xlu0 %v1760, 109
        %v2217 = vpop.permute.xlu0 %2216
        %v2218 = vsel %vm1058, %v2213, %v2215
        %v2219 = vsel %vm1058, %v2215, %v2217
        %v2221 = vsel %vm1769, %v2211, 0
        %v2224 = vsel %vm1773, %v2218, 0
        %v2227 = vsel %vm1773, %v2219, 0
        %v2230 = vsel %vm1773, %v2217, 0
        %2232 = vmatprep.subr.bf16.mxu0 0
        %2233 = vmatpush1.bf16.msra.mxu0 0
        %2234 = vmatprep.subr.bf16.mxu0 0
        %2235 = vmatpush1.bf16.msra.mxu0 0
        %2236 = vmatprep.subr.bf16.mxu0 0
        %2237 = vmatpush1.bf16.msra.mxu0 0
        %2238 = vmatprep.subr.bf16.mxu0 0
        %2239 = vmatpush1.bf16.msra.mxu0 0
        %2240 = vmatprep.subr.bf16.mxu0 0
        %2241 = vmatpush1.bf16.msra.mxu0 0
        %2242 = vmatprep.subr.bf16.mxu0 0
        %2243 = vmatpush1.bf16.msra.mxu0 0
        %2244 = vmatprep.subr.bf16.mxu0 0
        %2245 = vmatpush1.bf16.msra.mxu0 0
        %2246 = vmatprep.subr.bf16.mxu0 %v2227
        %2247 = vmatpush1.bf16.msra.mxu0 %v2224
        %2248 = vmatprep.subr.bf16.mxu0 0
        %2249 = vmatpush2.bf16.msra.mxu0 0
        %2250 = vmatprep.subr.bf16.mxu0 0
        %2251 = vmatpush2.bf16.msra.mxu0 0
        %2252 = vmatprep.subr.bf16.mxu0 0
        %2253 = vmatpush2.bf16.msra.mxu0 0
        %2254 = vmatprep.subr.bf16.mxu0 0
        %2255 = vmatpush2.bf16.msra.mxu0 0
        %2256 = vmatprep.subr.bf16.mxu0 0
        %2257 = vmatpush2.bf16.msra.mxu0 0
        %2258 = vmatprep.subr.bf16.mxu0 0
        %2259 = vmatpush2.bf16.msra.mxu0 0
        %2260 = vmatprep.subr.bf16.mxu0 0
        %2261 = vmatpush2.bf16.msra.mxu0 0
        %2262 = vmatprep.subr.bf16.mxu0 0
        %2263 = vmatpush2.bf16.msra.mxu0 0
        %2264 = vmatprep.mubr.bf16.mxu0 0
        %2265 = vmatmul.mubr.bf16.gmra.mxu0 %v2221
        %v2266 = vpop.f32.mrf.mxu0
        %v2267 = vadd.f32 0.0, %v2266
        %v2268 = vpop.f32.mrf.mxu0
        %v2269 = vadd.f32 0.0, %v2268
        %v2270 = vpop.f32.mrf.mxu0
        %v2271 = vadd.f32 0.0, %v2270
        %v2272 = vpop.f32.mrf.mxu0
        %v2273 = vadd.f32 0.0, %v2272
        %2274 = vdwg.mxu0
        %2275 = vmatprep.subr.bf16.mxu0 0
        %2276 = vmatpush1.bf16.msra.mxu0 0
        %2277 = vmatprep.subr.bf16.mxu0 0
        %2278 = vmatpush1.bf16.msra.mxu0 0
        %2279 = vmatprep.subr.bf16.mxu0 0
        %2280 = vmatpush1.bf16.msra.mxu0 0
        %2281 = vmatprep.subr.bf16.mxu0 0
        %2282 = vmatpush1.bf16.msra.mxu0 0
        %2283 = vmatprep.subr.bf16.mxu0 0
        %2284 = vmatpush1.bf16.msra.mxu0 0
        %2285 = vmatprep.subr.bf16.mxu0 0
        %2286 = vmatpush1.bf16.msra.mxu0 0
        %2287 = vmatprep.subr.bf16.mxu0 0
        %2288 = vmatpush1.bf16.msra.mxu0 0
        %2289 = vmatprep.subr.bf16.mxu0 0
        %2290 = vmatpush1.bf16.msra.mxu0 %v2230
        %2291 = vmatprep.subr.bf16.mxu0 0
        %2292 = vmatpush2.bf16.msra.mxu0 0
        %2293 = vmatprep.subr.bf16.mxu0 0
        %2294 = vmatpush2.bf16.msra.mxu0 0
        %2295 = vmatprep.subr.bf16.mxu0 0
        %2296 = vmatpush2.bf16.msra.mxu0 0
        %2297 = vmatprep.subr.bf16.mxu0 0
        %2298 = vmatpush2.bf16.msra.mxu0 0
        %2299 = vmatprep.subr.bf16.mxu0 0
        %2300 = vmatpush2.bf16.msra.mxu0 0
        %2301 = vmatprep.subr.bf16.mxu0 0
        %2302 = vmatpush2.bf16.msra.mxu0 0
        %2303 = vmatprep.subr.bf16.mxu0 0
        %2304 = vmatpush2.bf16.msra.mxu0 0
        %2305 = vmatprep.subr.bf16.mxu0 0
        %2306 = vmatpush2.bf16.msra.mxu0 0
        %2307 = vmatprep.mubr.bf16.mxu0 0
        %2308 = vmatmul.mubr.bf16.gmra.mxu0 %v2221
        %v2309 = vpop.f32.mrf.mxu0
        %v2310 = vadd.f32 0.0, %v2309
        %v2311 = vpop.f32.mrf.mxu0
        %v2312 = vpop.f32.mrf.mxu0
        %v2313 = vadd.f32 0.0, %v2312
        %v2314 = vpop.f32.mrf.mxu0
        %2315 = vdwg.mxu0
        %v2316 = vadd.f32 %v2198, %v2267
        %v2317 = vadd.f32 %v2199, %v2269
        %v2318 = vadd.f32 %v2200, %v2310
        %v2319 = vadd.f32 %v2201, %v2271
        %v2320 = vadd.f32 %v2202, %v2273
        %v2321 = vadd.f32 %v2203, %v2313
        %s2322 = scalar_lea.vmem %s4, 40
        %v2323 = vld [vmem:[%s2322] sm:$0xf]
        %v2324 = vld [vmem:[%s2322 + $0x4] sm:$0xf]
        %v2327 = vunpack.c.l.b16 %v2323
        %v2328 = vunpack.c.l.b16 %v2324
        %v2329 = vpack.c.b16 %v2328, %v2327
        %2330 = vrot.lane.b32.xlu0 %v1758, 108
        %v2331 = vpop.permute.xlu0 %2330
        %2332 = vrot.lane.b32.xlu0 %v1759, 108
        %v2333 = vpop.permute.xlu0 %2332
        %2334 = vrot.lane.b32.xlu0 %v1760, 108
        %v2335 = vpop.permute.xlu0 %2334
        %v2336 = vsel %vm1183, %v2331, %v2333
        %v2337 = vsel %vm1183, %v2333, %v2335
        %v2339 = vsel %vm1769, %v2329, 0
        %v2342 = vsel %vm1773, %v2336, 0
        %v2345 = vsel %vm1773, %v2337, 0
        %v2348 = vsel %vm1773, %v2335, 0
        %2350 = vmatprep.subr.bf16.mxu0 0
        %2351 = vmatpush1.bf16.msra.mxu0 0
        %2352 = vmatprep.subr.bf16.mxu0 0
        %2353 = vmatpush1.bf16.msra.mxu0 0
        %2354 = vmatprep.subr.bf16.mxu0 0
        %2355 = vmatpush1.bf16.msra.mxu0 0
        %2356 = vmatprep.subr.bf16.mxu0 0
        %2357 = vmatpush1.bf16.msra.mxu0 0
        %2358 = vmatprep.subr.bf16.mxu0 0
        %2359 = vmatpush1.bf16.msra.mxu0 0
        %2360 = vmatprep.subr.bf16.mxu0 0
        %2361 = vmatpush1.bf16.msra.mxu0 0
        %2362 = vmatprep.subr.bf16.mxu0 0
        %2363 = vmatpush1.bf16.msra.mxu0 0
        %2364 = vmatprep.subr.bf16.mxu0 %v2345
        %2365 = vmatpush1.bf16.msra.mxu0 %v2342
        %2366 = vmatprep.subr.bf16.mxu0 0
        %2367 = vmatpush2.bf16.msra.mxu0 0
        %2368 = vmatprep.subr.bf16.mxu0 0
        %2369 = vmatpush2.bf16.msra.mxu0 0
        %2370 = vmatprep.subr.bf16.mxu0 0
        %2371 = vmatpush2.bf16.msra.mxu0 0
        %2372 = vmatprep.subr.bf16.mxu0 0
        %2373 = vmatpush2.bf16.msra.mxu0 0
        %2374 = vmatprep.subr.bf16.mxu0 0
        %2375 = vmatpush2.bf16.msra.mxu0 0
        %2376 = vmatprep.subr.bf16.mxu0 0
        %2377 = vmatpush2.bf16.msra.mxu0 0
        %2378 = vmatprep.subr.bf16.mxu0 0
        %2379 = vmatpush2.bf16.msra.mxu0 0
        %2380 = vmatprep.subr.bf16.mxu0 0
        %2381 = vmatpush2.bf16.msra.mxu0 0
        %2382 = vmatprep.mubr.bf16.mxu0 0
        %2383 = vmatmul.mubr.bf16.gmra.mxu0 %v2339
        %v2384 = vpop.f32.mrf.mxu0
        %v2385 = vadd.f32 0.0, %v2384
        %v2386 = vpop.f32.mrf.mxu0
        %v2387 = vadd.f32 0.0, %v2386
        %v2388 = vpop.f32.mrf.mxu0
        %v2389 = vadd.f32 0.0, %v2388
        %v2390 = vpop.f32.mrf.mxu0
        %v2391 = vadd.f32 0.0, %v2390
        %2392 = vdwg.mxu0
        %2393 = vmatprep.subr.bf16.mxu0 0
        %2394 = vmatpush1.bf16.msra.mxu0 0
        %2395 = vmatprep.subr.bf16.mxu0 0
        %2396 = vmatpush1.bf16.msra.mxu0 0
        %2397 = vmatprep.subr.bf16.mxu0 0
        %2398 = vmatpush1.bf16.msra.mxu0 0
        %2399 = vmatprep.subr.bf16.mxu0 0
        %2400 = vmatpush1.bf16.msra.mxu0 0
        %2401 = vmatprep.subr.bf16.mxu0 0
        %2402 = vmatpush1.bf16.msra.mxu0 0
        %2403 = vmatprep.subr.bf16.mxu0 0
        %2404 = vmatpush1.bf16.msra.mxu0 0
        %2405 = vmatprep.subr.bf16.mxu0 0
        %2406 = vmatpush1.bf16.msra.mxu0 0
        %2407 = vmatprep.subr.bf16.mxu0 0
        %2408 = vmatpush1.bf16.msra.mxu0 %v2348
        %2409 = vmatprep.subr.bf16.mxu0 0
        %2410 = vmatpush2.bf16.msra.mxu0 0
        %2411 = vmatprep.subr.bf16.mxu0 0
        %2412 = vmatpush2.bf16.msra.mxu0 0
        %2413 = vmatprep.subr.bf16.mxu0 0
        %2414 = vmatpush2.bf16.msra.mxu0 0
        %2415 = vmatprep.subr.bf16.mxu0 0
        %2416 = vmatpush2.bf16.msra.mxu0 0
        %2417 = vmatprep.subr.bf16.mxu0 0
        %2418 = vmatpush2.bf16.msra.mxu0 0
        %2419 = vmatprep.subr.bf16.mxu0 0
        %2420 = vmatpush2.bf16.msra.mxu0 0
        %2421 = vmatprep.subr.bf16.mxu0 0
        %2422 = vmatpush2.bf16.msra.mxu0 0
        %2423 = vmatprep.subr.bf16.mxu0 0
        %2424 = vmatpush2.bf16.msra.mxu0 0
        %2425 = vmatprep.mubr.bf16.mxu0 0
        %2426 = vmatmul.mubr.bf16.gmra.mxu0 %v2339
        %v2427 = vpop.f32.mrf.mxu0
        %v2428 = vadd.f32 0.0, %v2427
        %v2429 = vpop.f32.mrf.mxu0
        %v2430 = vpop.f32.mrf.mxu0
        %v2431 = vadd.f32 0.0, %v2430
        %v2432 = vpop.f32.mrf.mxu0
        %2433 = vdwg.mxu0
        %v2434 = vadd.f32 %v2316, %v2385
        %v2435 = vadd.f32 %v2317, %v2387
        %v2436 = vadd.f32 %v2318, %v2428
        %v2437 = vadd.f32 %v2319, %v2389
        %v2438 = vadd.f32 %v2320, %v2391
        %v2439 = vadd.f32 %v2321, %v2431
        %s2440 = scalar_lea.vmem %s4, 48
        %v2441 = vld [vmem:[%s2440] sm:$0xf]
        %v2442 = vld [vmem:[%s2440 + $0x4] sm:$0xf]
        %v2445 = vunpack.c.l.b16 %v2441
        %v2446 = vunpack.c.l.b16 %v2442
        %v2447 = vpack.c.b16 %v2446, %v2445
        %2448 = vrot.lane.b32.xlu0 %v1758, 92
        %v2449 = vpop.permute.xlu0 %2448
        %2450 = vrot.lane.b32.xlu0 %v1759, 92
        %v2451 = vpop.permute.xlu0 %2450
        %2452 = vrot.lane.b32.xlu0 %v1760, 92
        %v2453 = vpop.permute.xlu0 %2452
        %v2454 = vsel %vm1308, %v2449, %v2451
        %v2455 = vsel %vm1308, %v2451, %v2453
        %v2457 = vsel %vm1769, %v2447, 0
        %v2460 = vsel %vm1773, %v2454, 0
        %v2463 = vsel %vm1773, %v2455, 0
        %v2466 = vsel %vm1773, %v2453, 0
        %2468 = vmatprep.subr.bf16.mxu0 0
        %2469 = vmatpush1.bf16.msra.mxu0 0
        %2470 = vmatprep.subr.bf16.mxu0 0
        %2471 = vmatpush1.bf16.msra.mxu0 0
        %2472 = vmatprep.subr.bf16.mxu0 0
        %2473 = vmatpush1.bf16.msra.mxu0 0
        %2474 = vmatprep.subr.bf16.mxu0 0
        %2475 = vmatpush1.bf16.msra.mxu0 0
        %2476 = vmatprep.subr.bf16.mxu0 0
        %2477 = vmatpush1.bf16.msra.mxu0 0
        %2478 = vmatprep.subr.bf16.mxu0 0
        %2479 = vmatpush1.bf16.msra.mxu0 0
        %2480 = vmatprep.subr.bf16.mxu0 0
        %2481 = vmatpush1.bf16.msra.mxu0 0
        %2482 = vmatprep.subr.bf16.mxu0 %v2463
        %2483 = vmatpush1.bf16.msra.mxu0 %v2460
        %2484 = vmatprep.subr.bf16.mxu0 0
        %2485 = vmatpush2.bf16.msra.mxu0 0
        %2486 = vmatprep.subr.bf16.mxu0 0
        %2487 = vmatpush2.bf16.msra.mxu0 0
        %2488 = vmatprep.subr.bf16.mxu0 0
        %2489 = vmatpush2.bf16.msra.mxu0 0
        %2490 = vmatprep.subr.bf16.mxu0 0
        %2491 = vmatpush2.bf16.msra.mxu0 0
        %2492 = vmatprep.subr.bf16.mxu0 0
        %2493 = vmatpush2.bf16.msra.mxu0 0
        %2494 = vmatprep.subr.bf16.mxu0 0
        %2495 = vmatpush2.bf16.msra.mxu0 0
        %2496 = vmatprep.subr.bf16.mxu0 0
        %2497 = vmatpush2.bf16.msra.mxu0 0
        %2498 = vmatprep.subr.bf16.mxu0 0
        %2499 = vmatpush2.bf16.msra.mxu0 0
        %2500 = vmatprep.mubr.bf16.mxu0 0
        %2501 = vmatmul.mubr.bf16.gmra.mxu0 %v2457
        %v2502 = vpop.f32.mrf.mxu0
        %v2503 = vadd.f32 0.0, %v2502
        %v2504 = vpop.f32.mrf.mxu0
        %v2505 = vadd.f32 0.0, %v2504
        %v2506 = vpop.f32.mrf.mxu0
        %v2507 = vadd.f32 0.0, %v2506
        %v2508 = vpop.f32.mrf.mxu0
        %v2509 = vadd.f32 0.0, %v2508
        %2510 = vdwg.mxu0
        %2511 = vmatprep.subr.bf16.mxu0 0
        %2512 = vmatpush1.bf16.msra.mxu0 0
        %2513 = vmatprep.subr.bf16.mxu0 0
        %2514 = vmatpush1.bf16.msra.mxu0 0
        %2515 = vmatprep.subr.bf16.mxu0 0
        %2516 = vmatpush1.bf16.msra.mxu0 0
        %2517 = vmatprep.subr.bf16.mxu0 0
        %2518 = vmatpush1.bf16.msra.mxu0 0
        %2519 = vmatprep.subr.bf16.mxu0 0
        %2520 = vmatpush1.bf16.msra.mxu0 0
        %2521 = vmatprep.subr.bf16.mxu0 0
        %2522 = vmatpush1.bf16.msra.mxu0 0
        %2523 = vmatprep.subr.bf16.mxu0 0
        %2524 = vmatpush1.bf16.msra.mxu0 0
        %2525 = vmatprep.subr.bf16.mxu0 0
        %2526 = vmatpush1.bf16.msra.mxu0 %v2466
        %2527 = vmatprep.subr.bf16.mxu0 0
        %2528 = vmatpush2.bf16.msra.mxu0 0
        %2529 = vmatprep.subr.bf16.mxu0 0
        %2530 = vmatpush2.bf16.msra.mxu0 0
        %2531 = vmatprep.subr.bf16.mxu0 0
        %2532 = vmatpush2.bf16.msra.mxu0 0
        %2533 = vmatprep.subr.bf16.mxu0 0
        %2534 = vmatpush2.bf16.msra.mxu0 0
        %2535 = vmatprep.subr.bf16.mxu0 0
        %2536 = vmatpush2.bf16.msra.mxu0 0
        %2537 = vmatprep.subr.bf16.mxu0 0
        %2538 = vmatpush2.bf16.msra.mxu0 0
        %2539 = vmatprep.subr.bf16.mxu0 0
        %2540 = vmatpush2.bf16.msra.mxu0 0
        %2541 = vmatprep.subr.bf16.mxu0 0
        %2542 = vmatpush2.bf16.msra.mxu0 0
        %2543 = vmatprep.mubr.bf16.mxu0 0
        %2544 = vmatmul.mubr.bf16.gmra.mxu0 %v2457
        %v2545 = vpop.f32.mrf.mxu0
        %v2546 = vadd.f32 0.0, %v2545
        %v2547 = vpop.f32.mrf.mxu0
        %v2548 = vpop.f32.mrf.mxu0
        %v2549 = vadd.f32 0.0, %v2548
        %v2550 = vpop.f32.mrf.mxu0
        %2551 = vdwg.mxu0
        %v2552 = vadd.f32 %v2434, %v2503
        %v2553 = vadd.f32 %v2435, %v2505
        %v2554 = vadd.f32 %v2436, %v2546
        %v2555 = vadd.f32 %v2437, %v2507
        %v2556 = vadd.f32 %v2438, %v2509
        %v2557 = vadd.f32 %v2439, %v2549
        %s2558 = scalar_lea.vmem %s4, 56
        %v2559 = vld [vmem:[%s2558] sm:$0xf]
        %v2560 = vld [vmem:[%s2558 + $0x4] sm:$0xf]
        %v2563 = vunpack.c.l.b16 %v2559
        %v2564 = vunpack.c.l.b16 %v2560
        %v2565 = vpack.c.b16 %v2564, %v2563
        %2566 = vrot.lane.b32.xlu0 %v1758, 91
        %v2567 = vpop.permute.xlu0 %2566
        %2568 = vrot.lane.b32.xlu0 %v1759, 91
        %v2569 = vpop.permute.xlu0 %2568
        %2570 = vrot.lane.b32.xlu0 %v1760, 91
        %v2571 = vpop.permute.xlu0 %2570
        %v2572 = vsel %vm1433, %v2567, %v2569
        %v2573 = vsel %vm1433, %v2569, %v2571
        %v2575 = vsel %vm1769, %v2565, 0
        %v2578 = vsel %vm1773, %v2572, 0
        %v2581 = vsel %vm1773, %v2573, 0
        %v2584 = vsel %vm1773, %v2571, 0
        %2586 = vmatprep.subr.bf16.mxu0 0
        %2587 = vmatpush1.bf16.msra.mxu0 0
        %2588 = vmatprep.subr.bf16.mxu0 0
        %2589 = vmatpush1.bf16.msra.mxu0 0
        %2590 = vmatprep.subr.bf16.mxu0 0
        %2591 = vmatpush1.bf16.msra.mxu0 0
        %2592 = vmatprep.subr.bf16.mxu0 0
        %2593 = vmatpush1.bf16.msra.mxu0 0
        %2594 = vmatprep.subr.bf16.mxu0 0
        %2595 = vmatpush1.bf16.msra.mxu0 0
        %2596 = vmatprep.subr.bf16.mxu0 0
        %2597 = vmatpush1.bf16.msra.mxu0 0
        %2598 = vmatprep.subr.bf16.mxu0 0
        %2599 = vmatpush1.bf16.msra.mxu0 0
        %2600 = vmatprep.subr.bf16.mxu0 %v2581
        %2601 = vmatpush1.bf16.msra.mxu0 %v2578
        %2602 = vmatprep.subr.bf16.mxu0 0
        %2603 = vmatpush2.bf16.msra.mxu0 0
        %2604 = vmatprep.subr.bf16.mxu0 0
        %2605 = vmatpush2.bf16.msra.mxu0 0
        %2606 = vmatprep.subr.bf16.mxu0 0
        %2607 = vmatpush2.bf16.msra.mxu0 0
        %2608 = vmatprep.subr.bf16.mxu0 0
        %2609 = vmatpush2.bf16.msra.mxu0 0
        %2610 = vmatprep.subr.bf16.mxu0 0
        %2611 = vmatpush2.bf16.msra.mxu0 0
        %2612 = vmatprep.subr.bf16.mxu0 0
        %2613 = vmatpush2.bf16.msra.mxu0 0
        %2614 = vmatprep.subr.bf16.mxu0 0
        %2615 = vmatpush2.bf16.msra.mxu0 0
        %2616 = vmatprep.subr.bf16.mxu0 0
        %2617 = vmatpush2.bf16.msra.mxu0 0
        %2618 = vmatprep.mubr.bf16.mxu0 0
        %2619 = vmatmul.mubr.bf16.gmra.mxu0 %v2575
        %v2620 = vpop.f32.mrf.mxu0
        %v2621 = vadd.f32 0.0, %v2620
        %v2622 = vpop.f32.mrf.mxu0
        %v2623 = vadd.f32 0.0, %v2622
        %v2624 = vpop.f32.mrf.mxu0
        %v2625 = vadd.f32 0.0, %v2624
        %v2626 = vpop.f32.mrf.mxu0
        %v2627 = vadd.f32 0.0, %v2626
        %2628 = vdwg.mxu0
        %2629 = vmatprep.subr.bf16.mxu0 0
        %2630 = vmatpush1.bf16.msra.mxu0 0
        %2631 = vmatprep.subr.bf16.mxu0 0
        %2632 = vmatpush1.bf16.msra.mxu0 0
        %2633 = vmatprep.subr.bf16.mxu0 0
        %2634 = vmatpush1.bf16.msra.mxu0 0
        %2635 = vmatprep.subr.bf16.mxu0 0
        %2636 = vmatpush1.bf16.msra.mxu0 0
        %2637 = vmatprep.subr.bf16.mxu0 0
        %2638 = vmatpush1.bf16.msra.mxu0 0
        %2639 = vmatprep.subr.bf16.mxu0 0
        %2640 = vmatpush1.bf16.msra.mxu0 0
        %2641 = vmatprep.subr.bf16.mxu0 0
        %2642 = vmatpush1.bf16.msra.mxu0 0
        %2643 = vmatprep.subr.bf16.mxu0 0
        %2644 = vmatpush1.bf16.msra.mxu0 %v2584
        %2645 = vmatprep.subr.bf16.mxu0 0
        %2646 = vmatpush2.bf16.msra.mxu0 0
        %2647 = vmatprep.subr.bf16.mxu0 0
        %2648 = vmatpush2.bf16.msra.mxu0 0
        %2649 = vmatprep.subr.bf16.mxu0 0
        %2650 = vmatpush2.bf16.msra.mxu0 0
        %2651 = vmatprep.subr.bf16.mxu0 0
        %2652 = vmatpush2.bf16.msra.mxu0 0
        %2653 = vmatprep.subr.bf16.mxu0 0
        %2654 = vmatpush2.bf16.msra.mxu0 0
        %2655 = vmatprep.subr.bf16.mxu0 0
        %2656 = vmatpush2.bf16.msra.mxu0 0
        %2657 = vmatprep.subr.bf16.mxu0 0
        %2658 = vmatpush2.bf16.msra.mxu0 0
        %2659 = vmatprep.subr.bf16.mxu0 0
        %2660 = vmatpush2.bf16.msra.mxu0 0
        %2661 = vmatprep.mubr.bf16.mxu0 0
        %2662 = vmatmul.mubr.bf16.gmra.mxu0 %v2575
        %v2663 = vpop.f32.mrf.mxu0
        %v2664 = vadd.f32 0.0, %v2663
        %v2665 = vpop.f32.mrf.mxu0
        %v2666 = vpop.f32.mrf.mxu0
        %v2667 = vadd.f32 0.0, %v2666
        %v2668 = vpop.f32.mrf.mxu0
        %2669 = vdwg.mxu0
        %v2670 = vadd.f32 %v2552, %v2621
        %v2671 = vadd.f32 %v2553, %v2623
        %v2672 = vadd.f32 %v2554, %v2664
        %v2673 = vadd.f32 %v2555, %v2625
        %v2674 = vadd.f32 %v2556, %v2627
        %v2675 = vadd.f32 %v2557, %v2667
        %s2676 = scalar_lea.vmem %s4, 64
        %v2677 = vld [vmem:[%s2676] sm:$0xf]
        %v2678 = vld [vmem:[%s2676 + $0x4] sm:$0xf]
        %v2681 = vunpack.c.l.b16 %v2677
        %v2682 = vunpack.c.l.b16 %v2678
        %v2683 = vpack.c.b16 %v2682, %v2681
        %2684 = vrot.lane.b32.xlu0 %v1758, 90
        %v2685 = vpop.permute.xlu0 %2684
        %2686 = vrot.lane.b32.xlu0 %v1759, 90
        %v2687 = vpop.permute.xlu0 %2686
        %2688 = vrot.lane.b32.xlu0 %v1760, 90
        %v2689 = vpop.permute.xlu0 %2688
        %v2690 = vsel %vm1558, %v2685, %v2687
        %v2691 = vsel %vm1558, %v2687, %v2689
        %v2693 = vsel %vm1769, %v2683, 0
        %v2696 = vsel %vm1773, %v2690, 0
        %v2699 = vsel %vm1773, %v2691, 0
        %v2702 = vsel %vm1773, %v2689, 0
        %2704 = vmatprep.subr.bf16.mxu0 0
        %2705 = vmatpush1.bf16.msra.mxu0 0
        %2706 = vmatprep.subr.bf16.mxu0 0
        %2707 = vmatpush1.bf16.msra.mxu0 0
        %2708 = vmatprep.subr.bf16.mxu0 0
        %2709 = vmatpush1.bf16.msra.mxu0 0
        %2710 = vmatprep.subr.bf16.mxu0 0
        %2711 = vmatpush1.bf16.msra.mxu0 0
        %2712 = vmatprep.subr.bf16.mxu0 0
        %2713 = vmatpush1.bf16.msra.mxu0 0
        %2714 = vmatprep.subr.bf16.mxu0 0
        %2715 = vmatpush1.bf16.msra.mxu0 0
        %2716 = vmatprep.subr.bf16.mxu0 0
        %2717 = vmatpush1.bf16.msra.mxu0 0
        %2718 = vmatprep.subr.bf16.mxu0 %v2699
        %2719 = vmatpush1.bf16.msra.mxu0 %v2696
        %2720 = vmatprep.subr.bf16.mxu0 0
        %2721 = vmatpush2.bf16.msra.mxu0 0
        %2722 = vmatprep.subr.bf16.mxu0 0
        %2723 = vmatpush2.bf16.msra.mxu0 0
        %2724 = vmatprep.subr.bf16.mxu0 0
        %2725 = vmatpush2.bf16.msra.mxu0 0
        %2726 = vmatprep.subr.bf16.mxu0 0
        %2727 = vmatpush2.bf16.msra.mxu0 0
        %2728 = vmatprep.subr.bf16.mxu0 0
        %2729 = vmatpush2.bf16.msra.mxu0 0
        %2730 = vmatprep.subr.bf16.mxu0 0
        %2731 = vmatpush2.bf16.msra.mxu0 0
        %2732 = vmatprep.subr.bf16.mxu0 0
        %2733 = vmatpush2.bf16.msra.mxu0 0
        %2734 = vmatprep.subr.bf16.mxu0 0
        %2735 = vmatpush2.bf16.msra.mxu0 0
        %2736 = vmatprep.mubr.bf16.mxu0 0
        %2737 = vmatmul.mubr.bf16.gmra.mxu0 %v2693
        %v2738 = vpop.f32.mrf.mxu0
        %v2739 = vadd.f32 0.0, %v2738
        %v2740 = vpop.f32.mrf.mxu0
        %v2741 = vadd.f32 0.0, %v2740
        %v2742 = vpop.f32.mrf.mxu0
        %v2743 = vadd.f32 0.0, %v2742
        %v2744 = vpop.f32.mrf.mxu0
        %v2745 = vadd.f32 0.0, %v2744
        %2746 = vdwg.mxu0
        %2747 = vmatprep.subr.bf16.mxu0 0
        %2748 = vmatpush1.bf16.msra.mxu0 0
        %2749 = vmatprep.subr.bf16.mxu0 0
        %2750 = vmatpush1.bf16.msra.mxu0 0
        %2751 = vmatprep.subr.bf16.mxu0 0
        %2752 = vmatpush1.bf16.msra.mxu0 0
        %2753 = vmatprep.subr.bf16.mxu0 0
        %2754 = vmatpush1.bf16.msra.mxu0 0
        %2755 = vmatprep.subr.bf16.mxu0 0
        %2756 = vmatpush1.bf16.msra.mxu0 0
        %2757 = vmatprep.subr.bf16.mxu0 0
        %2758 = vmatpush1.bf16.msra.mxu0 0
        %2759 = vmatprep.subr.bf16.mxu0 0
        %2760 = vmatpush1.bf16.msra.mxu0 0
        %2761 = vmatprep.subr.bf16.mxu0 0
        %2762 = vmatpush1.bf16.msra.mxu0 %v2702
        %2763 = vmatprep.subr.bf16.mxu0 0
        %2764 = vmatpush2.bf16.msra.mxu0 0
        %2765 = vmatprep.subr.bf16.mxu0 0
        %2766 = vmatpush2.bf16.msra.mxu0 0
        %2767 = vmatprep.subr.bf16.mxu0 0
        %2768 = vmatpush2.bf16.msra.mxu0 0
        %2769 = vmatprep.subr.bf16.mxu0 0
        %2770 = vmatpush2.bf16.msra.mxu0 0
        %2771 = vmatprep.subr.bf16.mxu0 0
        %2772 = vmatpush2.bf16.msra.mxu0 0
        %2773 = vmatprep.subr.bf16.mxu0 0
        %2774 = vmatpush2.bf16.msra.mxu0 0
        %2775 = vmatprep.subr.bf16.mxu0 0
        %2776 = vmatpush2.bf16.msra.mxu0 0
        %2777 = vmatprep.subr.bf16.mxu0 0
        %2778 = vmatpush2.bf16.msra.mxu0 0
        %2779 = vmatprep.mubr.bf16.mxu0 0
        %2780 = vmatmul.mubr.bf16.gmra.mxu0 %v2693
        %v2781 = vpop.f32.mrf.mxu0
        %v2782 = vadd.f32 0.0, %v2781
        %v2783 = vpop.f32.mrf.mxu0
        %v2784 = vpop.f32.mrf.mxu0
        %v2785 = vadd.f32 0.0, %v2784
        %v2786 = vpop.f32.mrf.mxu0
        %2787 = vdwg.mxu0
        %v2788 = vadd.f32 %v2670, %v2739
        %v2789 = vadd.f32 %v2671, %v2741
        %v2790 = vadd.f32 %v2672, %v2782
        %v2791 = vadd.f32 %v2673, %v2743
        %v2792 = vadd.f32 %v2674, %v2745
        %v2793 = vadd.f32 %v2675, %v2785
        %v2794 = vpack.c.bf16 %v2791, %v2788
        %v2795 = vpack.c.bf16 %v2792, %v2789
        %v2796 = vpack.c.bf16 %v2793, %v2790
        %v2797 = vld [vmem:[%s5] sm:$0xf]
        %v2798 = vld [vmem:[%s5 + $0x4] sm:$0xf]
        %v2799 = vld [vmem:[%s5 + $0x8] sm:$0xf]
        %v2800 = vld [vmem:[%s5 + $0xc] sm:$0xf]
        %v2801 = vld [vmem:[%s5 + $0x10] sm:$0xf]
        %v2802 = vld [vmem:[%s5 + $0x14] sm:$0xf]
        %v2803 = vld [vmem:[%s5 + $0x18] sm:$0xf]
        %v2804 = vld [vmem:[%s5 + $0x1c] sm:$0xf]
        %v2805 = vld [vmem:[%s5 + $0x20] sm:$0xf]
        %v2806 = vld [vmem:[%s5 + $0x24] sm:$0xf]
        %v2807 = vld [vmem:[%s5 + $0x28] sm:$0xf]
        %v2808 = vld [vmem:[%s5 + $0x2c] sm:$0xf]
        %v2809 = vld [vmem:[%s5 + $0x30] sm:$0xf]
        %v2810 = vld [vmem:[%s5 + $0x34] sm:$0xf]
        %v2811 = vld [vmem:[%s5 + $0x38] sm:$0xf]
        %v2812 = vld [vmem:[%s5 + $0x3c] sm:$0xf]
        %v2813 = vld [vmem:[%s5 + $0x40] sm:$0xf]
        %v2814 = vld [vmem:[%s5 + $0x44] sm:$0xf]
        %v2815 = vld [vmem:[%s5 + $0x48] sm:$0xf]
        %v2816 = vld [vmem:[%s5 + $0x4c] sm:$0xf]
        %v2817 = vld [vmem:[%s5 + $0x50] sm:$0xf]
        %v2818 = vld [vmem:[%s5 + $0x54] sm:$0xf]
        %v2819 = vld [vmem:[%s5 + $0x58] sm:$0xf]
        %v2820 = vld [vmem:[%s5 + $0x5c] sm:$0xf]
        %v2821 = vld [vmem:[%s5 + $0x60] sm:$0xf]
        %v2822 = vld [vmem:[%s5 + $0x64] sm:$0xf]
        %v2823 = vld [vmem:[%s5 + $0x68] sm:$0xf]
        %v2824 = vld [vmem:[%s5 + $0x6c] sm:$0xf]
        %v2825 = vld [vmem:[%s5 + $0x70] sm:$0xf]
        %v2826 = vld [vmem:[%s5 + $0x74] sm:$0xf]
        %v2827 = vld [vmem:[%s5 + $0x78] sm:$0xf]
        %v2828 = vld [vmem:[%s5 + $0x7c] sm:$0xf]
        %v2829 = vld [vmem:[%s5 + $0x80] sm:$0xf]
        %v2830 = vld [vmem:[%s5 + $0x84] sm:$0xf]
        %v2831 = vld [vmem:[%s5 + $0x88] sm:$0xf]
        %v2832 = vld [vmem:[%s5 + $0x8c] sm:$0xf]
        %v2833 = vld [vmem:[%s5 + $0x90] sm:$0xf]
        %v2834 = vld [vmem:[%s5 + $0x94] sm:$0xf]
        %v2835 = vld [vmem:[%s5 + $0x98] sm:$0xf]
        %v2836 = vld [vmem:[%s5 + $0x9c] sm:$0xf]
        %v2837 = vld [vmem:[%s5 + $0xa0] sm:$0x3]
        %v2879 = vunpack.c.l.b16 %v2797
        %v2880 = vunpack.c.l.b16 %v2798
        %v2881 = vunpack.c.l.b16 %v2799
        %v2882 = vunpack.c.l.b16 %v2800
        %v2883 = vunpack.c.l.b16 %v2801
        %v2884 = vunpack.c.l.b16 %v2802
        %v2885 = vunpack.c.l.b16 %v2803
        %v2886 = vunpack.c.l.b16 %v2804
        %v2887 = vunpack.c.l.b16 %v2805
        %v2888 = vunpack.c.l.b16 %v2806
        %v2889 = vunpack.c.l.b16 %v2807
        %v2890 = vunpack.c.l.b16 %v2808
        %v2891 = vunpack.c.l.b16 %v2809
        %v2892 = vunpack.c.l.b16 %v2810
        %v2893 = vunpack.c.l.b16 %v2811
        %v2894 = vunpack.c.l.b16 %v2812
        %v2895 = vunpack.c.l.b16 %v2813
        %v2896 = vunpack.c.l.b16 %v2814
        %v2897 = vunpack.c.l.b16 %v2815
        %v2898 = vunpack.c.l.b16 %v2816
        %v2899 = vunpack.c.l.b16 %v2817
        %v2900 = vunpack.c.l.b16 %v2818
        %v2901 = vunpack.c.l.b16 %v2819
        %v2902 = vunpack.c.l.b16 %v2820
        %v2903 = vunpack.c.l.b16 %v2821
        %v2904 = vunpack.c.l.b16 %v2822
        %v2905 = vunpack.c.l.b16 %v2823
        %v2906 = vunpack.c.l.b16 %v2824
        %v2907 = vunpack.c.l.b16 %v2825
        %v2908 = vunpack.c.l.b16 %v2826
        %v2909 = vunpack.c.l.b16 %v2827
        %v2910 = vunpack.c.l.b16 %v2828
        %v2911 = vunpack.c.l.b16 %v2829
        %v2912 = vunpack.c.l.b16 %v2830
        %v2913 = vunpack.c.l.b16 %v2831
        %v2914 = vunpack.c.l.b16 %v2832
        %v2915 = vunpack.c.l.b16 %v2833
        %v2916 = vunpack.c.l.b16 %v2834
        %v2917 = vunpack.c.l.b16 %v2835
        %v2918 = vunpack.c.l.b16 %v2836
        %v2919 = vunpack.c.l.b16 %v2837
        %v2920 = vpack.c.b16 %v2880, %v2879
        %v2921 = vpack.c.b16 %v2882, %v2881
        %v2922 = vpack.c.b16 %v2884, %v2883
        %v2923 = vpack.c.b16 %v2886, %v2885
        %v2924 = vpack.c.b16 %v2888, %v2887
        %v2925 = vpack.c.b16 %v2890, %v2889
        %v2926 = vpack.c.b16 %v2892, %v2891
        %v2927 = vpack.c.b16 %v2894, %v2893
        %v2928 = vpack.c.b16 %v2896, %v2895
        %v2929 = vpack.c.b16 %v2898, %v2897
        %v2930 = vpack.c.b16 %v2900, %v2899
        %v2931 = vpack.c.b16 %v2902, %v2901
        %v2932 = vpack.c.b16 %v2904, %v2903
        %v2933 = vpack.c.b16 %v2906, %v2905
        %v2934 = vpack.c.b16 %v2908, %v2907
        %v2935 = vpack.c.b16 %v2910, %v2909
        %v2936 = vpack.c.b16 %v2912, %v2911
        %v2937 = vpack.c.b16 %v2914, %v2913
        %v2938 = vpack.c.b16 %v2916, %v2915
        %v2939 = vpack.c.b16 %v2918, %v2917
        %v2940 = vpack.c.b16 %v2919, %v2919
        %v2962 = vsel %vm1677, %v2796, 0
        %v2965 = vsel %vm598, %v2940, 0
        %2967 = vmatprep.subr.bf16.mxu0 0
        %2968 = vmatpush1.bf16.msra.mxu0 %v2927
        %2969 = vmatprep.subr.bf16.mxu0 0
        %2970 = vmatpush1.bf16.msra.mxu0 %v2926
        %2971 = vmatprep.subr.bf16.mxu0 0
        %2972 = vmatpush1.bf16.msra.mxu0 %v2925
        %2973 = vmatprep.subr.bf16.mxu0 0
        %2974 = vmatpush1.bf16.msra.mxu0 %v2924
        %2975 = vmatprep.subr.bf16.mxu0 0
        %2976 = vmatpush1.bf16.msra.mxu0 %v2923
        %2977 = vmatprep.subr.bf16.mxu0 0
        %2978 = vmatpush1.bf16.msra.mxu0 %v2922
        %2979 = vmatprep.subr.bf16.mxu0 0
        %2980 = vmatpush1.bf16.msra.mxu0 %v2921
        %2981 = vmatprep.subr.bf16.mxu0 0
        %2982 = vmatpush1.bf16.msra.mxu0 %v2920
        %2983 = vmatprep.subr.bf16.mxu0 0
        %2984 = vmatpush2.bf16.msra.mxu0 %v2935
        %2985 = vmatprep.subr.bf16.mxu0 0
        %2986 = vmatpush2.bf16.msra.mxu0 %v2934
        %2987 = vmatprep.subr.bf16.mxu0 0
        %2988 = vmatpush2.bf16.msra.mxu0 %v2933
        %2989 = vmatprep.subr.bf16.mxu0 0
        %2990 = vmatpush2.bf16.msra.mxu0 %v2932
        %2991 = vmatprep.subr.bf16.mxu0 0
        %2992 = vmatpush2.bf16.msra.mxu0 %v2931
        %2993 = vmatprep.subr.bf16.mxu0 0
        %2994 = vmatpush2.bf16.msra.mxu0 %v2930
        %2995 = vmatprep.subr.bf16.mxu0 0
        %2996 = vmatpush2.bf16.msra.mxu0 %v2929
        %2997 = vmatprep.subr.bf16.mxu0 0
        %2998 = vmatpush2.bf16.msra.mxu0 %v2928
        %2999 = vmatprep.mubr.bf16.mxu0 %v2795
        %3000 = vmatmul.mubr.bf16.gmra.mxu0 %v2794
        %v3001 = vpop.f32.mrf.mxu0
        %v3002 = vadd.f32 0.0, %v3001
        %v3003 = vpop.f32.mrf.mxu0
        %v3004 = vpop.f32.mrf.mxu0
        %v3005 = vadd.f32 0.0, %v3004
        %v3006 = vpop.f32.mrf.mxu0
        %3007 = vdwg.mxu0
        %3008 = vmatprep.subr.bf16.mxu0 0
        %3009 = vmatpush1.bf16.msra.mxu0 0
        %3010 = vmatprep.subr.bf16.mxu0 0
        %3011 = vmatpush1.bf16.msra.mxu0 0
        %3012 = vmatprep.subr.bf16.mxu0 0
        %3013 = vmatpush1.bf16.msra.mxu0 0
        %3014 = vmatprep.subr.bf16.mxu0 0
        %3015 = vmatpush1.bf16.msra.mxu0 %v2965
        %3016 = vmatprep.subr.bf16.mxu0 0
        %3017 = vmatpush1.bf16.msra.mxu0 %v2939
        %3018 = vmatprep.subr.bf16.mxu0 0
        %3019 = vmatpush1.bf16.msra.mxu0 %v2938
        %3020 = vmatprep.subr.bf16.mxu0 0
        %3021 = vmatpush1.bf16.msra.mxu0 %v2937
        %3022 = vmatprep.subr.bf16.mxu0 0
        %3023 = vmatpush1.bf16.msra.mxu0 %v2936
        %3024 = vmatprep.subr.bf16.mxu0 0
        %3025 = vmatpush2.bf16.msra.mxu0 0
        %3026 = vmatprep.subr.bf16.mxu0 0
        %3027 = vmatpush2.bf16.msra.mxu0 0
        %3028 = vmatprep.subr.bf16.mxu0 0
        %3029 = vmatpush2.bf16.msra.mxu0 0
        %3030 = vmatprep.subr.bf16.mxu0 0
        %3031 = vmatpush2.bf16.msra.mxu0 0
        %3032 = vmatprep.subr.bf16.mxu0 0
        %3033 = vmatpush2.bf16.msra.mxu0 0
        %3034 = vmatprep.subr.bf16.mxu0 0
        %3035 = vmatpush2.bf16.msra.mxu0 0
        %3036 = vmatprep.subr.bf16.mxu0 0
        %3037 = vmatpush2.bf16.msra.mxu0 0
        %3038 = vmatprep.subr.bf16.mxu0 0
        %3039 = vmatpush2.bf16.msra.mxu0 0
        %3040 = vmatprep.mubr.bf16.mxu0 0
        %3041 = vmatmul.mubr.bf16.gmra.mxu0 %v2962
        %v3042 = vpop.f32.mrf.mxu0
        %v3043 = vadd.f32 %v3002, %v3042
        %v3044 = vpop.f32.mrf.mxu0
        %v3045 = vpop.f32.mrf.mxu0
        %v3046 = vadd.f32 %v3005, %v3045
        %v3047 = vpop.f32.mrf.mxu0
        %3048 = vdwg.mxu0
        %v3050 = vlaneseq
        %v3051 = vshrl.u32 %v3050, 7
        %v3052 = vsub.s32 0, %v3051
        %v3053 = vrot.slane %v553, %v3052
        %v3055 = vmul.f32 %v3043, %v3053
        %v3056 = vmul.f32 %v3046, %v3053
        %vm3057 = vcmask 818176
        %v3058 = vsel %vm3057, %v3055, 0.0
        %3059 = vadd.xlane.f32.xlu0 %v3058
        %v3060 = vpop.xlane.xlu0 %3059
        %v3061 = vsel %vm3057, %v3056, 0.0
        %3062 = vadd.xlane.f32.xlu0 %v3061
        %v3063 = vpop.xlane.xlu0 %3062
        %v3064 = vmul.f32 %v3060, 0.015625
        %v3065 = vmul.f32 %v3063, 0.015625
        %v3066 = vmul.f32 %v3055, %v3055
        %v3067 = vmul.f32 %v3056, %v3056
        %v3068 = vsel %vm3057, %v3066, 0.0
        %3069 = vadd.xlane.f32.xlu0 %v3068
        %v3070 = vpop.xlane.xlu0 %3069
        %v3071 = vsel %vm3057, %v3067, 0.0
        %3072 = vadd.xlane.f32.xlu0 %v3071
        %v3073 = vpop.xlane.xlu0 %3072
        %v3074 = vmul.f32 %v3070, 0.015625
        %v3075 = vmul.f32 %v3073, 0.015625
        %v3076 = vmul.f32 %v3064, %v3064
        %v3077 = vmul.f32 %v3065, %v3065
        %v3078 = vsub.f32 %v3074, %v3076
        %v3079 = vsub.f32 %v3075, %v3077
        %v3080 = vsub.f32 %v3055, %v3064
        %v3081 = vsub.f32 %v3056, %v3065
        %v3082 = vadd.f32 %v3078, 1e-05
        %v3083 = vadd.f32 %v3079, 1e-05
        %v3084 = vrsqrt.pop %v3082
        %v3085 = vrsqrt.pop %v3083
        %v3086 = vmul.f32 %v3080, %v3084
        %v3087 = vmul.f32 %v3081, %v3085
        %vm3088 = vcmp.ge.f32.partialorder %v3086, 0.0
        %vm3089 = vcmp.ge.f32.partialorder %v3087, 0.0
        %v3090 = vmul.f32 %v3086, 0.01
        %v3091 = vmul.f32 %v3087, 0.01
        %v3092 = vsel %vm3088, %v3086, %v3090
        %v3093 = vsel %vm3089, %v3087, %v3091
        %v3094 = vmul.f32 %v3092, %v3053
        %v3095 = vmul.f32 %v3093, %v3053
        %v3096 = vpack.c.bf16 %v3095, %v3094
        %v3098 = vunpack.c.l.b16 %v3096
        %v3099 = vunpack.c.h.b16 %v3096
        %v3100 = vpack.c.b16 %v3098, %v3098
        %v3101 = vpack.c.b16 %v3099, %v3099
        %3102 = vrot.lane.b32.xlu0 %v3100, 11
        %v3103 = vpop.permute.xlu0 %3102
        %3104 = vrot.lane.b32.xlu0 %v3101, 11
        %v3105 = vpop.permute.xlu0 %3104
        %vm3108 = vcmask 904280
        %3109 = vst.msk [vmem:[#allocation2 + $0x8] sm:$0xf] %vm3108, %v3103
        %3110 = vst.msk [vmem:[#allocation2 + $0xc] sm:$0xf] %vm3108, %v3105
        %v3111 = vld [vmem:[%s550] sm:$0xf]
        %v3112 = vld [vmem:[%s550 + $0x4] sm:$0xf]
        %v3113 = vld [vmem:[%s550 + $0x8] sm:$0xf]
        %v3114 = vld [vmem:[%s550 + $0xc] sm:$0xf]
        %v3115 = vld [vmem:[%s7] sm:$0xf]
        %v3116 = vld [vmem:[%s7 + $0x4] sm:$0xf]
        %v3119 = vunpack.c.l.b16 %v3115
        %v3120 = vunpack.c.l.b16 %v3116
        %v3121 = vpack.c.b16 %v3120, %v3119
        %v3126 = vunpack.c.l.b16 %v3111
        %v3127 = vunpack.c.l.b16 %v3112
        %v3128 = vunpack.c.l.b16 %v3113
        %v3129 = vunpack.c.l.b16 %v3114
        %v3130 = vpack.c.b16 %v3127, %v3126
        %v3131 = vpack.c.b16 %v3129, %v3128
        %vm3134 = vcmask 261120
        %v3136 = vsel %vm3134, %v3121, 0
        %3138 = vmatprep.subr.bf16.mxu0 0
        %3139 = vmatpush1.bf16.msra.mxu0 0
        %3140 = vmatprep.subr.bf16.mxu0 0
        %3141 = vmatpush1.bf16.msra.mxu0 0
        %3142 = vmatprep.subr.bf16.mxu0 0
        %3143 = vmatpush1.bf16.msra.mxu0 0
        %3144 = vmatprep.subr.bf16.mxu0 0
        %3145 = vmatpush1.bf16.msra.mxu0 0
        %3146 = vmatprep.subr.bf16.mxu0 0
        %3147 = vmatpush1.bf16.msra.mxu0 0
        %3148 = vmatprep.subr.bf16.mxu0 0
        %3149 = vmatpush1.bf16.msra.mxu0 0
        %3150 = vmatprep.subr.bf16.mxu0 0
        %3151 = vmatpush1.bf16.msra.mxu0 %v3131
        %3152 = vmatprep.subr.bf16.mxu0 0
        %3153 = vmatpush1.bf16.msra.mxu0 %v3130
        %3154 = vmatprep.subr.bf16.mxu0 0
        %3155 = vmatpush2.bf16.msra.mxu0 0
        %3156 = vmatprep.subr.bf16.mxu0 0
        %3157 = vmatpush2.bf16.msra.mxu0 0
        %3158 = vmatprep.subr.bf16.mxu0 0
        %3159 = vmatpush2.bf16.msra.mxu0 0
        %3160 = vmatprep.subr.bf16.mxu0 0
        %3161 = vmatpush2.bf16.msra.mxu0 0
        %3162 = vmatprep.subr.bf16.mxu0 0
        %3163 = vmatpush2.bf16.msra.mxu0 0
        %3164 = vmatprep.subr.bf16.mxu0 0
        %3165 = vmatpush2.bf16.msra.mxu0 0
        %3166 = vmatprep.subr.bf16.mxu0 0
        %3167 = vmatpush2.bf16.msra.mxu0 0
        %3168 = vmatprep.subr.bf16.mxu0 0
        %3169 = vmatpush2.bf16.msra.mxu0 0
        %3170 = vmatprep.mubr.bf16.mxu0 0
        %3171 = vmatmul.mubr.bf16.gmra.mxu0 %v3136
        %v3172 = vpop.f32.mrf.mxu0
        %v3173 = vadd.f32 0.0, %v3172
        %v3174 = vpop.f32.mrf.mxu0
        %v3175 = vpop.f32.mrf.mxu0
        %v3176 = vadd.f32 0.0, %v3175
        %v3177 = vpop.f32.mrf.mxu0
        %3178 = vdwg.mxu0
        %v3179 = vpack.c.bf16 %v3176, %v3173
        %v3180 = vld [vmem:[%s9] sm:$0xf]
        %v3181 = vld [vmem:[%s9 + $0x4] sm:$0xf]
        %v3182 = vld [vmem:[%s9 + $0x8] sm:$0xf]
        %v3183 = vld [vmem:[%s9 + $0xc] sm:$0xf]
        %v3184 = vld [vmem:[%s9 + $0x10] sm:$0x3]
        %s3185 = scalar_lea.vmem %s7, 8
        %v3186 = vld [vmem:[%s3185] sm:$0xf]
        %v3187 = vld [vmem:[%s3185 + $0x4] sm:$0xf]
        %v3190 = vunpack.c.l.b16 %v3186
        %v3191 = vunpack.c.l.b16 %v3187
        %v3192 = vpack.c.b16 %v3191, %v3190
        %v3194 = vsel %vm3134, %v3192, 0
        %3196 = vmatprep.subr.bf16.mxu0 0
        %3197 = vmatpush1.bf16.msra.mxu0 0
        %3198 = vmatprep.subr.bf16.mxu0 0
        %3199 = vmatpush1.bf16.msra.mxu0 0
        %3200 = vmatprep.subr.bf16.mxu0 0
        %3201 = vmatpush1.bf16.msra.mxu0 0
        %3202 = vmatprep.subr.bf16.mxu0 0
        %3203 = vmatpush1.bf16.msra.mxu0 0
        %3204 = vmatprep.subr.bf16.mxu0 0
        %3205 = vmatpush1.bf16.msra.mxu0 0
        %3206 = vmatprep.subr.bf16.mxu0 0
        %3207 = vmatpush1.bf16.msra.mxu0 0
        %3208 = vmatprep.subr.bf16.mxu0 0
        %3209 = vmatpush1.bf16.msra.mxu0 %v3131
        %3210 = vmatprep.subr.bf16.mxu0 0
        %3211 = vmatpush1.bf16.msra.mxu0 %v3130
        %3212 = vmatprep.subr.bf16.mxu0 0
        %3213 = vmatpush2.bf16.msra.mxu0 0
        %3214 = vmatprep.subr.bf16.mxu0 0
        %3215 = vmatpush2.bf16.msra.mxu0 0
        %3216 = vmatprep.subr.bf16.mxu0 0
        %3217 = vmatpush2.bf16.msra.mxu0 0
        %3218 = vmatprep.subr.bf16.mxu0 0
        %3219 = vmatpush2.bf16.msra.mxu0 0
        %3220 = vmatprep.subr.bf16.mxu0 0
        %3221 = vmatpush2.bf16.msra.mxu0 0
        %3222 = vmatprep.subr.bf16.mxu0 0
        %3223 = vmatpush2.bf16.msra.mxu0 0
        %3224 = vmatprep.subr.bf16.mxu0 0
        %3225 = vmatpush2.bf16.msra.mxu0 0
        %3226 = vmatprep.subr.bf16.mxu0 0
        %3227 = vmatpush2.bf16.msra.mxu0 0
        %3228 = vmatprep.mubr.bf16.mxu0 0
        %3229 = vmatmul.mubr.bf16.gmra.mxu0 %v3194
        %v3230 = vpop.f32.mrf.mxu0
        %v3231 = vadd.f32 0.0, %v3230
        %v3232 = vpop.f32.mrf.mxu0
        %v3233 = vpop.f32.mrf.mxu0
        %v3234 = vadd.f32 0.0, %v3233
        %v3235 = vpop.f32.mrf.mxu0
        %3236 = vdwg.mxu0
        %v3237 = vpack.c.bf16 %v3234, %v3231
        %s3238 = scalar_lea.vmem %s9, 20
        %v3239 = vld [vmem:[%s3238] sm:$0xf]
        %v3240 = vld [vmem:[%s3238 + $0x4] sm:$0xf]
        %v3241 = vld [vmem:[%s3238 + $0x8] sm:$0xf]
        %v3242 = vld [vmem:[%s3238 + $0xc] sm:$0xf]
        %v3243 = vld [vmem:[%s3238 + $0x10] sm:$0x3]
        %v3249 = vunpack.c.l.b16 %v3239
        %v3250 = vunpack.c.l.b16 %v3240
        %v3251 = vunpack.c.l.b16 %v3241
        %v3252 = vunpack.c.l.b16 %v3242
        %v3253 = vunpack.c.l.b16 %v3243
        %v3254 = vpack.c.b16 %v3250, %v3249
        %v3255 = vpack.c.b16 %v3252, %v3251
        %v3256 = vpack.c.b16 %v3253, %v3253
        %vm3259 = vcmask 293888
        %v3261 = vsel %vm3259, %v3237, 0
        %v3264 = vsel %vm598, %v3256, 0
        %3266 = vmatprep.subr.bf16.mxu0 0
        %3267 = vmatpush1.bf16.msra.mxu0 0
        %3268 = vmatprep.subr.bf16.mxu0 0
        %3269 = vmatpush1.bf16.msra.mxu0 0
        %3270 = vmatprep.subr.bf16.mxu0 0
        %3271 = vmatpush1.bf16.msra.mxu0 0
        %3272 = vmatprep.subr.bf16.mxu0 0
        %3273 = vmatpush1.bf16.msra.mxu0 0
        %3274 = vmatprep.subr.bf16.mxu0 0
        %3275 = vmatpush1.bf16.msra.mxu0 0
        %3276 = vmatprep.subr.bf16.mxu0 0
        %3277 = vmatpush1.bf16.msra.mxu0 %v3264
        %3278 = vmatprep.subr.bf16.mxu0 0
        %3279 = vmatpush1.bf16.msra.mxu0 %v3255
        %3280 = vmatprep.subr.bf16.mxu0 0
        %3281 = vmatpush1.bf16.msra.mxu0 %v3254
        %3282 = vmatprep.subr.bf16.mxu0 0
        %3283 = vmatpush2.bf16.msra.mxu0 0
        %3284 = vmatprep.subr.bf16.mxu0 0
        %3285 = vmatpush2.bf16.msra.mxu0 0
        %3286 = vmatprep.subr.bf16.mxu0 0
        %3287 = vmatpush2.bf16.msra.mxu0 0
        %3288 = vmatprep.subr.bf16.mxu0 0
        %3289 = vmatpush2.bf16.msra.mxu0 0
        %3290 = vmatprep.subr.bf16.mxu0 0
        %3291 = vmatpush2.bf16.msra.mxu0 0
        %3292 = vmatprep.subr.bf16.mxu0 0
        %3293 = vmatpush2.bf16.msra.mxu0 0
        %3294 = vmatprep.subr.bf16.mxu0 0
        %3295 = vmatpush2.bf16.msra.mxu0 0
        %3296 = vmatprep.subr.bf16.mxu0 0
        %3297 = vmatpush2.bf16.msra.mxu0 0
        %3298 = vmatprep.mubr.bf16.mxu0 0
        %3299 = vmatmul.mubr.bf16.gmra.mxu0 %v3261
        %v3300 = vpop.f32.mrf.mxu0
        %v3301 = vadd.f32 0.0, %v3300
        %v3302 = vpop.f32.mrf.mxu0
        %v3303 = vpop.f32.mrf.mxu0
        %v3304 = vadd.f32 0.0, %v3303
        %v3305 = vpop.f32.mrf.mxu0
        %3306 = vdwg.mxu0
        %v3312 = vunpack.c.l.b16 %v3180
        %v3313 = vunpack.c.l.b16 %v3181
        %v3314 = vunpack.c.l.b16 %v3182
        %v3315 = vunpack.c.l.b16 %v3183
        %v3316 = vunpack.c.l.b16 %v3184
        %v3317 = vpack.c.b16 %v3313, %v3312
        %v3318 = vpack.c.b16 %v3315, %v3314
        %v3319 = vpack.c.b16 %v3316, %v3316
        %v3323 = vsel %vm3259, %v3179, 0
        %v3326 = vsel %vm598, %v3319, 0
        %3328 = vmatprep.subr.bf16.mxu0 0
        %3329 = vmatpush1.bf16.msra.mxu0 0
        %3330 = vmatprep.subr.bf16.mxu0 0
        %3331 = vmatpush1.bf16.msra.mxu0 0
        %3332 = vmatprep.subr.bf16.mxu0 0
        %3333 = vmatpush1.bf16.msra.mxu0 0
        %3334 = vmatprep.subr.bf16.mxu0 0
        %3335 = vmatpush1.bf16.msra.mxu0 0
        %3336 = vmatprep.subr.bf16.mxu0 0
        %3337 = vmatpush1.bf16.msra.mxu0 0
        %3338 = vmatprep.subr.bf16.mxu0 0
        %3339 = vmatpush1.bf16.msra.mxu0 %v3326
        %3340 = vmatprep.subr.bf16.mxu0 0
        %3341 = vmatpush1.bf16.msra.mxu0 %v3318
        %3342 = vmatprep.subr.bf16.mxu0 0
        %3343 = vmatpush1.bf16.msra.mxu0 %v3317
        %3344 = vmatprep.subr.bf16.mxu0 0
        %3345 = vmatpush2.bf16.msra.mxu0 0
        %3346 = vmatprep.subr.bf16.mxu0 0
        %3347 = vmatpush2.bf16.msra.mxu0 0
        %3348 = vmatprep.subr.bf16.mxu0 0
        %3349 = vmatpush2.bf16.msra.mxu0 0
        %3350 = vmatprep.subr.bf16.mxu0 0
        %3351 = vmatpush2.bf16.msra.mxu0 0
        %3352 = vmatprep.subr.bf16.mxu0 0
        %3353 = vmatpush2.bf16.msra.mxu0 0
        %3354 = vmatprep.subr.bf16.mxu0 0
        %3355 = vmatpush2.bf16.msra.mxu0 0
        %3356 = vmatprep.subr.bf16.mxu0 0
        %3357 = vmatpush2.bf16.msra.mxu0 0
        %3358 = vmatprep.subr.bf16.mxu0 0
        %3359 = vmatpush2.bf16.msra.mxu0 0
        %3360 = vmatprep.mubr.bf16.mxu0 0
        %3361 = vmatmul.mubr.bf16.gmra.mxu0 %v3323
        %v3362 = vpop.f32.mrf.mxu0
        %v3363 = vadd.f32 %v3301, %v3362
        %v3364 = vpop.f32.mrf.mxu0
        %v3365 = vpop.f32.mrf.mxu0
        %v3366 = vadd.f32 %v3304, %v3365
        %v3367 = vpop.f32.mrf.mxu0
        %3368 = vdwg.mxu0
        %s3369 = scalar_lea.vmem %s7, 16
        %v3370 = vld [vmem:[%s3369] sm:$0xf]
        %v3371 = vld [vmem:[%s3369 + $0x4] sm:$0xf]
        %v3374 = vunpack.c.l.b16 %v3370
        %v3375 = vunpack.c.l.b16 %v3371
        %v3376 = vpack.c.b16 %v3375, %v3374
        %v3378 = vsel %vm3134, %v3376, 0
        %3380 = vmatprep.subr.bf16.mxu0 0
        %3381 = vmatpush1.bf16.msra.mxu0 0
        %3382 = vmatprep.subr.bf16.mxu0 0
        %3383 = vmatpush1.bf16.msra.mxu0 0
        %3384 = vmatprep.subr.bf16.mxu0 0
        %3385 = vmatpush1.bf16.msra.mxu0 0
        %3386 = vmatprep.subr.bf16.mxu0 0
        %3387 = vmatpush1.bf16.msra.mxu0 0
        %3388 = vmatprep.subr.bf16.mxu0 0
        %3389 = vmatpush1.bf16.msra.mxu0 0
        %3390 = vmatprep.subr.bf16.mxu0 0
        %3391 = vmatpush1.bf16.msra.mxu0 0
        %3392 = vmatprep.subr.bf16.mxu0 0
        %3393 = vmatpush1.bf16.msra.mxu0 %v3131
        %3394 = vmatprep.subr.bf16.mxu0 0
        %3395 = vmatpush1.bf16.msra.mxu0 %v3130
        %3396 = vmatprep.subr.bf16.mxu0 0
        %3397 = vmatpush2.bf16.msra.mxu0 0
        %3398 = vmatprep.subr.bf16.mxu0 0
        %3399 = vmatpush2.bf16.msra.mxu0 0
        %3400 = vmatprep.subr.bf16.mxu0 0
        %3401 = vmatpush2.bf16.msra.mxu0 0
        %3402 = vmatprep.subr.bf16.mxu0 0
        %3403 = vmatpush2.bf16.msra.mxu0 0
        %3404 = vmatprep.subr.bf16.mxu0 0
        %3405 = vmatpush2.bf16.msra.mxu0 0
        %3406 = vmatprep.subr.bf16.mxu0 0
        %3407 = vmatpush2.bf16.msra.mxu0 0
        %3408 = vmatprep.subr.bf16.mxu0 0
        %3409 = vmatpush2.bf16.msra.mxu0 0
        %3410 = vmatprep.subr.bf16.mxu0 0
        %3411 = vmatpush2.bf16.msra.mxu0 0
        %3412 = vmatprep.mubr.bf16.mxu0 0
        %3413 = vmatmul.mubr.bf16.gmra.mxu0 %v3378
        %v3414 = vpop.f32.mrf.mxu0
        %v3415 = vadd.f32 0.0, %v3414
        %v3416 = vpop.f32.mrf.mxu0
        %v3417 = vpop.f32.mrf.mxu0
        %v3418 = vadd.f32 0.0, %v3417
        %v3419 = vpop.f32.mrf.mxu0
        %3420 = vdwg.mxu0
        %v3421 = vpack.c.bf16 %v3418, %v3415
        %s3422 = scalar_lea.vmem %s9, 40
        %v3423 = vld [vmem:[%s3422] sm:$0xf]
        %v3424 = vld [vmem:[%s3422 + $0x4] sm:$0xf]
        %v3425 = vld [vmem:[%s3422 + $0x8] sm:$0xf]
        %v3426 = vld [vmem:[%s3422 + $0xc] sm:$0xf]
        %v3427 = vld [vmem:[%s3422 + $0x10] sm:$0x3]
        %v3433 = vunpack.c.l.b16 %v3423
        %v3434 = vunpack.c.l.b16 %v3424
        %v3435 = vunpack.c.l.b16 %v3425
        %v3436 = vunpack.c.l.b16 %v3426
        %v3437 = vunpack.c.l.b16 %v3427
        %v3438 = vpack.c.b16 %v3434, %v3433
        %v3439 = vpack.c.b16 %v3436, %v3435
        %v3440 = vpack.c.b16 %v3437, %v3437
        %v3444 = vsel %vm3259, %v3421, 0
        %v3447 = vsel %vm598, %v3440, 0
        %3449 = vmatprep.subr.bf16.mxu0 0
        %3450 = vmatpush1.bf16.msra.mxu0 0
        %3451 = vmatprep.subr.bf16.mxu0 0
        %3452 = vmatpush1.bf16.msra.mxu0 0
        %3453 = vmatprep.subr.bf16.mxu0 0
        %3454 = vmatpush1.bf16.msra.mxu0 0
        %3455 = vmatprep.subr.bf16.mxu0 0
        %3456 = vmatpush1.bf16.msra.mxu0 0
        %3457 = vmatprep.subr.bf16.mxu0 0
        %3458 = vmatpush1.bf16.msra.mxu0 0
        %3459 = vmatprep.subr.bf16.mxu0 0
        %3460 = vmatpush1.bf16.msra.mxu0 %v3447
        %3461 = vmatprep.subr.bf16.mxu0 0
        %3462 = vmatpush1.bf16.msra.mxu0 %v3439
        %3463 = vmatprep.subr.bf16.mxu0 0
        %3464 = vmatpush1.bf16.msra.mxu0 %v3438
        %3465 = vmatprep.subr.bf16.mxu0 0
        %3466 = vmatpush2.bf16.msra.mxu0 0
        %3467 = vmatprep.subr.bf16.mxu0 0
        %3468 = vmatpush2.bf16.msra.mxu0 0
        %3469 = vmatprep.subr.bf16.mxu0 0
        %3470 = vmatpush2.bf16.msra.mxu0 0
        %3471 = vmatprep.subr.bf16.mxu0 0
        %3472 = vmatpush2.bf16.msra.mxu0 0
        %3473 = vmatprep.subr.bf16.mxu0 0
        %3474 = vmatpush2.bf16.msra.mxu0 0
        %3475 = vmatprep.subr.bf16.mxu0 0
        %3476 = vmatpush2.bf16.msra.mxu0 0
        %3477 = vmatprep.subr.bf16.mxu0 0
        %3478 = vmatpush2.bf16.msra.mxu0 0
        %3479 = vmatprep.subr.bf16.mxu0 0
        %3480 = vmatpush2.bf16.msra.mxu0 0
        %3481 = vmatprep.mubr.bf16.mxu0 0
        %3482 = vmatmul.mubr.bf16.gmra.mxu0 %v3444
        %v3483 = vpop.f32.mrf.mxu0
        %v3484 = vadd.f32 0.0, %v3483
        %v3485 = vpop.f32.mrf.mxu0
        %v3486 = vpop.f32.mrf.mxu0
        %v3487 = vadd.f32 0.0, %v3486
        %v3488 = vpop.f32.mrf.mxu0
        %3489 = vdwg.mxu0
        %v3490 = vadd.f32 %v3363, %v3484
        %v3491 = vadd.f32 %v3366, %v3487
        %s3492 = scalar_lea.vmem %s7, 24
        %v3493 = vld [vmem:[%s3492] sm:$0xf]
        %v3494 = vld [vmem:[%s3492 + $0x4] sm:$0xf]
        %v3497 = vunpack.c.l.b16 %v3493
        %v3498 = vunpack.c.l.b16 %v3494
        %v3499 = vpack.c.b16 %v3498, %v3497
        %v3501 = vsel %vm3134, %v3499, 0
        %3503 = vmatprep.subr.bf16.mxu0 0
        %3504 = vmatpush1.bf16.msra.mxu0 0
        %3505 = vmatprep.subr.bf16.mxu0 0
        %3506 = vmatpush1.bf16.msra.mxu0 0
        %3507 = vmatprep.subr.bf16.mxu0 0
        %3508 = vmatpush1.bf16.msra.mxu0 0
        %3509 = vmatprep.subr.bf16.mxu0 0
        %3510 = vmatpush1.bf16.msra.mxu0 0
        %3511 = vmatprep.subr.bf16.mxu0 0
        %3512 = vmatpush1.bf16.msra.mxu0 0
        %3513 = vmatprep.subr.bf16.mxu0 0
        %3514 = vmatpush1.bf16.msra.mxu0 0
        %3515 = vmatprep.subr.bf16.mxu0 0
        %3516 = vmatpush1.bf16.msra.mxu0 %v3131
        %3517 = vmatprep.subr.bf16.mxu0 0
        %3518 = vmatpush1.bf16.msra.mxu0 %v3130
        %3519 = vmatprep.subr.bf16.mxu0 0
        %3520 = vmatpush2.bf16.msra.mxu0 0
        %3521 = vmatprep.subr.bf16.mxu0 0
        %3522 = vmatpush2.bf16.msra.mxu0 0
        %3523 = vmatprep.subr.bf16.mxu0 0
        %3524 = vmatpush2.bf16.msra.mxu0 0
        %3525 = vmatprep.subr.bf16.mxu0 0
        %3526 = vmatpush2.bf16.msra.mxu0 0
        %3527 = vmatprep.subr.bf16.mxu0 0
        %3528 = vmatpush2.bf16.msra.mxu0 0
        %3529 = vmatprep.subr.bf16.mxu0 0
        %3530 = vmatpush2.bf16.msra.mxu0 0
        %3531 = vmatprep.subr.bf16.mxu0 0
        %3532 = vmatpush2.bf16.msra.mxu0 0
        %3533 = vmatprep.subr.bf16.mxu0 0
        %3534 = vmatpush2.bf16.msra.mxu0 0
        %3535 = vmatprep.mubr.bf16.mxu0 0
        %3536 = vmatmul.mubr.bf16.gmra.mxu0 %v3501
        %v3537 = vpop.f32.mrf.mxu0
        %v3538 = vadd.f32 0.0, %v3537
        %v3539 = vpop.f32.mrf.mxu0
        %v3540 = vpop.f32.mrf.mxu0
        %v3541 = vadd.f32 0.0, %v3540
        %v3542 = vpop.f32.mrf.mxu0
        %3543 = vdwg.mxu0
        %v3544 = vpack.c.bf16 %v3541, %v3538
        %s3545 = scalar_lea.vmem %s9, 60
        %v3546 = vld [vmem:[%s3545] sm:$0xf]
        %v3547 = vld [vmem:[%s3545 + $0x4] sm:$0xf]
        %v3548 = vld [vmem:[%s3545 + $0x8] sm:$0xf]
        %v3549 = vld [vmem:[%s3545 + $0xc] sm:$0xf]
        %v3550 = vld [vmem:[%s3545 + $0x10] sm:$0x3]
        %v3556 = vunpack.c.l.b16 %v3546
        %v3557 = vunpack.c.l.b16 %v3547
        %v3558 = vunpack.c.l.b16 %v3548
        %v3559 = vunpack.c.l.b16 %v3549
        %v3560 = vunpack.c.l.b16 %v3550
        %v3561 = vpack.c.b16 %v3557, %v3556
        %v3562 = vpack.c.b16 %v3559, %v3558
        %v3563 = vpack.c.b16 %v3560, %v3560
        %v3567 = vsel %vm3259, %v3544, 0
        %v3570 = vsel %vm598, %v3563, 0
        %3572 = vmatprep.subr.bf16.mxu0 0
        %3573 = vmatpush1.bf16.msra.mxu0 0
        %3574 = vmatprep.subr.bf16.mxu0 0
        %3575 = vmatpush1.bf16.msra.mxu0 0
        %3576 = vmatprep.subr.bf16.mxu0 0
        %3577 = vmatpush1.bf16.msra.mxu0 0
        %3578 = vmatprep.subr.bf16.mxu0 0
        %3579 = vmatpush1.bf16.msra.mxu0 0
        %3580 = vmatprep.subr.bf16.mxu0 0
        %3581 = vmatpush1.bf16.msra.mxu0 0
        %3582 = vmatprep.subr.bf16.mxu0 0
        %3583 = vmatpush1.bf16.msra.mxu0 %v3570
        %3584 = vmatprep.subr.bf16.mxu0 0
        %3585 = vmatpush1.bf16.msra.mxu0 %v3562
        %3586 = vmatprep.subr.bf16.mxu0 0
        %3587 = vmatpush1.bf16.msra.mxu0 %v3561
        %3588 = vmatprep.subr.bf16.mxu0 0
        %3589 = vmatpush2.bf16.msra.mxu0 0
        %3590 = vmatprep.subr.bf16.mxu0 0
        %3591 = vmatpush2.bf16.msra.mxu0 0
        %3592 = vmatprep.subr.bf16.mxu0 0
        %3593 = vmatpush2.bf16.msra.mxu0 0
        %3594 = vmatprep.subr.bf16.mxu0 0
        %3595 = vmatpush2.bf16.msra.mxu0 0
        %3596 = vmatprep.subr.bf16.mxu0 0
        %3597 = vmatpush2.bf16.msra.mxu0 0
        %3598 = vmatprep.subr.bf16.mxu0 0
        %3599 = vmatpush2.bf16.msra.mxu0 0
        %3600 = vmatprep.subr.bf16.mxu0 0
        %3601 = vmatpush2.bf16.msra.mxu0 0
        %3602 = vmatprep.subr.bf16.mxu0 0
        %3603 = vmatpush2.bf16.msra.mxu0 0
        %3604 = vmatprep.mubr.bf16.mxu0 0
        %3605 = vmatmul.mubr.bf16.gmra.mxu0 %v3567
        %v3606 = vpop.f32.mrf.mxu0
        %v3607 = vadd.f32 0.0, %v3606
        %v3608 = vpop.f32.mrf.mxu0
        %v3609 = vpop.f32.mrf.mxu0
        %v3610 = vadd.f32 0.0, %v3609
        %v3611 = vpop.f32.mrf.mxu0
        %3612 = vdwg.mxu0
        %v3613 = vadd.f32 %v3490, %v3607
        %v3614 = vadd.f32 %v3491, %v3610
        %v3615 = vld [vmem:[%s8] sm:$0xff]
        %v3616 = vld [vmem:[%s8 + $0x8] sm:$0xff]
        %3618 = vset.pattern.permute.xlu0 0
        %3619 = vperm.xlu0 %3618, %v3615
        %v3620 = vpop.permute.xlu0 %3619
        %3623 = vset.pattern.permute.xlu0 0
        %3624 = vperm.xlu0 %3623, %v3616
        %v3625 = vpop.permute.xlu0 %3624
        %v3627 = vadd.f32 %v3613, %v3620
        %v3628 = vadd.f32 %v3614, %v3625
        %v3629 = vmul.f32 %v3627, %v3053
        %v3630 = vmul.f32 %v3628, %v3053
        %v3631 = vpack.c.bf16 %v3630, %v3629
        %v3633 = vunpack.c.l.b16 %v3631
        %v3634 = vunpack.c.h.b16 %v3631
        %v3635 = vpack.c.b16 %v3633, %v3633
        %v3636 = vpack.c.b16 %v3634, %v3634
        %3637 = vrot.lane.b32.xlu0 %v3635, 11
        %v3638 = vpop.permute.xlu0 %3637
        %3639 = vrot.lane.b32.xlu0 %v3636, 11
        %v3640 = vpop.permute.xlu0 %3639
        %3643 = vst.msk [vmem:[#allocation2] sm:$0xf] %vm3108, %v3638
        %3644 = vst.msk [vmem:[#allocation2 + $0x4] sm:$0xf] %vm3108, %v3640
        %v3645 = vld [vmem:[%s10] sm:$0xf]
        %v3646 = vld [vmem:[%s10 + $0x4] sm:$0xf]
        %v3647 = vld [vmem:[#allocation2] sm:$0xf]
        %v3648 = vld [vmem:[#allocation2 + $0x4] sm:$0xf]
        %v3649 = vld [vmem:[#allocation2 + $0x8] sm:$0xf]
        %v3650 = vld [vmem:[#allocation2 + $0xc] sm:$0xf]
        %s3651 = scalar_lea.vmem %s10, 8
        %v3652 = vld [vmem:[%s3651] sm:$0xf]
        %v3653 = vld [vmem:[%s3651 + $0x4] sm:$0xf]
        %v3656 = vunpack.c.l.b16 %v3652
        %v3657 = vunpack.c.l.b16 %v3653
        %v3658 = vpack.c.b16 %v3657, %v3656
        %v3663 = vunpack.c.l.b16 %v3647
        %v3664 = vunpack.c.l.b16 %v3648
        %v3665 = vunpack.c.l.b16 %v3649
        %v3666 = vunpack.c.l.b16 %v3650
        %v3667 = vpack.c.b16 %v3664, %v3663
        %v3668 = vpack.c.b16 %v3666, %v3665
        %3669 = vrot.lane.b32.xlu0 %v3667, 127
        %v3670 = vpop.permute.xlu0 %3669
        %3671 = vrot.lane.b32.xlu0 %v3668, 127
        %v3672 = vpop.permute.xlu0 %3671
        %v3676 = vsel %vm3134, %v3658, 0
        %3678 = vmatprep.subr.bf16.mxu0 0
        %3679 = vmatpush1.bf16.msra.mxu0 0
        %3680 = vmatprep.subr.bf16.mxu0 0
        %3681 = vmatpush1.bf16.msra.mxu0 0
        %3682 = vmatprep.subr.bf16.mxu0 0
        %3683 = vmatpush1.bf16.msra.mxu0 0
        %3684 = vmatprep.subr.bf16.mxu0 0
        %3685 = vmatpush1.bf16.msra.mxu0 0
        %3686 = vmatprep.subr.bf16.mxu0 0
        %3687 = vmatpush1.bf16.msra.mxu0 0
        %3688 = vmatprep.subr.bf16.mxu0 0
        %3689 = vmatpush1.bf16.msra.mxu0 0
        %3690 = vmatprep.subr.bf16.mxu0 0
        %3691 = vmatpush1.bf16.msra.mxu0 %v3672
        %3692 = vmatprep.subr.bf16.mxu0 0
        %3693 = vmatpush1.bf16.msra.mxu0 %v3670
        %3694 = vmatprep.subr.bf16.mxu0 0
        %3695 = vmatpush2.bf16.msra.mxu0 0
        %3696 = vmatprep.subr.bf16.mxu0 0
        %3697 = vmatpush2.bf16.msra.mxu0 0
        %3698 = vmatprep.subr.bf16.mxu0 0
        %3699 = vmatpush2.bf16.msra.mxu0 0
        %3700 = vmatprep.subr.bf16.mxu0 0
        %3701 = vmatpush2.bf16.msra.mxu0 0
        %3702 = vmatprep.subr.bf16.mxu0 0
        %3703 = vmatpush2.bf16.msra.mxu0 0
        %3704 = vmatprep.subr.bf16.mxu0 0
        %3705 = vmatpush2.bf16.msra.mxu0 0
        %3706 = vmatprep.subr.bf16.mxu0 0
        %3707 = vmatpush2.bf16.msra.mxu0 0
        %3708 = vmatprep.subr.bf16.mxu0 0
        %3709 = vmatpush2.bf16.msra.mxu0 0
        %3710 = vmatprep.mubr.bf16.mxu0 0
        %3711 = vmatmul.mubr.bf16.gmra.mxu0 %v3676
        %v3712 = vpop.f32.mrf.mxu0
        %v3713 = vadd.f32 0.0, %v3712
        %v3714 = vpop.f32.mrf.mxu0
        %v3715 = vpop.f32.mrf.mxu0
        %v3716 = vadd.f32 0.0, %v3715
        %v3717 = vpop.f32.mrf.mxu0
        %3718 = vdwg.mxu0
        %v3721 = vunpack.c.l.b16 %v3645
        %v3722 = vunpack.c.l.b16 %v3646
        %v3723 = vpack.c.b16 %v3722, %v3721
        %v3727 = vsel %vm3134, %v3723, 0
        %3729 = vmatprep.subr.bf16.mxu0 0
        %3730 = vmatpush1.bf16.msra.mxu0 0
        %3731 = vmatprep.subr.bf16.mxu0 0
        %3732 = vmatpush1.bf16.msra.mxu0 0
        %3733 = vmatprep.subr.bf16.mxu0 0
        %3734 = vmatpush1.bf16.msra.mxu0 0
        %3735 = vmatprep.subr.bf16.mxu0 0
        %3736 = vmatpush1.bf16.msra.mxu0 0
        %3737 = vmatprep.subr.bf16.mxu0 0
        %3738 = vmatpush1.bf16.msra.mxu0 0
        %3739 = vmatprep.subr.bf16.mxu0 0
        %3740 = vmatpush1.bf16.msra.mxu0 0
        %3741 = vmatprep.subr.bf16.mxu0 0
        %3742 = vmatpush1.bf16.msra.mxu0 %v3668
        %3743 = vmatprep.subr.bf16.mxu0 0
        %3744 = vmatpush1.bf16.msra.mxu0 %v3667
        %3745 = vmatprep.subr.bf16.mxu0 0
        %3746 = vmatpush2.bf16.msra.mxu0 0
        %3747 = vmatprep.subr.bf16.mxu0 0
        %3748 = vmatpush2.bf16.msra.mxu0 0
        %3749 = vmatprep.subr.bf16.mxu0 0
        %3750 = vmatpush2.bf16.msra.mxu0 0
        %3751 = vmatprep.subr.bf16.mxu0 0
        %3752 = vmatpush2.bf16.msra.mxu0 0
        %3753 = vmatprep.subr.bf16.mxu0 0
        %3754 = vmatpush2.bf16.msra.mxu0 0
        %3755 = vmatprep.subr.bf16.mxu0 0
        %3756 = vmatpush2.bf16.msra.mxu0 0
        %3757 = vmatprep.subr.bf16.mxu0 0
        %3758 = vmatpush2.bf16.msra.mxu0 0
        %3759 = vmatprep.subr.bf16.mxu0 0
        %3760 = vmatpush2.bf16.msra.mxu0 0
        %3761 = vmatprep.mubr.bf16.mxu0 0
        %3762 = vmatmul.mubr.bf16.gmra.mxu0 %v3727
        %v3763 = vpop.f32.mrf.mxu0
        %v3764 = vadd.f32 %v3713, %v3763
        %v3765 = vpop.f32.mrf.mxu0
        %v3766 = vpop.f32.mrf.mxu0
        %v3767 = vadd.f32 %v3716, %v3766
        %v3768 = vpop.f32.mrf.mxu0
        %3769 = vdwg.mxu0
        %s3770 = scalar_lea.vmem %s10, 16
        %v3771 = vld [vmem:[%s3770] sm:$0xf]
        %v3772 = vld [vmem:[%s3770 + $0x4] sm:$0xf]
        %v3775 = vunpack.c.l.b16 %v3771
        %v3776 = vunpack.c.l.b16 %v3772
        %v3777 = vpack.c.b16 %v3776, %v3775
        %3778 = vrot.lane.b32.xlu0 %v3667, 126
        %v3779 = vpop.permute.xlu0 %3778
        %3780 = vrot.lane.b32.xlu0 %v3668, 126
        %v3781 = vpop.permute.xlu0 %3780
        %v3785 = vsel %vm3134, %v3777, 0
        %3787 = vmatprep.subr.bf16.mxu0 0
        %3788 = vmatpush1.bf16.msra.mxu0 0
        %3789 = vmatprep.subr.bf16.mxu0 0
        %3790 = vmatpush1.bf16.msra.mxu0 0
        %3791 = vmatprep.subr.bf16.mxu0 0
        %3792 = vmatpush1.bf16.msra.mxu0 0
        %3793 = vmatprep.subr.bf16.mxu0 0
        %3794 = vmatpush1.bf16.msra.mxu0 0
        %3795 = vmatprep.subr.bf16.mxu0 0
        %3796 = vmatpush1.bf16.msra.mxu0 0
        %3797 = vmatprep.subr.bf16.mxu0 0
        %3798 = vmatpush1.bf16.msra.mxu0 0
        %3799 = vmatprep.subr.bf16.mxu0 0
        %3800 = vmatpush1.bf16.msra.mxu0 %v3781
        %3801 = vmatprep.subr.bf16.mxu0 0
        %3802 = vmatpush1.bf16.msra.mxu0 %v3779
        %3803 = vmatprep.subr.bf16.mxu0 0
        %3804 = vmatpush2.bf16.msra.mxu0 0
        %3805 = vmatprep.subr.bf16.mxu0 0
        %3806 = vmatpush2.bf16.msra.mxu0 0
        %3807 = vmatprep.subr.bf16.mxu0 0
        %3808 = vmatpush2.bf16.msra.mxu0 0
        %3809 = vmatprep.subr.bf16.mxu0 0
        %3810 = vmatpush2.bf16.msra.mxu0 0
        %3811 = vmatprep.subr.bf16.mxu0 0
        %3812 = vmatpush2.bf16.msra.mxu0 0
        %3813 = vmatprep.subr.bf16.mxu0 0
        %3814 = vmatpush2.bf16.msra.mxu0 0
        %3815 = vmatprep.subr.bf16.mxu0 0
        %3816 = vmatpush2.bf16.msra.mxu0 0
        %3817 = vmatprep.subr.bf16.mxu0 0
        %3818 = vmatpush2.bf16.msra.mxu0 0
        %3819 = vmatprep.mubr.bf16.mxu0 0
        %3820 = vmatmul.mubr.bf16.gmra.mxu0 %v3785
        %v3821 = vpop.f32.mrf.mxu0
        %v3822 = vadd.f32 0.0, %v3821
        %v3823 = vpop.f32.mrf.mxu0
        %v3824 = vpop.f32.mrf.mxu0
        %v3825 = vadd.f32 0.0, %v3824
        %v3826 = vpop.f32.mrf.mxu0
        %3827 = vdwg.mxu0
        %v3828 = vadd.f32 %v3764, %v3822
        %v3829 = vadd.f32 %v3767, %v3825
        %s3830 = scalar_lea.vmem %s10, 24
        %v3831 = vld [vmem:[%s3830] sm:$0xf]
        %v3832 = vld [vmem:[%s3830 + $0x4] sm:$0xf]
        %v3835 = vunpack.c.l.b16 %v3831
        %v3836 = vunpack.c.l.b16 %v3832
        %v3837 = vpack.c.b16 %v3836, %v3835
        %3838 = vrot.lane.b32.xlu0 %v3667, 118
        %v3839 = vpop.permute.xlu0 %3838
        %3840 = vrot.lane.b32.xlu0 %v3668, 118
        %v3841 = vpop.permute.xlu0 %3840
        %v3845 = vsel %vm3134, %v3837, 0
        %3847 = vmatprep.subr.bf16.mxu0 0
        %3848 = vmatpush1.bf16.msra.mxu0 0
        %3849 = vmatprep.subr.bf16.mxu0 0
        %3850 = vmatpush1.bf16.msra.mxu0 0
        %3851 = vmatprep.subr.bf16.mxu0 0
        %3852 = vmatpush1.bf16.msra.mxu0 0
        %3853 = vmatprep.subr.bf16.mxu0 0
        %3854 = vmatpush1.bf16.msra.mxu0 0
        %3855 = vmatprep.subr.bf16.mxu0 0
        %3856 = vmatpush1.bf16.msra.mxu0 0
        %3857 = vmatprep.subr.bf16.mxu0 0
        %3858 = vmatpush1.bf16.msra.mxu0 0
        %3859 = vmatprep.subr.bf16.mxu0 0
        %3860 = vmatpush1.bf16.msra.mxu0 %v3841
        %3861 = vmatprep.subr.bf16.mxu0 0
        %3862 = vmatpush1.bf16.msra.mxu0 %v3839
        %3863 = vmatprep.subr.bf16.mxu0 0
        %3864 = vmatpush2.bf16.msra.mxu0 0
        %3865 = vmatprep.subr.bf16.mxu0 0
        %3866 = vmatpush2.bf16.msra.mxu0 0
        %3867 = vmatprep.subr.bf16.mxu0 0
        %3868 = vmatpush2.bf16.msra.mxu0 0
        %3869 = vmatprep.subr.bf16.mxu0 0
        %3870 = vmatpush2.bf16.msra.mxu0 0
        %3871 = vmatprep.subr.bf16.mxu0 0
        %3872 = vmatpush2.bf16.msra.mxu0 0
        %3873 = vmatprep.subr.bf16.mxu0 0
        %3874 = vmatpush2.bf16.msra.mxu0 0
        %3875 = vmatprep.subr.bf16.mxu0 0
        %3876 = vmatpush2.bf16.msra.mxu0 0
        %3877 = vmatprep.subr.bf16.mxu0 0
        %3878 = vmatpush2.bf16.msra.mxu0 0
        %3879 = vmatprep.mubr.bf16.mxu0 0
        %3880 = vmatmul.mubr.bf16.gmra.mxu0 %v3845
        %v3881 = vpop.f32.mrf.mxu0
        %v3882 = vadd.f32 0.0, %v3881
        %v3883 = vpop.f32.mrf.mxu0
        %v3884 = vpop.f32.mrf.mxu0
        %v3885 = vadd.f32 0.0, %v3884
        %v3886 = vpop.f32.mrf.mxu0
        %3887 = vdwg.mxu0
        %v3888 = vadd.f32 %v3828, %v3882
        %v3889 = vadd.f32 %v3829, %v3885
        %s3890 = scalar_lea.vmem %s10, 32
        %v3891 = vld [vmem:[%s3890] sm:$0xf]
        %v3892 = vld [vmem:[%s3890 + $0x4] sm:$0xf]
        %v3895 = vunpack.c.l.b16 %v3891
        %v3896 = vunpack.c.l.b16 %v3892
        %v3897 = vpack.c.b16 %v3896, %v3895
        %3898 = vrot.lane.b32.xlu0 %v3667, 117
        %v3899 = vpop.permute.xlu0 %3898
        %3900 = vrot.lane.b32.xlu0 %v3668, 117
        %v3901 = vpop.permute.xlu0 %3900
        %v3905 = vsel %vm3134, %v3897, 0
        %3907 = vmatprep.subr.bf16.mxu0 0
        %3908 = vmatpush1.bf16.msra.mxu0 0
        %3909 = vmatprep.subr.bf16.mxu0 0
        %3910 = vmatpush1.bf16.msra.mxu0 0
        %3911 = vmatprep.subr.bf16.mxu0 0
        %3912 = vmatpush1.bf16.msra.mxu0 0
        %3913 = vmatprep.subr.bf16.mxu0 0
        %3914 = vmatpush1.bf16.msra.mxu0 0
        %3915 = vmatprep.subr.bf16.mxu0 0
        %3916 = vmatpush1.bf16.msra.mxu0 0
        %3917 = vmatprep.subr.bf16.mxu0 0
        %3918 = vmatpush1.bf16.msra.mxu0 0
        %3919 = vmatprep.subr.bf16.mxu0 0
        %3920 = vmatpush1.bf16.msra.mxu0 %v3901
        %3921 = vmatprep.subr.bf16.mxu0 0
        %3922 = vmatpush1.bf16.msra.mxu0 %v3899
        %3923 = vmatprep.subr.bf16.mxu0 0
        %3924 = vmatpush2.bf16.msra.mxu0 0
        %3925 = vmatprep.subr.bf16.mxu0 0
        %3926 = vmatpush2.bf16.msra.mxu0 0
        %3927 = vmatprep.subr.bf16.mxu0 0
        %3928 = vmatpush2.bf16.msra.mxu0 0
        %3929 = vmatprep.subr.bf16.mxu0 0
        %3930 = vmatpush2.bf16.msra.mxu0 0
        %3931 = vmatprep.subr.bf16.mxu0 0
        %3932 = vmatpush2.bf16.msra.mxu0 0
        %3933 = vmatprep.subr.bf16.mxu0 0
        %3934 = vmatpush2.bf16.msra.mxu0 0
        %3935 = vmatprep.subr.bf16.mxu0 0
        %3936 = vmatpush2.bf16.msra.mxu0 0
        %3937 = vmatprep.subr.bf16.mxu0 0
        %3938 = vmatpush2.bf16.msra.mxu0 0
        %3939 = vmatprep.mubr.bf16.mxu0 0
        %3940 = vmatmul.mubr.bf16.gmra.mxu0 %v3905
        %v3941 = vpop.f32.mrf.mxu0
        %v3942 = vadd.f32 0.0, %v3941
        %v3943 = vpop.f32.mrf.mxu0
        %v3944 = vpop.f32.mrf.mxu0
        %v3945 = vadd.f32 0.0, %v3944
        %v3946 = vpop.f32.mrf.mxu0
        %3947 = vdwg.mxu0
        %v3948 = vadd.f32 %v3888, %v3942
        %v3949 = vadd.f32 %v3889, %v3945
        %s3950 = scalar_lea.vmem %s10, 40
        %v3951 = vld [vmem:[%s3950] sm:$0xf]
        %v3952 = vld [vmem:[%s3950 + $0x4] sm:$0xf]
        %v3955 = vunpack.c.l.b16 %v3951
        %v3956 = vunpack.c.l.b16 %v3952
        %v3957 = vpack.c.b16 %v3956, %v3955
        %3958 = vrot.lane.b32.xlu0 %v3667, 116
        %v3959 = vpop.permute.xlu0 %3958
        %3960 = vrot.lane.b32.xlu0 %v3668, 116
        %v3961 = vpop.permute.xlu0 %3960
        %v3965 = vsel %vm3134, %v3957, 0
        %3967 = vmatprep.subr.bf16.mxu0 0
        %3968 = vmatpush1.bf16.msra.mxu0 0
        %3969 = vmatprep.subr.bf16.mxu0 0
        %3970 = vmatpush1.bf16.msra.mxu0 0
        %3971 = vmatprep.subr.bf16.mxu0 0
        %3972 = vmatpush1.bf16.msra.mxu0 0
        %3973 = vmatprep.subr.bf16.mxu0 0
        %3974 = vmatpush1.bf16.msra.mxu0 0
        %3975 = vmatprep.subr.bf16.mxu0 0
        %3976 = vmatpush1.bf16.msra.mxu0 0
        %3977 = vmatprep.subr.bf16.mxu0 0
        %3978 = vmatpush1.bf16.msra.mxu0 0
        %3979 = vmatprep.subr.bf16.mxu0 0
        %3980 = vmatpush1.bf16.msra.mxu0 %v3961
        %3981 = vmatprep.subr.bf16.mxu0 0
        %3982 = vmatpush1.bf16.msra.mxu0 %v3959
        %3983 = vmatprep.subr.bf16.mxu0 0
        %3984 = vmatpush2.bf16.msra.mxu0 0
        %3985 = vmatprep.subr.bf16.mxu0 0
        %3986 = vmatpush2.bf16.msra.mxu0 0
        %3987 = vmatprep.subr.bf16.mxu0 0
        %3988 = vmatpush2.bf16.msra.mxu0 0
        %3989 = vmatprep.subr.bf16.mxu0 0
        %3990 = vmatpush2.bf16.msra.mxu0 0
        %3991 = vmatprep.subr.bf16.mxu0 0
        %3992 = vmatpush2.bf16.msra.mxu0 0
        %3993 = vmatprep.subr.bf16.mxu0 0
        %3994 = vmatpush2.bf16.msra.mxu0 0
        %3995 = vmatprep.subr.bf16.mxu0 0
        %3996 = vmatpush2.bf16.msra.mxu0 0
        %3997 = vmatprep.subr.bf16.mxu0 0
        %3998 = vmatpush2.bf16.msra.mxu0 0
        %3999 = vmatprep.mubr.bf16.mxu0 0
        %4000 = vmatmul.mubr.bf16.gmra.mxu0 %v3965
        %v4001 = vpop.f32.mrf.mxu0
        %v4002 = vadd.f32 0.0, %v4001
        %v4003 = vpop.f32.mrf.mxu0
        %v4004 = vpop.f32.mrf.mxu0
        %v4005 = vadd.f32 0.0, %v4004
        %v4006 = vpop.f32.mrf.mxu0
        %4007 = vdwg.mxu0
        %v4008 = vadd.f32 %v3948, %v4002
        %v4009 = vadd.f32 %v3949, %v4005
        %s4010 = scalar_lea.vmem %s10, 48
        %v4011 = vld [vmem:[%s4010] sm:$0xf]
        %v4012 = vld [vmem:[%s4010 + $0x4] sm:$0xf]
        %v4015 = vunpack.c.l.b16 %v4011
        %v4016 = vunpack.c.l.b16 %v4012
        %v4017 = vpack.c.b16 %v4016, %v4015
        %4018 = vrot.lane.b32.xlu0 %v3667, 108
        %v4019 = vpop.permute.xlu0 %4018
        %4020 = vrot.lane.b32.xlu0 %v3668, 108
        %v4021 = vpop.permute.xlu0 %4020
        %v4025 = vsel %vm3134, %v4017, 0
        %4027 = vmatprep.subr.bf16.mxu0 0
        %4028 = vmatpush1.bf16.msra.mxu0 0
        %4029 = vmatprep.subr.bf16.mxu0 0
        %4030 = vmatpush1.bf16.msra.mxu0 0
        %4031 = vmatprep.subr.bf16.mxu0 0
        %4032 = vmatpush1.bf16.msra.mxu0 0
        %4033 = vmatprep.subr.bf16.mxu0 0
        %4034 = vmatpush1.bf16.msra.mxu0 0
        %4035 = vmatprep.subr.bf16.mxu0 0
        %4036 = vmatpush1.bf16.msra.mxu0 0
        %4037 = vmatprep.subr.bf16.mxu0 0
        %4038 = vmatpush1.bf16.msra.mxu0 0
        %4039 = vmatprep.subr.bf16.mxu0 0
        %4040 = vmatpush1.bf16.msra.mxu0 %v4021
        %4041 = vmatprep.subr.bf16.mxu0 0
        %4042 = vmatpush1.bf16.msra.mxu0 %v4019
        %4043 = vmatprep.subr.bf16.mxu0 0
        %4044 = vmatpush2.bf16.msra.mxu0 0
        %4045 = vmatprep.subr.bf16.mxu0 0
        %4046 = vmatpush2.bf16.msra.mxu0 0
        %4047 = vmatprep.subr.bf16.mxu0 0
        %4048 = vmatpush2.bf16.msra.mxu0 0
        %4049 = vmatprep.subr.bf16.mxu0 0
        %4050 = vmatpush2.bf16.msra.mxu0 0
        %4051 = vmatprep.subr.bf16.mxu0 0
        %4052 = vmatpush2.bf16.msra.mxu0 0
        %4053 = vmatprep.subr.bf16.mxu0 0
        %4054 = vmatpush2.bf16.msra.mxu0 0
        %4055 = vmatprep.subr.bf16.mxu0 0
        %4056 = vmatpush2.bf16.msra.mxu0 0
        %4057 = vmatprep.subr.bf16.mxu0 0
        %4058 = vmatpush2.bf16.msra.mxu0 0
        %4059 = vmatprep.mubr.bf16.mxu0 0
        %4060 = vmatmul.mubr.bf16.gmra.mxu0 %v4025
        %v4061 = vpop.f32.mrf.mxu0
        %v4062 = vadd.f32 0.0, %v4061
        %v4063 = vpop.f32.mrf.mxu0
        %v4064 = vpop.f32.mrf.mxu0
        %v4065 = vadd.f32 0.0, %v4064
        %v4066 = vpop.f32.mrf.mxu0
        %4067 = vdwg.mxu0
        %v4068 = vadd.f32 %v4008, %v4062
        %v4069 = vadd.f32 %v4009, %v4065
        %s4070 = scalar_lea.vmem %s10, 56
        %v4071 = vld [vmem:[%s4070] sm:$0xf]
        %v4072 = vld [vmem:[%s4070 + $0x4] sm:$0xf]
        %v4075 = vunpack.c.l.b16 %v4071
        %v4076 = vunpack.c.l.b16 %v4072
        %v4077 = vpack.c.b16 %v4076, %v4075
        %4078 = vrot.lane.b32.xlu0 %v3667, 107
        %v4079 = vpop.permute.xlu0 %4078
        %4080 = vrot.lane.b32.xlu0 %v3668, 107
        %v4081 = vpop.permute.xlu0 %4080
        %v4085 = vsel %vm3134, %v4077, 0
        %4087 = vmatprep.subr.bf16.mxu0 0
        %4088 = vmatpush1.bf16.msra.mxu0 0
        %4089 = vmatprep.subr.bf16.mxu0 0
        %4090 = vmatpush1.bf16.msra.mxu0 0
        %4091 = vmatprep.subr.bf16.mxu0 0
        %4092 = vmatpush1.bf16.msra.mxu0 0
        %4093 = vmatprep.subr.bf16.mxu0 0
        %4094 = vmatpush1.bf16.msra.mxu0 0
        %4095 = vmatprep.subr.bf16.mxu0 0
        %4096 = vmatpush1.bf16.msra.mxu0 0
        %4097 = vmatprep.subr.bf16.mxu0 0
        %4098 = vmatpush1.bf16.msra.mxu0 0
        %4099 = vmatprep.subr.bf16.mxu0 0
        %4100 = vmatpush1.bf16.msra.mxu0 %v4081
        %4101 = vmatprep.subr.bf16.mxu0 0
        %4102 = vmatpush1.bf16.msra.mxu0 %v4079
        %4103 = vmatprep.subr.bf16.mxu0 0
        %4104 = vmatpush2.bf16.msra.mxu0 0
        %4105 = vmatprep.subr.bf16.mxu0 0
        %4106 = vmatpush2.bf16.msra.mxu0 0
        %4107 = vmatprep.subr.bf16.mxu0 0
        %4108 = vmatpush2.bf16.msra.mxu0 0
        %4109 = vmatprep.subr.bf16.mxu0 0
        %4110 = vmatpush2.bf16.msra.mxu0 0
        %4111 = vmatprep.subr.bf16.mxu0 0
        %4112 = vmatpush2.bf16.msra.mxu0 0
        %4113 = vmatprep.subr.bf16.mxu0 0
        %4114 = vmatpush2.bf16.msra.mxu0 0
        %4115 = vmatprep.subr.bf16.mxu0 0
        %4116 = vmatpush2.bf16.msra.mxu0 0
        %4117 = vmatprep.subr.bf16.mxu0 0
        %4118 = vmatpush2.bf16.msra.mxu0 0
        %4119 = vmatprep.mubr.bf16.mxu0 0
        %4120 = vmatmul.mubr.bf16.gmra.mxu0 %v4085
        %v4121 = vpop.f32.mrf.mxu0
        %v4122 = vadd.f32 0.0, %v4121
        %v4123 = vpop.f32.mrf.mxu0
        %v4124 = vpop.f32.mrf.mxu0
        %v4125 = vadd.f32 0.0, %v4124
        %v4126 = vpop.f32.mrf.mxu0
        %4127 = vdwg.mxu0
        %v4128 = vadd.f32 %v4068, %v4122
        %v4129 = vadd.f32 %v4069, %v4125
        %s4130 = scalar_lea.vmem %s10, 64
        %v4131 = vld [vmem:[%s4130] sm:$0xf]
        %v4132 = vld [vmem:[%s4130 + $0x4] sm:$0xf]
        %v4135 = vunpack.c.l.b16 %v4131
        %v4136 = vunpack.c.l.b16 %v4132
        %v4137 = vpack.c.b16 %v4136, %v4135
        %4138 = vrot.lane.b32.xlu0 %v3667, 106
        %v4139 = vpop.permute.xlu0 %4138
        %4140 = vrot.lane.b32.xlu0 %v3668, 106
        %v4141 = vpop.permute.xlu0 %4140
        %v4145 = vsel %vm3134, %v4137, 0
        %4147 = vmatprep.subr.bf16.mxu0 0
        %4148 = vmatpush1.bf16.msra.mxu0 0
        %4149 = vmatprep.subr.bf16.mxu0 0
        %4150 = vmatpush1.bf16.msra.mxu0 0
        %4151 = vmatprep.subr.bf16.mxu0 0
        %4152 = vmatpush1.bf16.msra.mxu0 0
        %4153 = vmatprep.subr.bf16.mxu0 0
        %4154 = vmatpush1.bf16.msra.mxu0 0
        %4155 = vmatprep.subr.bf16.mxu0 0
        %4156 = vmatpush1.bf16.msra.mxu0 0
        %4157 = vmatprep.subr.bf16.mxu0 0
        %4158 = vmatpush1.bf16.msra.mxu0 0
        %4159 = vmatprep.subr.bf16.mxu0 0
        %4160 = vmatpush1.bf16.msra.mxu0 %v4141
        %4161 = vmatprep.subr.bf16.mxu0 0
        %4162 = vmatpush1.bf16.msra.mxu0 %v4139
        %4163 = vmatprep.subr.bf16.mxu0 0
        %4164 = vmatpush2.bf16.msra.mxu0 0
        %4165 = vmatprep.subr.bf16.mxu0 0
        %4166 = vmatpush2.bf16.msra.mxu0 0
        %4167 = vmatprep.subr.bf16.mxu0 0
        %4168 = vmatpush2.bf16.msra.mxu0 0
        %4169 = vmatprep.subr.bf16.mxu0 0
        %4170 = vmatpush2.bf16.msra.mxu0 0
        %4171 = vmatprep.subr.bf16.mxu0 0
        %4172 = vmatpush2.bf16.msra.mxu0 0
        %4173 = vmatprep.subr.bf16.mxu0 0
        %4174 = vmatpush2.bf16.msra.mxu0 0
        %4175 = vmatprep.subr.bf16.mxu0 0
        %4176 = vmatpush2.bf16.msra.mxu0 0
        %4177 = vmatprep.subr.bf16.mxu0 0
        %4178 = vmatpush2.bf16.msra.mxu0 0
        %4179 = vmatprep.mubr.bf16.mxu0 0
        %4180 = vmatmul.mubr.bf16.gmra.mxu0 %v4145
        %v4181 = vpop.f32.mrf.mxu0
        %v4182 = vadd.f32 0.0, %v4181
        %v4183 = vpop.f32.mrf.mxu0
        %v4184 = vpop.f32.mrf.mxu0
        %v4185 = vadd.f32 0.0, %v4184
        %v4186 = vpop.f32.mrf.mxu0
        %4187 = vdwg.mxu0
        %v4188 = vadd.f32 %v4128, %v4182
        %v4189 = vadd.f32 %v4129, %v4185
        %v4190 = vmul.f32 %v4188, %v3053
        %v4191 = vmul.f32 %v4189, %v3053
        %v4192 = vsel %vm3057, %v4190, 0.0
        %4193 = vadd.xlane.f32.xlu0 %v4192
        %v4194 = vpop.xlane.xlu0 %4193
        %v4195 = vsel %vm3057, %v4191, 0.0
        %4196 = vadd.xlane.f32.xlu0 %v4195
        %v4197 = vpop.xlane.xlu0 %4196
        %v4198 = vmul.f32 %v4194, 0.015625
        %v4199 = vmul.f32 %v4197, 0.015625
        %v4200 = vmul.f32 %v4190, %v4190
        %v4201 = vmul.f32 %v4191, %v4191
        %v4202 = vsel %vm3057, %v4200, 0.0
        %4203 = vadd.xlane.f32.xlu0 %v4202
        %v4204 = vpop.xlane.xlu0 %4203
        %v4205 = vsel %vm3057, %v4201, 0.0
        %4206 = vadd.xlane.f32.xlu0 %v4205
        %v4207 = vpop.xlane.xlu0 %4206
        %v4208 = vmul.f32 %v4204, 0.015625
        %v4209 = vmul.f32 %v4207, 0.015625
        %v4210 = vmul.f32 %v4198, %v4198
        %v4211 = vmul.f32 %v4199, %v4199
        %v4212 = vsub.f32 %v4208, %v4210
        %v4213 = vsub.f32 %v4209, %v4211
        %v4214 = vsub.f32 %v4190, %v4198
        %v4215 = vsub.f32 %v4191, %v4199
        %v4216 = vadd.f32 %v4212, 1e-05
        %v4217 = vadd.f32 %v4213, 1e-05
        %v4218 = vrsqrt.pop %v4216
        %v4219 = vrsqrt.pop %v4217
        %v4220 = vmul.f32 %v4214, %v4218
        %v4221 = vmul.f32 %v4215, %v4219
        %vm4222 = vcmp.ge.f32.partialorder %v4220, 0.0
        %vm4223 = vcmp.ge.f32.partialorder %v4221, 0.0
        %v4224 = vmul.f32 %v4220, 0.01
        %v4225 = vmul.f32 %v4221, 0.01
        %v4226 = vsel %vm4222, %v4220, %v4224
        %v4227 = vsel %vm4223, %v4221, %v4225
        %v4228 = vmul.f32 %v4226, %v3053
        %v4229 = vmul.f32 %v4227, %v3053
        %4230 = vst.msk [vmem:[%s533] sm:$0xff] %vm3057, %v4228
        %4231 = vst.msk [vmem:[%s533 + $0x8] sm:$0xff] %vm3057, %v4229
        %v4232 = vpack.c.bf16 %v4229, %v4228
        %v4233 = vld [vmem:[%s11] sm:$0xf]
        %vm4234 = vcmask 130048
        %v4236 = vsel %vm4234, %v4233, 0
        %4238 = vmatprep.subr.bf16.mxu0 0
        %4239 = vmatpush1.bf16.msra.mxu0 0
        %4240 = vmatprep.subr.bf16.mxu0 0
        %4241 = vmatpush1.bf16.msra.mxu0 0
        %4242 = vmatprep.subr.bf16.mxu0 0
        %4243 = vmatpush1.bf16.msra.mxu0 0
        %4244 = vmatprep.subr.bf16.mxu0 0
        %4245 = vmatpush1.bf16.msra.mxu0 0
        %4246 = vmatprep.subr.bf16.mxu0 0
        %4247 = vmatpush1.bf16.msra.mxu0 0
        %4248 = vmatprep.subr.bf16.mxu0 0
        %4249 = vmatpush1.bf16.msra.mxu0 0
        %4250 = vmatprep.subr.bf16.mxu0 0
        %4251 = vmatpush1.bf16.msra.mxu0 0
        %4252 = vmatprep.subr.bf16.mxu0 0
        %4253 = vmatpush1.bf16.msra.mxu0 %v4232
        %4254 = vmatprep.subr.bf16.mxu0 0
        %4255 = vmatpush2.bf16.msra.mxu0 0
        %4256 = vmatprep.subr.bf16.mxu0 0
        %4257 = vmatpush2.bf16.msra.mxu0 0
        %4258 = vmatprep.subr.bf16.mxu0 0
        %4259 = vmatpush2.bf16.msra.mxu0 0
        %4260 = vmatprep.subr.bf16.mxu0 0
        %4261 = vmatpush2.bf16.msra.mxu0 0
        %4262 = vmatprep.subr.bf16.mxu0 0
        %4263 = vmatpush2.bf16.msra.mxu0 0
        %4264 = vmatprep.subr.bf16.mxu0 0
        %4265 = vmatpush2.bf16.msra.mxu0 0
        %4266 = vmatprep.subr.bf16.mxu0 0
        %4267 = vmatpush2.bf16.msra.mxu0 0
        %4268 = vmatprep.subr.bf16.mxu0 0
        %4269 = vmatpush2.bf16.msra.mxu0 0
        %4270 = vmatprep.mubr.bf16.mxu0 0
        %4271 = vmatmul.mubr.bf16.gmra.mxu0 %v4236
        %v4272 = vpop.f32.mrf.mxu0
        %v4273 = vadd.f32 0.0, %v4272
        %v4274 = vpop.f32.mrf.mxu0
        %v4275 = vpop.f32.mrf.mxu0
        %v4276 = vpop.f32.mrf.mxu0
        %4277 = vdwg.mxu0
        %v4278 = vpack.c.bf16 %v4273, %v4273
        %v4279 = vld [vmem:[%s13] sm:$0xff]
        %v4280 = vld [vmem:[%s13 + $0x8] sm:$0xf]
        %v4281 = vld [vmem:[%s13 + $0xc] sm:$0xff]
        %v4282 = vld [vmem:[%s13 + $0x14] sm:$0xf]
        %v4283 = vld [vmem:[%s13 + $0x18] sm:$0xff]
        %v4284 = vld [vmem:[%s13 + $0x20] sm:$0xf]
        %v4285 = vld [vmem:[%s13 + $0x24] sm:$0xff]
        %v4286 = vld [vmem:[%s13 + $0x2c] sm:$0xf]
        %v4287 = vld [vmem:[%s13 + $0x30] sm:$0xff]
        %v4288 = vld [vmem:[%s13 + $0x38] sm:$0xf]
        %v4289 = vld [vmem:[%s13 + $0x3c] sm:$0xff]
        %v4290 = vld [vmem:[%s13 + $0x44] sm:$0xf]
        %v4291 = vld [vmem:[%s13 + $0x48] sm:$0xff]
        %v4292 = vld [vmem:[%s13 + $0x50] sm:$0xf]
        %v4293 = vld [vmem:[%s13 + $0x54] sm:$0xff]
        %v4294 = vld [vmem:[%s13 + $0x5c] sm:$0xf]
        %v4295 = vld [vmem:[%s13 + $0x60] sm:$0xff]
        %v4296 = vld [vmem:[%s13 + $0x68] sm:$0xf]
        %v4297 = vld [vmem:[%s13 + $0x6c] sm:$0xff]
        %v4298 = vld [vmem:[%s13 + $0x74] sm:$0xf]
        %v4299 = vld [vmem:[%s13 + $0x78] sm:$0xff]
        %v4300 = vld [vmem:[%s13 + $0x80] sm:$0xf]
        %v4301 = vld [vmem:[%s13 + $0x84] sm:$0xff]
        %v4302 = vld [vmem:[%s13 + $0x8c] sm:$0xf]
        %v4303 = vld [vmem:[%s13 + $0x90] sm:$0x33]
        %v4304 = vld [vmem:[%s13 + $0x98] sm:$0x3]
        %s4305 = scalar_lea.vmem %s11, 4
        %v4306 = vld [vmem:[%s4305] sm:$0xf]
        %v4308 = vsel %vm4234, %v4306, 0
        %4310 = vmatprep.subr.bf16.mxu0 0
        %4311 = vmatpush1.bf16.msra.mxu0 0
        %4312 = vmatprep.subr.bf16.mxu0 0
        %4313 = vmatpush1.bf16.msra.mxu0 0
        %4314 = vmatprep.subr.bf16.mxu0 0
        %4315 = vmatpush1.bf16.msra.mxu0 0
        %4316 = vmatprep.subr.bf16.mxu0 0
        %4317 = vmatpush1.bf16.msra.mxu0 0
        %4318 = vmatprep.subr.bf16.mxu0 0
        %4319 = vmatpush1.bf16.msra.mxu0 0
        %4320 = vmatprep.subr.bf16.mxu0 0
        %4321 = vmatpush1.bf16.msra.mxu0 0
        %4322 = vmatprep.subr.bf16.mxu0 0
        %4323 = vmatpush1.bf16.msra.mxu0 0
        %4324 = vmatprep.subr.bf16.mxu0 0
        %4325 = vmatpush1.bf16.msra.mxu0 %v4232
        %4326 = vmatprep.subr.bf16.mxu0 0
        %4327 = vmatpush2.bf16.msra.mxu0 0
        %4328 = vmatprep.subr.bf16.mxu0 0
        %4329 = vmatpush2.bf16.msra.mxu0 0
        %4330 = vmatprep.subr.bf16.mxu0 0
        %4331 = vmatpush2.bf16.msra.mxu0 0
        %4332 = vmatprep.subr.bf16.mxu0 0
        %4333 = vmatpush2.bf16.msra.mxu0 0
        %4334 = vmatprep.subr.bf16.mxu0 0
        %4335 = vmatpush2.bf16.msra.mxu0 0
        %4336 = vmatprep.subr.bf16.mxu0 0
        %4337 = vmatpush2.bf16.msra.mxu0 0
        %4338 = vmatprep.subr.bf16.mxu0 0
        %4339 = vmatpush2.bf16.msra.mxu0 0
        %4340 = vmatprep.subr.bf16.mxu0 0
        %4341 = vmatpush2.bf16.msra.mxu0 0
        %4342 = vmatprep.mubr.bf16.mxu0 0
        %4343 = vmatmul.mubr.bf16.gmra.mxu0 %v4308
        %v4344 = vpop.f32.mrf.mxu0
        %v4345 = vadd.f32 0.0, %v4344
        %v4346 = vpop.f32.mrf.mxu0
        %v4347 = vpop.f32.mrf.mxu0
        %v4348 = vpop.f32.mrf.mxu0
        %4349 = vdwg.mxu0
        %v4350 = vpack.c.bf16 %v4345, %v4345
        %s4351 = scalar_lea.vmem %s13, 156
        %v4352 = vld [vmem:[%s4351] sm:$0xff]
        %v4353 = vld [vmem:[%s4351 + $0x8] sm:$0xf]
        %v4354 = vld [vmem:[%s4351 + $0xc] sm:$0xff]
        %v4355 = vld [vmem:[%s4351 + $0x14] sm:$0xf]
        %v4356 = vld [vmem:[%s4351 + $0x18] sm:$0xff]
        %v4357 = vld [vmem:[%s4351 + $0x20] sm:$0xf]
        %v4358 = vld [vmem:[%s4351 + $0x24] sm:$0xff]
        %v4359 = vld [vmem:[%s4351 + $0x2c] sm:$0xf]
        %v4360 = vld [vmem:[%s4351 + $0x30] sm:$0xff]
        %v4361 = vld [vmem:[%s4351 + $0x38] sm:$0xf]
        %v4362 = vld [vmem:[%s4351 + $0x3c] sm:$0xff]
        %v4363 = vld [vmem:[%s4351 + $0x44] sm:$0xf]
        %v4364 = vld [vmem:[%s4351 + $0x48] sm:$0xff]
        %v4365 = vld [vmem:[%s4351 + $0x50] sm:$0xf]
        %v4366 = vld [vmem:[%s4351 + $0x54] sm:$0xff]
        %v4367 = vld [vmem:[%s4351 + $0x5c] sm:$0xf]
        %v4368 = vld [vmem:[%s4351 + $0x60] sm:$0xff]
        %v4369 = vld [vmem:[%s4351 + $0x68] sm:$0xf]
        %v4370 = vld [vmem:[%s4351 + $0x6c] sm:$0xff]
        %v4371 = vld [vmem:[%s4351 + $0x74] sm:$0xf]
        %v4372 = vld [vmem:[%s4351 + $0x78] sm:$0xff]
        %v4373 = vld [vmem:[%s4351 + $0x80] sm:$0xf]
        %v4374 = vld [vmem:[%s4351 + $0x84] sm:$0xff]
        %v4375 = vld [vmem:[%s4351 + $0x8c] sm:$0xf]
        %v4376 = vld [vmem:[%s4351 + $0x90] sm:$0x33]
        %v4377 = vld [vmem:[%s4351 + $0x98] sm:$0x3]
        %v4404 = vunpack.c.l.b16 %v4352
        %v4405 = vunpack.c.h.b16 %v4352
        %v4406 = vunpack.c.l.b16 %v4353
        %v4407 = vunpack.c.l.b16 %v4354
        %v4408 = vunpack.c.h.b16 %v4354
        %v4409 = vunpack.c.l.b16 %v4355
        %v4410 = vunpack.c.l.b16 %v4356
        %v4411 = vunpack.c.h.b16 %v4356
        %v4412 = vunpack.c.l.b16 %v4357
        %v4413 = vunpack.c.l.b16 %v4358
        %v4414 = vunpack.c.h.b16 %v4358
        %v4415 = vunpack.c.l.b16 %v4359
        %v4416 = vunpack.c.l.b16 %v4360
        %v4417 = vunpack.c.h.b16 %v4360
        %v4418 = vunpack.c.l.b16 %v4361
        %v4419 = vunpack.c.l.b16 %v4362
        %v4420 = vunpack.c.h.b16 %v4362
        %v4421 = vunpack.c.l.b16 %v4363
        %v4422 = vunpack.c.l.b16 %v4364
        %v4423 = vunpack.c.h.b16 %v4364
        %v4424 = vunpack.c.l.b16 %v4365
        %v4425 = vunpack.c.l.b16 %v4366
        %v4426 = vunpack.c.h.b16 %v4366
        %v4427 = vunpack.c.l.b16 %v4367
        %v4428 = vunpack.c.l.b16 %v4368
        %v4429 = vunpack.c.h.b16 %v4368
        %v4430 = vunpack.c.l.b16 %v4369
        %v4431 = vunpack.c.l.b16 %v4370
        %v4432 = vunpack.c.h.b16 %v4370
        %v4433 = vunpack.c.l.b16 %v4371
        %v4434 = vunpack.c.l.b16 %v4372
        %v4435 = vunpack.c.h.b16 %v4372
        %v4436 = vunpack.c.l.b16 %v4373
        %v4437 = vunpack.c.l.b16 %v4374
        %v4438 = vunpack.c.h.b16 %v4374
        %v4439 = vunpack.c.l.b16 %v4375
        %v4440 = vunpack.c.l.b16 %v4376
        %v4441 = vunpack.c.h.b16 %v4376
        %v4442 = vunpack.c.l.b16 %v4377
        %v4443 = vpack.c.b16 %v4407, %v4404
        %v4444 = vpack.c.b16 %v4408, %v4405
        %v4445 = vpack.c.b16 %v4409, %v4406
        %v4446 = vpack.c.b16 %v4413, %v4410
        %v4447 = vpack.c.b16 %v4414, %v4411
        %v4448 = vpack.c.b16 %v4415, %v4412
        %v4449 = vpack.c.b16 %v4419, %v4416
        %v4450 = vpack.c.b16 %v4420, %v4417
        %v4451 = vpack.c.b16 %v4421, %v4418
        %v4452 = vpack.c.b16 %v4425, %v4422
        %v4453 = vpack.c.b16 %v4426, %v4423
        %v4454 = vpack.c.b16 %v4427, %v4424
        %v4455 = vpack.c.b16 %v4431, %v4428
        %v4456 = vpack.c.b16 %v4432, %v4429
        %v4457 = vpack.c.b16 %v4433, %v4430
        %v4458 = vpack.c.b16 %v4437, %v4434
        %v4459 = vpack.c.b16 %v4438, %v4435
        %v4460 = vpack.c.b16 %v4439, %v4436
        %v4461 = vpack.c.b16 %v4440, %v4440
        %v4462 = vpack.c.b16 %v4441, %v4441
        %v4463 = vpack.c.b16 %v4442, %v4442
        %v4483 = vsel %vm3057, %v4350, 0
        %v4486 = vsel %vm598, %v4461, 0
        %v4489 = vsel %vm598, %v4462, 0
        %v4492 = vsel %vm598, %v4463, 0
        %4494 = vmatprep.subr.bf16.mxu0 0
        %4495 = vmatpush1.bf16.msra.mxu0 0
        %4496 = vmatprep.subr.bf16.mxu0 %v4489
        %4497 = vmatpush1.bf16.msra.mxu0 %v4486
        %4498 = vmatprep.subr.bf16.mxu0 %v4459
        %4499 = vmatpush1.bf16.msra.mxu0 %v4458
        %4500 = vmatprep.subr.bf16.mxu0 %v4456
        %4501 = vmatpush1.bf16.msra.mxu0 %v4455
        %4502 = vmatprep.subr.bf16.mxu0 %v4453
        %4503 = vmatpush1.bf16.msra.mxu0 %v4452
        %4504 = vmatprep.subr.bf16.mxu0 %v4450
        %4505 = vmatpush1.bf16.msra.mxu0 %v4449
        %4506 = vmatprep.subr.bf16.mxu0 %v4447
        %4507 = vmatpush1.bf16.msra.mxu0 %v4446
        %4508 = vmatprep.subr.bf16.mxu0 %v4444
        %4509 = vmatpush1.bf16.msra.mxu0 %v4443
        %4510 = vmatprep.subr.bf16.mxu0 0
        %4511 = vmatpush2.bf16.msra.mxu0 0
        %4512 = vmatprep.subr.bf16.mxu0 0
        %4513 = vmatpush2.bf16.msra.mxu0 0
        %4514 = vmatprep.subr.bf16.mxu0 0
        %4515 = vmatpush2.bf16.msra.mxu0 0
        %4516 = vmatprep.subr.bf16.mxu0 0
        %4517 = vmatpush2.bf16.msra.mxu0 0
        %4518 = vmatprep.subr.bf16.mxu0 0
        %4519 = vmatpush2.bf16.msra.mxu0 0
        %4520 = vmatprep.subr.bf16.mxu0 0
        %4521 = vmatpush2.bf16.msra.mxu0 0
        %4522 = vmatprep.subr.bf16.mxu0 0
        %4523 = vmatpush2.bf16.msra.mxu0 0
        %4524 = vmatprep.subr.bf16.mxu0 0
        %4525 = vmatpush2.bf16.msra.mxu0 0
        %4526 = vmatprep.mubr.bf16.mxu0 0
        %4527 = vmatmul.mubr.bf16.gmra.mxu0 %v4483
        %v4528 = vpop.f32.mrf.mxu0
        %v4529 = vadd.f32 0.0, %v4528
        %v4530 = vpop.f32.mrf.mxu0
        %v4531 = vadd.f32 0.0, %v4530
        %v4532 = vpop.f32.mrf.mxu0
        %v4533 = vpop.f32.mrf.mxu0
        %4534 = vdwg.mxu0
        %4535 = vmatprep.subr.bf16.mxu0 0
        %4536 = vmatpush1.bf16.msra.mxu0 0
        %4537 = vmatprep.subr.bf16.mxu0 0
        %4538 = vmatpush1.bf16.msra.mxu0 %v4492
        %4539 = vmatprep.subr.bf16.mxu0 0
        %4540 = vmatpush1.bf16.msra.mxu0 %v4460
        %4541 = vmatprep.subr.bf16.mxu0 0
        %4542 = vmatpush1.bf16.msra.mxu0 %v4457
        %4543 = vmatprep.subr.bf16.mxu0 0
        %4544 = vmatpush1.bf16.msra.mxu0 %v4454
        %4545 = vmatprep.subr.bf16.mxu0 0
        %4546 = vmatpush1.bf16.msra.mxu0 %v4451
        %4547 = vmatprep.subr.bf16.mxu0 0
        %4548 = vmatpush1.bf16.msra.mxu0 %v4448
        %4549 = vmatprep.subr.bf16.mxu0 0
        %4550 = vmatpush1.bf16.msra.mxu0 %v4445
        %4551 = vmatprep.subr.bf16.mxu0 0
        %4552 = vmatpush2.bf16.msra.mxu0 0
        %4553 = vmatprep.subr.bf16.mxu0 0
        %4554 = vmatpush2.bf16.msra.mxu0 0
        %4555 = vmatprep.subr.bf16.mxu0 0
        %4556 = vmatpush2.bf16.msra.mxu0 0
        %4557 = vmatprep.subr.bf16.mxu0 0
        %4558 = vmatpush2.bf16.msra.mxu0 0
        %4559 = vmatprep.subr.bf16.mxu0 0
        %4560 = vmatpush2.bf16.msra.mxu0 0
        %4561 = vmatprep.subr.bf16.mxu0 0
        %4562 = vmatpush2.bf16.msra.mxu0 0
        %4563 = vmatprep.subr.bf16.mxu0 0
        %4564 = vmatpush2.bf16.msra.mxu0 0
        %4565 = vmatprep.subr.bf16.mxu0 0
        %4566 = vmatpush2.bf16.msra.mxu0 0
        %4567 = vmatprep.mubr.bf16.mxu0 0
        %4568 = vmatmul.mubr.bf16.gmra.mxu0 %v4483
        %v4569 = vpop.f32.mrf.mxu0
        %v4570 = vadd.f32 0.0, %v4569
        %v4571 = vpop.f32.mrf.mxu0
        %v4572 = vpop.f32.mrf.mxu0
        %v4573 = vpop.f32.mrf.mxu0
        %4574 = vdwg.mxu0
        %v4601 = vunpack.c.l.b16 %v4279
        %v4602 = vunpack.c.h.b16 %v4279
        %v4603 = vunpack.c.l.b16 %v4280
        %v4604 = vunpack.c.l.b16 %v4281
        %v4605 = vunpack.c.h.b16 %v4281
        %v4606 = vunpack.c.l.b16 %v4282
        %v4607 = vunpack.c.l.b16 %v4283
        %v4608 = vunpack.c.h.b16 %v4283
        %v4609 = vunpack.c.l.b16 %v4284
        %v4610 = vunpack.c.l.b16 %v4285
        %v4611 = vunpack.c.h.b16 %v4285
        %v4612 = vunpack.c.l.b16 %v4286
        %v4613 = vunpack.c.l.b16 %v4287
        %v4614 = vunpack.c.h.b16 %v4287
        %v4615 = vunpack.c.l.b16 %v4288
        %v4616 = vunpack.c.l.b16 %v4289
        %v4617 = vunpack.c.h.b16 %v4289
        %v4618 = vunpack.c.l.b16 %v4290
        %v4619 = vunpack.c.l.b16 %v4291
        %v4620 = vunpack.c.h.b16 %v4291
        %v4621 = vunpack.c.l.b16 %v4292
        %v4622 = vunpack.c.l.b16 %v4293
        %v4623 = vunpack.c.h.b16 %v4293
        %v4624 = vunpack.c.l.b16 %v4294
        %v4625 = vunpack.c.l.b16 %v4295
        %v4626 = vunpack.c.h.b16 %v4295
        %v4627 = vunpack.c.l.b16 %v4296
        %v4628 = vunpack.c.l.b16 %v4297
        %v4629 = vunpack.c.h.b16 %v4297
        %v4630 = vunpack.c.l.b16 %v4298
        %v4631 = vunpack.c.l.b16 %v4299
        %v4632 = vunpack.c.h.b16 %v4299
        %v4633 = vunpack.c.l.b16 %v4300
        %v4634 = vunpack.c.l.b16 %v4301
        %v4635 = vunpack.c.h.b16 %v4301
        %v4636 = vunpack.c.l.b16 %v4302
        %v4637 = vunpack.c.l.b16 %v4303
        %v4638 = vunpack.c.h.b16 %v4303
        %v4639 = vunpack.c.l.b16 %v4304
        %v4640 = vpack.c.b16 %v4604, %v4601
        %v4641 = vpack.c.b16 %v4605, %v4602
        %v4642 = vpack.c.b16 %v4606, %v4603
        %v4643 = vpack.c.b16 %v4610, %v4607
        %v4644 = vpack.c.b16 %v4611, %v4608
        %v4645 = vpack.c.b16 %v4612, %v4609
        %v4646 = vpack.c.b16 %v4616, %v4613
        %v4647 = vpack.c.b16 %v4617, %v4614
        %v4648 = vpack.c.b16 %v4618, %v4615
        %v4649 = vpack.c.b16 %v4622, %v4619
        %v4650 = vpack.c.b16 %v4623, %v4620
        %v4651 = vpack.c.b16 %v4624, %v4621
        %v4652 = vpack.c.b16 %v4628, %v4625
        %v4653 = vpack.c.b16 %v4629, %v4626
        %v4654 = vpack.c.b16 %v4630, %v4627
        %v4655 = vpack.c.b16 %v4634, %v4631
        %v4656 = vpack.c.b16 %v4635, %v4632
        %v4657 = vpack.c.b16 %v4636, %v4633
        %v4658 = vpack.c.b16 %v4637, %v4637
        %v4659 = vpack.c.b16 %v4638, %v4638
        %v4660 = vpack.c.b16 %v4639, %v4639
        %v4680 = vsel %vm3057, %v4278, 0
        %v4683 = vsel %vm598, %v4658, 0
        %v4686 = vsel %vm598, %v4659, 0
        %v4689 = vsel %vm598, %v4660, 0
        %4691 = vmatprep.subr.bf16.mxu0 0
        %4692 = vmatpush1.bf16.msra.mxu0 0
        %4693 = vmatprep.subr.bf16.mxu0 %v4686
        %4694 = vmatpush1.bf16.msra.mxu0 %v4683
        %4695 = vmatprep.subr.bf16.mxu0 %v4656
        %4696 = vmatpush1.bf16.msra.mxu0 %v4655
        %4697 = vmatprep.subr.bf16.mxu0 %v4653
        %4698 = vmatpush1.bf16.msra.mxu0 %v4652
        %4699 = vmatprep.subr.bf16.mxu0 %v4650
        %4700 = vmatpush1.bf16.msra.mxu0 %v4649
        %4701 = vmatprep.subr.bf16.mxu0 %v4647
        %4702 = vmatpush1.bf16.msra.mxu0 %v4646
        %4703 = vmatprep.subr.bf16.mxu0 %v4644
        %4704 = vmatpush1.bf16.msra.mxu0 %v4643
        %4705 = vmatprep.subr.bf16.mxu0 %v4641
        %4706 = vmatpush1.bf16.msra.mxu0 %v4640
        %4707 = vmatprep.subr.bf16.mxu0 0
        %4708 = vmatpush2.bf16.msra.mxu0 0
        %4709 = vmatprep.subr.bf16.mxu0 0
        %4710 = vmatpush2.bf16.msra.mxu0 0
        %4711 = vmatprep.subr.bf16.mxu0 0
        %4712 = vmatpush2.bf16.msra.mxu0 0
        %4713 = vmatprep.subr.bf16.mxu0 0
        %4714 = vmatpush2.bf16.msra.mxu0 0
        %4715 = vmatprep.subr.bf16.mxu0 0
        %4716 = vmatpush2.bf16.msra.mxu0 0
        %4717 = vmatprep.subr.bf16.mxu0 0
        %4718 = vmatpush2.bf16.msra.mxu0 0
        %4719 = vmatprep.subr.bf16.mxu0 0
        %4720 = vmatpush2.bf16.msra.mxu0 0
        %4721 = vmatprep.subr.bf16.mxu0 0
        %4722 = vmatpush2.bf16.msra.mxu0 0
        %4723 = vmatprep.mubr.bf16.mxu0 0
        %4724 = vmatmul.mubr.bf16.gmra.mxu0 %v4680
        %v4725 = vpop.f32.mrf.mxu0
        %v4726 = vadd.f32 %v4529, %v4725
        %v4727 = vpop.f32.mrf.mxu0
        %v4728 = vadd.f32 %v4531, %v4727
        %v4729 = vpop.f32.mrf.mxu0
        %v4730 = vpop.f32.mrf.mxu0
        %4731 = vdwg.mxu0
        %4732 = vmatprep.subr.bf16.mxu0 0
        %4733 = vmatpush1.bf16.msra.mxu0 0
        %4734 = vmatprep.subr.bf16.mxu0 0
        %4735 = vmatpush1.bf16.msra.mxu0 %v4689
        %4736 = vmatprep.subr.bf16.mxu0 0
        %4737 = vmatpush1.bf16.msra.mxu0 %v4657
        %4738 = vmatprep.subr.bf16.mxu0 0
        %4739 = vmatpush1.bf16.msra.mxu0 %v4654
        %4740 = vmatprep.subr.bf16.mxu0 0
        %4741 = vmatpush1.bf16.msra.mxu0 %v4651
        %4742 = vmatprep.subr.bf16.mxu0 0
        %4743 = vmatpush1.bf16.msra.mxu0 %v4648
        %4744 = vmatprep.subr.bf16.mxu0 0
        %4745 = vmatpush1.bf16.msra.mxu0 %v4645
        %4746 = vmatprep.subr.bf16.mxu0 0
        %4747 = vmatpush1.bf16.msra.mxu0 %v4642
        %4748 = vmatprep.subr.bf16.mxu0 0
        %4749 = vmatpush2.bf16.msra.mxu0 0
        %4750 = vmatprep.subr.bf16.mxu0 0
        %4751 = vmatpush2.bf16.msra.mxu0 0
        %4752 = vmatprep.subr.bf16.mxu0 0
        %4753 = vmatpush2.bf16.msra.mxu0 0
        %4754 = vmatprep.subr.bf16.mxu0 0
        %4755 = vmatpush2.bf16.msra.mxu0 0
        %4756 = vmatprep.subr.bf16.mxu0 0
        %4757 = vmatpush2.bf16.msra.mxu0 0
        %4758 = vmatprep.subr.bf16.mxu0 0
        %4759 = vmatpush2.bf16.msra.mxu0 0
        %4760 = vmatprep.subr.bf16.mxu0 0
        %4761 = vmatpush2.bf16.msra.mxu0 0
        %4762 = vmatprep.subr.bf16.mxu0 0
        %4763 = vmatpush2.bf16.msra.mxu0 0
        %4764 = vmatprep.mubr.bf16.mxu0 0
        %4765 = vmatmul.mubr.bf16.gmra.mxu0 %v4680
        %v4766 = vpop.f32.mrf.mxu0
        %v4767 = vadd.f32 %v4570, %v4766
        %v4768 = vpop.f32.mrf.mxu0
        %v4769 = vpop.f32.mrf.mxu0
        %v4770 = vpop.f32.mrf.mxu0
        %4771 = vdwg.mxu0
        %s4772 = scalar_lea.vmem %s11, 8
        %v4773 = vld [vmem:[%s4772] sm:$0xf]
        %v4775 = vsel %vm4234, %v4773, 0
        %4777 = vmatprep.subr.bf16.mxu0 0
        %4778 = vmatpush1.bf16.msra.mxu0 0
        %4779 = vmatprep.subr.bf16.mxu0 0
        %4780 = vmatpush1.bf16.msra.mxu0 0
        %4781 = vmatprep.subr.bf16.mxu0 0
        %4782 = vmatpush1.bf16.msra.mxu0 0
        %4783 = vmatprep.subr.bf16.mxu0 0
        %4784 = vmatpush1.bf16.msra.mxu0 0
        %4785 = vmatprep.subr.bf16.mxu0 0
        %4786 = vmatpush1.bf16.msra.mxu0 0
        %4787 = vmatprep.subr.bf16.mxu0 0
        %4788 = vmatpush1.bf16.msra.mxu0 0
        %4789 = vmatprep.subr.bf16.mxu0 0
        %4790 = vmatpush1.bf16.msra.mxu0 0
        %4791 = vmatprep.subr.bf16.mxu0 0
        %4792 = vmatpush1.bf16.msra.mxu0 %v4232
        %4793 = vmatprep.subr.bf16.mxu0 0
        %4794 = vmatpush2.bf16.msra.mxu0 0
        %4795 = vmatprep.subr.bf16.mxu0 0
        %4796 = vmatpush2.bf16.msra.mxu0 0
        %4797 = vmatprep.subr.bf16.mxu0 0
        %4798 = vmatpush2.bf16.msra.mxu0 0
        %4799 = vmatprep.subr.bf16.mxu0 0
        %4800 = vmatpush2.bf16.msra.mxu0 0
        %4801 = vmatprep.subr.bf16.mxu0 0
        %4802 = vmatpush2.bf16.msra.mxu0 0
        %4803 = vmatprep.subr.bf16.mxu0 0
        %4804 = vmatpush2.bf16.msra.mxu0 0
        %4805 = vmatprep.subr.bf16.mxu0 0
        %4806 = vmatpush2.bf16.msra.mxu0 0
        %4807 = vmatprep.subr.bf16.mxu0 0
        %4808 = vmatpush2.bf16.msra.mxu0 0
        %4809 = vmatprep.mubr.bf16.mxu0 0
        %4810 = vmatmul.mubr.bf16.gmra.mxu0 %v4775
        %v4811 = vpop.f32.mrf.mxu0
        %v4812 = vadd.f32 0.0, %v4811
        %v4813 = vpop.f32.mrf.mxu0
        %v4814 = vpop.f32.mrf.mxu0
        %v4815 = vpop.f32.mrf.mxu0
        %4816 = vdwg.mxu0
        %v4817 = vpack.c.bf16 %v4812, %v4812
        %s4818 = scalar_lea.vmem %s13, 312
        %v4819 = vld [vmem:[%s4818] sm:$0xff]
        %v4820 = vld [vmem:[%s4818 + $0x8] sm:$0xf]
        %v4821 = vld [vmem:[%s4818 + $0xc] sm:$0xff]
        %v4822 = vld [vmem:[%s4818 + $0x14] sm:$0xf]
        %v4823 = vld [vmem:[%s4818 + $0x18] sm:$0xff]
        %v4824 = vld [vmem:[%s4818 + $0x20] sm:$0xf]
        %v4825 = vld [vmem:[%s4818 + $0x24] sm:$0xff]
        %v4826 = vld [vmem:[%s4818 + $0x2c] sm:$0xf]
        %v4827 = vld [vmem:[%s4818 + $0x30] sm:$0xff]
        %v4828 = vld [vmem:[%s4818 + $0x38] sm:$0xf]
        %v4829 = vld [vmem:[%s4818 + $0x3c] sm:$0xff]
        %v4830 = vld [vmem:[%s4818 + $0x44] sm:$0xf]
        %v4831 = vld [vmem:[%s4818 + $0x48] sm:$0xff]
        %v4832 = vld [vmem:[%s4818 + $0x50] sm:$0xf]
        %v4833 = vld [vmem:[%s4818 + $0x54] sm:$0xff]
        %v4834 = vld [vmem:[%s4818 + $0x5c] sm:$0xf]
        %v4835 = vld [vmem:[%s4818 + $0x60] sm:$0xff]
        %v4836 = vld [vmem:[%s4818 + $0x68] sm:$0xf]
        %v4837 = vld [vmem:[%s4818 + $0x6c] sm:$0xff]
        %v4838 = vld [vmem:[%s4818 + $0x74] sm:$0xf]
        %v4839 = vld [vmem:[%s4818 + $0x78] sm:$0xff]
        %v4840 = vld [vmem:[%s4818 + $0x80] sm:$0xf]
        %v4841 = vld [vmem:[%s4818 + $0x84] sm:$0xff]
        %v4842 = vld [vmem:[%s4818 + $0x8c] sm:$0xf]
        %v4843 = vld [vmem:[%s4818 + $0x90] sm:$0x33]
        %v4844 = vld [vmem:[%s4818 + $0x98] sm:$0x3]
        %v4871 = vunpack.c.l.b16 %v4819
        %v4872 = vunpack.c.h.b16 %v4819
        %v4873 = vunpack.c.l.b16 %v4820
        %v4874 = vunpack.c.l.b16 %v4821
        %v4875 = vunpack.c.h.b16 %v4821
        %v4876 = vunpack.c.l.b16 %v4822
        %v4877 = vunpack.c.l.b16 %v4823
        %v4878 = vunpack.c.h.b16 %v4823
        %v4879 = vunpack.c.l.b16 %v4824
        %v4880 = vunpack.c.l.b16 %v4825
        %v4881 = vunpack.c.h.b16 %v4825
        %v4882 = vunpack.c.l.b16 %v4826
        %v4883 = vunpack.c.l.b16 %v4827
        %v4884 = vunpack.c.h.b16 %v4827
        %v4885 = vunpack.c.l.b16 %v4828
        %v4886 = vunpack.c.l.b16 %v4829
        %v4887 = vunpack.c.h.b16 %v4829
        %v4888 = vunpack.c.l.b16 %v4830
        %v4889 = vunpack.c.l.b16 %v4831
        %v4890 = vunpack.c.h.b16 %v4831
        %v4891 = vunpack.c.l.b16 %v4832
        %v4892 = vunpack.c.l.b16 %v4833
        %v4893 = vunpack.c.h.b16 %v4833
        %v4894 = vunpack.c.l.b16 %v4834
        %v4895 = vunpack.c.l.b16 %v4835
        %v4896 = vunpack.c.h.b16 %v4835
        %v4897 = vunpack.c.l.b16 %v4836
        %v4898 = vunpack.c.l.b16 %v4837
        %v4899 = vunpack.c.h.b16 %v4837
        %v4900 = vunpack.c.l.b16 %v4838
        %v4901 = vunpack.c.l.b16 %v4839
        %v4902 = vunpack.c.h.b16 %v4839
        %v4903 = vunpack.c.l.b16 %v4840
        %v4904 = vunpack.c.l.b16 %v4841
        %v4905 = vunpack.c.h.b16 %v4841
        %v4906 = vunpack.c.l.b16 %v4842
        %v4907 = vunpack.c.l.b16 %v4843
        %v4908 = vunpack.c.h.b16 %v4843
        %v4909 = vunpack.c.l.b16 %v4844
        %v4910 = vpack.c.b16 %v4874, %v4871
        %v4911 = vpack.c.b16 %v4875, %v4872
        %v4912 = vpack.c.b16 %v4876, %v4873
        %v4913 = vpack.c.b16 %v4880, %v4877
        %v4914 = vpack.c.b16 %v4881, %v4878
        %v4915 = vpack.c.b16 %v4882, %v4879
        %v4916 = vpack.c.b16 %v4886, %v4883
        %v4917 = vpack.c.b16 %v4887, %v4884
        %v4918 = vpack.c.b16 %v4888, %v4885
        %v4919 = vpack.c.b16 %v4892, %v4889
        %v4920 = vpack.c.b16 %v4893, %v4890
        %v4921 = vpack.c.b16 %v4894, %v4891
        %v4922 = vpack.c.b16 %v4898, %v4895
        %v4923 = vpack.c.b16 %v4899, %v4896
        %v4924 = vpack.c.b16 %v4900, %v4897
        %v4925 = vpack.c.b16 %v4904, %v4901
        %v4926 = vpack.c.b16 %v4905, %v4902
        %v4927 = vpack.c.b16 %v4906, %v4903
        %v4928 = vpack.c.b16 %v4907, %v4907
        %v4929 = vpack.c.b16 %v4908, %v4908
        %v4930 = vpack.c.b16 %v4909, %v4909
        %v4950 = vsel %vm3057, %v4817, 0
        %v4953 = vsel %vm598, %v4928, 0
        %v4956 = vsel %vm598, %v4929, 0
        %v4959 = vsel %vm598, %v4930, 0
        %4961 = vmatprep.subr.bf16.mxu0 0
        %4962 = vmatpush1.bf16.msra.mxu0 0
        %4963 = vmatprep.subr.bf16.mxu0 %v4956
        %4964 = vmatpush1.bf16.msra.mxu0 %v4953
        %4965 = vmatprep.subr.bf16.mxu0 %v4926
        %4966 = vmatpush1.bf16.msra.mxu0 %v4925
        %4967 = vmatprep.subr.bf16.mxu0 %v4923
        %4968 = vmatpush1.bf16.msra.mxu0 %v4922
        %4969 = vmatprep.subr.bf16.mxu0 %v4920
        %4970 = vmatpush1.bf16.msra.mxu0 %v4919
        %4971 = vmatprep.subr.bf16.mxu0 %v4917
        %4972 = vmatpush1.bf16.msra.mxu0 %v4916
        %4973 = vmatprep.subr.bf16.mxu0 %v4914
        %4974 = vmatpush1.bf16.msra.mxu0 %v4913
        %4975 = vmatprep.subr.bf16.mxu0 %v4911
        %4976 = vmatpush1.bf16.msra.mxu0 %v4910
        %4977 = vmatprep.subr.bf16.mxu0 0
        %4978 = vmatpush2.bf16.msra.mxu0 0
        %4979 = vmatprep.subr.bf16.mxu0 0
        %4980 = vmatpush2.bf16.msra.mxu0 0
        %4981 = vmatprep.subr.bf16.mxu0 0
        %4982 = vmatpush2.bf16.msra.mxu0 0
        %4983 = vmatprep.subr.bf16.mxu0 0
        %4984 = vmatpush2.bf16.msra.mxu0 0
        %4985 = vmatprep.subr.bf16.mxu0 0
        %4986 = vmatpush2.bf16.msra.mxu0 0
        %4987 = vmatprep.subr.bf16.mxu0 0
        %4988 = vmatpush2.bf16.msra.mxu0 0
        %4989 = vmatprep.subr.bf16.mxu0 0
        %4990 = vmatpush2.bf16.msra.mxu0 0
        %4991 = vmatprep.subr.bf16.mxu0 0
        %4992 = vmatpush2.bf16.msra.mxu0 0
        %4993 = vmatprep.mubr.bf16.mxu0 0
        %4994 = vmatmul.mubr.bf16.gmra.mxu0 %v4950
        %v4995 = vpop.f32.mrf.mxu0
        %v4996 = vadd.f32 0.0, %v4995
        %v4997 = vpop.f32.mrf.mxu0
        %v4998 = vadd.f32 0.0, %v4997
        %v4999 = vpop.f32.mrf.mxu0
        %v5000 = vpop.f32.mrf.mxu0
        %5001 = vdwg.mxu0
        %5002 = vmatprep.subr.bf16.mxu0 0
        %5003 = vmatpush1.bf16.msra.mxu0 0
        %5004 = vmatprep.subr.bf16.mxu0 0
        %5005 = vmatpush1.bf16.msra.mxu0 %v4959
        %5006 = vmatprep.subr.bf16.mxu0 0
        %5007 = vmatpush1.bf16.msra.mxu0 %v4927
        %5008 = vmatprep.subr.bf16.mxu0 0
        %5009 = vmatpush1.bf16.msra.mxu0 %v4924
        %5010 = vmatprep.subr.bf16.mxu0 0
        %5011 = vmatpush1.bf16.msra.mxu0 %v4921
        %5012 = vmatprep.subr.bf16.mxu0 0
        %5013 = vmatpush1.bf16.msra.mxu0 %v4918
        %5014 = vmatprep.subr.bf16.mxu0 0
        %5015 = vmatpush1.bf16.msra.mxu0 %v4915
        %5016 = vmatprep.subr.bf16.mxu0 0
        %5017 = vmatpush1.bf16.msra.mxu0 %v4912
        %5018 = vmatprep.subr.bf16.mxu0 0
        %5019 = vmatpush2.bf16.msra.mxu0 0
        %5020 = vmatprep.subr.bf16.mxu0 0
        %5021 = vmatpush2.bf16.msra.mxu0 0
        %5022 = vmatprep.subr.bf16.mxu0 0
        %5023 = vmatpush2.bf16.msra.mxu0 0
        %5024 = vmatprep.subr.bf16.mxu0 0
        %5025 = vmatpush2.bf16.msra.mxu0 0
        %5026 = vmatprep.subr.bf16.mxu0 0
        %5027 = vmatpush2.bf16.msra.mxu0 0
        %5028 = vmatprep.subr.bf16.mxu0 0
        %5029 = vmatpush2.bf16.msra.mxu0 0
        %5030 = vmatprep.subr.bf16.mxu0 0
        %5031 = vmatpush2.bf16.msra.mxu0 0
        %5032 = vmatprep.subr.bf16.mxu0 0
        %5033 = vmatpush2.bf16.msra.mxu0 0
        %5034 = vmatprep.mubr.bf16.mxu0 0
        %5035 = vmatmul.mubr.bf16.gmra.mxu0 %v4950
        %v5036 = vpop.f32.mrf.mxu0
        %v5037 = vadd.f32 0.0, %v5036
        %v5038 = vpop.f32.mrf.mxu0
        %v5039 = vpop.f32.mrf.mxu0
        %v5040 = vpop.f32.mrf.mxu0
        %5041 = vdwg.mxu0
        %v5042 = vadd.f32 %v4726, %v4996
        %v5043 = vadd.f32 %v4728, %v4998
        %v5044 = vadd.f32 %v4767, %v5037
        %s5045 = scalar_lea.vmem %s11, 12
        %v5046 = vld [vmem:[%s5045] sm:$0xf]
        %v5048 = vsel %vm4234, %v5046, 0
        %5050 = vmatprep.subr.bf16.mxu0 0
        %5051 = vmatpush1.bf16.msra.mxu0 0
        %5052 = vmatprep.subr.bf16.mxu0 0
        %5053 = vmatpush1.bf16.msra.mxu0 0
        %5054 = vmatprep.subr.bf16.mxu0 0
        %5055 = vmatpush1.bf16.msra.mxu0 0
        %5056 = vmatprep.subr.bf16.mxu0 0
        %5057 = vmatpush1.bf16.msra.mxu0 0
        %5058 = vmatprep.subr.bf16.mxu0 0
        %5059 = vmatpush1.bf16.msra.mxu0 0
        %5060 = vmatprep.subr.bf16.mxu0 0
        %5061 = vmatpush1.bf16.msra.mxu0 0
        %5062 = vmatprep.subr.bf16.mxu0 0
        %5063 = vmatpush1.bf16.msra.mxu0 0
        %5064 = vmatprep.subr.bf16.mxu0 0
        %5065 = vmatpush1.bf16.msra.mxu0 %v4232
        %5066 = vmatprep.subr.bf16.mxu0 0
        %5067 = vmatpush2.bf16.msra.mxu0 0
        %5068 = vmatprep.subr.bf16.mxu0 0
        %5069 = vmatpush2.bf16.msra.mxu0 0
        %5070 = vmatprep.subr.bf16.mxu0 0
        %5071 = vmatpush2.bf16.msra.mxu0 0
        %5072 = vmatprep.subr.bf16.mxu0 0
        %5073 = vmatpush2.bf16.msra.mxu0 0
        %5074 = vmatprep.subr.bf16.mxu0 0
        %5075 = vmatpush2.bf16.msra.mxu0 0
        %5076 = vmatprep.subr.bf16.mxu0 0
        %5077 = vmatpush2.bf16.msra.mxu0 0
        %5078 = vmatprep.subr.bf16.mxu0 0
        %5079 = vmatpush2.bf16.msra.mxu0 0
        %5080 = vmatprep.subr.bf16.mxu0 0
        %5081 = vmatpush2.bf16.msra.mxu0 0
        %5082 = vmatprep.mubr.bf16.mxu0 0
        %5083 = vmatmul.mubr.bf16.gmra.mxu0 %v5048
        %v5084 = vpop.f32.mrf.mxu0
        %v5085 = vadd.f32 0.0, %v5084
        %v5086 = vpop.f32.mrf.mxu0
        %v5087 = vpop.f32.mrf.mxu0
        %v5088 = vpop.f32.mrf.mxu0
        %5089 = vdwg.mxu0
        %v5090 = vpack.c.bf16 %v5085, %v5085
        %s5091 = scalar_lea.vmem %s13, 468
        %v5092 = vld [vmem:[%s5091] sm:$0xff]
        %v5093 = vld [vmem:[%s5091 + $0x8] sm:$0xf]
        %v5094 = vld [vmem:[%s5091 + $0xc] sm:$0xff]
        %v5095 = vld [vmem:[%s5091 + $0x14] sm:$0xf]
        %v5096 = vld [vmem:[%s5091 + $0x18] sm:$0xff]
        %v5097 = vld [vmem:[%s5091 + $0x20] sm:$0xf]
        %v5098 = vld [vmem:[%s5091 + $0x24] sm:$0xff]
        %v5099 = vld [vmem:[%s5091 + $0x2c] sm:$0xf]
        %v5100 = vld [vmem:[%s5091 + $0x30] sm:$0xff]
        %v5101 = vld [vmem:[%s5091 + $0x38] sm:$0xf]
        %v5102 = vld [vmem:[%s5091 + $0x3c] sm:$0xff]
        %v5103 = vld [vmem:[%s5091 + $0x44] sm:$0xf]
        %v5104 = vld [vmem:[%s5091 + $0x48] sm:$0xff]
        %v5105 = vld [vmem:[%s5091 + $0x50] sm:$0xf]
        %v5106 = vld [vmem:[%s5091 + $0x54] sm:$0xff]
        %v5107 = vld [vmem:[%s5091 + $0x5c] sm:$0xf]
        %v5108 = vld [vmem:[%s5091 + $0x60] sm:$0xff]
        %v5109 = vld [vmem:[%s5091 + $0x68] sm:$0xf]
        %v5110 = vld [vmem:[%s5091 + $0x6c] sm:$0xff]
        %v5111 = vld [vmem:[%s5091 + $0x74] sm:$0xf]
        %v5112 = vld [vmem:[%s5091 + $0x78] sm:$0xff]
        %v5113 = vld [vmem:[%s5091 + $0x80] sm:$0xf]
        %v5114 = vld [vmem:[%s5091 + $0x84] sm:$0xff]
        %v5115 = vld [vmem:[%s5091 + $0x8c] sm:$0xf]
        %v5116 = vld [vmem:[%s5091 + $0x90] sm:$0x33]
        %v5117 = vld [vmem:[%s5091 + $0x98] sm:$0x3]
        %v5144 = vunpack.c.l.b16 %v5092
        %v5145 = vunpack.c.h.b16 %v5092
        %v5146 = vunpack.c.l.b16 %v5093
        %v5147 = vunpack.c.l.b16 %v5094
        %v5148 = vunpack.c.h.b16 %v5094
        %v5149 = vunpack.c.l.b16 %v5095
        %v5150 = vunpack.c.l.b16 %v5096
        %v5151 = vunpack.c.h.b16 %v5096
        %v5152 = vunpack.c.l.b16 %v5097
        %v5153 = vunpack.c.l.b16 %v5098
        %v5154 = vunpack.c.h.b16 %v5098
        %v5155 = vunpack.c.l.b16 %v5099
        %v5156 = vunpack.c.l.b16 %v5100
        %v5157 = vunpack.c.h.b16 %v5100
        %v5158 = vunpack.c.l.b16 %v5101
        %v5159 = vunpack.c.l.b16 %v5102
        %v5160 = vunpack.c.h.b16 %v5102
        %v5161 = vunpack.c.l.b16 %v5103
        %v5162 = vunpack.c.l.b16 %v5104
        %v5163 = vunpack.c.h.b16 %v5104
        %v5164 = vunpack.c.l.b16 %v5105
        %v5165 = vunpack.c.l.b16 %v5106
        %v5166 = vunpack.c.h.b16 %v5106
        %v5167 = vunpack.c.l.b16 %v5107
        %v5168 = vunpack.c.l.b16 %v5108
        %v5169 = vunpack.c.h.b16 %v5108
        %v5170 = vunpack.c.l.b16 %v5109
        %v5171 = vunpack.c.l.b16 %v5110
        %v5172 = vunpack.c.h.b16 %v5110
        %v5173 = vunpack.c.l.b16 %v5111
        %v5174 = vunpack.c.l.b16 %v5112
        %v5175 = vunpack.c.h.b16 %v5112
        %v5176 = vunpack.c.l.b16 %v5113
        %v5177 = vunpack.c.l.b16 %v5114
        %v5178 = vunpack.c.h.b16 %v5114
        %v5179 = vunpack.c.l.b16 %v5115
        %v5180 = vunpack.c.l.b16 %v5116
        %v5181 = vunpack.c.h.b16 %v5116
        %v5182 = vunpack.c.l.b16 %v5117
        %v5183 = vpack.c.b16 %v5147, %v5144
        %v5184 = vpack.c.b16 %v5148, %v5145
        %v5185 = vpack.c.b16 %v5149, %v5146
        %v5186 = vpack.c.b16 %v5153, %v5150
        %v5187 = vpack.c.b16 %v5154, %v5151
        %v5188 = vpack.c.b16 %v5155, %v5152
        %v5189 = vpack.c.b16 %v5159, %v5156
        %v5190 = vpack.c.b16 %v5160, %v5157
        %v5191 = vpack.c.b16 %v5161, %v5158
        %v5192 = vpack.c.b16 %v5165, %v5162
        %v5193 = vpack.c.b16 %v5166, %v5163
        %v5194 = vpack.c.b16 %v5167, %v5164
        %v5195 = vpack.c.b16 %v5171, %v5168
        %v5196 = vpack.c.b16 %v5172, %v5169
        %v5197 = vpack.c.b16 %v5173, %v5170
        %v5198 = vpack.c.b16 %v5177, %v5174
        %v5199 = vpack.c.b16 %v5178, %v5175
        %v5200 = vpack.c.b16 %v5179, %v5176
        %v5201 = vpack.c.b16 %v5180, %v5180
        %v5202 = vpack.c.b16 %v5181, %v5181
        %v5203 = vpack.c.b16 %v5182, %v5182
        %v5223 = vsel %vm3057, %v5090, 0
        %v5226 = vsel %vm598, %v5201, 0
        %v5229 = vsel %vm598, %v5202, 0
        %v5232 = vsel %vm598, %v5203, 0
        %5234 = vmatprep.subr.bf16.mxu0 0
        %5235 = vmatpush1.bf16.msra.mxu0 0
        %5236 = vmatprep.subr.bf16.mxu0 %v5229
        %5237 = vmatpush1.bf16.msra.mxu0 %v5226
        %5238 = vmatprep.subr.bf16.mxu0 %v5199
        %5239 = vmatpush1.bf16.msra.mxu0 %v5198
        %5240 = vmatprep.subr.bf16.mxu0 %v5196
        %5241 = vmatpush1.bf16.msra.mxu0 %v5195
        %5242 = vmatprep.subr.bf16.mxu0 %v5193
        %5243 = vmatpush1.bf16.msra.mxu0 %v5192
        %5244 = vmatprep.subr.bf16.mxu0 %v5190
        %5245 = vmatpush1.bf16.msra.mxu0 %v5189
        %5246 = vmatprep.subr.bf16.mxu0 %v5187
        %5247 = vmatpush1.bf16.msra.mxu0 %v5186
        %5248 = vmatprep.subr.bf16.mxu0 %v5184
        %5249 = vmatpush1.bf16.msra.mxu0 %v5183
        %5250 = vmatprep.subr.bf16.mxu0 0
        %5251 = vmatpush2.bf16.msra.mxu0 0
        %5252 = vmatprep.subr.bf16.mxu0 0
        %5253 = vmatpush2.bf16.msra.mxu0 0
        %5254 = vmatprep.subr.bf16.mxu0 0
        %5255 = vmatpush2.bf16.msra.mxu0 0
        %5256 = vmatprep.subr.bf16.mxu0 0
        %5257 = vmatpush2.bf16.msra.mxu0 0
        %5258 = vmatprep.subr.bf16.mxu0 0
        %5259 = vmatpush2.bf16.msra.mxu0 0
        %5260 = vmatprep.subr.bf16.mxu0 0
        %5261 = vmatpush2.bf16.msra.mxu0 0
        %5262 = vmatprep.subr.bf16.mxu0 0
        %5263 = vmatpush2.bf16.msra.mxu0 0
        %5264 = vmatprep.subr.bf16.mxu0 0
        %5265 = vmatpush2.bf16.msra.mxu0 0
        %5266 = vmatprep.mubr.bf16.mxu0 0
        %5267 = vmatmul.mubr.bf16.gmra.mxu0 %v5223
        %v5268 = vpop.f32.mrf.mxu0
        %v5269 = vadd.f32 0.0, %v5268
        %v5270 = vpop.f32.mrf.mxu0
        %v5271 = vadd.f32 0.0, %v5270
        %v5272 = vpop.f32.mrf.mxu0
        %v5273 = vpop.f32.mrf.mxu0
        %5274 = vdwg.mxu0
        %5275 = vmatprep.subr.bf16.mxu0 0
        %5276 = vmatpush1.bf16.msra.mxu0 0
        %5277 = vmatprep.subr.bf16.mxu0 0
        %5278 = vmatpush1.bf16.msra.mxu0 %v5232
        %5279 = vmatprep.subr.bf16.mxu0 0
        %5280 = vmatpush1.bf16.msra.mxu0 %v5200
        %5281 = vmatprep.subr.bf16.mxu0 0
        %5282 = vmatpush1.bf16.msra.mxu0 %v5197
        %5283 = vmatprep.subr.bf16.mxu0 0
        %5284 = vmatpush1.bf16.msra.mxu0 %v5194
        %5285 = vmatprep.subr.bf16.mxu0 0
        %5286 = vmatpush1.bf16.msra.mxu0 %v5191
        %5287 = vmatprep.subr.bf16.mxu0 0
        %5288 = vmatpush1.bf16.msra.mxu0 %v5188
        %5289 = vmatprep.subr.bf16.mxu0 0
        %5290 = vmatpush1.bf16.msra.mxu0 %v5185
        %5291 = vmatprep.subr.bf16.mxu0 0
        %5292 = vmatpush2.bf16.msra.mxu0 0
        %5293 = vmatprep.subr.bf16.mxu0 0
        %5294 = vmatpush2.bf16.msra.mxu0 0
        %5295 = vmatprep.subr.bf16.mxu0 0
        %5296 = vmatpush2.bf16.msra.mxu0 0
        %5297 = vmatprep.subr.bf16.mxu0 0
        %5298 = vmatpush2.bf16.msra.mxu0 0
        %5299 = vmatprep.subr.bf16.mxu0 0
        %5300 = vmatpush2.bf16.msra.mxu0 0
        %5301 = vmatprep.subr.bf16.mxu0 0
        %5302 = vmatpush2.bf16.msra.mxu0 0
        %5303 = vmatprep.subr.bf16.mxu0 0
        %5304 = vmatpush2.bf16.msra.mxu0 0
        %5305 = vmatprep.subr.bf16.mxu0 0
        %5306 = vmatpush2.bf16.msra.mxu0 0
        %5307 = vmatprep.mubr.bf16.mxu0 0
        %5308 = vmatmul.mubr.bf16.gmra.mxu0 %v5223
        %v5309 = vpop.f32.mrf.mxu0
        %v5310 = vadd.f32 0.0, %v5309
        %v5311 = vpop.f32.mrf.mxu0
        %v5312 = vpop.f32.mrf.mxu0
        %v5313 = vpop.f32.mrf.mxu0
        %5314 = vdwg.mxu0
        %v5315 = vadd.f32 %v5042, %v5269
        %v5316 = vadd.f32 %v5043, %v5271
        %v5317 = vadd.f32 %v5044, %v5310
        %v5318 = vld [vmem:[%s12] sm:$0xff]
        %5320 = vset.pattern.permute.xlu0 0
        %5321 = vperm.xlu0 %5320, %v5318
        %v5322 = vpop.permute.xlu0 %5321
        %v5324 = vadd.f32 %v5315, %v5322
        %v5325 = vadd.f32 %v5316, %v5322
        %v5326 = vadd.f32 %v5317, %v5322
        %v5327 = vmul.f32 %v5324, %v1661
        %v5328 = vmul.f32 %v5325, %v1665
        %v5329 = vmul.f32 %v5326, %v1669
        %v5330 = vpack.c.bf16 %v5327, %v5327
        %v5331 = vpack.c.bf16 %v5328, %v5328
        %v5332 = vpack.c.bf16 %v5329, %v5329
        %v5336 = vunpack.c.l.b16 %v5330
        %v5337 = vunpack.c.l.b16 %v5331
        %v5338 = vunpack.c.l.b16 %v5332
        %v5339 = vpack.c.b16 %v5337, %v5336
        %v5340 = vpack.c.b16 %v5338, %v5338
        %5341 = vrot.lane.b32.xlu0 %v5339, 19
        %v5342 = vpop.permute.xlu0 %5341
        %5343 = vrot.lane.b32.xlu0 %v5340, 19
        %v5344 = vpop.permute.xlu0 %5343
        %v5345 = vrot.slane %v5342, 4
        %v5346 = vsel %vm1730, %v5345, %v5342
        %v5347 = vsel %vm1730, %v5345, %v5344
        %5350 = vst.msk [vmem:[#allocation3] sm:$0xff] %vm1737, %v5346
        %5351 = vst.msk [vmem:[#allocation3 + $0x8] sm:$0xf] %vm1739, %v5347
        %v5352 = vld [vmem:[%s14] sm:$0xf]
        %v5353 = vld [vmem:[#allocation3] sm:$0xff]
        %v5354 = vld [vmem:[#allocation3 + $0x8] sm:$0xf]
        %v5355 = vld [vmem:[#allocation3 + $0xc] sm:$0xff]
        %v5356 = vld [vmem:[#allocation3 + $0x14] sm:$0xf]
        %s5357 = scalar_lea.vmem %s14, 4
        %v5358 = vld [vmem:[%s5357] sm:$0xf]
        %v5363 = vunpack.c.l.b16 %v5353
        %v5364 = vunpack.c.h.b16 %v5353
        %v5365 = vunpack.c.l.b16 %v5354
        %v5366 = vunpack.c.l.b16 %v5355
        %v5367 = vunpack.c.h.b16 %v5355
        %v5368 = vunpack.c.l.b16 %v5356
        %v5369 = vpack.c.b16 %v5366, %v5363
        %v5370 = vpack.c.b16 %v5367, %v5364
        %v5371 = vpack.c.b16 %v5368, %v5365
        %5372 = vrot.lane.b32.xlu0 %v5369, 127
        %v5373 = vpop.permute.xlu0 %5372
        %5374 = vrot.lane.b32.xlu0 %v5370, 127
        %v5375 = vpop.permute.xlu0 %5374
        %5376 = vrot.lane.b32.xlu0 %v5371, 127
        %v5377 = vpop.permute.xlu0 %5376
        %v5378 = vsel %vm591, %v5373, %v5375
        %v5379 = vsel %vm591, %v5375, %v5377
        %v5384 = vsel %vm4234, %v5358, 0
        %5386 = vmatprep.subr.bf16.mxu0 0
        %5387 = vmatpush1.bf16.msra.mxu0 0
        %5388 = vmatprep.subr.bf16.mxu0 0
        %5389 = vmatpush1.bf16.msra.mxu0 0
        %5390 = vmatprep.subr.bf16.mxu0 0
        %5391 = vmatpush1.bf16.msra.mxu0 0
        %5392 = vmatprep.subr.bf16.mxu0 0
        %5393 = vmatpush1.bf16.msra.mxu0 0
        %5394 = vmatprep.subr.bf16.mxu0 0
        %5395 = vmatpush1.bf16.msra.mxu0 0
        %5396 = vmatprep.subr.bf16.mxu0 0
        %5397 = vmatpush1.bf16.msra.mxu0 0
        %5398 = vmatprep.subr.bf16.mxu0 0
        %5399 = vmatpush1.bf16.msra.mxu0 0
        %5400 = vmatprep.subr.bf16.mxu0 %v5379
        %5401 = vmatpush1.bf16.msra.mxu0 %v5378
        %5402 = vmatprep.subr.bf16.mxu0 0
        %5403 = vmatpush2.bf16.msra.mxu0 0
        %5404 = vmatprep.subr.bf16.mxu0 0
        %5405 = vmatpush2.bf16.msra.mxu0 0
        %5406 = vmatprep.subr.bf16.mxu0 0
        %5407 = vmatpush2.bf16.msra.mxu0 0
        %5408 = vmatprep.subr.bf16.mxu0 0
        %5409 = vmatpush2.bf16.msra.mxu0 0
        %5410 = vmatprep.subr.bf16.mxu0 0
        %5411 = vmatpush2.bf16.msra.mxu0 0
        %5412 = vmatprep.subr.bf16.mxu0 0
        %5413 = vmatpush2.bf16.msra.mxu0 0
        %5414 = vmatprep.subr.bf16.mxu0 0
        %5415 = vmatpush2.bf16.msra.mxu0 0
        %5416 = vmatprep.subr.bf16.mxu0 0
        %5417 = vmatpush2.bf16.msra.mxu0 0
        %5418 = vmatprep.mubr.bf16.mxu0 0
        %5419 = vmatmul.mubr.bf16.gmra.mxu0 %v5384
        %v5420 = vpop.f32.mrf.mxu0
        %v5421 = vadd.f32 0.0, %v5420
        %v5422 = vpop.f32.mrf.mxu0
        %v5423 = vadd.f32 0.0, %v5422
        %v5424 = vpop.f32.mrf.mxu0
        %v5425 = vpop.f32.mrf.mxu0
        %5426 = vdwg.mxu0
        %5427 = vmatprep.subr.bf16.mxu0 0
        %5428 = vmatpush1.bf16.msra.mxu0 0
        %5429 = vmatprep.subr.bf16.mxu0 0
        %5430 = vmatpush1.bf16.msra.mxu0 0
        %5431 = vmatprep.subr.bf16.mxu0 0
        %5432 = vmatpush1.bf16.msra.mxu0 0
        %5433 = vmatprep.subr.bf16.mxu0 0
        %5434 = vmatpush1.bf16.msra.mxu0 0
        %5435 = vmatprep.subr.bf16.mxu0 0
        %5436 = vmatpush1.bf16.msra.mxu0 0
        %5437 = vmatprep.subr.bf16.mxu0 0
        %5438 = vmatpush1.bf16.msra.mxu0 0
        %5439 = vmatprep.subr.bf16.mxu0 0
        %5440 = vmatpush1.bf16.msra.mxu0 0
        %5441 = vmatprep.subr.bf16.mxu0 0
        %5442 = vmatpush1.bf16.msra.mxu0 %v5377
        %5443 = vmatprep.subr.bf16.mxu0 0
        %5444 = vmatpush2.bf16.msra.mxu0 0
        %5445 = vmatprep.subr.bf16.mxu0 0
        %5446 = vmatpush2.bf16.msra.mxu0 0
        %5447 = vmatprep.subr.bf16.mxu0 0
        %5448 = vmatpush2.bf16.msra.mxu0 0
        %5449 = vmatprep.subr.bf16.mxu0 0
        %5450 = vmatpush2.bf16.msra.mxu0 0
        %5451 = vmatprep.subr.bf16.mxu0 0
        %5452 = vmatpush2.bf16.msra.mxu0 0
        %5453 = vmatprep.subr.bf16.mxu0 0
        %5454 = vmatpush2.bf16.msra.mxu0 0
        %5455 = vmatprep.subr.bf16.mxu0 0
        %5456 = vmatpush2.bf16.msra.mxu0 0
        %5457 = vmatprep.subr.bf16.mxu0 0
        %5458 = vmatpush2.bf16.msra.mxu0 0
        %5459 = vmatprep.mubr.bf16.mxu0 0
        %5460 = vmatmul.mubr.bf16.gmra.mxu0 %v5384
        %v5461 = vpop.f32.mrf.mxu0
        %v5462 = vadd.f32 0.0, %v5461
        %v5463 = vpop.f32.mrf.mxu0
        %v5464 = vpop.f32.mrf.mxu0
        %v5465 = vpop.f32.mrf.mxu0
        %5466 = vdwg.mxu0
        %v5471 = vsel %vm4234, %v5352, 0
        %5473 = vmatprep.subr.bf16.mxu0 0
        %5474 = vmatpush1.bf16.msra.mxu0 0
        %5475 = vmatprep.subr.bf16.mxu0 0
        %5476 = vmatpush1.bf16.msra.mxu0 0
        %5477 = vmatprep.subr.bf16.mxu0 0
        %5478 = vmatpush1.bf16.msra.mxu0 0
        %5479 = vmatprep.subr.bf16.mxu0 0
        %5480 = vmatpush1.bf16.msra.mxu0 0
        %5481 = vmatprep.subr.bf16.mxu0 0
        %5482 = vmatpush1.bf16.msra.mxu0 0
        %5483 = vmatprep.subr.bf16.mxu0 0
        %5484 = vmatpush1.bf16.msra.mxu0 0
        %5485 = vmatprep.subr.bf16.mxu0 0
        %5486 = vmatpush1.bf16.msra.mxu0 0
        %5487 = vmatprep.subr.bf16.mxu0 %v5370
        %5488 = vmatpush1.bf16.msra.mxu0 %v5369
        %5489 = vmatprep.subr.bf16.mxu0 0
        %5490 = vmatpush2.bf16.msra.mxu0 0
        %5491 = vmatprep.subr.bf16.mxu0 0
        %5492 = vmatpush2.bf16.msra.mxu0 0
        %5493 = vmatprep.subr.bf16.mxu0 0
        %5494 = vmatpush2.bf16.msra.mxu0 0
        %5495 = vmatprep.subr.bf16.mxu0 0
        %5496 = vmatpush2.bf16.msra.mxu0 0
        %5497 = vmatprep.subr.bf16.mxu0 0
        %5498 = vmatpush2.bf16.msra.mxu0 0
        %5499 = vmatprep.subr.bf16.mxu0 0
        %5500 = vmatpush2.bf16.msra.mxu0 0
        %5501 = vmatprep.subr.bf16.mxu0 0
        %5502 = vmatpush2.bf16.msra.mxu0 0
        %5503 = vmatprep.subr.bf16.mxu0 0
        %5504 = vmatpush2.bf16.msra.mxu0 0
        %5505 = vmatprep.mubr.bf16.mxu0 0
        %5506 = vmatmul.mubr.bf16.gmra.mxu0 %v5471
        %v5507 = vpop.f32.mrf.mxu0
        %v5508 = vadd.f32 %v5421, %v5507
        %v5509 = vpop.f32.mrf.mxu0
        %v5510 = vadd.f32 %v5423, %v5509
        %v5511 = vpop.f32.mrf.mxu0
        %v5512 = vpop.f32.mrf.mxu0
        %5513 = vdwg.mxu0
        %5514 = vmatprep.subr.bf16.mxu0 0
        %5515 = vmatpush1.bf16.msra.mxu0 0
        %5516 = vmatprep.subr.bf16.mxu0 0
        %5517 = vmatpush1.bf16.msra.mxu0 0
        %5518 = vmatprep.subr.bf16.mxu0 0
        %5519 = vmatpush1.bf16.msra.mxu0 0
        %5520 = vmatprep.subr.bf16.mxu0 0
        %5521 = vmatpush1.bf16.msra.mxu0 0
        %5522 = vmatprep.subr.bf16.mxu0 0
        %5523 = vmatpush1.bf16.msra.mxu0 0
        %5524 = vmatprep.subr.bf16.mxu0 0
        %5525 = vmatpush1.bf16.msra.mxu0 0
        %5526 = vmatprep.subr.bf16.mxu0 0
        %5527 = vmatpush1.bf16.msra.mxu0 0
        %5528 = vmatprep.subr.bf16.mxu0 0
        %5529 = vmatpush1.bf16.msra.mxu0 %v5371
        %5530 = vmatprep.subr.bf16.mxu0 0
        %5531 = vmatpush2.bf16.msra.mxu0 0
        %5532 = vmatprep.subr.bf16.mxu0 0
        %5533 = vmatpush2.bf16.msra.mxu0 0
        %5534 = vmatprep.subr.bf16.mxu0 0
        %5535 = vmatpush2.bf16.msra.mxu0 0
        %5536 = vmatprep.subr.bf16.mxu0 0
        %5537 = vmatpush2.bf16.msra.mxu0 0
        %5538 = vmatprep.subr.bf16.mxu0 0
        %5539 = vmatpush2.bf16.msra.mxu0 0
        %5540 = vmatprep.subr.bf16.mxu0 0
        %5541 = vmatpush2.bf16.msra.mxu0 0
        %5542 = vmatprep.subr.bf16.mxu0 0
        %5543 = vmatpush2.bf16.msra.mxu0 0
        %5544 = vmatprep.subr.bf16.mxu0 0
        %5545 = vmatpush2.bf16.msra.mxu0 0
        %5546 = vmatprep.mubr.bf16.mxu0 0
        %5547 = vmatmul.mubr.bf16.gmra.mxu0 %v5471
        %v5548 = vpop.f32.mrf.mxu0
        %v5549 = vadd.f32 %v5462, %v5548
        %v5550 = vpop.f32.mrf.mxu0
        %v5551 = vpop.f32.mrf.mxu0
        %v5552 = vpop.f32.mrf.mxu0
        %5553 = vdwg.mxu0
        %s5554 = scalar_lea.vmem %s14, 8
        %v5555 = vld [vmem:[%s5554] sm:$0xf]
        %5556 = vrot.lane.b32.xlu0 %v5369, 126
        %v5557 = vpop.permute.xlu0 %5556
        %5558 = vrot.lane.b32.xlu0 %v5370, 126
        %v5559 = vpop.permute.xlu0 %5558
        %5560 = vrot.lane.b32.xlu0 %v5371, 126
        %v5561 = vpop.permute.xlu0 %5560
        %v5562 = vsel %vm808, %v5557, %v5559
        %v5563 = vsel %vm808, %v5559, %v5561
        %v5568 = vsel %vm4234, %v5555, 0
        %5570 = vmatprep.subr.bf16.mxu0 0
        %5571 = vmatpush1.bf16.msra.mxu0 0
        %5572 = vmatprep.subr.bf16.mxu0 0
        %5573 = vmatpush1.bf16.msra.mxu0 0
        %5574 = vmatprep.subr.bf16.mxu0 0
        %5575 = vmatpush1.bf16.msra.mxu0 0
        %5576 = vmatprep.subr.bf16.mxu0 0
        %5577 = vmatpush1.bf16.msra.mxu0 0
        %5578 = vmatprep.subr.bf16.mxu0 0
        %5579 = vmatpush1.bf16.msra.mxu0 0
        %5580 = vmatprep.subr.bf16.mxu0 0
        %5581 = vmatpush1.bf16.msra.mxu0 0
        %5582 = vmatprep.subr.bf16.mxu0 0
        %5583 = vmatpush1.bf16.msra.mxu0 0
        %5584 = vmatprep.subr.bf16.mxu0 %v5563
        %5585 = vmatpush1.bf16.msra.mxu0 %v5562
        %5586 = vmatprep.subr.bf16.mxu0 0
        %5587 = vmatpush2.bf16.msra.mxu0 0
        %5588 = vmatprep.subr.bf16.mxu0 0
        %5589 = vmatpush2.bf16.msra.mxu0 0
        %5590 = vmatprep.subr.bf16.mxu0 0
        %5591 = vmatpush2.bf16.msra.mxu0 0
        %5592 = vmatprep.subr.bf16.mxu0 0
        %5593 = vmatpush2.bf16.msra.mxu0 0
        %5594 = vmatprep.subr.bf16.mxu0 0
        %5595 = vmatpush2.bf16.msra.mxu0 0
        %5596 = vmatprep.subr.bf16.mxu0 0
        %5597 = vmatpush2.bf16.msra.mxu0 0
        %5598 = vmatprep.subr.bf16.mxu0 0
        %5599 = vmatpush2.bf16.msra.mxu0 0
        %5600 = vmatprep.subr.bf16.mxu0 0
        %5601 = vmatpush2.bf16.msra.mxu0 0
        %5602 = vmatprep.mubr.bf16.mxu0 0
        %5603 = vmatmul.mubr.bf16.gmra.mxu0 %v5568
        %v5604 = vpop.f32.mrf.mxu0
        %v5605 = vadd.f32 0.0, %v5604
        %v5606 = vpop.f32.mrf.mxu0
        %v5607 = vadd.f32 0.0, %v5606
        %v5608 = vpop.f32.mrf.mxu0
        %v5609 = vpop.f32.mrf.mxu0
        %5610 = vdwg.mxu0
        %5611 = vmatprep.subr.bf16.mxu0 0
        %5612 = vmatpush1.bf16.msra.mxu0 0
        %5613 = vmatprep.subr.bf16.mxu0 0
        %5614 = vmatpush1.bf16.msra.mxu0 0
        %5615 = vmatprep.subr.bf16.mxu0 0
        %5616 = vmatpush1.bf16.msra.mxu0 0
        %5617 = vmatprep.subr.bf16.mxu0 0
        %5618 = vmatpush1.bf16.msra.mxu0 0
        %5619 = vmatprep.subr.bf16.mxu0 0
        %5620 = vmatpush1.bf16.msra.mxu0 0
        %5621 = vmatprep.subr.bf16.mxu0 0
        %5622 = vmatpush1.bf16.msra.mxu0 0
        %5623 = vmatprep.subr.bf16.mxu0 0
        %5624 = vmatpush1.bf16.msra.mxu0 0
        %5625 = vmatprep.subr.bf16.mxu0 0
        %5626 = vmatpush1.bf16.msra.mxu0 %v5561
        %5627 = vmatprep.subr.bf16.mxu0 0
        %5628 = vmatpush2.bf16.msra.mxu0 0
        %5629 = vmatprep.subr.bf16.mxu0 0
        %5630 = vmatpush2.bf16.msra.mxu0 0
        %5631 = vmatprep.subr.bf16.mxu0 0
        %5632 = vmatpush2.bf16.msra.mxu0 0
        %5633 = vmatprep.subr.bf16.mxu0 0
        %5634 = vmatpush2.bf16.msra.mxu0 0
        %5635 = vmatprep.subr.bf16.mxu0 0
        %5636 = vmatpush2.bf16.msra.mxu0 0
        %5637 = vmatprep.subr.bf16.mxu0 0
        %5638 = vmatpush2.bf16.msra.mxu0 0
        %5639 = vmatprep.subr.bf16.mxu0 0
        %5640 = vmatpush2.bf16.msra.mxu0 0
        %5641 = vmatprep.subr.bf16.mxu0 0
        %5642 = vmatpush2.bf16.msra.mxu0 0
        %5643 = vmatprep.mubr.bf16.mxu0 0
        %5644 = vmatmul.mubr.bf16.gmra.mxu0 %v5568
        %v5645 = vpop.f32.mrf.mxu0
        %v5646 = vadd.f32 0.0, %v5645
        %v5647 = vpop.f32.mrf.mxu0
        %v5648 = vpop.f32.mrf.mxu0
        %v5649 = vpop.f32.mrf.mxu0
        %5650 = vdwg.mxu0
        %v5651 = vadd.f32 %v5508, %v5605
        %v5652 = vadd.f32 %v5510, %v5607
        %v5653 = vadd.f32 %v5549, %v5646
        %s5654 = scalar_lea.vmem %s14, 12
        %v5655 = vld [vmem:[%s5654] sm:$0xf]
        %5656 = vrot.lane.b32.xlu0 %v5369, 110
        %v5657 = vpop.permute.xlu0 %5656
        %5658 = vrot.lane.b32.xlu0 %v5370, 110
        %v5659 = vpop.permute.xlu0 %5658
        %5660 = vrot.lane.b32.xlu0 %v5371, 110
        %v5661 = vpop.permute.xlu0 %5660
        %v5662 = vsel %vm933, %v5657, %v5659
        %v5663 = vsel %vm933, %v5659, %v5661
        %v5668 = vsel %vm4234, %v5655, 0
        %5670 = vmatprep.subr.bf16.mxu0 0
        %5671 = vmatpush1.bf16.msra.mxu0 0
        %5672 = vmatprep.subr.bf16.mxu0 0
        %5673 = vmatpush1.bf16.msra.mxu0 0
        %5674 = vmatprep.subr.bf16.mxu0 0
        %5675 = vmatpush1.bf16.msra.mxu0 0
        %5676 = vmatprep.subr.bf16.mxu0 0
        %5677 = vmatpush1.bf16.msra.mxu0 0
        %5678 = vmatprep.subr.bf16.mxu0 0
        %5679 = vmatpush1.bf16.msra.mxu0 0
        %5680 = vmatprep.subr.bf16.mxu0 0
        %5681 = vmatpush1.bf16.msra.mxu0 0
        %5682 = vmatprep.subr.bf16.mxu0 0
        %5683 = vmatpush1.bf16.msra.mxu0 0
        %5684 = vmatprep.subr.bf16.mxu0 %v5663
        %5685 = vmatpush1.bf16.msra.mxu0 %v5662
        %5686 = vmatprep.subr.bf16.mxu0 0
        %5687 = vmatpush2.bf16.msra.mxu0 0
        %5688 = vmatprep.subr.bf16.mxu0 0
        %5689 = vmatpush2.bf16.msra.mxu0 0
        %5690 = vmatprep.subr.bf16.mxu0 0
        %5691 = vmatpush2.bf16.msra.mxu0 0
        %5692 = vmatprep.subr.bf16.mxu0 0
        %5693 = vmatpush2.bf16.msra.mxu0 0
        %5694 = vmatprep.subr.bf16.mxu0 0
        %5695 = vmatpush2.bf16.msra.mxu0 0
        %5696 = vmatprep.subr.bf16.mxu0 0
        %5697 = vmatpush2.bf16.msra.mxu0 0
        %5698 = vmatprep.subr.bf16.mxu0 0
        %5699 = vmatpush2.bf16.msra.mxu0 0
        %5700 = vmatprep.subr.bf16.mxu0 0
        %5701 = vmatpush2.bf16.msra.mxu0 0
        %5702 = vmatprep.mubr.bf16.mxu0 0
        %5703 = vmatmul.mubr.bf16.gmra.mxu0 %v5668
        %v5704 = vpop.f32.mrf.mxu0
        %v5705 = vadd.f32 0.0, %v5704
        %v5706 = vpop.f32.mrf.mxu0
        %v5707 = vadd.f32 0.0, %v5706
        %v5708 = vpop.f32.mrf.mxu0
        %v5709 = vpop.f32.mrf.mxu0
        %5710 = vdwg.mxu0
        %5711 = vmatprep.subr.bf16.mxu0 0
        %5712 = vmatpush1.bf16.msra.mxu0 0
        %5713 = vmatprep.subr.bf16.mxu0 0
        %5714 = vmatpush1.bf16.msra.mxu0 0
        %5715 = vmatprep.subr.bf16.mxu0 0
        %5716 = vmatpush1.bf16.msra.mxu0 0
        %5717 = vmatprep.subr.bf16.mxu0 0
        %5718 = vmatpush1.bf16.msra.mxu0 0
        %5719 = vmatprep.subr.bf16.mxu0 0
        %5720 = vmatpush1.bf16.msra.mxu0 0
        %5721 = vmatprep.subr.bf16.mxu0 0
        %5722 = vmatpush1.bf16.msra.mxu0 0
        %5723 = vmatprep.subr.bf16.mxu0 0
        %5724 = vmatpush1.bf16.msra.mxu0 0
        %5725 = vmatprep.subr.bf16.mxu0 0
        %5726 = vmatpush1.bf16.msra.mxu0 %v5661
        %5727 = vmatprep.subr.bf16.mxu0 0
        %5728 = vmatpush2.bf16.msra.mxu0 0
        %5729 = vmatprep.subr.bf16.mxu0 0
        %5730 = vmatpush2.bf16.msra.mxu0 0
        %5731 = vmatprep.subr.bf16.mxu0 0
        %5732 = vmatpush2.bf16.msra.mxu0 0
        %5733 = vmatprep.subr.bf16.mxu0 0
        %5734 = vmatpush2.bf16.msra.mxu0 0
        %5735 = vmatprep.subr.bf16.mxu0 0
        %5736 = vmatpush2.bf16.msra.mxu0 0
        %5737 = vmatprep.subr.bf16.mxu0 0
        %5738 = vmatpush2.bf16.msra.mxu0 0
        %5739 = vmatprep.subr.bf16.mxu0 0
        %5740 = vmatpush2.bf16.msra.mxu0 0
        %5741 = vmatprep.subr.bf16.mxu0 0
        %5742 = vmatpush2.bf16.msra.mxu0 0
        %5743 = vmatprep.mubr.bf16.mxu0 0
        %5744 = vmatmul.mubr.bf16.gmra.mxu0 %v5668
        %v5745 = vpop.f32.mrf.mxu0
        %v5746 = vadd.f32 0.0, %v5745
        %v5747 = vpop.f32.mrf.mxu0
        %v5748 = vpop.f32.mrf.mxu0
        %v5749 = vpop.f32.mrf.mxu0
        %5750 = vdwg.mxu0
        %v5751 = vadd.f32 %v5651, %v5705
        %v5752 = vadd.f32 %v5652, %v5707
        %v5753 = vadd.f32 %v5653, %v5746
        %s5754 = scalar_lea.vmem %s14, 16
        %v5755 = vld [vmem:[%s5754] sm:$0xf]
        %5756 = vrot.lane.b32.xlu0 %v5369, 109
        %v5757 = vpop.permute.xlu0 %5756
        %5758 = vrot.lane.b32.xlu0 %v5370, 109
        %v5759 = vpop.permute.xlu0 %5758
        %5760 = vrot.lane.b32.xlu0 %v5371, 109
        %v5761 = vpop.permute.xlu0 %5760
        %v5762 = vsel %vm1058, %v5757, %v5759
        %v5763 = vsel %vm1058, %v5759, %v5761
        %v5768 = vsel %vm4234, %v5755, 0
        %5770 = vmatprep.subr.bf16.mxu0 0
        %5771 = vmatpush1.bf16.msra.mxu0 0
        %5772 = vmatprep.subr.bf16.mxu0 0
        %5773 = vmatpush1.bf16.msra.mxu0 0
        %5774 = vmatprep.subr.bf16.mxu0 0
        %5775 = vmatpush1.bf16.msra.mxu0 0
        %5776 = vmatprep.subr.bf16.mxu0 0
        %5777 = vmatpush1.bf16.msra.mxu0 0
        %5778 = vmatprep.subr.bf16.mxu0 0
        %5779 = vmatpush1.bf16.msra.mxu0 0
        %5780 = vmatprep.subr.bf16.mxu0 0
        %5781 = vmatpush1.bf16.msra.mxu0 0
        %5782 = vmatprep.subr.bf16.mxu0 0
        %5783 = vmatpush1.bf16.msra.mxu0 0
        %5784 = vmatprep.subr.bf16.mxu0 %v5763
        %5785 = vmatpush1.bf16.msra.mxu0 %v5762
        %5786 = vmatprep.subr.bf16.mxu0 0
        %5787 = vmatpush2.bf16.msra.mxu0 0
        %5788 = vmatprep.subr.bf16.mxu0 0
        %5789 = vmatpush2.bf16.msra.mxu0 0
        %5790 = vmatprep.subr.bf16.mxu0 0
        %5791 = vmatpush2.bf16.msra.mxu0 0
        %5792 = vmatprep.subr.bf16.mxu0 0
        %5793 = vmatpush2.bf16.msra.mxu0 0
        %5794 = vmatprep.subr.bf16.mxu0 0
        %5795 = vmatpush2.bf16.msra.mxu0 0
        %5796 = vmatprep.subr.bf16.mxu0 0
        %5797 = vmatpush2.bf16.msra.mxu0 0
        %5798 = vmatprep.subr.bf16.mxu0 0
        %5799 = vmatpush2.bf16.msra.mxu0 0
        %5800 = vmatprep.subr.bf16.mxu0 0
        %5801 = vmatpush2.bf16.msra.mxu0 0
        %5802 = vmatprep.mubr.bf16.mxu0 0
        %5803 = vmatmul.mubr.bf16.gmra.mxu0 %v5768
        %v5804 = vpop.f32.mrf.mxu0
        %v5805 = vadd.f32 0.0, %v5804
        %v5806 = vpop.f32.mrf.mxu0
        %v5807 = vadd.f32 0.0, %v5806
        %v5808 = vpop.f32.mrf.mxu0
        %v5809 = vpop.f32.mrf.mxu0
        %5810 = vdwg.mxu0
        %5811 = vmatprep.subr.bf16.mxu0 0
        %5812 = vmatpush1.bf16.msra.mxu0 0
        %5813 = vmatprep.subr.bf16.mxu0 0
        %5814 = vmatpush1.bf16.msra.mxu0 0
        %5815 = vmatprep.subr.bf16.mxu0 0
        %5816 = vmatpush1.bf16.msra.mxu0 0
        %5817 = vmatprep.subr.bf16.mxu0 0
        %5818 = vmatpush1.bf16.msra.mxu0 0
        %5819 = vmatprep.subr.bf16.mxu0 0
        %5820 = vmatpush1.bf16.msra.mxu0 0
        %5821 = vmatprep.subr.bf16.mxu0 0
        %5822 = vmatpush1.bf16.msra.mxu0 0
        %5823 = vmatprep.subr.bf16.mxu0 0
        %5824 = vmatpush1.bf16.msra.mxu0 0
        %5825 = vmatprep.subr.bf16.mxu0 0
        %5826 = vmatpush1.bf16.msra.mxu0 %v5761
        %5827 = vmatprep.subr.bf16.mxu0 0
        %5828 = vmatpush2.bf16.msra.mxu0 0
        %5829 = vmatprep.subr.bf16.mxu0 0
        %5830 = vmatpush2.bf16.msra.mxu0 0
        %5831 = vmatprep.subr.bf16.mxu0 0
        %5832 = vmatpush2.bf16.msra.mxu0 0
        %5833 = vmatprep.subr.bf16.mxu0 0
        %5834 = vmatpush2.bf16.msra.mxu0 0
        %5835 = vmatprep.subr.bf16.mxu0 0
        %5836 = vmatpush2.bf16.msra.mxu0 0
        %5837 = vmatprep.subr.bf16.mxu0 0
        %5838 = vmatpush2.bf16.msra.mxu0 0
        %5839 = vmatprep.subr.bf16.mxu0 0
        %5840 = vmatpush2.bf16.msra.mxu0 0
        %5841 = vmatprep.subr.bf16.mxu0 0
        %5842 = vmatpush2.bf16.msra.mxu0 0
        %5843 = vmatprep.mubr.bf16.mxu0 0
        %5844 = vmatmul.mubr.bf16.gmra.mxu0 %v5768
        %v5845 = vpop.f32.mrf.mxu0
        %v5846 = vadd.f32 0.0, %v5845
        %v5847 = vpop.f32.mrf.mxu0
        %v5848 = vpop.f32.mrf.mxu0
        %v5849 = vpop.f32.mrf.mxu0
        %5850 = vdwg.mxu0
        %v5851 = vadd.f32 %v5751, %v5805
        %v5852 = vadd.f32 %v5752, %v5807
        %v5853 = vadd.f32 %v5753, %v5846
        %s5854 = scalar_lea.vmem %s14, 20
        %v5855 = vld [vmem:[%s5854] sm:$0xf]
        %5856 = vrot.lane.b32.xlu0 %v5369, 108
        %v5857 = vpop.permute.xlu0 %5856
        %5858 = vrot.lane.b32.xlu0 %v5370, 108
        %v5859 = vpop.permute.xlu0 %5858
        %5860 = vrot.lane.b32.xlu0 %v5371, 108
        %v5861 = vpop.permute.xlu0 %5860
        %v5862 = vsel %vm1183, %v5857, %v5859
        %v5863 = vsel %vm1183, %v5859, %v5861
        %v5868 = vsel %vm4234, %v5855, 0
        %5870 = vmatprep.subr.bf16.mxu0 0
        %5871 = vmatpush1.bf16.msra.mxu0 0
        %5872 = vmatprep.subr.bf16.mxu0 0
        %5873 = vmatpush1.bf16.msra.mxu0 0
        %5874 = vmatprep.subr.bf16.mxu0 0
        %5875 = vmatpush1.bf16.msra.mxu0 0
        %5876 = vmatprep.subr.bf16.mxu0 0
        %5877 = vmatpush1.bf16.msra.mxu0 0
        %5878 = vmatprep.subr.bf16.mxu0 0
        %5879 = vmatpush1.bf16.msra.mxu0 0
        %5880 = vmatprep.subr.bf16.mxu0 0
        %5881 = vmatpush1.bf16.msra.mxu0 0
        %5882 = vmatprep.subr.bf16.mxu0 0
        %5883 = vmatpush1.bf16.msra.mxu0 0
        %5884 = vmatprep.subr.bf16.mxu0 %v5863
        %5885 = vmatpush1.bf16.msra.mxu0 %v5862
        %5886 = vmatprep.subr.bf16.mxu0 0
        %5887 = vmatpush2.bf16.msra.mxu0 0
        %5888 = vmatprep.subr.bf16.mxu0 0
        %5889 = vmatpush2.bf16.msra.mxu0 0
        %5890 = vmatprep.subr.bf16.mxu0 0
        %5891 = vmatpush2.bf16.msra.mxu0 0
        %5892 = vmatprep.subr.bf16.mxu0 0
        %5893 = vmatpush2.bf16.msra.mxu0 0
        %5894 = vmatprep.subr.bf16.mxu0 0
        %5895 = vmatpush2.bf16.msra.mxu0 0
        %5896 = vmatprep.subr.bf16.mxu0 0
        %5897 = vmatpush2.bf16.msra.mxu0 0
        %5898 = vmatprep.subr.bf16.mxu0 0
        %5899 = vmatpush2.bf16.msra.mxu0 0
        %5900 = vmatprep.subr.bf16.mxu0 0
        %5901 = vmatpush2.bf16.msra.mxu0 0
        %5902 = vmatprep.mubr.bf16.mxu0 0
        %5903 = vmatmul.mubr.bf16.gmra.mxu0 %v5868
        %v5904 = vpop.f32.mrf.mxu0
        %v5905 = vadd.f32 0.0, %v5904
        %v5906 = vpop.f32.mrf.mxu0
        %v5907 = vadd.f32 0.0, %v5906
        %v5908 = vpop.f32.mrf.mxu0
        %v5909 = vpop.f32.mrf.mxu0
        %5910 = vdwg.mxu0
        %5911 = vmatprep.subr.bf16.mxu0 0
        %5912 = vmatpush1.bf16.msra.mxu0 0
        %5913 = vmatprep.subr.bf16.mxu0 0
        %5914 = vmatpush1.bf16.msra.mxu0 0
        %5915 = vmatprep.subr.bf16.mxu0 0
        %5916 = vmatpush1.bf16.msra.mxu0 0
        %5917 = vmatprep.subr.bf16.mxu0 0
        %5918 = vmatpush1.bf16.msra.mxu0 0
        %5919 = vmatprep.subr.bf16.mxu0 0
        %5920 = vmatpush1.bf16.msra.mxu0 0
        %5921 = vmatprep.subr.bf16.mxu0 0
        %5922 = vmatpush1.bf16.msra.mxu0 0
        %5923 = vmatprep.subr.bf16.mxu0 0
        %5924 = vmatpush1.bf16.msra.mxu0 0
        %5925 = vmatprep.subr.bf16.mxu0 0
        %5926 = vmatpush1.bf16.msra.mxu0 %v5861
        %5927 = vmatprep.subr.bf16.mxu0 0
        %5928 = vmatpush2.bf16.msra.mxu0 0
        %5929 = vmatprep.subr.bf16.mxu0 0
        %5930 = vmatpush2.bf16.msra.mxu0 0
        %5931 = vmatprep.subr.bf16.mxu0 0
        %5932 = vmatpush2.bf16.msra.mxu0 0
        %5933 = vmatprep.subr.bf16.mxu0 0
        %5934 = vmatpush2.bf16.msra.mxu0 0
        %5935 = vmatprep.subr.bf16.mxu0 0
        %5936 = vmatpush2.bf16.msra.mxu0 0
        %5937 = vmatprep.subr.bf16.mxu0 0
        %5938 = vmatpush2.bf16.msra.mxu0 0
        %5939 = vmatprep.subr.bf16.mxu0 0
        %5940 = vmatpush2.bf16.msra.mxu0 0
        %5941 = vmatprep.subr.bf16.mxu0 0
        %5942 = vmatpush2.bf16.msra.mxu0 0
        %5943 = vmatprep.mubr.bf16.mxu0 0
        %5944 = vmatmul.mubr.bf16.gmra.mxu0 %v5868
        %v5945 = vpop.f32.mrf.mxu0
        %v5946 = vadd.f32 0.0, %v5945
        %v5947 = vpop.f32.mrf.mxu0
        %v5948 = vpop.f32.mrf.mxu0
        %v5949 = vpop.f32.mrf.mxu0
        %5950 = vdwg.mxu0
        %v5951 = vadd.f32 %v5851, %v5905
        %v5952 = vadd.f32 %v5852, %v5907
        %v5953 = vadd.f32 %v5853, %v5946
        %s5954 = scalar_lea.vmem %s14, 24
        %v5955 = vld [vmem:[%s5954] sm:$0xf]
        %5956 = vrot.lane.b32.xlu0 %v5369, 92
        %v5957 = vpop.permute.xlu0 %5956
        %5958 = vrot.lane.b32.xlu0 %v5370, 92
        %v5959 = vpop.permute.xlu0 %5958
        %5960 = vrot.lane.b32.xlu0 %v5371, 92
        %v5961 = vpop.permute.xlu0 %5960
        %v5962 = vsel %vm1308, %v5957, %v5959
        %v5963 = vsel %vm1308, %v5959, %v5961
        %v5968 = vsel %vm4234, %v5955, 0
        %5970 = vmatprep.subr.bf16.mxu0 0
        %5971 = vmatpush1.bf16.msra.mxu0 0
        %5972 = vmatprep.subr.bf16.mxu0 0
        %5973 = vmatpush1.bf16.msra.mxu0 0
        %5974 = vmatprep.subr.bf16.mxu0 0
        %5975 = vmatpush1.bf16.msra.mxu0 0
        %5976 = vmatprep.subr.bf16.mxu0 0
        %5977 = vmatpush1.bf16.msra.mxu0 0
        %5978 = vmatprep.subr.bf16.mxu0 0
        %5979 = vmatpush1.bf16.msra.mxu0 0
        %5980 = vmatprep.subr.bf16.mxu0 0
        %5981 = vmatpush1.bf16.msra.mxu0 0
        %5982 = vmatprep.subr.bf16.mxu0 0
        %5983 = vmatpush1.bf16.msra.mxu0 0
        %5984 = vmatprep.subr.bf16.mxu0 %v5963
        %5985 = vmatpush1.bf16.msra.mxu0 %v5962
        %5986 = vmatprep.subr.bf16.mxu0 0
        %5987 = vmatpush2.bf16.msra.mxu0 0
        %5988 = vmatprep.subr.bf16.mxu0 0
        %5989 = vmatpush2.bf16.msra.mxu0 0
        %5990 = vmatprep.subr.bf16.mxu0 0
        %5991 = vmatpush2.bf16.msra.mxu0 0
        %5992 = vmatprep.subr.bf16.mxu0 0
        %5993 = vmatpush2.bf16.msra.mxu0 0
        %5994 = vmatprep.subr.bf16.mxu0 0
        %5995 = vmatpush2.bf16.msra.mxu0 0
        %5996 = vmatprep.subr.bf16.mxu0 0
        %5997 = vmatpush2.bf16.msra.mxu0 0
        %5998 = vmatprep.subr.bf16.mxu0 0
        %5999 = vmatpush2.bf16.msra.mxu0 0
        %6000 = vmatprep.subr.bf16.mxu0 0
        %6001 = vmatpush2.bf16.msra.mxu0 0
        %6002 = vmatprep.mubr.bf16.mxu0 0
        %6003 = vmatmul.mubr.bf16.gmra.mxu0 %v5968
        %v6004 = vpop.f32.mrf.mxu0
        %v6005 = vadd.f32 0.0, %v6004
        %v6006 = vpop.f32.mrf.mxu0
        %v6007 = vadd.f32 0.0, %v6006
        %v6008 = vpop.f32.mrf.mxu0
        %v6009 = vpop.f32.mrf.mxu0
        %6010 = vdwg.mxu0
        %6011 = vmatprep.subr.bf16.mxu0 0
        %6012 = vmatpush1.bf16.msra.mxu0 0
        %6013 = vmatprep.subr.bf16.mxu0 0
        %6014 = vmatpush1.bf16.msra.mxu0 0
        %6015 = vmatprep.subr.bf16.mxu0 0
        %6016 = vmatpush1.bf16.msra.mxu0 0
        %6017 = vmatprep.subr.bf16.mxu0 0
        %6018 = vmatpush1.bf16.msra.mxu0 0
        %6019 = vmatprep.subr.bf16.mxu0 0
        %6020 = vmatpush1.bf16.msra.mxu0 0
        %6021 = vmatprep.subr.bf16.mxu0 0
        %6022 = vmatpush1.bf16.msra.mxu0 0
        %6023 = vmatprep.subr.bf16.mxu0 0
        %6024 = vmatpush1.bf16.msra.mxu0 0
        %6025 = vmatprep.subr.bf16.mxu0 0
        %6026 = vmatpush1.bf16.msra.mxu0 %v5961
        %6027 = vmatprep.subr.bf16.mxu0 0
        %6028 = vmatpush2.bf16.msra.mxu0 0
        %6029 = vmatprep.subr.bf16.mxu0 0
        %6030 = vmatpush2.bf16.msra.mxu0 0
        %6031 = vmatprep.subr.bf16.mxu0 0
        %6032 = vmatpush2.bf16.msra.mxu0 0
        %6033 = vmatprep.subr.bf16.mxu0 0
        %6034 = vmatpush2.bf16.msra.mxu0 0
        %6035 = vmatprep.subr.bf16.mxu0 0
        %6036 = vmatpush2.bf16.msra.mxu0 0
        %6037 = vmatprep.subr.bf16.mxu0 0
        %6038 = vmatpush2.bf16.msra.mxu0 0
        %6039 = vmatprep.subr.bf16.mxu0 0
        %6040 = vmatpush2.bf16.msra.mxu0 0
        %6041 = vmatprep.subr.bf16.mxu0 0
        %6042 = vmatpush2.bf16.msra.mxu0 0
        %6043 = vmatprep.mubr.bf16.mxu0 0
        %6044 = vmatmul.mubr.bf16.gmra.mxu0 %v5968
        %v6045 = vpop.f32.mrf.mxu0
        %v6046 = vadd.f32 0.0, %v6045
        %v6047 = vpop.f32.mrf.mxu0
        %v6048 = vpop.f32.mrf.mxu0
        %v6049 = vpop.f32.mrf.mxu0
        %6050 = vdwg.mxu0
        %v6051 = vadd.f32 %v5951, %v6005
        %v6052 = vadd.f32 %v5952, %v6007
        %v6053 = vadd.f32 %v5953, %v6046
        %s6054 = scalar_lea.vmem %s14, 28
        %v6055 = vld [vmem:[%s6054] sm:$0xf]
        %6056 = vrot.lane.b32.xlu0 %v5369, 91
        %v6057 = vpop.permute.xlu0 %6056
        %6058 = vrot.lane.b32.xlu0 %v5370, 91
        %v6059 = vpop.permute.xlu0 %6058
        %6060 = vrot.lane.b32.xlu0 %v5371, 91
        %v6061 = vpop.permute.xlu0 %6060
        %v6062 = vsel %vm1433, %v6057, %v6059
        %v6063 = vsel %vm1433, %v6059, %v6061
        %v6068 = vsel %vm4234, %v6055, 0
        %6070 = vmatprep.subr.bf16.mxu0 0
        %6071 = vmatpush1.bf16.msra.mxu0 0
        %6072 = vmatprep.subr.bf16.mxu0 0
        %6073 = vmatpush1.bf16.msra.mxu0 0
        %6074 = vmatprep.subr.bf16.mxu0 0
        %6075 = vmatpush1.bf16.msra.mxu0 0
        %6076 = vmatprep.subr.bf16.mxu0 0
        %6077 = vmatpush1.bf16.msra.mxu0 0
        %6078 = vmatprep.subr.bf16.mxu0 0
        %6079 = vmatpush1.bf16.msra.mxu0 0
        %6080 = vmatprep.subr.bf16.mxu0 0
        %6081 = vmatpush1.bf16.msra.mxu0 0
        %6082 = vmatprep.subr.bf16.mxu0 0
        %6083 = vmatpush1.bf16.msra.mxu0 0
        %6084 = vmatprep.subr.bf16.mxu0 %v6063
        %6085 = vmatpush1.bf16.msra.mxu0 %v6062
        %6086 = vmatprep.subr.bf16.mxu0 0
        %6087 = vmatpush2.bf16.msra.mxu0 0
        %6088 = vmatprep.subr.bf16.mxu0 0
        %6089 = vmatpush2.bf16.msra.mxu0 0
        %6090 = vmatprep.subr.bf16.mxu0 0
        %6091 = vmatpush2.bf16.msra.mxu0 0
        %6092 = vmatprep.subr.bf16.mxu0 0
        %6093 = vmatpush2.bf16.msra.mxu0 0
        %6094 = vmatprep.subr.bf16.mxu0 0
        %6095 = vmatpush2.bf16.msra.mxu0 0
        %6096 = vmatprep.subr.bf16.mxu0 0
        %6097 = vmatpush2.bf16.msra.mxu0 0
        %6098 = vmatprep.subr.bf16.mxu0 0
        %6099 = vmatpush2.bf16.msra.mxu0 0
        %6100 = vmatprep.subr.bf16.mxu0 0
        %6101 = vmatpush2.bf16.msra.mxu0 0
        %6102 = vmatprep.mubr.bf16.mxu0 0
        %6103 = vmatmul.mubr.bf16.gmra.mxu0 %v6068
        %v6104 = vpop.f32.mrf.mxu0
        %v6105 = vadd.f32 0.0, %v6104
        %v6106 = vpop.f32.mrf.mxu0
        %v6107 = vadd.f32 0.0, %v6106
        %v6108 = vpop.f32.mrf.mxu0
        %v6109 = vpop.f32.mrf.mxu0
        %6110 = vdwg.mxu0
        %6111 = vmatprep.subr.bf16.mxu0 0
        %6112 = vmatpush1.bf16.msra.mxu0 0
        %6113 = vmatprep.subr.bf16.mxu0 0
        %6114 = vmatpush1.bf16.msra.mxu0 0
        %6115 = vmatprep.subr.bf16.mxu0 0
        %6116 = vmatpush1.bf16.msra.mxu0 0
        %6117 = vmatprep.subr.bf16.mxu0 0
        %6118 = vmatpush1.bf16.msra.mxu0 0
        %6119 = vmatprep.subr.bf16.mxu0 0
        %6120 = vmatpush1.bf16.msra.mxu0 0
        %6121 = vmatprep.subr.bf16.mxu0 0
        %6122 = vmatpush1.bf16.msra.mxu0 0
        %6123 = vmatprep.subr.bf16.mxu0 0
        %6124 = vmatpush1.bf16.msra.mxu0 0
        %6125 = vmatprep.subr.bf16.mxu0 0
        %6126 = vmatpush1.bf16.msra.mxu0 %v6061
        %6127 = vmatprep.subr.bf16.mxu0 0
        %6128 = vmatpush2.bf16.msra.mxu0 0
        %6129 = vmatprep.subr.bf16.mxu0 0
        %6130 = vmatpush2.bf16.msra.mxu0 0
        %6131 = vmatprep.subr.bf16.mxu0 0
        %6132 = vmatpush2.bf16.msra.mxu0 0
        %6133 = vmatprep.subr.bf16.mxu0 0
        %6134 = vmatpush2.bf16.msra.mxu0 0
        %6135 = vmatprep.subr.bf16.mxu0 0
        %6136 = vmatpush2.bf16.msra.mxu0 0
        %6137 = vmatprep.subr.bf16.mxu0 0
        %6138 = vmatpush2.bf16.msra.mxu0 0
        %6139 = vmatprep.subr.bf16.mxu0 0
        %6140 = vmatpush2.bf16.msra.mxu0 0
        %6141 = vmatprep.subr.bf16.mxu0 0
        %6142 = vmatpush2.bf16.msra.mxu0 0
        %6143 = vmatprep.mubr.bf16.mxu0 0
        %6144 = vmatmul.mubr.bf16.gmra.mxu0 %v6068
        %v6145 = vpop.f32.mrf.mxu0
        %v6146 = vadd.f32 0.0, %v6145
        %v6147 = vpop.f32.mrf.mxu0
        %v6148 = vpop.f32.mrf.mxu0
        %v6149 = vpop.f32.mrf.mxu0
        %6150 = vdwg.mxu0
        %v6151 = vadd.f32 %v6051, %v6105
        %v6152 = vadd.f32 %v6052, %v6107
        %v6153 = vadd.f32 %v6053, %v6146
        %s6154 = scalar_lea.vmem %s14, 32
        %v6155 = vld [vmem:[%s6154] sm:$0xf]
        %6156 = vrot.lane.b32.xlu0 %v5369, 90
        %v6157 = vpop.permute.xlu0 %6156
        %6158 = vrot.lane.b32.xlu0 %v5370, 90
        %v6159 = vpop.permute.xlu0 %6158
        %6160 = vrot.lane.b32.xlu0 %v5371, 90
        %v6161 = vpop.permute.xlu0 %6160
        %v6162 = vsel %vm1558, %v6157, %v6159
        %v6163 = vsel %vm1558, %v6159, %v6161
        %v6168 = vsel %vm4234, %v6155, 0
        %6170 = vmatprep.subr.bf16.mxu0 0
        %6171 = vmatpush1.bf16.msra.mxu0 0
        %6172 = vmatprep.subr.bf16.mxu0 0
        %6173 = vmatpush1.bf16.msra.mxu0 0
        %6174 = vmatprep.subr.bf16.mxu0 0
        %6175 = vmatpush1.bf16.msra.mxu0 0
        %6176 = vmatprep.subr.bf16.mxu0 0
        %6177 = vmatpush1.bf16.msra.mxu0 0
        %6178 = vmatprep.subr.bf16.mxu0 0
        %6179 = vmatpush1.bf16.msra.mxu0 0
        %6180 = vmatprep.subr.bf16.mxu0 0
        %6181 = vmatpush1.bf16.msra.mxu0 0
        %6182 = vmatprep.subr.bf16.mxu0 0
        %6183 = vmatpush1.bf16.msra.mxu0 0
        %6184 = vmatprep.subr.bf16.mxu0 %v6163
        %6185 = vmatpush1.bf16.msra.mxu0 %v6162
        %6186 = vmatprep.subr.bf16.mxu0 0
        %6187 = vmatpush2.bf16.msra.mxu0 0
        %6188 = vmatprep.subr.bf16.mxu0 0
        %6189 = vmatpush2.bf16.msra.mxu0 0
        %6190 = vmatprep.subr.bf16.mxu0 0
        %6191 = vmatpush2.bf16.msra.mxu0 0
        %6192 = vmatprep.subr.bf16.mxu0 0
        %6193 = vmatpush2.bf16.msra.mxu0 0
        %6194 = vmatprep.subr.bf16.mxu0 0
        %6195 = vmatpush2.bf16.msra.mxu0 0
        %6196 = vmatprep.subr.bf16.mxu0 0
        %6197 = vmatpush2.bf16.msra.mxu0 0
        %6198 = vmatprep.subr.bf16.mxu0 0
        %6199 = vmatpush2.bf16.msra.mxu0 0
        %6200 = vmatprep.subr.bf16.mxu0 0
        %6201 = vmatpush2.bf16.msra.mxu0 0
        %6202 = vmatprep.mubr.bf16.mxu0 0
        %6203 = vmatmul.mubr.bf16.gmra.mxu0 %v6168
        %v6204 = vpop.f32.mrf.mxu0
        %v6205 = vadd.f32 0.0, %v6204
        %v6206 = vpop.f32.mrf.mxu0
        %v6207 = vadd.f32 0.0, %v6206
        %v6208 = vpop.f32.mrf.mxu0
        %v6209 = vpop.f32.mrf.mxu0
        %6210 = vdwg.mxu0
        %6211 = vmatprep.subr.bf16.mxu0 0
        %6212 = vmatpush1.bf16.msra.mxu0 0
        %6213 = vmatprep.subr.bf16.mxu0 0
        %6214 = vmatpush1.bf16.msra.mxu0 0
        %6215 = vmatprep.subr.bf16.mxu0 0
        %6216 = vmatpush1.bf16.msra.mxu0 0
        %6217 = vmatprep.subr.bf16.mxu0 0
        %6218 = vmatpush1.bf16.msra.mxu0 0
        %6219 = vmatprep.subr.bf16.mxu0 0
        %6220 = vmatpush1.bf16.msra.mxu0 0
        %6221 = vmatprep.subr.bf16.mxu0 0
        %6222 = vmatpush1.bf16.msra.mxu0 0
        %6223 = vmatprep.subr.bf16.mxu0 0
        %6224 = vmatpush1.bf16.msra.mxu0 0
        %6225 = vmatprep.subr.bf16.mxu0 0
        %6226 = vmatpush1.bf16.msra.mxu0 %v6161
        %6227 = vmatprep.subr.bf16.mxu0 0
        %6228 = vmatpush2.bf16.msra.mxu0 0
        %6229 = vmatprep.subr.bf16.mxu0 0
        %6230 = vmatpush2.bf16.msra.mxu0 0
        %6231 = vmatprep.subr.bf16.mxu0 0
        %6232 = vmatpush2.bf16.msra.mxu0 0
        %6233 = vmatprep.subr.bf16.mxu0 0
        %6234 = vmatpush2.bf16.msra.mxu0 0
        %6235 = vmatprep.subr.bf16.mxu0 0
        %6236 = vmatpush2.bf16.msra.mxu0 0
        %6237 = vmatprep.subr.bf16.mxu0 0
        %6238 = vmatpush2.bf16.msra.mxu0 0
        %6239 = vmatprep.subr.bf16.mxu0 0
        %6240 = vmatpush2.bf16.msra.mxu0 0
        %6241 = vmatprep.subr.bf16.mxu0 0
        %6242 = vmatpush2.bf16.msra.mxu0 0
        %6243 = vmatprep.mubr.bf16.mxu0 0
        %6244 = vmatmul.mubr.bf16.gmra.mxu0 %v6168
        %v6245 = vpop.f32.mrf.mxu0
        %v6246 = vadd.f32 0.0, %v6245
        %v6247 = vpop.f32.mrf.mxu0
        %v6248 = vpop.f32.mrf.mxu0
        %v6249 = vpop.f32.mrf.mxu0
        %6250 = vdwg.mxu0
        %v6251 = vadd.f32 %v6151, %v6205
        %v6252 = vadd.f32 %v6152, %v6207
        %v6253 = vadd.f32 %v6153, %v6246
        %v6254 = vmul.f32 %v6251, %v1661
        %v6255 = vmul.f32 %v6252, %v1665
        %v6256 = vmul.f32 %v6253, %v1669
        %v6257 = vadd.f32 %v6254, %v6255
        %v6258 = vsel %vm1677, %v6256, 0.0
        %v6259 = vadd.f32 %v6257, %v6258
        %6260 = vadd.xlane.f32.xlu0 %v6259
        %v6261 = vpop.xlane.xlu0 %6260
        %v6262 = vmul.f32 %v6261, 0.00390625
        %v6263 = vmul.f32 %v6254, %v6254
        %v6264 = vmul.f32 %v6255, %v6255
        %v6265 = vmul.f32 %v6256, %v6256
        %v6266 = vadd.f32 %v6263, %v6264
        %v6267 = vsel %vm1677, %v6265, 0.0
        %v6268 = vadd.f32 %v6266, %v6267
        %6269 = vadd.xlane.f32.xlu0 %v6268
        %v6270 = vpop.xlane.xlu0 %6269
        %v6271 = vmul.f32 %v6270, 0.00390625
        %v6272 = vmul.f32 %v6262, %v6262
        %v6273 = vsub.f32 %v6271, %v6272
        %v6274 = vsub.f32 %v6254, %v6262
        %v6275 = vsub.f32 %v6255, %v6262
        %v6276 = vsub.f32 %v6256, %v6262
        %v6277 = vadd.f32 %v6273, 1e-05
        %v6278 = vrsqrt.pop %v6277
        %v6279 = vmul.f32 %v6274, %v6278
        %v6280 = vmul.f32 %v6275, %v6278
        %v6281 = vmul.f32 %v6276, %v6278
        %vm6282 = vcmp.ge.f32.partialorder %v6279, 0.0
        %vm6283 = vcmp.ge.f32.partialorder %v6280, 0.0
        %vm6284 = vcmp.ge.f32.partialorder %v6281, 0.0
        %v6285 = vmul.f32 %v6279, 0.01
        %v6286 = vmul.f32 %v6280, 0.01
        %v6287 = vmul.f32 %v6281, 0.01
        %v6288 = vsel %vm6282, %v6279, %v6285
        %v6289 = vsel %vm6283, %v6280, %v6286
        %v6290 = vsel %vm6284, %v6281, %v6287
        %v6291 = vmul.f32 %v6288, %v1661
        %v6292 = vmul.f32 %v6289, %v1665
        %v6293 = vmul.f32 %v6290, %v1669
        %6294 = vst [vmem:[%s540] sm:$0xff] %v6291
        %6295 = vst [vmem:[%s540 + $0x8] sm:$0xff] %v6292
        %6296 = vst.msk [vmem:[%s540 + $0x10] sm:$0xff] %vm1677, %v6293
        %s6297 = sand.u32 %s367, 1
        %s6298 = scalar_lea.sflag [#allocation5], %s6297
        %s6299 = sand.u32 %s367, 1
        %s6300 = smul.addr %s6299, 16
        %s6301 = scalar_lea.vmem [#allocation4], %s6300
        %s6302 = sand.u32 %s393, 1
        %s6303 = scalar_lea.sflag [#allocation7], %s6302
        %s6304 = sand.u32 %s393, 1
        %s6305 = smul.addr %s6304, 24
        %s6306 = scalar_lea.vmem [#allocation6], %s6305
        // Predicated region
        $region81: #{tpu_custom_call.1} parent=79 // pred_check
          %p6307 = pneg %p377
        $region82: #{tpu_custom_call.1} parent=79 // pred_check_branch
          %6309 = sbr.rel (%p6307) target = $region84
        $region83: #{tpu_custom_call.1} parent=79 // pred_region
          %s6311 = ssub.s32 256, 256
          %6312 = vsyncadd %s6298, %s6311
          %s6313 = smul.addr %s34, 2
          %s6314 = smul.addr %s6313, 128
          %s6315 = scalar_lea.hbm %s15, %s6314
          %s6316 = sshll.u32 %s6301, 4
          %s6317 = int_to_ptr.vmem [resolvable:$true] %s6316
          %6322 = dma.vmem_to_hbm [thread:$0]  %s6317, 256, %s6315, %s6298, 128, 128, 8
        $region84: #{tpu_custom_call.1} parent=79 // pred_fallthru
          _
        // Predicated region
        $region85: #{tpu_custom_call.1} parent=79 // pred_check
          %p6323 = pneg %p403
        $region86: #{tpu_custom_call.1} parent=79 // pred_check_branch
          %6325 = sbr.rel (%p6323) target = $region88
        $region87: #{tpu_custom_call.1} parent=79 // pred_region
          %s6327 = ssub.s32 384, 384
          %6328 = vsyncadd %s6303, %s6327
          %s6329 = smul.addr %s34, 3
          %s6330 = smul.addr %s6329, 128
          %s6331 = scalar_lea.hbm %s16, %s6330
          %s6333 = sshll.u32 %s6306, 4
          %s6334 = int_to_ptr.vmem [resolvable:$true] %s6333
          %6336 = dma.vmem_to_hbm [thread:$0]  %s6334, 384, %s6331, %s6303
        $region88: #{tpu_custom_call.1} parent=79 // pred_fallthru
          _
      $region80: #{tpu_custom_call.1} parent=5 // pred_fallthru
        _
      %p6337 = scmp.le.s32.totalorder 2, %s29
      // Predicated region
      $region89: #{tpu_custom_call.1} parent=5 // pred_check
        %p6338 = pneg %p6337
      $region90: #{tpu_custom_call.1} parent=5 // pred_check_branch
        %6340 = sbr.rel (%p6338) target = $region92
      $region91: #{tpu_custom_call.1} parent=5 // pred_region
        %s6341 = ssub.s32 %s29, 2
        // Predicated region
        $region93: #{tpu_custom_call.1} parent=91 // pred_check
          %p6342 = pneg %p383
        $region94: #{tpu_custom_call.1} parent=91 // pred_check_branch
          %6344 = sbr.rel (%p6342) target = $region96
        $region95: #{tpu_custom_call.1} parent=91 // pred_region
          %s6345 = sand.u32 %s368, 1
          %s6346 = scalar_lea.sflag [#allocation5], %s6345
          %s6347 = sand.u32 %s368, 1
          %s6348 = smul.addr %s6347, 16
          %s6349 = scalar_lea.vmem [#allocation4], %s6348
          %6350 = dma.done %s6346, 256
        $region96: #{tpu_custom_call.1} parent=91 // pred_fallthru
          _
        // Predicated region
        $region97: #{tpu_custom_call.1} parent=91 // pred_check
          %p6351 = pneg %p409
        $region98: #{tpu_custom_call.1} parent=91 // pred_check_branch
          %6353 = sbr.rel (%p6351) target = $region100
        $region99: #{tpu_custom_call.1} parent=91 // pred_region
          %s6354 = sand.u32 %s394, 1
          %s6355 = scalar_lea.sflag [#allocation7], %s6354
          %s6356 = sand.u32 %s394, 1
          %s6357 = smul.addr %s6356, 24
          %s6358 = scalar_lea.vmem [#allocation6], %s6357
          %6359 = dma.done %s6355, 384
        $region100: #{tpu_custom_call.1} parent=91 // pred_fallthru
          _
      $region92: #{tpu_custom_call.1} parent=5 // pred_fallthru
        _
    $region6: #{tpu_custom_call.1} parent=1 // loop_footer
      %s33 = sadd.s32 1, %s29
    $region7: #{tpu_custom_call.1} parent=1 // loop_footer_branch
      %28 = sbr.rel target = $region3
    $region8: #{tpu_custom_call.1} parent=1 // loop_exit
      _
    %6360 = vsyncpa [#allocation5], 1
    %s6361 = scalar_lea.sflag [#allocation5], 1
    %6362 = vsyncpa %s6361, 1
    %6363 = vsyncpa [#allocation7], 1
    %s6364 = scalar_lea.sflag [#allocation7], 1
    %6365 = vsyncpa %s6364, 1

</llo_original>
